<compile_context>
chip_gen: v5e
topology: v5e:2x2
jax: 0.10.0
libtpu: 0.0.40
codegen_flags: <defaults>
</compile_context>

<pallas_src>
import math
from functools import partial

import jax
import jax.numpy as jnp
from jax.experimental import pallas as pl
from jax.experimental.pallas import tpu as pltpu

C_PAD = 8      # channel padding (sublane axis); all channel counts here are <= 8
KVOL = 27      # 3x3x3 taps
EPS = 1e-5     # InstanceNorm3d default eps


def _round_up(x, m):
    return ((x + m - 1) // m) * m


# ----------------------------------------------------------------------------
# Fused Pallas kernel: shift-conv (sign=+1) or shift-conv-transpose (sign=-1)
# + InstanceNorm3d(affine) + PReLU (+ optional fused "x + global avg pool" output).
# ----------------------------------------------------------------------------
def _make_layer_kernel(num_inputs, offsets, sign, count, out_start, p_t, pbuf, emit_gap):
    inv_count = 1.0 / float(count)
    tail = pbuf - out_start - p_t

    def kernel(*refs):
        x_refs = refs[:num_inputs]                    # each (C_PAD, pbuf)  bf16
        w_refs = refs[num_inputs:2 * num_inputs]      # each (KVOL*C_PAD, C_PAD) f32
        mask_ref = refs[2 * num_inputs]               # (1, p_t)  f32
        gba_ref = refs[2 * num_inputs + 1]            # (C_PAD, 3) f32
        out_refs = refs[2 * num_inputs + 2:]          # 1 or 2 x (C_PAD, pbuf) bf16

        # Conv as 27 statically shifted slices x tiny (Cout, Cin) MXU matmuls,
        # accumulated in f32.  (No HBM im2col; slices come from the VMEM slab.)
        acc = jnp.zeros((C_PAD, p_t), jnp.float32)
        for i in range(num_inputs):
            xv = x_refs[i][...]                       # (C_PAD, pbuf) bf16, one VMEM load
            w_ref = w_refs[i]
            for k, off in enumerate(offsets):
                start = out_start + sign * off
                slab = xv[:, start:start + p_t]                              # (8, p_t)
                wk = w_ref[k * C_PAD:(k + 1) * C_PAD, :].astype(jnp.bfloat16)  # (8, 8)
                acc = acc + jnp.dot(wk, slab, preferred_element_type=jnp.float32)

        # InstanceNorm over the valid spatial positions only (mask), per channel.
        mask = mask_ref[...]
        mean = jnp.sum(acc * mask, axis=1, keepdims=True) * inv_count
        centered = acc - mean
        var = jnp.sum(jnp.square(centered) * mask, axis=1, keepdims=True) * inv_count
        gba = gba_ref[...]
        gamma, beta, alpha = gba[:, 0:1], gba[:, 1:2], gba[:, 2:3]
        y = centered * jax.lax.rsqrt(var + EPS) * gamma + beta
        y = jnp.where(y >= 0.0, y, alpha * y)          # PReLU (per-channel alpha)
        y = y * mask                                   # keep out-of-box positions at 0

        def store(ref, vals):
            # full-buffer, 128-aligned, lane-dense stores (zero halos rewritten)
            ref[:, :out_start] = jnp.zeros((C_PAD, out_start), ref.dtype)
            ref[:, out_start:out_start + p_t] = vals.astype(ref.dtype)
            ref[:, out_start + p_t:] = jnp.zeros((C_PAD, tail), ref.dtype)

        store(out_refs[0], y)                          # layer output (skip path)
        if emit_gap:
            gap = jnp.sum(y, axis=1, keepdims=True) * inv_count
            store(out_refs[1], y + gap * mask)         # feature + adaptive_avg_pool3d

    return kernel


def _run_layer(inputs, weights, gba, mask, *, sign, count, emit_gap,
               pbuf, p_t, out_start, offsets):
    n = inputs[0].shape[0]
    ni = len(inputs)
    kernel = _make_layer_kernel(ni, offsets, sign, count, out_start, p_t, pbuf, emit_gap)

    feat_spec = pl.BlockSpec((None, C_PAD, pbuf), lambda b: (b, 0, 0))
    in_specs = ([feat_spec] * ni +
                [pl.BlockSpec((KVOL * C_PAD, C_PAD), lambda b: (0, 0))] * ni +
                [pl.BlockSpec((1, p_t), lambda b: (0, 0)),
                 pl.BlockSpec((C_PAD, 3), lambda b: (0, 0))])
    out_sds = jax.ShapeDtypeStruct((n, C_PAD, pbuf), jnp.bfloat16)
    if emit_gap:
        out_shape = (out_sds, out_sds)
        out_specs = (feat_spec, feat_spec)
    else:
        out_shape = out_sds
        out_specs = feat_spec

    return pl.pallas_call(
        kernel,
        out_shape=out_shape,
        grid=(n,),
        in_specs=in_specs,
        out_specs=out_specs,
        compiler_params=pltpu.CompilerParams(dimension_semantics=("parallel",)),
    )(*inputs, *weights, mask, gba)


# ----------------------------------------------------------------------------
# Parameter construction + one-time prepacking (hoisted out of the forward pass)
# ----------------------------------------------------------------------------
def _pack_conv_weight(w_tap_co_ci):
    """(27, Cout, Cin) tap-major weight -> zero-padded (27*8, 8) f32; rows=(tap,co), cols=ci."""
    kk, co, ci = w_tap_co_ci.shape
    assert kk == KVOL and co <= C_PAD and ci <= C_PAD
    w = jnp.pad(w_tap_co_ci, ((0, 0), (0, C_PAD - co), (0, C_PAD - ci)))
    return w.reshape(KVOL * C_PAD, C_PAD).astype(jnp.float32)


def _pack_gba(gamma, beta, alpha):
    """Pack gamma/beta/alpha (Cout,) into one (8, 3) f32 array (rows=channel)."""
    co = gamma.shape[0]
    g = jnp.pad(gamma, (0, C_PAD - co), constant_values=1.0)
    b = jnp.pad(beta, (0, C_PAD - co))
    a = jnp.pad(alpha, (0, C_PAD - co))
    return jnp.stack([g, b, a], axis=1).astype(jnp.float32)


def init_unet_mini_params(key, in_channel, d_channel, num_level):
    """Deterministic params matching UNetMini's module shapes, prepacked for the kernels."""
    enc = []
    c = in_channel
    for _ in range(num_level):
        co = c + d_channel
        key, kw = jax.random.split(key)
        # torch.nn.Conv3d weight (Cout, Cin, 3, 3, 3), bias=False
        w = jax.random.normal(kw, (co, c, 3, 3, 3), jnp.float32) / math.sqrt(c * 27)
        w_tap = jnp.transpose(w, (2, 3, 4, 0, 1)).reshape(KVOL, co, c)      # (tap, co, ci)
        enc.append(dict(
            cin=c, cout=co,
            w_packed=_pack_conv_weight(w_tap),
            gba=_pack_gba(jnp.ones((co,), jnp.float32),
                          jnp.zeros((co,), jnp.float32),
                          jnp.full((co,), 0.25, jnp.float32)),
        ))
        c = co

    dec = []
    cin_d = c
    for l_n in range(num_level - 1, -1, -1):
        c_skip = enc[l_n]["cout"]
        cin_total = cin_d + c_skip
        cout = enc[l_n]["cin"]
        key, kw = jax.random.split(key)
        # torch.nn.ConvTranspose3d weight (Cin, Cout, 3, 3, 3), bias=False
        w = jax.random.normal(kw, (cin_total, cout, 3, 3, 3), jnp.float32) / math.sqrt(cin_total * 27)
        # torch.cat([feature, skip], dim=1): rows [0, cin_d) -> feature, rest -> skip
        w_feat = jnp.transpose(w[:cin_d], (2, 3, 4, 1, 0)).reshape(KVOL, cout, cin_d)
        w_skip = jnp.transpose(w[cin_d:], (2, 3, 4, 1, 0)).reshape(KVOL, cout, c_skip)
        dec.append(dict(
            cin_feat=cin_d, cin_skip=c_skip, cout=cout,
            w_feat_packed=_pack_conv_weight(w_feat),
            w_skip_packed=_pack_conv_weight(w_skip),
            gba=_pack_gba(jnp.ones((cout,), jnp.float32),
                          jnp.zeros((cout,), jnp.float32),
                          jnp.full((cout,), 0.25, jnp.float32)),
        ))
        cin_d = cout

    return dict(enc=enc, dec=dec, num_level=num_level, out_channel=cin_d)


# ----------------------------------------------------------------------------
# Forward pass (semantics of UNetMini.forward with dropout_rate=0 / eval mode)
# ----------------------------------------------------------------------------
def unet_mini_forward(x_ncdhw, params):
    n, cin, d, h, w = x_ncdhw.shape
    assert cin <= C_PAD
    grid_sz = d * h * w
    o_max = 2 * (h * w + w + 1)                 # largest 3x3x3 tap offset on the flat grid
    pad_l = _round_up(o_max, 128)               # left zero halo (decoder reads)
    p_t = _round_up(grid_sz, 128)               # 128-aligned compute window
    pbuf = _round_up(pad_l + p_t + o_max, 128)  # full buffer (right halo for encoder reads)
    offsets = tuple(kz * h * w + ky * w + kx
                    for kz in range(3) for ky in range(3) for kx in range(3))

    def make_mask(do, ho, wo):
        p = jnp.arange(p_t)
        z = p // (h * w)
        r = p % (h * w)
        yy = r // w
        xx = r % w
        valid = (p < grid_sz) & (z < do) & (yy < ho) & (xx < wo)
        return valid.astype(jnp.float32).reshape(1, p_t)

    run = partial(_run_layer, pbuf=pbuf, p_t=p_t, out_start=pad_l, offsets=offsets)

    # Pack NCDHW input into the shared flattened-grid buffer layout:
    # (N, C_PAD, pbuf) bf16, channels zero-padded, grid at columns [pad_l, pad_l+grid).
    x = x_ncdhw.astype(jnp.float32).reshape(n, cin, grid_sz)
    buf = jnp.pad(x, ((0, 0), (0, C_PAD - cin),
                      (pad_l, pbuf - pad_l - grid_sz))).astype(jnp.bfloat16)

    num_level = params["num_level"]
    dims = (d, h, w)
    skips = []
    for li, ep in enumerate(params["enc"]):
        do, ho, wo = dims[0] - 2, dims[1] - 2, dims[2] - 2   # valid conv shrinks by 2
        last = li == num_level - 1
        res = run([buf], [ep["w_packed"]], ep["gba"], make_mask(do, ho, wo),
                  sign=+1, count=do * ho * wo, emit_gap=last)
        if last:
            skip, buf = res        # pre-GAP feature (skip), GAP-added feature
        else:
            skip = buf = res
        skips.append(skip)
        dims = (do, ho, wo)

    for i, dp in enumerate(params["dec"]):
        l_n = num_level - 1 - i
        do, ho, wo = dims[0] + 2, dims[1] + 2, dims[2] + 2   # full conv-transpose grows by 2
        buf = run([buf, skips[l_n]],
                  [dp["w_feat_packed"], dp["w_skip_packed"]],
                  dp["gba"], make_mask(do, ho, wo),
                  sign=-1, count=do * ho * wo, emit_gap=False)
        dims = (do, ho, wo)

    assert dims == (d, h, w)
    cout = params["out_channel"]
    out = buf[:, :cout, pad_l:pad_l + grid_sz].astype(jnp.float32)
    return out.reshape(n, cout, d, h, w)      # NCDHW, like PyTorch


# ----------------------------------------------------------------------------
if __name__ == "__main__":
    # Small config: in_channel=2, d_channel=2, num_level=2, spatial 12^3, batch 2.
    IN_C, D_C, NUM_LEVEL = 2, 2, 2
    N, D, H, W = 2, 12, 12, 12

    key = jax.random.PRNGKey(0)
    key, kx = jax.random.split(key)
    x = jax.random.normal(kx, (N, IN_C, D, H, W), jnp.float32)   # NCDHW like PyTorch

    params = init_unet_mini_params(key, IN_C, D_C, NUM_LEVEL)

    out = unet_mini_forward(x, params)
    out = jax.block_until_ready(out)

    # UNetMini returns same spatial size as input, out_channel == encoder[0].in_channel
    assert out.shape == (N, IN_C, D, H, W), out.shape
    assert bool(jnp.all(jnp.isfinite(out)))
    print("KERNEL_OK")
</pallas_src>

<mosaic_0001>
module attributes {stable_mosaic.version = 11 : i64} {
  func.func @kernel(%arg0: i32, %arg1: memref<1x8x2560xbf16, #tpu.memory_space<vmem>>, %arg2: memref<216x8xf32, #tpu.memory_space<vmem>>, %arg3: memref<1x1792xf32, #tpu.memory_space<vmem>>, %arg4: memref<8x3xf32, #tpu.memory_space<vmem>>, %arg5: memref<1x8x2560xbf16, #tpu.memory_space<vmem>>) attributes {dimension_semantics = [#tpu.dimension_semantics<parallel>], iteration_bounds = array<i64: 2>, scalar_prefetch = 0 : i64, scratch_operands = 0 : i64, tpu.core_type = #tpu.core_type<tc>, window_params = [{transform_indices = @transform_0, window_bounds = array<i64: 1, 8, 2560>}, {pipeline_mode = #tpu.pipeline_mode<synchronous>, transform_indices = @transform_1, window_bounds = array<i64: 216, 8>}, {pipeline_mode = #tpu.pipeline_mode<synchronous>, transform_indices = @transform_2, window_bounds = array<i64: 1, 1792>}, {pipeline_mode = #tpu.pipeline_mode<synchronous>, transform_indices = @transform_3, window_bounds = array<i64: 8, 3>}, {transform_indices = @transform_4, window_bounds = array<i64: 1, 8, 2560>}]} {
    %cst = arith.constant 0.000000e+00 : f32
    %0 = vector.broadcast %cst : f32 to vector<8x1792xf32>
    %c0 = arith.constant 0 : index
    %c0_0 = arith.constant 0 : index
    %c0_1 = arith.constant 0 : index
    %1 = vector.load %arg1[%c0, %c0_0, %c0_1] : memref<1x8x2560xbf16, #tpu.memory_space<vmem>>, vector<1x8x2560xbf16>
    %2 = vector.shape_cast %1 : vector<1x8x2560xbf16> to vector<8x2560xbf16>
    %3 = vector.extract_strided_slice %2 {offsets = [0, 384], sizes = [8, 1792], strides = [1, 1]} : vector<8x2560xbf16> to vector<8x1792xbf16>
    %c0_2 = arith.constant 0 : index
    %c0_3 = arith.constant 0 : index
    %4 = vector.load %arg2[%c0_2, %c0_3] : memref<216x8xf32, #tpu.memory_space<vmem>>, vector<8x8xf32>
    %5 = arith.truncf %4 : vector<8x8xf32> to vector<8x8xbf16>
    %cst_4 = arith.constant dense<0.000000e+00> : vector<8x1792xf32>
    %6 = tpu.matmul %5, %3, %cst_4 {dimension_numbers = #tpu.dot_dimension_numbers<[1], [0], [0], [1], [0, 0, 1, 1], [], []>} : vector<8x8xbf16>, vector<8x1792xbf16>, vector<8x1792xf32> -> vector<8x1792xf32>
    %7 = arith.addf %0, %6 : vector<8x1792xf32>
    %8 = vector.extract_strided_slice %2 {offsets = [0, 385], sizes = [8, 1792], strides = [1, 1]} : vector<8x2560xbf16> to vector<8x1792xbf16>
    %c8 = arith.constant 8 : index
    %c0_5 = arith.constant 0 : index
    %9 = vector.load %arg2[%c8, %c0_5] : memref<216x8xf32, #tpu.memory_space<vmem>>, vector<8x8xf32>
    %10 = arith.truncf %9 : vector<8x8xf32> to vector<8x8xbf16>
    %cst_6 = arith.constant dense<0.000000e+00> : vector<8x1792xf32>
    %11 = tpu.matmul %10, %8, %cst_6 {dimension_numbers = #tpu.dot_dimension_numbers<[1], [0], [0], [1], [0, 0, 1, 1], [], []>} : vector<8x8xbf16>, vector<8x1792xbf16>, vector<8x1792xf32> -> vector<8x1792xf32>
    %12 = arith.addf %7, %11 : vector<8x1792xf32>
    %13 = vector.extract_strided_slice %2 {offsets = [0, 386], sizes = [8, 1792], strides = [1, 1]} : vector<8x2560xbf16> to vector<8x1792xbf16>
    %c16 = arith.constant 16 : index
    %c0_7 = arith.constant 0 : index
    %14 = vector.load %arg2[%c16, %c0_7] : memref<216x8xf32, #tpu.memory_space<vmem>>, vector<8x8xf32>
    %15 = arith.truncf %14 : vector<8x8xf32> to vector<8x8xbf16>
    %cst_8 = arith.constant dense<0.000000e+00> : vector<8x1792xf32>
    %16 = tpu.matmul %15, %13, %cst_8 {dimension_numbers = #tpu.dot_dimension_numbers<[1], [0], [0], [1], [0, 0, 1, 1], [], []>} : vector<8x8xbf16>, vector<8x1792xbf16>, vector<8x1792xf32> -> vector<8x1792xf32>
    %17 = arith.addf %12, %16 : vector<8x1792xf32>
    %18 = vector.extract_strided_slice %2 {offsets = [0, 396], sizes = [8, 1792], strides = [1, 1]} : vector<8x2560xbf16> to vector<8x1792xbf16>
    %c24 = arith.constant 24 : index
    %c0_9 = arith.constant 0 : index
    %19 = vector.load %arg2[%c24, %c0_9] : memref<216x8xf32, #tpu.memory_space<vmem>>, vector<8x8xf32>
    %20 = arith.truncf %19 : vector<8x8xf32> to vector<8x8xbf16>
    %cst_10 = arith.constant dense<0.000000e+00> : vector<8x1792xf32>
    %21 = tpu.matmul %20, %18, %cst_10 {dimension_numbers = #tpu.dot_dimension_numbers<[1], [0], [0], [1], [0, 0, 1, 1], [], []>} : vector<8x8xbf16>, vector<8x1792xbf16>, vector<8x1792xf32> -> vector<8x1792xf32>
    %22 = arith.addf %17, %21 : vector<8x1792xf32>
    %23 = vector.extract_strided_slice %2 {offsets = [0, 397], sizes = [8, 1792], strides = [1, 1]} : vector<8x2560xbf16> to vector<8x1792xbf16>
    %c32 = arith.constant 32 : index
    %c0_11 = arith.constant 0 : index
    %24 = vector.load %arg2[%c32, %c0_11] : memref<216x8xf32, #tpu.memory_space<vmem>>, vector<8x8xf32>
    %25 = arith.truncf %24 : vector<8x8xf32> to vector<8x8xbf16>
    %cst_12 = arith.constant dense<0.000000e+00> : vector<8x1792xf32>
    %26 = tpu.matmul %25, %23, %cst_12 {dimension_numbers = #tpu.dot_dimension_numbers<[1], [0], [0], [1], [0, 0, 1, 1], [], []>} : vector<8x8xbf16>, vector<8x1792xbf16>, vector<8x1792xf32> -> vector<8x1792xf32>
    %27 = arith.addf %22, %26 : vector<8x1792xf32>
    %28 = vector.extract_strided_slice %2 {offsets = [0, 398], sizes = [8, 1792], strides = [1, 1]} : vector<8x2560xbf16> to vector<8x1792xbf16>
    %c40 = arith.constant 40 : index
    %c0_13 = arith.constant 0 : index
    %29 = vector.load %arg2[%c40, %c0_13] : memref<216x8xf32, #tpu.memory_space<vmem>>, vector<8x8xf32>
    %30 = arith.truncf %29 : vector<8x8xf32> to vector<8x8xbf16>
    %cst_14 = arith.constant dense<0.000000e+00> : vector<8x1792xf32>
    %31 = tpu.matmul %30, %28, %cst_14 {dimension_numbers = #tpu.dot_dimension_numbers<[1], [0], [0], [1], [0, 0, 1, 1], [], []>} : vector<8x8xbf16>, vector<8x1792xbf16>, vector<8x1792xf32> -> vector<8x1792xf32>
    %32 = arith.addf %27, %31 : vector<8x1792xf32>
    %33 = vector.extract_strided_slice %2 {offsets = [0, 408], sizes = [8, 1792], strides = [1, 1]} : vector<8x2560xbf16> to vector<8x1792xbf16>
    %c48 = arith.constant 48 : index
    %c0_15 = arith.constant 0 : index
    %34 = vector.load %arg2[%c48, %c0_15] : memref<216x8xf32, #tpu.memory_space<vmem>>, vector<8x8xf32>
    %35 = arith.truncf %34 : vector<8x8xf32> to vector<8x8xbf16>
    %cst_16 = arith.constant dense<0.000000e+00> : vector<8x1792xf32>
    %36 = tpu.matmul %35, %33, %cst_16 {dimension_numbers = #tpu.dot_dimension_numbers<[1], [0], [0], [1], [0, 0, 1, 1], [], []>} : vector<8x8xbf16>, vector<8x1792xbf16>, vector<8x1792xf32> -> vector<8x1792xf32>
    %37 = arith.addf %32, %36 : vector<8x1792xf32>
    %38 = vector.extract_strided_slice %2 {offsets = [0, 409], sizes = [8, 1792], strides = [1, 1]} : vector<8x2560xbf16> to vector<8x1792xbf16>
    %c56 = arith.constant 56 : index
    %c0_17 = arith.constant 0 : index
    %39 = vector.load %arg2[%c56, %c0_17] : memref<216x8xf32, #tpu.memory_space<vmem>>, vector<8x8xf32>
    %40 = arith.truncf %39 : vector<8x8xf32> to vector<8x8xbf16>
    %cst_18 = arith.constant dense<0.000000e+00> : vector<8x1792xf32>
    %41 = tpu.matmul %40, %38, %cst_18 {dimension_numbers = #tpu.dot_dimension_numbers<[1], [0], [0], [1], [0, 0, 1, 1], [], []>} : vector<8x8xbf16>, vector<8x1792xbf16>, vector<8x1792xf32> -> vector<8x1792xf32>
    %42 = arith.addf %37, %41 : vector<8x1792xf32>
    %43 = vector.extract_strided_slice %2 {offsets = [0, 410], sizes = [8, 1792], strides = [1, 1]} : vector<8x2560xbf16> to vector<8x1792xbf16>
    %c64 = arith.constant 64 : index
    %c0_19 = arith.constant 0 : index
    %44 = vector.load %arg2[%c64, %c0_19] : memref<216x8xf32, #tpu.memory_space<vmem>>, vector<8x8xf32>
    %45 = arith.truncf %44 : vector<8x8xf32> to vector<8x8xbf16>
    %cst_20 = arith.constant dense<0.000000e+00> : vector<8x1792xf32>
    %46 = tpu.matmul %45, %43, %cst_20 {dimension_numbers = #tpu.dot_dimension_numbers<[1], [0], [0], [1], [0, 0, 1, 1], [], []>} : vector<8x8xbf16>, vector<8x1792xbf16>, vector<8x1792xf32> -> vector<8x1792xf32>
    %47 = arith.addf %42, %46 : vector<8x1792xf32>
    %48 = vector.extract_strided_slice %2 {offsets = [0, 528], sizes = [8, 1792], strides = [1, 1]} : vector<8x2560xbf16> to vector<8x1792xbf16>
    %c72 = arith.constant 72 : index
    %c0_21 = arith.constant 0 : index
    %49 = vector.load %arg2[%c72, %c0_21] : memref<216x8xf32, #tpu.memory_space<vmem>>, vector<8x8xf32>
    %50 = arith.truncf %49 : vector<8x8xf32> to vector<8x8xbf16>
    %cst_22 = arith.constant dense<0.000000e+00> : vector<8x1792xf32>
    %51 = tpu.matmul %50, %48, %cst_22 {dimension_numbers = #tpu.dot_dimension_numbers<[1], [0], [0], [1], [0, 0, 1, 1], [], []>} : vector<8x8xbf16>, vector<8x1792xbf16>, vector<8x1792xf32> -> vector<8x1792xf32>
    %52 = arith.addf %47, %51 : vector<8x1792xf32>
    %53 = vector.extract_strided_slice %2 {offsets = [0, 529], sizes = [8, 1792], strides = [1, 1]} : vector<8x2560xbf16> to vector<8x1792xbf16>
    %c80 = arith.constant 80 : index
    %c0_23 = arith.constant 0 : index
    %54 = vector.load %arg2[%c80, %c0_23] : memref<216x8xf32, #tpu.memory_space<vmem>>, vector<8x8xf32>
    %55 = arith.truncf %54 : vector<8x8xf32> to vector<8x8xbf16>
    %cst_24 = arith.constant dense<0.000000e+00> : vector<8x1792xf32>
    %56 = tpu.matmul %55, %53, %cst_24 {dimension_numbers = #tpu.dot_dimension_numbers<[1], [0], [0], [1], [0, 0, 1, 1], [], []>} : vector<8x8xbf16>, vector<8x1792xbf16>, vector<8x1792xf32> -> vector<8x1792xf32>
    %57 = arith.addf %52, %56 : vector<8x1792xf32>
    %58 = vector.extract_strided_slice %2 {offsets = [0, 530], sizes = [8, 1792], strides = [1, 1]} : vector<8x2560xbf16> to vector<8x1792xbf16>
    %c88 = arith.constant 88 : index
    %c0_25 = arith.constant 0 : index
    %59 = vector.load %arg2[%c88, %c0_25] : memref<216x8xf32, #tpu.memory_space<vmem>>, vector<8x8xf32>
    %60 = arith.truncf %59 : vector<8x8xf32> to vector<8x8xbf16>
    %cst_26 = arith.constant dense<0.000000e+00> : vector<8x1792xf32>
    %61 = tpu.matmul %60, %58, %cst_26 {dimension_numbers = #tpu.dot_dimension_numbers<[1], [0], [0], [1], [0, 0, 1, 1], [], []>} : vector<8x8xbf16>, vector<8x1792xbf16>, vector<8x1792xf32> -> vector<8x1792xf32>
    %62 = arith.addf %57, %61 : vector<8x1792xf32>
    %63 = vector.extract_strided_slice %2 {offsets = [0, 540], sizes = [8, 1792], strides = [1, 1]} : vector<8x2560xbf16> to vector<8x1792xbf16>
    %c96 = arith.constant 96 : index
    %c0_27 = arith.constant 0 : index
    %64 = vector.load %arg2[%c96, %c0_27] : memref<216x8xf32, #tpu.memory_space<vmem>>, vector<8x8xf32>
    %65 = arith.truncf %64 : vector<8x8xf32> to vector<8x8xbf16>
    %cst_28 = arith.constant dense<0.000000e+00> : vector<8x1792xf32>
    %66 = tpu.matmul %65, %63, %cst_28 {dimension_numbers = #tpu.dot_dimension_numbers<[1], [0], [0], [1], [0, 0, 1, 1], [], []>} : vector<8x8xbf16>, vector<8x1792xbf16>, vector<8x1792xf32> -> vector<8x1792xf32>
    %67 = arith.addf %62, %66 : vector<8x1792xf32>
    %68 = vector.extract_strided_slice %2 {offsets = [0, 541], sizes = [8, 1792], strides = [1, 1]} : vector<8x2560xbf16> to vector<8x1792xbf16>
    %c104 = arith.constant 104 : index
    %c0_29 = arith.constant 0 : index
    %69 = vector.load %arg2[%c104, %c0_29] : memref<216x8xf32, #tpu.memory_space<vmem>>, vector<8x8xf32>
    %70 = arith.truncf %69 : vector<8x8xf32> to vector<8x8xbf16>
    %cst_30 = arith.constant dense<0.000000e+00> : vector<8x1792xf32>
    %71 = tpu.matmul %70, %68, %cst_30 {dimension_numbers = #tpu.dot_dimension_numbers<[1], [0], [0], [1], [0, 0, 1, 1], [], []>} : vector<8x8xbf16>, vector<8x1792xbf16>, vector<8x1792xf32> -> vector<8x1792xf32>
    %72 = arith.addf %67, %71 : vector<8x1792xf32>
    %73 = vector.extract_strided_slice %2 {offsets = [0, 542], sizes = [8, 1792], strides = [1, 1]} : vector<8x2560xbf16> to vector<8x1792xbf16>
    %c112 = arith.constant 112 : index
    %c0_31 = arith.constant 0 : index
    %74 = vector.load %arg2[%c112, %c0_31] : memref<216x8xf32, #tpu.memory_space<vmem>>, vector<8x8xf32>
    %75 = arith.truncf %74 : vector<8x8xf32> to vector<8x8xbf16>
    %cst_32 = arith.constant dense<0.000000e+00> : vector<8x1792xf32>
    %76 = tpu.matmul %75, %73, %cst_32 {dimension_numbers = #tpu.dot_dimension_numbers<[1], [0], [0], [1], [0, 0, 1, 1], [], []>} : vector<8x8xbf16>, vector<8x1792xbf16>, vector<8x1792xf32> -> vector<8x1792xf32>
    %77 = arith.addf %72, %76 : vector<8x1792xf32>
    %78 = vector.extract_strided_slice %2 {offsets = [0, 552], sizes = [8, 1792], strides = [1, 1]} : vector<8x2560xbf16> to vector<8x1792xbf16>
    %c120 = arith.constant 120 : index
    %c0_33 = arith.constant 0 : index
    %79 = vector.load %arg2[%c120, %c0_33] : memref<216x8xf32, #tpu.memory_space<vmem>>, vector<8x8xf32>
    %80 = arith.truncf %79 : vector<8x8xf32> to vector<8x8xbf16>
    %cst_34 = arith.constant dense<0.000000e+00> : vector<8x1792xf32>
    %81 = tpu.matmul %80, %78, %cst_34 {dimension_numbers = #tpu.dot_dimension_numbers<[1], [0], [0], [1], [0, 0, 1, 1], [], []>} : vector<8x8xbf16>, vector<8x1792xbf16>, vector<8x1792xf32> -> vector<8x1792xf32>
    %82 = arith.addf %77, %81 : vector<8x1792xf32>
    %83 = vector.extract_strided_slice %2 {offsets = [0, 553], sizes = [8, 1792], strides = [1, 1]} : vector<8x2560xbf16> to vector<8x1792xbf16>
    %c128 = arith.constant 128 : index
    %c0_35 = arith.constant 0 : index
    %84 = vector.load %arg2[%c128, %c0_35] : memref<216x8xf32, #tpu.memory_space<vmem>>, vector<8x8xf32>
    %85 = arith.truncf %84 : vector<8x8xf32> to vector<8x8xbf16>
    %cst_36 = arith.constant dense<0.000000e+00> : vector<8x1792xf32>
    %86 = tpu.matmul %85, %83, %cst_36 {dimension_numbers = #tpu.dot_dimension_numbers<[1], [0], [0], [1], [0, 0, 1, 1], [], []>} : vector<8x8xbf16>, vector<8x1792xbf16>, vector<8x1792xf32> -> vector<8x1792xf32>
    %87 = arith.addf %82, %86 : vector<8x1792xf32>
    %88 = vector.extract_strided_slice %2 {offsets = [0, 554], sizes = [8, 1792], strides = [1, 1]} : vector<8x2560xbf16> to vector<8x1792xbf16>
    %c136 = arith.constant 136 : index
    %c0_37 = arith.constant 0 : index
    %89 = vector.load %arg2[%c136, %c0_37] : memref<216x8xf32, #tpu.memory_space<vmem>>, vector<8x8xf32>
    %90 = arith.truncf %89 : vector<8x8xf32> to vector<8x8xbf16>
    %cst_38 = arith.constant dense<0.000000e+00> : vector<8x1792xf32>
    %91 = tpu.matmul %90, %88, %cst_38 {dimension_numbers = #tpu.dot_dimension_numbers<[1], [0], [0], [1], [0, 0, 1, 1], [], []>} : vector<8x8xbf16>, vector<8x1792xbf16>, vector<8x1792xf32> -> vector<8x1792xf32>
    %92 = arith.addf %87, %91 : vector<8x1792xf32>
    %93 = vector.extract_strided_slice %2 {offsets = [0, 672], sizes = [8, 1792], strides = [1, 1]} : vector<8x2560xbf16> to vector<8x1792xbf16>
    %c144 = arith.constant 144 : index
    %c0_39 = arith.constant 0 : index
    %94 = vector.load %arg2[%c144, %c0_39] : memref<216x8xf32, #tpu.memory_space<vmem>>, vector<8x8xf32>
    %95 = arith.truncf %94 : vector<8x8xf32> to vector<8x8xbf16>
    %cst_40 = arith.constant dense<0.000000e+00> : vector<8x1792xf32>
    %96 = tpu.matmul %95, %93, %cst_40 {dimension_numbers = #tpu.dot_dimension_numbers<[1], [0], [0], [1], [0, 0, 1, 1], [], []>} : vector<8x8xbf16>, vector<8x1792xbf16>, vector<8x1792xf32> -> vector<8x1792xf32>
    %97 = arith.addf %92, %96 : vector<8x1792xf32>
    %98 = vector.extract_strided_slice %2 {offsets = [0, 673], sizes = [8, 1792], strides = [1, 1]} : vector<8x2560xbf16> to vector<8x1792xbf16>
    %c152 = arith.constant 152 : index
    %c0_41 = arith.constant 0 : index
    %99 = vector.load %arg2[%c152, %c0_41] : memref<216x8xf32, #tpu.memory_space<vmem>>, vector<8x8xf32>
    %100 = arith.truncf %99 : vector<8x8xf32> to vector<8x8xbf16>
    %cst_42 = arith.constant dense<0.000000e+00> : vector<8x1792xf32>
    %101 = tpu.matmul %100, %98, %cst_42 {dimension_numbers = #tpu.dot_dimension_numbers<[1], [0], [0], [1], [0, 0, 1, 1], [], []>} : vector<8x8xbf16>, vector<8x1792xbf16>, vector<8x1792xf32> -> vector<8x1792xf32>
    %102 = arith.addf %97, %101 : vector<8x1792xf32>
    %103 = vector.extract_strided_slice %2 {offsets = [0, 674], sizes = [8, 1792], strides = [1, 1]} : vector<8x2560xbf16> to vector<8x1792xbf16>
    %c160 = arith.constant 160 : index
    %c0_43 = arith.constant 0 : index
    %104 = vector.load %arg2[%c160, %c0_43] : memref<216x8xf32, #tpu.memory_space<vmem>>, vector<8x8xf32>
    %105 = arith.truncf %104 : vector<8x8xf32> to vector<8x8xbf16>
    %cst_44 = arith.constant dense<0.000000e+00> : vector<8x1792xf32>
    %106 = tpu.matmul %105, %103, %cst_44 {dimension_numbers = #tpu.dot_dimension_numbers<[1], [0], [0], [1], [0, 0, 1, 1], [], []>} : vector<8x8xbf16>, vector<8x1792xbf16>, vector<8x1792xf32> -> vector<8x1792xf32>
    %107 = arith.addf %102, %106 : vector<8x1792xf32>
    %108 = vector.extract_strided_slice %2 {offsets = [0, 684], sizes = [8, 1792], strides = [1, 1]} : vector<8x2560xbf16> to vector<8x1792xbf16>
    %c168 = arith.constant 168 : index
    %c0_45 = arith.constant 0 : index
    %109 = vector.load %arg2[%c168, %c0_45] : memref<216x8xf32, #tpu.memory_space<vmem>>, vector<8x8xf32>
    %110 = arith.truncf %109 : vector<8x8xf32> to vector<8x8xbf16>
    %cst_46 = arith.constant dense<0.000000e+00> : vector<8x1792xf32>
    %111 = tpu.matmul %110, %108, %cst_46 {dimension_numbers = #tpu.dot_dimension_numbers<[1], [0], [0], [1], [0, 0, 1, 1], [], []>} : vector<8x8xbf16>, vector<8x1792xbf16>, vector<8x1792xf32> -> vector<8x1792xf32>
    %112 = arith.addf %107, %111 : vector<8x1792xf32>
    %113 = vector.extract_strided_slice %2 {offsets = [0, 685], sizes = [8, 1792], strides = [1, 1]} : vector<8x2560xbf16> to vector<8x1792xbf16>
    %c176 = arith.constant 176 : index
    %c0_47 = arith.constant 0 : index
    %114 = vector.load %arg2[%c176, %c0_47] : memref<216x8xf32, #tpu.memory_space<vmem>>, vector<8x8xf32>
    %115 = arith.truncf %114 : vector<8x8xf32> to vector<8x8xbf16>
    %cst_48 = arith.constant dense<0.000000e+00> : vector<8x1792xf32>
    %116 = tpu.matmul %115, %113, %cst_48 {dimension_numbers = #tpu.dot_dimension_numbers<[1], [0], [0], [1], [0, 0, 1, 1], [], []>} : vector<8x8xbf16>, vector<8x1792xbf16>, vector<8x1792xf32> -> vector<8x1792xf32>
    %117 = arith.addf %112, %116 : vector<8x1792xf32>
    %118 = vector.extract_strided_slice %2 {offsets = [0, 686], sizes = [8, 1792], strides = [1, 1]} : vector<8x2560xbf16> to vector<8x1792xbf16>
    %c184 = arith.constant 184 : index
    %c0_49 = arith.constant 0 : index
    %119 = vector.load %arg2[%c184, %c0_49] : memref<216x8xf32, #tpu.memory_space<vmem>>, vector<8x8xf32>
    %120 = arith.truncf %119 : vector<8x8xf32> to vector<8x8xbf16>
    %cst_50 = arith.constant dense<0.000000e+00> : vector<8x1792xf32>
    %121 = tpu.matmul %120, %118, %cst_50 {dimension_numbers = #tpu.dot_dimension_numbers<[1], [0], [0], [1], [0, 0, 1, 1], [], []>} : vector<8x8xbf16>, vector<8x1792xbf16>, vector<8x1792xf32> -> vector<8x1792xf32>
    %122 = arith.addf %117, %121 : vector<8x1792xf32>
    %123 = vector.extract_strided_slice %2 {offsets = [0, 696], sizes = [8, 1792], strides = [1, 1]} : vector<8x2560xbf16> to vector<8x1792xbf16>
    %c192 = arith.constant 192 : index
    %c0_51 = arith.constant 0 : index
    %124 = vector.load %arg2[%c192, %c0_51] : memref<216x8xf32, #tpu.memory_space<vmem>>, vector<8x8xf32>
    %125 = arith.truncf %124 : vector<8x8xf32> to vector<8x8xbf16>
    %cst_52 = arith.constant dense<0.000000e+00> : vector<8x1792xf32>
    %126 = tpu.matmul %125, %123, %cst_52 {dimension_numbers = #tpu.dot_dimension_numbers<[1], [0], [0], [1], [0, 0, 1, 1], [], []>} : vector<8x8xbf16>, vector<8x1792xbf16>, vector<8x1792xf32> -> vector<8x1792xf32>
    %127 = arith.addf %122, %126 : vector<8x1792xf32>
    %128 = vector.extract_strided_slice %2 {offsets = [0, 697], sizes = [8, 1792], strides = [1, 1]} : vector<8x2560xbf16> to vector<8x1792xbf16>
    %c200 = arith.constant 200 : index
    %c0_53 = arith.constant 0 : index
    %129 = vector.load %arg2[%c200, %c0_53] : memref<216x8xf32, #tpu.memory_space<vmem>>, vector<8x8xf32>
    %130 = arith.truncf %129 : vector<8x8xf32> to vector<8x8xbf16>
    %cst_54 = arith.constant dense<0.000000e+00> : vector<8x1792xf32>
    %131 = tpu.matmul %130, %128, %cst_54 {dimension_numbers = #tpu.dot_dimension_numbers<[1], [0], [0], [1], [0, 0, 1, 1], [], []>} : vector<8x8xbf16>, vector<8x1792xbf16>, vector<8x1792xf32> -> vector<8x1792xf32>
    %132 = arith.addf %127, %131 : vector<8x1792xf32>
    %133 = vector.extract_strided_slice %2 {offsets = [0, 698], sizes = [8, 1792], strides = [1, 1]} : vector<8x2560xbf16> to vector<8x1792xbf16>
    %c208 = arith.constant 208 : index
    %c0_55 = arith.constant 0 : index
    %134 = vector.load %arg2[%c208, %c0_55] : memref<216x8xf32, #tpu.memory_space<vmem>>, vector<8x8xf32>
    %135 = arith.truncf %134 : vector<8x8xf32> to vector<8x8xbf16>
    %cst_56 = arith.constant dense<0.000000e+00> : vector<8x1792xf32>
    %136 = tpu.matmul %135, %133, %cst_56 {dimension_numbers = #tpu.dot_dimension_numbers<[1], [0], [0], [1], [0, 0, 1, 1], [], []>} : vector<8x8xbf16>, vector<8x1792xbf16>, vector<8x1792xf32> -> vector<8x1792xf32>
    %137 = arith.addf %132, %136 : vector<8x1792xf32>
    %c0_57 = arith.constant 0 : index
    %c0_58 = arith.constant 0 : index
    %138 = vector.load %arg3[%c0_57, %c0_58] : memref<1x1792xf32, #tpu.memory_space<vmem>>, vector<1x1792xf32>
    %139 = vector.broadcast %138 : vector<1x1792xf32> to vector<8x1792xf32>
    %140 = arith.mulf %137, %139 : vector<8x1792xf32>
    %cst_59 = arith.constant dense<0.000000e+00> : vector<8xf32>
    %141 = vector.multi_reduction <add>, %140, %cst_59 [1] : vector<8x1792xf32> to vector<8xf32>
    %142 = vector.shape_cast %141 : vector<8xf32> to vector<8x1xf32>
    %cst_60 = arith.constant 1.000000e-03 : f32
    %143 = vector.broadcast %cst_60 : f32 to vector<8x1xf32>
    %144 = arith.mulf %142, %143 : vector<8x1xf32>
    %145 = vector.broadcast %144 : vector<8x1xf32> to vector<8x1792xf32>
    %146 = arith.subf %137, %145 : vector<8x1792xf32>
    %147 = arith.mulf %146, %146 : vector<8x1792xf32>
    %148 = vector.broadcast %138 : vector<1x1792xf32> to vector<8x1792xf32>
    %149 = arith.mulf %147, %148 : vector<8x1792xf32>
    %cst_61 = arith.constant dense<0.000000e+00> : vector<8xf32>
    %150 = vector.multi_reduction <add>, %149, %cst_61 [1] : vector<8x1792xf32> to vector<8xf32>
    %151 = vector.shape_cast %150 : vector<8xf32> to vector<8x1xf32>
    %cst_62 = arith.constant 1.000000e-03 : f32
    %152 = vector.broadcast %cst_62 : f32 to vector<8x1xf32>
    %153 = arith.mulf %151, %152 : vector<8x1xf32>
    %c0_63 = arith.constant 0 : index
    %c0_64 = arith.constant 0 : index
    %154 = vector.load %arg4[%c0_63, %c0_64] : memref<8x3xf32, #tpu.memory_space<vmem>>, vector<8x3xf32>
    %155 = vector.extract_strided_slice %154 {offsets = [0, 0], sizes = [8, 1], strides = [1, 1]} : vector<8x3xf32> to vector<8x1xf32>
    %156 = vector.extract_strided_slice %154 {offsets = [0, 1], sizes = [8, 1], strides = [1, 1]} : vector<8x3xf32> to vector<8x1xf32>
    %157 = vector.extract_strided_slice %154 {offsets = [0, 2], sizes = [8, 1], strides = [1, 1]} : vector<8x3xf32> to vector<8x1xf32>
    %cst_65 = arith.constant 9.99999974E-6 : f32
    %158 = vector.broadcast %cst_65 : f32 to vector<8x1xf32>
    %159 = arith.addf %153, %158 : vector<8x1xf32>
    %160 = math.rsqrt %159 : vector<8x1xf32>
    %161 = vector.broadcast %160 : vector<8x1xf32> to vector<8x1792xf32>
    %162 = arith.mulf %146, %161 : vector<8x1792xf32>
    %163 = vector.broadcast %155 : vector<8x1xf32> to vector<8x1792xf32>
    %164 = arith.mulf %162, %163 : vector<8x1792xf32>
    %165 = vector.broadcast %156 : vector<8x1xf32> to vector<8x1792xf32>
    %166 = arith.addf %164, %165 : vector<8x1792xf32>
    %cst_66 = arith.constant 0.000000e+00 : f32
    %167 = vector.broadcast %cst_66 : f32 to vector<8x1792xf32>
    %168 = arith.cmpf oge, %166, %167 : vector<8x1792xf32>
    %169 = vector.broadcast %157 : vector<8x1xf32> to vector<8x1792xf32>
    %170 = arith.mulf %169, %166 : vector<8x1792xf32>
    %171 = arith.select %168, %166, %170 : vector<8x1792xi1>, vector<8x1792xf32>
    %172 = vector.broadcast %138 : vector<1x1792xf32> to vector<8x1792xf32>
    %173 = arith.mulf %171, %172 : vector<8x1792xf32>
    %cst_67 = arith.constant 0.000000e+00 : bf16
    %174 = vector.broadcast %cst_67 : bf16 to vector<8x384xbf16>
    %c0_68 = arith.constant 0 : index
    %c0_69 = arith.constant 0 : index
    %c0_70 = arith.constant 0 : index
    %175 = vector.load %arg5[%c0_68, %c0_69, %c0_70] : memref<1x8x2560xbf16, #tpu.memory_space<vmem>>, vector<1x8x384xbf16>
    %176 = vector.shape_cast %175 : vector<1x8x384xbf16> to vector<8x384xbf16>
    %177 = vector.shape_cast %174 : vector<8x384xbf16> to vector<1x8x384xbf16>
    tpu.vector_store %arg5[%c0_68, %c0_69, %c0_70], %177 {strides = array<i32>} : memref<1x8x2560xbf16, #tpu.memory_space<vmem>>, vector<1x8x384xbf16>,
    %178 = arith.truncf %173 : vector<8x1792xf32> to vector<8x1792xbf16>
    %c0_71 = arith.constant 0 : index
    %c0_72 = arith.constant 0 : index
    %c384 = arith.constant 384 : index
    %179 = vector.load %arg5[%c0_71, %c0_72, %c384] : memref<1x8x2560xbf16, #tpu.memory_space<vmem>>, vector<1x8x1792xbf16>
    %180 = vector.shape_cast %179 : vector<1x8x1792xbf16> to vector<8x1792xbf16>
    %181 = vector.shape_cast %178 : vector<8x1792xbf16> to vector<1x8x1792xbf16>
    tpu.vector_store %arg5[%c0_71, %c0_72, %c384], %181 {strides = array<i32>} : memref<1x8x2560xbf16, #tpu.memory_space<vmem>>, vector<1x8x1792xbf16>,
    %cst_73 = arith.constant 0.000000e+00 : bf16
    %182 = vector.broadcast %cst_73 : bf16 to vector<8x384xbf16>
    %c0_74 = arith.constant 0 : index
    %c0_75 = arith.constant 0 : index
    %c2176 = arith.constant 2176 : index
    %183 = vector.load %arg5[%c0_74, %c0_75, %c2176] : memref<1x8x2560xbf16, #tpu.memory_space<vmem>>, vector<1x8x384xbf16>
    %184 = vector.shape_cast %183 : vector<1x8x384xbf16> to vector<8x384xbf16>
    %185 = vector.shape_cast %182 : vector<8x384xbf16> to vector<1x8x384xbf16>
    tpu.vector_store %arg5[%c0_74, %c0_75, %c2176], %185 {strides = array<i32>} : memref<1x8x2560xbf16, #tpu.memory_space<vmem>>, vector<1x8x384xbf16>,
    return
  }
  func.func @transform_0(%arg0: i32) -> (i32, i32, i32) {
    %c0_i32 = arith.constant 0 : i32
    %c0_i32_0 = arith.constant 0 : i32
    %c0_i32_1 = arith.constant 0 : i32
    return %arg0, %c0_i32, %c0_i32_0 : i32, i32, i32
  }
  func.func @transform_1(%arg0: i32) -> (i32, i32) {
    %c0_i32 = arith.constant 0 : i32
    %c0_i32_0 = arith.constant 0 : i32
    %c0_i32_1 = arith.constant 0 : i32
    return %c0_i32, %c0_i32_0 : i32, i32
  }
  func.func @transform_2(%arg0: i32) -> (i32, i32) {
    %c0_i32 = arith.constant 0 : i32
    %c0_i32_0 = arith.constant 0 : i32
    %c0_i32_1 = arith.constant 0 : i32
    return %c0_i32, %c0_i32_0 : i32, i32
  }
  func.func @transform_3(%arg0: i32) -> (i32, i32) {
    %c0_i32 = arith.constant 0 : i32
    %c0_i32_0 = arith.constant 0 : i32
    %c0_i32_1 = arith.constant 0 : i32
    return %c0_i32, %c0_i32_0 : i32, i32
  }
  func.func @transform_4(%arg0: i32) -> (i32, i32, i32) {
    %c0_i32 = arith.constant 0 : i32
    %c0_i32_0 = arith.constant 0 : i32
    %c0_i32_1 = arith.constant 0 : i32
    return %arg0, %c0_i32, %c0_i32_0 : i32, i32, i32
  }
}

</mosaic_0001>

<llo_original>
// kernel: tpu_custom_call.1
$region0: #{tpu_custom_call.1}
  #allocation0 [shape = 'u32[]', space=smem, size = 0x4, offset = 0x4, fixed_abs, tag = 'smem constant byte address 0x4 - core index']
  #allocation1 [shape = 'u32[72,128]{1,0:T(1,128)}', space=vmem, size = 0x9000, scoped, tag = 'internal scratch']
  %s0 = inlined_call_operand.vmem [shape: bf16[2,8,2560], index: 0, kind: input, shape index: {}]
  %s1 = inlined_call_operand.vmem [shape: f32[216,8], index: 1, kind: input, shape index: {}]
  %s2 = inlined_call_operand.vmem [shape: f32[1,1792], index: 2, kind: input, shape index: {}]
  %s3 = inlined_call_operand.vmem [shape: f32[8,3], index: 3, kind: input, shape index: {}]
  %s4 = inlined_call_operand.hbm [shape: bf16[2,8,2560], index: 4, kind: output, shape index: {}]
  %s5 = sld [smem:[#allocation0]]
  $region49: #{tpu_custom_call.1} parent=0
    _
  %s7 = ssub.s32 1, %s5
  %s8 = scalar_select 0, %s7, %s5
  $region1: #{tpu_custom_call.1} parent=0
    #allocation2 [shape = 'u8[81920]{0}', space=vmem, size = 0x14000, scoped, tag = 'output window, operand 0']
    #allocation3 [shape = 's32[2]{0}', space=sflag, size = 0x8, scoped, tag = 'scoped memory for tpu_custom_call.1']
    %9 = vsyncpa [#allocation3], 0
    %s10 = scalar_lea.sflag [#allocation3], 1
    %11 = vsyncpa %s10, 0
    loop: start=0, step=1, limit=4
    $region2: #{tpu_custom_call.1} parent=1 // loop_pre_header
      _
    $region3: #{tpu_custom_call.1} parent=1 // loop_header
      %s13 = sphi 0, %s17
      %p14 = scmp.ge.s32.totalorder %s13, 4
      %s23 = sphi 0, %s25
      %s26 = sphi 0, %s23
      %s27 = sphi 0, %s26
      %s43 = sphi 0, %s27
      %s47 = sphi 0, %s47
      %s49 = sphi 0, %s47
      %s50 = sphi 0, %s49
      %s64 = sphi 0, %s50
      %s68 = sphi 0, %s68
      %s70 = sphi 0, %s68
      %s71 = sphi 0, %s70
      %s85 = sphi 0, %s71
      %s89 = sphi 0, %s89
      %s91 = sphi 0, %s89
      %s92 = sphi 0, %s91
      %s106 = sphi 0, %s92
      %s112 = sphi 0, %s114
      %s115 = sphi 0, %s112
      %s116 = sphi 0, %s115
      %s132 = sphi 0, %s116
    $region4: #{tpu_custom_call.1} parent=1 // loop_header_branch
      %16 = sbr.rel (%p14) target = $region8
    $region5: #{tpu_custom_call.1} parent=1 // loop_body
      %s18 = ssub.s32 %s13, 1
      %s19 = ssub.s32 %s13, 2
      %s20 = sadd.s32 %s13, 1
      %s21 = ssub.s32 %s13, %s20
      %p22 = scmp.eq.s32.totalorder %s21, 0
      %s24 = sadd.s32 %s23, 1
      %s25 = scalar_select %p22, %s23, %s24
      %p28 = pneg %p22
      %p29 = scmp.eq.s32.totalorder %s13, 1
      %p30 = por %p28, %p29
      %p31 = scmp.ne.s32.totalorder %s23, %s26
      %p32 = scmp.eq.s32.totalorder %s13, 0
      %p33 = por %p31, %p32
      %p34 = scmp.ne.s32.totalorder %s23, %s26
      %p35 = scmp.eq.s32.totalorder %s18, 1
      %p36 = por %p34, %p35
      %p37 = scmp.ne.s32.totalorder %s26, %s27
      %p38 = scmp.eq.s32.totalorder %s18, 0
      %p39 = por %p37, %p38
      %p40 = scmp.ne.s32.totalorder %s26, %s27
      %p41 = scmp.eq.s32.totalorder %s19, 1
      %p42 = por %p40, %p41
      %p44 = scmp.ne.s32.totalorder %s27, %s43
      %p45 = scmp.eq.s32.totalorder %s19, 0
      %p46 = por %p44, %p45
      %s48 = sadd.s32 %s47, 1
      %p51 = scmp.eq.s32.totalorder %s13, 1
      %p52 = scmp.ne.s32.totalorder %s47, %s49
      %p53 = scmp.eq.s32.totalorder %s13, 0
      %p54 = por %p52, %p53
      %p55 = scmp.ne.s32.totalorder %s47, %s49
      %p56 = scmp.eq.s32.totalorder %s18, 1
      %p57 = por %p55, %p56
      %p58 = scmp.ne.s32.totalorder %s49, %s50
      %p59 = scmp.eq.s32.totalorder %s18, 0
      %p60 = por %p58, %p59
      %p61 = scmp.ne.s32.totalorder %s49, %s50
      %p62 = scmp.eq.s32.totalorder %s19, 1
      %p63 = por %p61, %p62
      %p65 = scmp.ne.s32.totalorder %s50, %s64
      %p66 = scmp.eq.s32.totalorder %s19, 0
      %p67 = por %p65, %p66
      %s69 = sadd.s32 %s68, 1
      %p72 = scmp.eq.s32.totalorder %s13, 1
      %p73 = scmp.ne.s32.totalorder %s68, %s70
      %p74 = scmp.eq.s32.totalorder %s13, 0
      %p75 = por %p73, %p74
      %p76 = scmp.ne.s32.totalorder %s68, %s70
      %p77 = scmp.eq.s32.totalorder %s18, 1
      %p78 = por %p76, %p77
      %p79 = scmp.ne.s32.totalorder %s70, %s71
      %p80 = scmp.eq.s32.totalorder %s18, 0
      %p81 = por %p79, %p80
      %p82 = scmp.ne.s32.totalorder %s70, %s71
      %p83 = scmp.eq.s32.totalorder %s19, 1
      %p84 = por %p82, %p83
      %p86 = scmp.ne.s32.totalorder %s71, %s85
      %p87 = scmp.eq.s32.totalorder %s19, 0
      %p88 = por %p86, %p87
      %s90 = sadd.s32 %s89, 1
      %p93 = scmp.eq.s32.totalorder %s13, 1
      %p94 = scmp.ne.s32.totalorder %s89, %s91
      %p95 = scmp.eq.s32.totalorder %s13, 0
      %p96 = por %p94, %p95
      %p97 = scmp.ne.s32.totalorder %s89, %s91
      %p98 = scmp.eq.s32.totalorder %s18, 1
      %p99 = por %p97, %p98
      %p100 = scmp.ne.s32.totalorder %s91, %s92
      %p101 = scmp.eq.s32.totalorder %s18, 0
      %p102 = por %p100, %p101
      %p103 = scmp.ne.s32.totalorder %s91, %s92
      %p104 = scmp.eq.s32.totalorder %s19, 1
      %p105 = por %p103, %p104
      %p107 = scmp.ne.s32.totalorder %s92, %s106
      %p108 = scmp.eq.s32.totalorder %s19, 0
      %p109 = por %p107, %p108
      %s110 = ssub.s32 %s13, %s20
      %p111 = scmp.eq.s32.totalorder %s110, 0
      %s113 = sadd.s32 %s112, 1
      %s114 = scalar_select %p111, %s112, %s113
      %p117 = pneg %p111
      %p118 = scmp.eq.s32.totalorder %s13, 1
      %p119 = por %p117, %p118
      %p120 = scmp.ne.s32.totalorder %s112, %s115
      %p121 = scmp.eq.s32.totalorder %s13, 0
      %p122 = por %p120, %p121
      %p123 = scmp.ne.s32.totalorder %s112, %s115
      %p124 = scmp.eq.s32.totalorder %s18, 1
      %p125 = por %p123, %p124
      %p126 = scmp.ne.s32.totalorder %s115, %s116
      %p127 = scmp.eq.s32.totalorder %s18, 0
      %p128 = por %p126, %p127
      %p129 = scmp.ne.s32.totalorder %s115, %s116
      %p130 = scmp.eq.s32.totalorder %s19, 1
      %p131 = por %p129, %p130
      %p133 = scmp.ne.s32.totalorder %s116, %s132
      %p134 = scmp.eq.s32.totalorder %s19, 0
      %p135 = por %p133, %p134
      %p136 = scmp.le.s32.totalorder 1, %s13
      %p137 = scmp.lt.s32.totalorder %s13, 3
      %p138 = pnand %p136, %p137
      %p139 = pneg %p138
      // Predicated region
      $region9: #{tpu_custom_call.1} parent=5 // pred_check
        _
      $region10: #{tpu_custom_call.1} parent=5 // pred_check_branch
        %141 = sbr.rel (%p138) target = $region12
      $region11: #{tpu_custom_call.1} parent=5 // pred_region
        %s142 = ssub.s32 %s13, 1
        // Predicated region
        $region13: #{tpu_custom_call.1} parent=11 // pred_check
          %p143 = pneg %p60
        $region14: #{tpu_custom_call.1} parent=11 // pred_check_branch
          %145 = sbr.rel (%p143) target = $region16
        $region15: #{tpu_custom_call.1} parent=11 // pred_region
          _
        $region16: #{tpu_custom_call.1} parent=11 // pred_fallthru
          _
        // Predicated region
        $region17: #{tpu_custom_call.1} parent=11 // pred_check
          %p146 = pneg %p81
        $region18: #{tpu_custom_call.1} parent=11 // pred_check_branch
          %148 = sbr.rel (%p146) target = $region20
        $region19: #{tpu_custom_call.1} parent=11 // pred_region
          _
        $region20: #{tpu_custom_call.1} parent=11 // pred_fallthru
          _
        // Predicated region
        $region21: #{tpu_custom_call.1} parent=11 // pred_check
          %p149 = pneg %p102
        $region22: #{tpu_custom_call.1} parent=11 // pred_check_branch
          %151 = sbr.rel (%p149) target = $region24
        $region23: #{tpu_custom_call.1} parent=11 // pred_region
          _
        $region24: #{tpu_custom_call.1} parent=11 // pred_fallthru
          _
      $region12: #{tpu_custom_call.1} parent=5 // pred_fallthru
        _
      %p152 = scmp.lt.s32.totalorder %s13, 2
      // Predicated region
      $region25: #{tpu_custom_call.1} parent=5 // pred_check
        %p153 = pneg %p152
      $region26: #{tpu_custom_call.1} parent=5 // pred_check_branch
        %155 = sbr.rel (%p153) target = $region28
      $region27: #{tpu_custom_call.1} parent=5 // pred_region
        // Predicated region
        $region29: #{tpu_custom_call.1} parent=27 // pred_check
          %p156 = pneg %p33
        $region30: #{tpu_custom_call.1} parent=27 // pred_check_branch
          %158 = sbr.rel (%p156) target = $region32
        $region31: #{tpu_custom_call.1} parent=27 // pred_region
          %p159 = scmp.lt.s32.totalorder %s13, 1
          %s160 = scalar_select %p159, %s13, 1
          %s161 = smul.addr %s160, 20
          %s162 = smul.addr %s161, 4
          %s163 = scalar_lea.vmem %s0, %s162
        $region32: #{tpu_custom_call.1} parent=27 // pred_fallthru
          _
      $region28: #{tpu_custom_call.1} parent=5 // pred_fallthru
        _
      %p164 = scmp.le.s32.totalorder 1, %s13
      %p165 = scmp.lt.s32.totalorder %s13, 3
      %p166 = pnand %p164, %p165
      %p167 = pneg %p166
      // Predicated region
      $region33: #{tpu_custom_call.1} parent=5 // pred_check
        _
      $region34: #{tpu_custom_call.1} parent=5 // pred_check_branch
        %169 = sbr.rel (%p166) target = $region36
      $region35: #{tpu_custom_call.1} parent=5 // pred_region
        %s170 = ssub.s32 %s13, 1
        %p171 = scmp.lt.s32.totalorder %s18, 1
        %s172 = scalar_select %p171, %s18, 1
        %s173 = smul.addr %s172, 20
        %s174 = smul.addr %s173, 4
        %s175 = scalar_lea.vmem %s0, %s174
        %p176 = pneg %p39
        %p177 = pneg %p36
        %p178 = pneg %p60
        %p179 = pneg %p57
        %p180 = pneg %p81
        %p181 = pneg %p78
        %p182 = pneg %p102
        %p183 = pneg %p99
        %p184 = pneg %p128
        %p185 = pneg %p125
        %s186 = sand.u32 %s115, 1
        %s187 = scalar_lea.sflag [#allocation3], %s186
        %s188 = sand.u32 %s115, 1
        %s189 = smul.addr %s188, 80
        %s190 = scalar_lea.vmem [#allocation2], %s189
        %p191 = scmp.lt.s32.totalorder %s18, 1
        %s192 = scalar_select %p191, %s18, 1
        %s193 = smul.addr %s192, 20
        %s194 = smul.addr %s193, 4
        %s195 = scalar_lea.vmem %s0, %s194
        %v197 = vld [vmem:[%s195 + $0x8] sm:$0xff]
        %v198 = vld [vmem:[%s195 + $0x10] sm:$0xff]
        %v199 = vld [vmem:[%s195 + $0x18] sm:$0xff]
        %v200 = vld [vmem:[%s195 + $0x20] sm:$0xff]
        %v201 = vld [vmem:[%s195 + $0x28] sm:$0xff]
        %v202 = vld [vmem:[%s195 + $0x30] sm:$0xff]
        %v203 = vld [vmem:[%s195 + $0x38] sm:$0xff]
        %v204 = vld [vmem:[%s195 + $0x40] sm:$0xff]
        %v205 = vld [vmem:[%s195 + $0x48] sm:$0xff]
        %v206 = vld [vmem:[%s1] sm:$0xff]
        %v207 = vpack.c.bf16 %v206, %v206
        %v208 = vld [vmem:[%s1 + $0x8] sm:$0xff]
        %v209 = vpack.c.bf16 %v208, %v208
        %v218 = vunpack.c.h.b16 %v197
        %v219 = vunpack.c.l.b16 %v198
        %v220 = vunpack.c.h.b16 %v198
        %v221 = vunpack.c.l.b16 %v199
        %v222 = vunpack.c.h.b16 %v199
        %v223 = vunpack.c.l.b16 %v200
        %v224 = vunpack.c.h.b16 %v200
        %v225 = vunpack.c.l.b16 %v201
        %v226 = vunpack.c.h.b16 %v201
        %v227 = vunpack.c.l.b16 %v202
        %v228 = vunpack.c.h.b16 %v202
        %v229 = vunpack.c.l.b16 %v203
        %v230 = vunpack.c.h.b16 %v203
        %v231 = vunpack.c.l.b16 %v204
        %v232 = vunpack.c.h.b16 %v204
        %v233 = vpack.c.b16 %v218, %v218
        %v234 = vpack.c.b16 %v219, %v219
        %v235 = vpack.c.b16 %v220, %v220
        %v236 = vpack.c.b16 %v221, %v221
        %v237 = vpack.c.b16 %v222, %v222
        %v238 = vpack.c.b16 %v223, %v223
        %v239 = vpack.c.b16 %v224, %v224
        %v240 = vpack.c.b16 %v225, %v225
        %v241 = vpack.c.b16 %v226, %v226
        %v242 = vpack.c.b16 %v227, %v227
        %v243 = vpack.c.b16 %v228, %v228
        %v244 = vpack.c.b16 %v229, %v229
        %v245 = vpack.c.b16 %v230, %v230
        %v246 = vpack.c.b16 %v231, %v231
        %v247 = vpack.c.b16 %v232, %v232
        %248 = vrot.lane.b32.xlu0 %v233, 127
        %v249 = vpop.permute.xlu0 %248
        %250 = vrot.lane.b32.xlu0 %v234, 127
        %v251 = vpop.permute.xlu0 %250
        %252 = vrot.lane.b32.xlu0 %v235, 127
        %v253 = vpop.permute.xlu0 %252
        %254 = vrot.lane.b32.xlu0 %v236, 127
        %v255 = vpop.permute.xlu0 %254
        %256 = vrot.lane.b32.xlu0 %v237, 127
        %v257 = vpop.permute.xlu0 %256
        %258 = vrot.lane.b32.xlu0 %v238, 127
        %v259 = vpop.permute.xlu0 %258
        %260 = vrot.lane.b32.xlu0 %v239, 127
        %v261 = vpop.permute.xlu0 %260
        %262 = vrot.lane.b32.xlu0 %v240, 127
        %v263 = vpop.permute.xlu0 %262
        %264 = vrot.lane.b32.xlu0 %v241, 127
        %v265 = vpop.permute.xlu0 %264
        %266 = vrot.lane.b32.xlu0 %v242, 127
        %v267 = vpop.permute.xlu0 %266
        %268 = vrot.lane.b32.xlu0 %v243, 127
        %v269 = vpop.permute.xlu0 %268
        %270 = vrot.lane.b32.xlu0 %v244, 127
        %v271 = vpop.permute.xlu0 %270
        %272 = vrot.lane.b32.xlu0 %v245, 127
        %v273 = vpop.permute.xlu0 %272
        %274 = vrot.lane.b32.xlu0 %v246, 127
        %v275 = vpop.permute.xlu0 %274
        %276 = vrot.lane.b32.xlu0 %v247, 127
        %v277 = vpop.permute.xlu0 %276
        %vm278 = vcmask 1039360
        %v279 = vsel %vm278, %v249, %v251
        %v280 = vsel %vm278, %v251, %v253
        %v281 = vsel %vm278, %v253, %v255
        %v282 = vsel %vm278, %v255, %v257
        %v283 = vsel %vm278, %v257, %v259
        %v284 = vsel %vm278, %v259, %v261
        %v285 = vsel %vm278, %v261, %v263
        %v286 = vsel %vm278, %v263, %v265
        %v287 = vsel %vm278, %v265, %v267
        %v288 = vsel %vm278, %v267, %v269
        %v289 = vsel %vm278, %v269, %v271
        %v290 = vsel %vm278, %v271, %v273
        %v291 = vsel %vm278, %v273, %v275
        %v292 = vsel %vm278, %v275, %v277
        %vm293 = vcmask 64512
        %v295 = vsel %vm293, %v209, 0
        %vm297 = vcmask 1043456
        %v299 = vsel %vm297, %v279, 0
        %v302 = vsel %vm297, %v280, 0
        %v305 = vsel %vm297, %v281, 0
        %v308 = vsel %vm297, %v282, 0
        %v311 = vsel %vm297, %v283, 0
        %v314 = vsel %vm297, %v284, 0
        %v317 = vsel %vm297, %v285, 0
        %v320 = vsel %vm297, %v286, 0
        %v323 = vsel %vm297, %v287, 0
        %v326 = vsel %vm297, %v288, 0
        %v329 = vsel %vm297, %v289, 0
        %v332 = vsel %vm297, %v290, 0
        %v335 = vsel %vm297, %v291, 0
        %v338 = vsel %vm297, %v292, 0
        %340 = vmatpush.bf16.msra.mxu0 0
        %341 = vmatpush.bf16.msra.mxu0 0
        %342 = vmatpush.bf16.msra.mxu0 0
        %343 = vmatpush.bf16.msra.mxu0 0
        %344 = vmatpush.bf16.msra.mxu0 0
        %345 = vmatpush.bf16.msra.mxu0 0
        %346 = vmatpush.bf16.msra.mxu0 0
        %347 = vmatpush.bf16.msra.mxu0 %v299
        %348 = vmatmul.bf16.gmra.mxu0 %v295
        %v349 = vpop.f32.mrf.mxu0
        %v350 = vadd.f32 0.0, %v349
        %v351 = vpop.f32.mrf.mxu0
        %352 = vdwg.mxu0
        %353 = vmatpush.bf16.msra.mxu0 0
        %354 = vmatpush.bf16.msra.mxu0 0
        %355 = vmatpush.bf16.msra.mxu0 0
        %356 = vmatpush.bf16.msra.mxu0 0
        %357 = vmatpush.bf16.msra.mxu0 0
        %358 = vmatpush.bf16.msra.mxu0 0
        %359 = vmatpush.bf16.msra.mxu0 0
        %360 = vmatpush.bf16.msra.mxu0 %v302
        %361 = vmatmul.bf16.gmra.mxu0 %v295
        %v362 = vpop.f32.mrf.mxu0
        %v363 = vadd.f32 0.0, %v362
        %v364 = vpop.f32.mrf.mxu0
        %365 = vdwg.mxu0
        %366 = vmatpush.bf16.msra.mxu0 0
        %367 = vmatpush.bf16.msra.mxu0 0
        %368 = vmatpush.bf16.msra.mxu0 0
        %369 = vmatpush.bf16.msra.mxu0 0
        %370 = vmatpush.bf16.msra.mxu0 0
        %371 = vmatpush.bf16.msra.mxu0 0
        %372 = vmatpush.bf16.msra.mxu0 0
        %373 = vmatpush.bf16.msra.mxu0 %v305
        %374 = vmatmul.bf16.gmra.mxu0 %v295
        %v375 = vpop.f32.mrf.mxu0
        %v376 = vadd.f32 0.0, %v375
        %v377 = vpop.f32.mrf.mxu0
        %378 = vdwg.mxu0
        %379 = vmatpush.bf16.msra.mxu0 0
        %380 = vmatpush.bf16.msra.mxu0 0
        %381 = vmatpush.bf16.msra.mxu0 0
        %382 = vmatpush.bf16.msra.mxu0 0
        %383 = vmatpush.bf16.msra.mxu0 0
        %384 = vmatpush.bf16.msra.mxu0 0
        %385 = vmatpush.bf16.msra.mxu0 0
        %386 = vmatpush.bf16.msra.mxu0 %v308
        %387 = vmatmul.bf16.gmra.mxu0 %v295
        %v388 = vpop.f32.mrf.mxu0
        %v389 = vadd.f32 0.0, %v388
        %v390 = vpop.f32.mrf.mxu0
        %391 = vdwg.mxu0
        %392 = vmatpush.bf16.msra.mxu0 0
        %393 = vmatpush.bf16.msra.mxu0 0
        %394 = vmatpush.bf16.msra.mxu0 0
        %395 = vmatpush.bf16.msra.mxu0 0
        %396 = vmatpush.bf16.msra.mxu0 0
        %397 = vmatpush.bf16.msra.mxu0 0
        %398 = vmatpush.bf16.msra.mxu0 0
        %399 = vmatpush.bf16.msra.mxu0 %v311
        %400 = vmatmul.bf16.gmra.mxu0 %v295
        %v401 = vpop.f32.mrf.mxu0
        %v402 = vadd.f32 0.0, %v401
        %v403 = vpop.f32.mrf.mxu0
        %404 = vdwg.mxu0
        %405 = vmatpush.bf16.msra.mxu0 0
        %406 = vmatpush.bf16.msra.mxu0 0
        %407 = vmatpush.bf16.msra.mxu0 0
        %408 = vmatpush.bf16.msra.mxu0 0
        %409 = vmatpush.bf16.msra.mxu0 0
        %410 = vmatpush.bf16.msra.mxu0 0
        %411 = vmatpush.bf16.msra.mxu0 0
        %412 = vmatpush.bf16.msra.mxu0 %v314
        %413 = vmatmul.bf16.gmra.mxu0 %v295
        %v414 = vpop.f32.mrf.mxu0
        %v415 = vadd.f32 0.0, %v414
        %v416 = vpop.f32.mrf.mxu0
        %417 = vdwg.mxu0
        %418 = vmatpush.bf16.msra.mxu0 0
        %419 = vmatpush.bf16.msra.mxu0 0
        %420 = vmatpush.bf16.msra.mxu0 0
        %421 = vmatpush.bf16.msra.mxu0 0
        %422 = vmatpush.bf16.msra.mxu0 0
        %423 = vmatpush.bf16.msra.mxu0 0
        %424 = vmatpush.bf16.msra.mxu0 0
        %425 = vmatpush.bf16.msra.mxu0 %v317
        %426 = vmatmul.bf16.gmra.mxu0 %v295
        %v427 = vpop.f32.mrf.mxu0
        %v428 = vadd.f32 0.0, %v427
        %v429 = vpop.f32.mrf.mxu0
        %430 = vdwg.mxu0
        %431 = vmatpush.bf16.msra.mxu0 0
        %432 = vmatpush.bf16.msra.mxu0 0
        %433 = vmatpush.bf16.msra.mxu0 0
        %434 = vmatpush.bf16.msra.mxu0 0
        %435 = vmatpush.bf16.msra.mxu0 0
        %436 = vmatpush.bf16.msra.mxu0 0
        %437 = vmatpush.bf16.msra.mxu0 0
        %438 = vmatpush.bf16.msra.mxu0 %v320
        %439 = vmatmul.bf16.gmra.mxu0 %v295
        %v440 = vpop.f32.mrf.mxu0
        %v441 = vadd.f32 0.0, %v440
        %v442 = vpop.f32.mrf.mxu0
        %443 = vdwg.mxu0
        %444 = vmatpush.bf16.msra.mxu0 0
        %445 = vmatpush.bf16.msra.mxu0 0
        %446 = vmatpush.bf16.msra.mxu0 0
        %447 = vmatpush.bf16.msra.mxu0 0
        %448 = vmatpush.bf16.msra.mxu0 0
        %449 = vmatpush.bf16.msra.mxu0 0
        %450 = vmatpush.bf16.msra.mxu0 0
        %451 = vmatpush.bf16.msra.mxu0 %v323
        %452 = vmatmul.bf16.gmra.mxu0 %v295
        %v453 = vpop.f32.mrf.mxu0
        %v454 = vadd.f32 0.0, %v453
        %v455 = vpop.f32.mrf.mxu0
        %456 = vdwg.mxu0
        %457 = vmatpush.bf16.msra.mxu0 0
        %458 = vmatpush.bf16.msra.mxu0 0
        %459 = vmatpush.bf16.msra.mxu0 0
        %460 = vmatpush.bf16.msra.mxu0 0
        %461 = vmatpush.bf16.msra.mxu0 0
        %462 = vmatpush.bf16.msra.mxu0 0
        %463 = vmatpush.bf16.msra.mxu0 0
        %464 = vmatpush.bf16.msra.mxu0 %v326
        %465 = vmatmul.bf16.gmra.mxu0 %v295
        %v466 = vpop.f32.mrf.mxu0
        %v467 = vadd.f32 0.0, %v466
        %v468 = vpop.f32.mrf.mxu0
        %469 = vdwg.mxu0
        %470 = vmatpush.bf16.msra.mxu0 0
        %471 = vmatpush.bf16.msra.mxu0 0
        %472 = vmatpush.bf16.msra.mxu0 0
        %473 = vmatpush.bf16.msra.mxu0 0
        %474 = vmatpush.bf16.msra.mxu0 0
        %475 = vmatpush.bf16.msra.mxu0 0
        %476 = vmatpush.bf16.msra.mxu0 0
        %477 = vmatpush.bf16.msra.mxu0 %v329
        %478 = vmatmul.bf16.gmra.mxu0 %v295
        %v479 = vpop.f32.mrf.mxu0
        %v480 = vadd.f32 0.0, %v479
        %v481 = vpop.f32.mrf.mxu0
        %482 = vdwg.mxu0
        %483 = vmatpush.bf16.msra.mxu0 0
        %484 = vmatpush.bf16.msra.mxu0 0
        %485 = vmatpush.bf16.msra.mxu0 0
        %486 = vmatpush.bf16.msra.mxu0 0
        %487 = vmatpush.bf16.msra.mxu0 0
        %488 = vmatpush.bf16.msra.mxu0 0
        %489 = vmatpush.bf16.msra.mxu0 0
        %490 = vmatpush.bf16.msra.mxu0 %v332
        %491 = vmatmul.bf16.gmra.mxu0 %v295
        %v492 = vpop.f32.mrf.mxu0
        %v493 = vadd.f32 0.0, %v492
        %v494 = vpop.f32.mrf.mxu0
        %495 = vdwg.mxu0
        %496 = vmatpush.bf16.msra.mxu0 0
        %497 = vmatpush.bf16.msra.mxu0 0
        %498 = vmatpush.bf16.msra.mxu0 0
        %499 = vmatpush.bf16.msra.mxu0 0
        %500 = vmatpush.bf16.msra.mxu0 0
        %501 = vmatpush.bf16.msra.mxu0 0
        %502 = vmatpush.bf16.msra.mxu0 0
        %503 = vmatpush.bf16.msra.mxu0 %v335
        %504 = vmatmul.bf16.gmra.mxu0 %v295
        %v505 = vpop.f32.mrf.mxu0
        %v506 = vadd.f32 0.0, %v505
        %v507 = vpop.f32.mrf.mxu0
        %508 = vdwg.mxu0
        %509 = vmatpush.bf16.msra.mxu0 0
        %510 = vmatpush.bf16.msra.mxu0 0
        %511 = vmatpush.bf16.msra.mxu0 0
        %512 = vmatpush.bf16.msra.mxu0 0
        %513 = vmatpush.bf16.msra.mxu0 0
        %514 = vmatpush.bf16.msra.mxu0 0
        %515 = vmatpush.bf16.msra.mxu0 0
        %516 = vmatpush.bf16.msra.mxu0 %v338
        %517 = vmatmul.bf16.gmra.mxu0 %v295
        %v518 = vpop.f32.mrf.mxu0
        %v519 = vadd.f32 0.0, %v518
        %v520 = vpop.f32.mrf.mxu0
        %521 = vdwg.mxu0
        %v523 = vsel %vm293, %v207, 0
        %v526 = vsel %vm297, %v233, 0
        %v529 = vsel %vm297, %v234, 0
        %v532 = vsel %vm297, %v235, 0
        %v535 = vsel %vm297, %v236, 0
        %v538 = vsel %vm297, %v237, 0
        %v541 = vsel %vm297, %v238, 0
        %v544 = vsel %vm297, %v239, 0
        %v547 = vsel %vm297, %v240, 0
        %v550 = vsel %vm297, %v241, 0
        %v553 = vsel %vm297, %v242, 0
        %v556 = vsel %vm297, %v243, 0
        %v559 = vsel %vm297, %v244, 0
        %v562 = vsel %vm297, %v245, 0
        %v565 = vsel %vm297, %v246, 0
        %567 = vmatpush.bf16.msra.mxu0 0
        %568 = vmatpush.bf16.msra.mxu0 0
        %569 = vmatpush.bf16.msra.mxu0 0
        %570 = vmatpush.bf16.msra.mxu0 0
        %571 = vmatpush.bf16.msra.mxu0 0
        %572 = vmatpush.bf16.msra.mxu0 0
        %573 = vmatpush.bf16.msra.mxu0 0
        %574 = vmatpush.bf16.msra.mxu0 %v526
        %575 = vmatmul.bf16.gmra.mxu0 %v523
        %v576 = vpop.f32.mrf.mxu0
        %v577 = vadd.f32 %v350, %v576
        %v578 = vpop.f32.mrf.mxu0
        %579 = vdwg.mxu0
        %580 = vmatpush.bf16.msra.mxu0 0
        %581 = vmatpush.bf16.msra.mxu0 0
        %582 = vmatpush.bf16.msra.mxu0 0
        %583 = vmatpush.bf16.msra.mxu0 0
        %584 = vmatpush.bf16.msra.mxu0 0
        %585 = vmatpush.bf16.msra.mxu0 0
        %586 = vmatpush.bf16.msra.mxu0 0
        %587 = vmatpush.bf16.msra.mxu0 %v529
        %588 = vmatmul.bf16.gmra.mxu0 %v523
        %v589 = vpop.f32.mrf.mxu0
        %v590 = vadd.f32 %v363, %v589
        %v591 = vpop.f32.mrf.mxu0
        %592 = vdwg.mxu0
        %593 = vmatpush.bf16.msra.mxu0 0
        %594 = vmatpush.bf16.msra.mxu0 0
        %595 = vmatpush.bf16.msra.mxu0 0
        %596 = vmatpush.bf16.msra.mxu0 0
        %597 = vmatpush.bf16.msra.mxu0 0
        %598 = vmatpush.bf16.msra.mxu0 0
        %599 = vmatpush.bf16.msra.mxu0 0
        %600 = vmatpush.bf16.msra.mxu0 %v532
        %601 = vmatmul.bf16.gmra.mxu0 %v523
        %v602 = vpop.f32.mrf.mxu0
        %v603 = vadd.f32 %v376, %v602
        %v604 = vpop.f32.mrf.mxu0
        %605 = vdwg.mxu0
        %606 = vmatpush.bf16.msra.mxu0 0
        %607 = vmatpush.bf16.msra.mxu0 0
        %608 = vmatpush.bf16.msra.mxu0 0
        %609 = vmatpush.bf16.msra.mxu0 0
        %610 = vmatpush.bf16.msra.mxu0 0
        %611 = vmatpush.bf16.msra.mxu0 0
        %612 = vmatpush.bf16.msra.mxu0 0
        %613 = vmatpush.bf16.msra.mxu0 %v535
        %614 = vmatmul.bf16.gmra.mxu0 %v523
        %v615 = vpop.f32.mrf.mxu0
        %v616 = vadd.f32 %v389, %v615
        %v617 = vpop.f32.mrf.mxu0
        %618 = vdwg.mxu0
        %619 = vmatpush.bf16.msra.mxu0 0
        %620 = vmatpush.bf16.msra.mxu0 0
        %621 = vmatpush.bf16.msra.mxu0 0
        %622 = vmatpush.bf16.msra.mxu0 0
        %623 = vmatpush.bf16.msra.mxu0 0
        %624 = vmatpush.bf16.msra.mxu0 0
        %625 = vmatpush.bf16.msra.mxu0 0
        %626 = vmatpush.bf16.msra.mxu0 %v538
        %627 = vmatmul.bf16.gmra.mxu0 %v523
        %v628 = vpop.f32.mrf.mxu0
        %v629 = vadd.f32 %v402, %v628
        %v630 = vpop.f32.mrf.mxu0
        %631 = vdwg.mxu0
        %632 = vmatpush.bf16.msra.mxu0 0
        %633 = vmatpush.bf16.msra.mxu0 0
        %634 = vmatpush.bf16.msra.mxu0 0
        %635 = vmatpush.bf16.msra.mxu0 0
        %636 = vmatpush.bf16.msra.mxu0 0
        %637 = vmatpush.bf16.msra.mxu0 0
        %638 = vmatpush.bf16.msra.mxu0 0
        %639 = vmatpush.bf16.msra.mxu0 %v541
        %640 = vmatmul.bf16.gmra.mxu0 %v523
        %v641 = vpop.f32.mrf.mxu0
        %v642 = vadd.f32 %v415, %v641
        %v643 = vpop.f32.mrf.mxu0
        %644 = vdwg.mxu0
        %645 = vmatpush.bf16.msra.mxu0 0
        %646 = vmatpush.bf16.msra.mxu0 0
        %647 = vmatpush.bf16.msra.mxu0 0
        %648 = vmatpush.bf16.msra.mxu0 0
        %649 = vmatpush.bf16.msra.mxu0 0
        %650 = vmatpush.bf16.msra.mxu0 0
        %651 = vmatpush.bf16.msra.mxu0 0
        %652 = vmatpush.bf16.msra.mxu0 %v544
        %653 = vmatmul.bf16.gmra.mxu0 %v523
        %v654 = vpop.f32.mrf.mxu0
        %v655 = vadd.f32 %v428, %v654
        %v656 = vpop.f32.mrf.mxu0
        %657 = vdwg.mxu0
        %658 = vmatpush.bf16.msra.mxu0 0
        %659 = vmatpush.bf16.msra.mxu0 0
        %660 = vmatpush.bf16.msra.mxu0 0
        %661 = vmatpush.bf16.msra.mxu0 0
        %662 = vmatpush.bf16.msra.mxu0 0
        %663 = vmatpush.bf16.msra.mxu0 0
        %664 = vmatpush.bf16.msra.mxu0 0
        %665 = vmatpush.bf16.msra.mxu0 %v547
        %666 = vmatmul.bf16.gmra.mxu0 %v523
        %v667 = vpop.f32.mrf.mxu0
        %v668 = vadd.f32 %v441, %v667
        %v669 = vpop.f32.mrf.mxu0
        %670 = vdwg.mxu0
        %671 = vmatpush.bf16.msra.mxu0 0
        %672 = vmatpush.bf16.msra.mxu0 0
        %673 = vmatpush.bf16.msra.mxu0 0
        %674 = vmatpush.bf16.msra.mxu0 0
        %675 = vmatpush.bf16.msra.mxu0 0
        %676 = vmatpush.bf16.msra.mxu0 0
        %677 = vmatpush.bf16.msra.mxu0 0
        %678 = vmatpush.bf16.msra.mxu0 %v550
        %679 = vmatmul.bf16.gmra.mxu0 %v523
        %v680 = vpop.f32.mrf.mxu0
        %v681 = vadd.f32 %v454, %v680
        %v682 = vpop.f32.mrf.mxu0
        %683 = vdwg.mxu0
        %684 = vmatpush.bf16.msra.mxu0 0
        %685 = vmatpush.bf16.msra.mxu0 0
        %686 = vmatpush.bf16.msra.mxu0 0
        %687 = vmatpush.bf16.msra.mxu0 0
        %688 = vmatpush.bf16.msra.mxu0 0
        %689 = vmatpush.bf16.msra.mxu0 0
        %690 = vmatpush.bf16.msra.mxu0 0
        %691 = vmatpush.bf16.msra.mxu0 %v553
        %692 = vmatmul.bf16.gmra.mxu0 %v523
        %v693 = vpop.f32.mrf.mxu0
        %v694 = vadd.f32 %v467, %v693
        %v695 = vpop.f32.mrf.mxu0
        %696 = vdwg.mxu0
        %697 = vmatpush.bf16.msra.mxu0 0
        %698 = vmatpush.bf16.msra.mxu0 0
        %699 = vmatpush.bf16.msra.mxu0 0
        %700 = vmatpush.bf16.msra.mxu0 0
        %701 = vmatpush.bf16.msra.mxu0 0
        %702 = vmatpush.bf16.msra.mxu0 0
        %703 = vmatpush.bf16.msra.mxu0 0
        %704 = vmatpush.bf16.msra.mxu0 %v556
        %705 = vmatmul.bf16.gmra.mxu0 %v523
        %v706 = vpop.f32.mrf.mxu0
        %v707 = vadd.f32 %v480, %v706
        %v708 = vpop.f32.mrf.mxu0
        %709 = vdwg.mxu0
        %710 = vmatpush.bf16.msra.mxu0 0
        %711 = vmatpush.bf16.msra.mxu0 0
        %712 = vmatpush.bf16.msra.mxu0 0
        %713 = vmatpush.bf16.msra.mxu0 0
        %714 = vmatpush.bf16.msra.mxu0 0
        %715 = vmatpush.bf16.msra.mxu0 0
        %716 = vmatpush.bf16.msra.mxu0 0
        %717 = vmatpush.bf16.msra.mxu0 %v559
        %718 = vmatmul.bf16.gmra.mxu0 %v523
        %v719 = vpop.f32.mrf.mxu0
        %v720 = vadd.f32 %v493, %v719
        %v721 = vpop.f32.mrf.mxu0
        %722 = vdwg.mxu0
        %723 = vmatpush.bf16.msra.mxu0 0
        %724 = vmatpush.bf16.msra.mxu0 0
        %725 = vmatpush.bf16.msra.mxu0 0
        %726 = vmatpush.bf16.msra.mxu0 0
        %727 = vmatpush.bf16.msra.mxu0 0
        %728 = vmatpush.bf16.msra.mxu0 0
        %729 = vmatpush.bf16.msra.mxu0 0
        %730 = vmatpush.bf16.msra.mxu0 %v562
        %731 = vmatmul.bf16.gmra.mxu0 %v523
        %v732 = vpop.f32.mrf.mxu0
        %v733 = vadd.f32 %v506, %v732
        %v734 = vpop.f32.mrf.mxu0
        %735 = vdwg.mxu0
        %736 = vmatpush.bf16.msra.mxu0 0
        %737 = vmatpush.bf16.msra.mxu0 0
        %738 = vmatpush.bf16.msra.mxu0 0
        %739 = vmatpush.bf16.msra.mxu0 0
        %740 = vmatpush.bf16.msra.mxu0 0
        %741 = vmatpush.bf16.msra.mxu0 0
        %742 = vmatpush.bf16.msra.mxu0 0
        %743 = vmatpush.bf16.msra.mxu0 %v565
        %744 = vmatmul.bf16.gmra.mxu0 %v523
        %v745 = vpop.f32.mrf.mxu0
        %v746 = vadd.f32 %v519, %v745
        %v747 = vpop.f32.mrf.mxu0
        %748 = vdwg.mxu0
        %v749 = vld [vmem:[%s1 + $0x10] sm:$0xff]
        %v750 = vpack.c.bf16 %v749, %v749
        %751 = vrot.lane.b32.xlu0 %v233, 126
        %v752 = vpop.permute.xlu0 %751
        %753 = vrot.lane.b32.xlu0 %v234, 126
        %v754 = vpop.permute.xlu0 %753
        %755 = vrot.lane.b32.xlu0 %v235, 126
        %v756 = vpop.permute.xlu0 %755
        %757 = vrot.lane.b32.xlu0 %v236, 126
        %v758 = vpop.permute.xlu0 %757
        %759 = vrot.lane.b32.xlu0 %v237, 126
        %v760 = vpop.permute.xlu0 %759
        %761 = vrot.lane.b32.xlu0 %v238, 126
        %v762 = vpop.permute.xlu0 %761
        %763 = vrot.lane.b32.xlu0 %v239, 126
        %v764 = vpop.permute.xlu0 %763
        %765 = vrot.lane.b32.xlu0 %v240, 126
        %v766 = vpop.permute.xlu0 %765
        %767 = vrot.lane.b32.xlu0 %v241, 126
        %v768 = vpop.permute.xlu0 %767
        %769 = vrot.lane.b32.xlu0 %v242, 126
        %v770 = vpop.permute.xlu0 %769
        %771 = vrot.lane.b32.xlu0 %v243, 126
        %v772 = vpop.permute.xlu0 %771
        %773 = vrot.lane.b32.xlu0 %v244, 126
        %v774 = vpop.permute.xlu0 %773
        %775 = vrot.lane.b32.xlu0 %v245, 126
        %v776 = vpop.permute.xlu0 %775
        %777 = vrot.lane.b32.xlu0 %v246, 126
        %v778 = vpop.permute.xlu0 %777
        %779 = vrot.lane.b32.xlu0 %v247, 126
        %v780 = vpop.permute.xlu0 %779
        %vm781 = vcmask 1031168
        %v782 = vsel %vm781, %v752, %v754
        %v783 = vsel %vm781, %v754, %v756
        %v784 = vsel %vm781, %v756, %v758
        %v785 = vsel %vm781, %v758, %v760
        %v786 = vsel %vm781, %v760, %v762
        %v787 = vsel %vm781, %v762, %v764
        %v788 = vsel %vm781, %v764, %v766
        %v789 = vsel %vm781, %v766, %v768
        %v790 = vsel %vm781, %v768, %v770
        %v791 = vsel %vm781, %v770, %v772
        %v792 = vsel %vm781, %v772, %v774
        %v793 = vsel %vm781, %v774, %v776
        %v794 = vsel %vm781, %v776, %v778
        %v795 = vsel %vm781, %v778, %v780
        %v797 = vsel %vm293, %v750, 0
        %v800 = vsel %vm297, %v782, 0
        %v803 = vsel %vm297, %v783, 0
        %v806 = vsel %vm297, %v784, 0
        %v809 = vsel %vm297, %v785, 0
        %v812 = vsel %vm297, %v786, 0
        %v815 = vsel %vm297, %v787, 0
        %v818 = vsel %vm297, %v788, 0
        %v821 = vsel %vm297, %v789, 0
        %v824 = vsel %vm297, %v790, 0
        %v827 = vsel %vm297, %v791, 0
        %v830 = vsel %vm297, %v792, 0
        %v833 = vsel %vm297, %v793, 0
        %v836 = vsel %vm297, %v794, 0
        %v839 = vsel %vm297, %v795, 0
        %841 = vmatpush.bf16.msra.mxu0 0
        %842 = vmatpush.bf16.msra.mxu0 0
        %843 = vmatpush.bf16.msra.mxu0 0
        %844 = vmatpush.bf16.msra.mxu0 0
        %845 = vmatpush.bf16.msra.mxu0 0
        %846 = vmatpush.bf16.msra.mxu0 0
        %847 = vmatpush.bf16.msra.mxu0 0
        %848 = vmatpush.bf16.msra.mxu0 %v800
        %849 = vmatmul.bf16.gmra.mxu0 %v797
        %v850 = vpop.f32.mrf.mxu0
        %v851 = vadd.f32 0.0, %v850
        %v852 = vpop.f32.mrf.mxu0
        %853 = vdwg.mxu0
        %854 = vmatpush.bf16.msra.mxu0 0
        %855 = vmatpush.bf16.msra.mxu0 0
        %856 = vmatpush.bf16.msra.mxu0 0
        %857 = vmatpush.bf16.msra.mxu0 0
        %858 = vmatpush.bf16.msra.mxu0 0
        %859 = vmatpush.bf16.msra.mxu0 0
        %860 = vmatpush.bf16.msra.mxu0 0
        %861 = vmatpush.bf16.msra.mxu0 %v803
        %862 = vmatmul.bf16.gmra.mxu0 %v797
        %v863 = vpop.f32.mrf.mxu0
        %v864 = vadd.f32 0.0, %v863
        %v865 = vpop.f32.mrf.mxu0
        %866 = vdwg.mxu0
        %867 = vmatpush.bf16.msra.mxu0 0
        %868 = vmatpush.bf16.msra.mxu0 0
        %869 = vmatpush.bf16.msra.mxu0 0
        %870 = vmatpush.bf16.msra.mxu0 0
        %871 = vmatpush.bf16.msra.mxu0 0
        %872 = vmatpush.bf16.msra.mxu0 0
        %873 = vmatpush.bf16.msra.mxu0 0
        %874 = vmatpush.bf16.msra.mxu0 %v806
        %875 = vmatmul.bf16.gmra.mxu0 %v797
        %v876 = vpop.f32.mrf.mxu0
        %v877 = vadd.f32 0.0, %v876
        %v878 = vpop.f32.mrf.mxu0
        %879 = vdwg.mxu0
        %880 = vmatpush.bf16.msra.mxu0 0
        %881 = vmatpush.bf16.msra.mxu0 0
        %882 = vmatpush.bf16.msra.mxu0 0
        %883 = vmatpush.bf16.msra.mxu0 0
        %884 = vmatpush.bf16.msra.mxu0 0
        %885 = vmatpush.bf16.msra.mxu0 0
        %886 = vmatpush.bf16.msra.mxu0 0
        %887 = vmatpush.bf16.msra.mxu0 %v809
        %888 = vmatmul.bf16.gmra.mxu0 %v797
        %v889 = vpop.f32.mrf.mxu0
        %v890 = vadd.f32 0.0, %v889
        %v891 = vpop.f32.mrf.mxu0
        %892 = vdwg.mxu0
        %893 = vmatpush.bf16.msra.mxu0 0
        %894 = vmatpush.bf16.msra.mxu0 0
        %895 = vmatpush.bf16.msra.mxu0 0
        %896 = vmatpush.bf16.msra.mxu0 0
        %897 = vmatpush.bf16.msra.mxu0 0
        %898 = vmatpush.bf16.msra.mxu0 0
        %899 = vmatpush.bf16.msra.mxu0 0
        %900 = vmatpush.bf16.msra.mxu0 %v812
        %901 = vmatmul.bf16.gmra.mxu0 %v797
        %v902 = vpop.f32.mrf.mxu0
        %v903 = vadd.f32 0.0, %v902
        %v904 = vpop.f32.mrf.mxu0
        %905 = vdwg.mxu0
        %906 = vmatpush.bf16.msra.mxu0 0
        %907 = vmatpush.bf16.msra.mxu0 0
        %908 = vmatpush.bf16.msra.mxu0 0
        %909 = vmatpush.bf16.msra.mxu0 0
        %910 = vmatpush.bf16.msra.mxu0 0
        %911 = vmatpush.bf16.msra.mxu0 0
        %912 = vmatpush.bf16.msra.mxu0 0
        %913 = vmatpush.bf16.msra.mxu0 %v815
        %914 = vmatmul.bf16.gmra.mxu0 %v797
        %v915 = vpop.f32.mrf.mxu0
        %v916 = vadd.f32 0.0, %v915
        %v917 = vpop.f32.mrf.mxu0
        %918 = vdwg.mxu0
        %919 = vmatpush.bf16.msra.mxu0 0
        %920 = vmatpush.bf16.msra.mxu0 0
        %921 = vmatpush.bf16.msra.mxu0 0
        %922 = vmatpush.bf16.msra.mxu0 0
        %923 = vmatpush.bf16.msra.mxu0 0
        %924 = vmatpush.bf16.msra.mxu0 0
        %925 = vmatpush.bf16.msra.mxu0 0
        %926 = vmatpush.bf16.msra.mxu0 %v818
        %927 = vmatmul.bf16.gmra.mxu0 %v797
        %v928 = vpop.f32.mrf.mxu0
        %v929 = vadd.f32 0.0, %v928
        %v930 = vpop.f32.mrf.mxu0
        %931 = vdwg.mxu0
        %932 = vmatpush.bf16.msra.mxu0 0
        %933 = vmatpush.bf16.msra.mxu0 0
        %934 = vmatpush.bf16.msra.mxu0 0
        %935 = vmatpush.bf16.msra.mxu0 0
        %936 = vmatpush.bf16.msra.mxu0 0
        %937 = vmatpush.bf16.msra.mxu0 0
        %938 = vmatpush.bf16.msra.mxu0 0
        %939 = vmatpush.bf16.msra.mxu0 %v821
        %940 = vmatmul.bf16.gmra.mxu0 %v797
        %v941 = vpop.f32.mrf.mxu0
        %v942 = vadd.f32 0.0, %v941
        %v943 = vpop.f32.mrf.mxu0
        %944 = vdwg.mxu0
        %945 = vmatpush.bf16.msra.mxu0 0
        %946 = vmatpush.bf16.msra.mxu0 0
        %947 = vmatpush.bf16.msra.mxu0 0
        %948 = vmatpush.bf16.msra.mxu0 0
        %949 = vmatpush.bf16.msra.mxu0 0
        %950 = vmatpush.bf16.msra.mxu0 0
        %951 = vmatpush.bf16.msra.mxu0 0
        %952 = vmatpush.bf16.msra.mxu0 %v824
        %953 = vmatmul.bf16.gmra.mxu0 %v797
        %v954 = vpop.f32.mrf.mxu0
        %v955 = vadd.f32 0.0, %v954
        %v956 = vpop.f32.mrf.mxu0
        %957 = vdwg.mxu0
        %958 = vmatpush.bf16.msra.mxu0 0
        %959 = vmatpush.bf16.msra.mxu0 0
        %960 = vmatpush.bf16.msra.mxu0 0
        %961 = vmatpush.bf16.msra.mxu0 0
        %962 = vmatpush.bf16.msra.mxu0 0
        %963 = vmatpush.bf16.msra.mxu0 0
        %964 = vmatpush.bf16.msra.mxu0 0
        %965 = vmatpush.bf16.msra.mxu0 %v827
        %966 = vmatmul.bf16.gmra.mxu0 %v797
        %v967 = vpop.f32.mrf.mxu0
        %v968 = vadd.f32 0.0, %v967
        %v969 = vpop.f32.mrf.mxu0
        %970 = vdwg.mxu0
        %971 = vmatpush.bf16.msra.mxu0 0
        %972 = vmatpush.bf16.msra.mxu0 0
        %973 = vmatpush.bf16.msra.mxu0 0
        %974 = vmatpush.bf16.msra.mxu0 0
        %975 = vmatpush.bf16.msra.mxu0 0
        %976 = vmatpush.bf16.msra.mxu0 0
        %977 = vmatpush.bf16.msra.mxu0 0
        %978 = vmatpush.bf16.msra.mxu0 %v830
        %979 = vmatmul.bf16.gmra.mxu0 %v797
        %v980 = vpop.f32.mrf.mxu0
        %v981 = vadd.f32 0.0, %v980
        %v982 = vpop.f32.mrf.mxu0
        %983 = vdwg.mxu0
        %984 = vmatpush.bf16.msra.mxu0 0
        %985 = vmatpush.bf16.msra.mxu0 0
        %986 = vmatpush.bf16.msra.mxu0 0
        %987 = vmatpush.bf16.msra.mxu0 0
        %988 = vmatpush.bf16.msra.mxu0 0
        %989 = vmatpush.bf16.msra.mxu0 0
        %990 = vmatpush.bf16.msra.mxu0 0
        %991 = vmatpush.bf16.msra.mxu0 %v833
        %992 = vmatmul.bf16.gmra.mxu0 %v797
        %v993 = vpop.f32.mrf.mxu0
        %v994 = vadd.f32 0.0, %v993
        %v995 = vpop.f32.mrf.mxu0
        %996 = vdwg.mxu0
        %997 = vmatpush.bf16.msra.mxu0 0
        %998 = vmatpush.bf16.msra.mxu0 0
        %999 = vmatpush.bf16.msra.mxu0 0
        %1000 = vmatpush.bf16.msra.mxu0 0
        %1001 = vmatpush.bf16.msra.mxu0 0
        %1002 = vmatpush.bf16.msra.mxu0 0
        %1003 = vmatpush.bf16.msra.mxu0 0
        %1004 = vmatpush.bf16.msra.mxu0 %v836
        %1005 = vmatmul.bf16.gmra.mxu0 %v797
        %v1006 = vpop.f32.mrf.mxu0
        %v1007 = vadd.f32 0.0, %v1006
        %v1008 = vpop.f32.mrf.mxu0
        %1009 = vdwg.mxu0
        %1010 = vmatpush.bf16.msra.mxu0 0
        %1011 = vmatpush.bf16.msra.mxu0 0
        %1012 = vmatpush.bf16.msra.mxu0 0
        %1013 = vmatpush.bf16.msra.mxu0 0
        %1014 = vmatpush.bf16.msra.mxu0 0
        %1015 = vmatpush.bf16.msra.mxu0 0
        %1016 = vmatpush.bf16.msra.mxu0 0
        %1017 = vmatpush.bf16.msra.mxu0 %v839
        %1018 = vmatmul.bf16.gmra.mxu0 %v797
        %v1019 = vpop.f32.mrf.mxu0
        %v1020 = vadd.f32 0.0, %v1019
        %v1021 = vpop.f32.mrf.mxu0
        %1022 = vdwg.mxu0
        %v1023 = vadd.f32 %v577, %v851
        %v1024 = vadd.f32 %v590, %v864
        %v1025 = vadd.f32 %v603, %v877
        %v1026 = vadd.f32 %v616, %v890
        %v1027 = vadd.f32 %v629, %v903
        %v1028 = vadd.f32 %v642, %v916
        %v1029 = vadd.f32 %v655, %v929
        %v1030 = vadd.f32 %v668, %v942
        %v1031 = vadd.f32 %v681, %v955
        %v1032 = vadd.f32 %v694, %v968
        %v1033 = vadd.f32 %v707, %v981
        %v1034 = vadd.f32 %v720, %v994
        %v1035 = vadd.f32 %v733, %v1007
        %v1036 = vadd.f32 %v746, %v1020
        %v1037 = vld [vmem:[%s1 + $0x18] sm:$0xff]
        %v1038 = vpack.c.bf16 %v1037, %v1037
        %1039 = vrot.lane.b32.xlu0 %v233, 116
        %v1040 = vpop.permute.xlu0 %1039
        %1041 = vrot.lane.b32.xlu0 %v234, 116
        %v1042 = vpop.permute.xlu0 %1041
        %1043 = vrot.lane.b32.xlu0 %v235, 116
        %v1044 = vpop.permute.xlu0 %1043
        %1045 = vrot.lane.b32.xlu0 %v236, 116
        %v1046 = vpop.permute.xlu0 %1045
        %1047 = vrot.lane.b32.xlu0 %v237, 116
        %v1048 = vpop.permute.xlu0 %1047
        %1049 = vrot.lane.b32.xlu0 %v238, 116
        %v1050 = vpop.permute.xlu0 %1049
        %1051 = vrot.lane.b32.xlu0 %v239, 116
        %v1052 = vpop.permute.xlu0 %1051
        %1053 = vrot.lane.b32.xlu0 %v240, 116
        %v1054 = vpop.permute.xlu0 %1053
        %1055 = vrot.lane.b32.xlu0 %v241, 116
        %v1056 = vpop.permute.xlu0 %1055
        %1057 = vrot.lane.b32.xlu0 %v242, 116
        %v1058 = vpop.permute.xlu0 %1057
        %1059 = vrot.lane.b32.xlu0 %v243, 116
        %v1060 = vpop.permute.xlu0 %1059
        %1061 = vrot.lane.b32.xlu0 %v244, 116
        %v1062 = vpop.permute.xlu0 %1061
        %1063 = vrot.lane.b32.xlu0 %v245, 116
        %v1064 = vpop.permute.xlu0 %1063
        %1065 = vrot.lane.b32.xlu0 %v246, 116
        %v1066 = vpop.permute.xlu0 %1065
        %1067 = vrot.lane.b32.xlu0 %v247, 116
        %v1068 = vpop.permute.xlu0 %1067
        %vm1069 = vcmask 949248
        %v1070 = vsel %vm1069, %v1040, %v1042
        %v1071 = vsel %vm1069, %v1042, %v1044
        %v1072 = vsel %vm1069, %v1044, %v1046
        %v1073 = vsel %vm1069, %v1046, %v1048
        %v1074 = vsel %vm1069, %v1048, %v1050
        %v1075 = vsel %vm1069, %v1050, %v1052
        %v1076 = vsel %vm1069, %v1052, %v1054
        %v1077 = vsel %vm1069, %v1054, %v1056
        %v1078 = vsel %vm1069, %v1056, %v1058
        %v1079 = vsel %vm1069, %v1058, %v1060
        %v1080 = vsel %vm1069, %v1060, %v1062
        %v1081 = vsel %vm1069, %v1062, %v1064
        %v1082 = vsel %vm1069, %v1064, %v1066
        %v1083 = vsel %vm1069, %v1066, %v1068
        %v1085 = vsel %vm293, %v1038, 0
        %v1088 = vsel %vm297, %v1070, 0
        %v1091 = vsel %vm297, %v1071, 0
        %v1094 = vsel %vm297, %v1072, 0
        %v1097 = vsel %vm297, %v1073, 0
        %v1100 = vsel %vm297, %v1074, 0
        %v1103 = vsel %vm297, %v1075, 0
        %v1106 = vsel %vm297, %v1076, 0
        %v1109 = vsel %vm297, %v1077, 0
        %v1112 = vsel %vm297, %v1078, 0
        %v1115 = vsel %vm297, %v1079, 0
        %v1118 = vsel %vm297, %v1080, 0
        %v1121 = vsel %vm297, %v1081, 0
        %v1124 = vsel %vm297, %v1082, 0
        %v1127 = vsel %vm297, %v1083, 0
        %1129 = vmatpush.bf16.msra.mxu0 0
        %1130 = vmatpush.bf16.msra.mxu0 0
        %1131 = vmatpush.bf16.msra.mxu0 0
        %1132 = vmatpush.bf16.msra.mxu0 0
        %1133 = vmatpush.bf16.msra.mxu0 0
        %1134 = vmatpush.bf16.msra.mxu0 0
        %1135 = vmatpush.bf16.msra.mxu0 0
        %1136 = vmatpush.bf16.msra.mxu0 %v1088
        %1137 = vmatmul.bf16.gmra.mxu0 %v1085
        %v1138 = vpop.f32.mrf.mxu0
        %v1139 = vadd.f32 0.0, %v1138
        %v1140 = vpop.f32.mrf.mxu0
        %1141 = vdwg.mxu0
        %1142 = vmatpush.bf16.msra.mxu0 0
        %1143 = vmatpush.bf16.msra.mxu0 0
        %1144 = vmatpush.bf16.msra.mxu0 0
        %1145 = vmatpush.bf16.msra.mxu0 0
        %1146 = vmatpush.bf16.msra.mxu0 0
        %1147 = vmatpush.bf16.msra.mxu0 0
        %1148 = vmatpush.bf16.msra.mxu0 0
        %1149 = vmatpush.bf16.msra.mxu0 %v1091
        %1150 = vmatmul.bf16.gmra.mxu0 %v1085
        %v1151 = vpop.f32.mrf.mxu0
        %v1152 = vadd.f32 0.0, %v1151
        %v1153 = vpop.f32.mrf.mxu0
        %1154 = vdwg.mxu0
        %1155 = vmatpush.bf16.msra.mxu0 0
        %1156 = vmatpush.bf16.msra.mxu0 0
        %1157 = vmatpush.bf16.msra.mxu0 0
        %1158 = vmatpush.bf16.msra.mxu0 0
        %1159 = vmatpush.bf16.msra.mxu0 0
        %1160 = vmatpush.bf16.msra.mxu0 0
        %1161 = vmatpush.bf16.msra.mxu0 0
        %1162 = vmatpush.bf16.msra.mxu0 %v1094
        %1163 = vmatmul.bf16.gmra.mxu0 %v1085
        %v1164 = vpop.f32.mrf.mxu0
        %v1165 = vadd.f32 0.0, %v1164
        %v1166 = vpop.f32.mrf.mxu0
        %1167 = vdwg.mxu0
        %1168 = vmatpush.bf16.msra.mxu0 0
        %1169 = vmatpush.bf16.msra.mxu0 0
        %1170 = vmatpush.bf16.msra.mxu0 0
        %1171 = vmatpush.bf16.msra.mxu0 0
        %1172 = vmatpush.bf16.msra.mxu0 0
        %1173 = vmatpush.bf16.msra.mxu0 0
        %1174 = vmatpush.bf16.msra.mxu0 0
        %1175 = vmatpush.bf16.msra.mxu0 %v1097
        %1176 = vmatmul.bf16.gmra.mxu0 %v1085
        %v1177 = vpop.f32.mrf.mxu0
        %v1178 = vadd.f32 0.0, %v1177
        %v1179 = vpop.f32.mrf.mxu0
        %1180 = vdwg.mxu0
        %1181 = vmatpush.bf16.msra.mxu0 0
        %1182 = vmatpush.bf16.msra.mxu0 0
        %1183 = vmatpush.bf16.msra.mxu0 0
        %1184 = vmatpush.bf16.msra.mxu0 0
        %1185 = vmatpush.bf16.msra.mxu0 0
        %1186 = vmatpush.bf16.msra.mxu0 0
        %1187 = vmatpush.bf16.msra.mxu0 0
        %1188 = vmatpush.bf16.msra.mxu0 %v1100
        %1189 = vmatmul.bf16.gmra.mxu0 %v1085
        %v1190 = vpop.f32.mrf.mxu0
        %v1191 = vadd.f32 0.0, %v1190
        %v1192 = vpop.f32.mrf.mxu0
        %1193 = vdwg.mxu0
        %1194 = vmatpush.bf16.msra.mxu0 0
        %1195 = vmatpush.bf16.msra.mxu0 0
        %1196 = vmatpush.bf16.msra.mxu0 0
        %1197 = vmatpush.bf16.msra.mxu0 0
        %1198 = vmatpush.bf16.msra.mxu0 0
        %1199 = vmatpush.bf16.msra.mxu0 0
        %1200 = vmatpush.bf16.msra.mxu0 0
        %1201 = vmatpush.bf16.msra.mxu0 %v1103
        %1202 = vmatmul.bf16.gmra.mxu0 %v1085
        %v1203 = vpop.f32.mrf.mxu0
        %v1204 = vadd.f32 0.0, %v1203
        %v1205 = vpop.f32.mrf.mxu0
        %1206 = vdwg.mxu0
        %1207 = vmatpush.bf16.msra.mxu0 0
        %1208 = vmatpush.bf16.msra.mxu0 0
        %1209 = vmatpush.bf16.msra.mxu0 0
        %1210 = vmatpush.bf16.msra.mxu0 0
        %1211 = vmatpush.bf16.msra.mxu0 0
        %1212 = vmatpush.bf16.msra.mxu0 0
        %1213 = vmatpush.bf16.msra.mxu0 0
        %1214 = vmatpush.bf16.msra.mxu0 %v1106
        %1215 = vmatmul.bf16.gmra.mxu0 %v1085
        %v1216 = vpop.f32.mrf.mxu0
        %v1217 = vadd.f32 0.0, %v1216
        %v1218 = vpop.f32.mrf.mxu0
        %1219 = vdwg.mxu0
        %1220 = vmatpush.bf16.msra.mxu0 0
        %1221 = vmatpush.bf16.msra.mxu0 0
        %1222 = vmatpush.bf16.msra.mxu0 0
        %1223 = vmatpush.bf16.msra.mxu0 0
        %1224 = vmatpush.bf16.msra.mxu0 0
        %1225 = vmatpush.bf16.msra.mxu0 0
        %1226 = vmatpush.bf16.msra.mxu0 0
        %1227 = vmatpush.bf16.msra.mxu0 %v1109
        %1228 = vmatmul.bf16.gmra.mxu0 %v1085
        %v1229 = vpop.f32.mrf.mxu0
        %v1230 = vadd.f32 0.0, %v1229
        %v1231 = vpop.f32.mrf.mxu0
        %1232 = vdwg.mxu0
        %1233 = vmatpush.bf16.msra.mxu0 0
        %1234 = vmatpush.bf16.msra.mxu0 0
        %1235 = vmatpush.bf16.msra.mxu0 0
        %1236 = vmatpush.bf16.msra.mxu0 0
        %1237 = vmatpush.bf16.msra.mxu0 0
        %1238 = vmatpush.bf16.msra.mxu0 0
        %1239 = vmatpush.bf16.msra.mxu0 0
        %1240 = vmatpush.bf16.msra.mxu0 %v1112
        %1241 = vmatmul.bf16.gmra.mxu0 %v1085
        %v1242 = vpop.f32.mrf.mxu0
        %v1243 = vadd.f32 0.0, %v1242
        %v1244 = vpop.f32.mrf.mxu0
        %1245 = vdwg.mxu0
        %1246 = vmatpush.bf16.msra.mxu0 0
        %1247 = vmatpush.bf16.msra.mxu0 0
        %1248 = vmatpush.bf16.msra.mxu0 0
        %1249 = vmatpush.bf16.msra.mxu0 0
        %1250 = vmatpush.bf16.msra.mxu0 0
        %1251 = vmatpush.bf16.msra.mxu0 0
        %1252 = vmatpush.bf16.msra.mxu0 0
        %1253 = vmatpush.bf16.msra.mxu0 %v1115
        %1254 = vmatmul.bf16.gmra.mxu0 %v1085
        %v1255 = vpop.f32.mrf.mxu0
        %v1256 = vadd.f32 0.0, %v1255
        %v1257 = vpop.f32.mrf.mxu0
        %1258 = vdwg.mxu0
        %1259 = vmatpush.bf16.msra.mxu0 0
        %1260 = vmatpush.bf16.msra.mxu0 0
        %1261 = vmatpush.bf16.msra.mxu0 0
        %1262 = vmatpush.bf16.msra.mxu0 0
        %1263 = vmatpush.bf16.msra.mxu0 0
        %1264 = vmatpush.bf16.msra.mxu0 0
        %1265 = vmatpush.bf16.msra.mxu0 0
        %1266 = vmatpush.bf16.msra.mxu0 %v1118
        %1267 = vmatmul.bf16.gmra.mxu0 %v1085
        %v1268 = vpop.f32.mrf.mxu0
        %v1269 = vadd.f32 0.0, %v1268
        %v1270 = vpop.f32.mrf.mxu0
        %1271 = vdwg.mxu0
        %1272 = vmatpush.bf16.msra.mxu0 0
        %1273 = vmatpush.bf16.msra.mxu0 0
        %1274 = vmatpush.bf16.msra.mxu0 0
        %1275 = vmatpush.bf16.msra.mxu0 0
        %1276 = vmatpush.bf16.msra.mxu0 0
        %1277 = vmatpush.bf16.msra.mxu0 0
        %1278 = vmatpush.bf16.msra.mxu0 0
        %1279 = vmatpush.bf16.msra.mxu0 %v1121
        %1280 = vmatmul.bf16.gmra.mxu0 %v1085
        %v1281 = vpop.f32.mrf.mxu0
        %v1282 = vadd.f32 0.0, %v1281
        %v1283 = vpop.f32.mrf.mxu0
        %1284 = vdwg.mxu0
        %1285 = vmatpush.bf16.msra.mxu0 0
        %1286 = vmatpush.bf16.msra.mxu0 0
        %1287 = vmatpush.bf16.msra.mxu0 0
        %1288 = vmatpush.bf16.msra.mxu0 0
        %1289 = vmatpush.bf16.msra.mxu0 0
        %1290 = vmatpush.bf16.msra.mxu0 0
        %1291 = vmatpush.bf16.msra.mxu0 0
        %1292 = vmatpush.bf16.msra.mxu0 %v1124
        %1293 = vmatmul.bf16.gmra.mxu0 %v1085
        %v1294 = vpop.f32.mrf.mxu0
        %v1295 = vadd.f32 0.0, %v1294
        %v1296 = vpop.f32.mrf.mxu0
        %1297 = vdwg.mxu0
        %1298 = vmatpush.bf16.msra.mxu0 0
        %1299 = vmatpush.bf16.msra.mxu0 0
        %1300 = vmatpush.bf16.msra.mxu0 0
        %1301 = vmatpush.bf16.msra.mxu0 0
        %1302 = vmatpush.bf16.msra.mxu0 0
        %1303 = vmatpush.bf16.msra.mxu0 0
        %1304 = vmatpush.bf16.msra.mxu0 0
        %1305 = vmatpush.bf16.msra.mxu0 %v1127
        %1306 = vmatmul.bf16.gmra.mxu0 %v1085
        %v1307 = vpop.f32.mrf.mxu0
        %v1308 = vadd.f32 0.0, %v1307
        %v1309 = vpop.f32.mrf.mxu0
        %1310 = vdwg.mxu0
        %v1311 = vadd.f32 %v1023, %v1139
        %v1312 = vadd.f32 %v1024, %v1152
        %v1313 = vadd.f32 %v1025, %v1165
        %v1314 = vadd.f32 %v1026, %v1178
        %v1315 = vadd.f32 %v1027, %v1191
        %v1316 = vadd.f32 %v1028, %v1204
        %v1317 = vadd.f32 %v1029, %v1217
        %v1318 = vadd.f32 %v1030, %v1230
        %v1319 = vadd.f32 %v1031, %v1243
        %v1320 = vadd.f32 %v1032, %v1256
        %v1321 = vadd.f32 %v1033, %v1269
        %v1322 = vadd.f32 %v1034, %v1282
        %v1323 = vadd.f32 %v1035, %v1295
        %v1324 = vadd.f32 %v1036, %v1308
        %v1325 = vld [vmem:[%s1 + $0x20] sm:$0xff]
        %v1326 = vpack.c.bf16 %v1325, %v1325
        %1327 = vrot.lane.b32.xlu0 %v233, 115
        %v1328 = vpop.permute.xlu0 %1327
        %1329 = vrot.lane.b32.xlu0 %v234, 115
        %v1330 = vpop.permute.xlu0 %1329
        %1331 = vrot.lane.b32.xlu0 %v235, 115
        %v1332 = vpop.permute.xlu0 %1331
        %1333 = vrot.lane.b32.xlu0 %v236, 115
        %v1334 = vpop.permute.xlu0 %1333
        %1335 = vrot.lane.b32.xlu0 %v237, 115
        %v1336 = vpop.permute.xlu0 %1335
        %1337 = vrot.lane.b32.xlu0 %v238, 115
        %v1338 = vpop.permute.xlu0 %1337
        %1339 = vrot.lane.b32.xlu0 %v239, 115
        %v1340 = vpop.permute.xlu0 %1339
        %1341 = vrot.lane.b32.xlu0 %v240, 115
        %v1342 = vpop.permute.xlu0 %1341
        %1343 = vrot.lane.b32.xlu0 %v241, 115
        %v1344 = vpop.permute.xlu0 %1343
        %1345 = vrot.lane.b32.xlu0 %v242, 115
        %v1346 = vpop.permute.xlu0 %1345
        %1347 = vrot.lane.b32.xlu0 %v243, 115
        %v1348 = vpop.permute.xlu0 %1347
        %1349 = vrot.lane.b32.xlu0 %v244, 115
        %v1350 = vpop.permute.xlu0 %1349
        %1351 = vrot.lane.b32.xlu0 %v245, 115
        %v1352 = vpop.permute.xlu0 %1351
        %1353 = vrot.lane.b32.xlu0 %v246, 115
        %v1354 = vpop.permute.xlu0 %1353
        %1355 = vrot.lane.b32.xlu0 %v247, 115
        %v1356 = vpop.permute.xlu0 %1355
        %vm1357 = vcmask 941056
        %v1358 = vsel %vm1357, %v1328, %v1330
        %v1359 = vsel %vm1357, %v1330, %v1332
        %v1360 = vsel %vm1357, %v1332, %v1334
        %v1361 = vsel %vm1357, %v1334, %v1336
        %v1362 = vsel %vm1357, %v1336, %v1338
        %v1363 = vsel %vm1357, %v1338, %v1340
        %v1364 = vsel %vm1357, %v1340, %v1342
        %v1365 = vsel %vm1357, %v1342, %v1344
        %v1366 = vsel %vm1357, %v1344, %v1346
        %v1367 = vsel %vm1357, %v1346, %v1348
        %v1368 = vsel %vm1357, %v1348, %v1350
        %v1369 = vsel %vm1357, %v1350, %v1352
        %v1370 = vsel %vm1357, %v1352, %v1354
        %v1371 = vsel %vm1357, %v1354, %v1356
        %v1373 = vsel %vm293, %v1326, 0
        %v1376 = vsel %vm297, %v1358, 0
        %v1379 = vsel %vm297, %v1359, 0
        %v1382 = vsel %vm297, %v1360, 0
        %v1385 = vsel %vm297, %v1361, 0
        %v1388 = vsel %vm297, %v1362, 0
        %v1391 = vsel %vm297, %v1363, 0
        %v1394 = vsel %vm297, %v1364, 0
        %v1397 = vsel %vm297, %v1365, 0
        %v1400 = vsel %vm297, %v1366, 0
        %v1403 = vsel %vm297, %v1367, 0
        %v1406 = vsel %vm297, %v1368, 0
        %v1409 = vsel %vm297, %v1369, 0
        %v1412 = vsel %vm297, %v1370, 0
        %v1415 = vsel %vm297, %v1371, 0
        %1417 = vmatpush.bf16.msra.mxu0 0
        %1418 = vmatpush.bf16.msra.mxu0 0
        %1419 = vmatpush.bf16.msra.mxu0 0
        %1420 = vmatpush.bf16.msra.mxu0 0
        %1421 = vmatpush.bf16.msra.mxu0 0
        %1422 = vmatpush.bf16.msra.mxu0 0
        %1423 = vmatpush.bf16.msra.mxu0 0
        %1424 = vmatpush.bf16.msra.mxu0 %v1376
        %1425 = vmatmul.bf16.gmra.mxu0 %v1373
        %v1426 = vpop.f32.mrf.mxu0
        %v1427 = vadd.f32 0.0, %v1426
        %v1428 = vpop.f32.mrf.mxu0
        %1429 = vdwg.mxu0
        %1430 = vmatpush.bf16.msra.mxu0 0
        %1431 = vmatpush.bf16.msra.mxu0 0
        %1432 = vmatpush.bf16.msra.mxu0 0
        %1433 = vmatpush.bf16.msra.mxu0 0
        %1434 = vmatpush.bf16.msra.mxu0 0
        %1435 = vmatpush.bf16.msra.mxu0 0
        %1436 = vmatpush.bf16.msra.mxu0 0
        %1437 = vmatpush.bf16.msra.mxu0 %v1379
        %1438 = vmatmul.bf16.gmra.mxu0 %v1373
        %v1439 = vpop.f32.mrf.mxu0
        %v1440 = vadd.f32 0.0, %v1439
        %v1441 = vpop.f32.mrf.mxu0
        %1442 = vdwg.mxu0
        %1443 = vmatpush.bf16.msra.mxu0 0
        %1444 = vmatpush.bf16.msra.mxu0 0
        %1445 = vmatpush.bf16.msra.mxu0 0
        %1446 = vmatpush.bf16.msra.mxu0 0
        %1447 = vmatpush.bf16.msra.mxu0 0
        %1448 = vmatpush.bf16.msra.mxu0 0
        %1449 = vmatpush.bf16.msra.mxu0 0
        %1450 = vmatpush.bf16.msra.mxu0 %v1382
        %1451 = vmatmul.bf16.gmra.mxu0 %v1373
        %v1452 = vpop.f32.mrf.mxu0
        %v1453 = vadd.f32 0.0, %v1452
        %v1454 = vpop.f32.mrf.mxu0
        %1455 = vdwg.mxu0
        %1456 = vmatpush.bf16.msra.mxu0 0
        %1457 = vmatpush.bf16.msra.mxu0 0
        %1458 = vmatpush.bf16.msra.mxu0 0
        %1459 = vmatpush.bf16.msra.mxu0 0
        %1460 = vmatpush.bf16.msra.mxu0 0
        %1461 = vmatpush.bf16.msra.mxu0 0
        %1462 = vmatpush.bf16.msra.mxu0 0
        %1463 = vmatpush.bf16.msra.mxu0 %v1385
        %1464 = vmatmul.bf16.gmra.mxu0 %v1373
        %v1465 = vpop.f32.mrf.mxu0
        %v1466 = vadd.f32 0.0, %v1465
        %v1467 = vpop.f32.mrf.mxu0
        %1468 = vdwg.mxu0
        %1469 = vmatpush.bf16.msra.mxu0 0
        %1470 = vmatpush.bf16.msra.mxu0 0
        %1471 = vmatpush.bf16.msra.mxu0 0
        %1472 = vmatpush.bf16.msra.mxu0 0
        %1473 = vmatpush.bf16.msra.mxu0 0
        %1474 = vmatpush.bf16.msra.mxu0 0
        %1475 = vmatpush.bf16.msra.mxu0 0
        %1476 = vmatpush.bf16.msra.mxu0 %v1388
        %1477 = vmatmul.bf16.gmra.mxu0 %v1373
        %v1478 = vpop.f32.mrf.mxu0
        %v1479 = vadd.f32 0.0, %v1478
        %v1480 = vpop.f32.mrf.mxu0
        %1481 = vdwg.mxu0
        %1482 = vmatpush.bf16.msra.mxu0 0
        %1483 = vmatpush.bf16.msra.mxu0 0
        %1484 = vmatpush.bf16.msra.mxu0 0
        %1485 = vmatpush.bf16.msra.mxu0 0
        %1486 = vmatpush.bf16.msra.mxu0 0
        %1487 = vmatpush.bf16.msra.mxu0 0
        %1488 = vmatpush.bf16.msra.mxu0 0
        %1489 = vmatpush.bf16.msra.mxu0 %v1391
        %1490 = vmatmul.bf16.gmra.mxu0 %v1373
        %v1491 = vpop.f32.mrf.mxu0
        %v1492 = vadd.f32 0.0, %v1491
        %v1493 = vpop.f32.mrf.mxu0
        %1494 = vdwg.mxu0
        %1495 = vmatpush.bf16.msra.mxu0 0
        %1496 = vmatpush.bf16.msra.mxu0 0
        %1497 = vmatpush.bf16.msra.mxu0 0
        %1498 = vmatpush.bf16.msra.mxu0 0
        %1499 = vmatpush.bf16.msra.mxu0 0
        %1500 = vmatpush.bf16.msra.mxu0 0
        %1501 = vmatpush.bf16.msra.mxu0 0
        %1502 = vmatpush.bf16.msra.mxu0 %v1394
        %1503 = vmatmul.bf16.gmra.mxu0 %v1373
        %v1504 = vpop.f32.mrf.mxu0
        %v1505 = vadd.f32 0.0, %v1504
        %v1506 = vpop.f32.mrf.mxu0
        %1507 = vdwg.mxu0
        %1508 = vmatpush.bf16.msra.mxu0 0
        %1509 = vmatpush.bf16.msra.mxu0 0
        %1510 = vmatpush.bf16.msra.mxu0 0
        %1511 = vmatpush.bf16.msra.mxu0 0
        %1512 = vmatpush.bf16.msra.mxu0 0
        %1513 = vmatpush.bf16.msra.mxu0 0
        %1514 = vmatpush.bf16.msra.mxu0 0
        %1515 = vmatpush.bf16.msra.mxu0 %v1397
        %1516 = vmatmul.bf16.gmra.mxu0 %v1373
        %v1517 = vpop.f32.mrf.mxu0
        %v1518 = vadd.f32 0.0, %v1517
        %v1519 = vpop.f32.mrf.mxu0
        %1520 = vdwg.mxu0
        %1521 = vmatpush.bf16.msra.mxu0 0
        %1522 = vmatpush.bf16.msra.mxu0 0
        %1523 = vmatpush.bf16.msra.mxu0 0
        %1524 = vmatpush.bf16.msra.mxu0 0
        %1525 = vmatpush.bf16.msra.mxu0 0
        %1526 = vmatpush.bf16.msra.mxu0 0
        %1527 = vmatpush.bf16.msra.mxu0 0
        %1528 = vmatpush.bf16.msra.mxu0 %v1400
        %1529 = vmatmul.bf16.gmra.mxu0 %v1373
        %v1530 = vpop.f32.mrf.mxu0
        %v1531 = vadd.f32 0.0, %v1530
        %v1532 = vpop.f32.mrf.mxu0
        %1533 = vdwg.mxu0
        %1534 = vmatpush.bf16.msra.mxu0 0
        %1535 = vmatpush.bf16.msra.mxu0 0
        %1536 = vmatpush.bf16.msra.mxu0 0
        %1537 = vmatpush.bf16.msra.mxu0 0
        %1538 = vmatpush.bf16.msra.mxu0 0
        %1539 = vmatpush.bf16.msra.mxu0 0
        %1540 = vmatpush.bf16.msra.mxu0 0
        %1541 = vmatpush.bf16.msra.mxu0 %v1403
        %1542 = vmatmul.bf16.gmra.mxu0 %v1373
        %v1543 = vpop.f32.mrf.mxu0
        %v1544 = vadd.f32 0.0, %v1543
        %v1545 = vpop.f32.mrf.mxu0
        %1546 = vdwg.mxu0
        %1547 = vmatpush.bf16.msra.mxu0 0
        %1548 = vmatpush.bf16.msra.mxu0 0
        %1549 = vmatpush.bf16.msra.mxu0 0
        %1550 = vmatpush.bf16.msra.mxu0 0
        %1551 = vmatpush.bf16.msra.mxu0 0
        %1552 = vmatpush.bf16.msra.mxu0 0
        %1553 = vmatpush.bf16.msra.mxu0 0
        %1554 = vmatpush.bf16.msra.mxu0 %v1406
        %1555 = vmatmul.bf16.gmra.mxu0 %v1373
        %v1556 = vpop.f32.mrf.mxu0
        %v1557 = vadd.f32 0.0, %v1556
        %v1558 = vpop.f32.mrf.mxu0
        %1559 = vdwg.mxu0
        %1560 = vmatpush.bf16.msra.mxu0 0
        %1561 = vmatpush.bf16.msra.mxu0 0
        %1562 = vmatpush.bf16.msra.mxu0 0
        %1563 = vmatpush.bf16.msra.mxu0 0
        %1564 = vmatpush.bf16.msra.mxu0 0
        %1565 = vmatpush.bf16.msra.mxu0 0
        %1566 = vmatpush.bf16.msra.mxu0 0
        %1567 = vmatpush.bf16.msra.mxu0 %v1409
        %1568 = vmatmul.bf16.gmra.mxu0 %v1373
        %v1569 = vpop.f32.mrf.mxu0
        %v1570 = vadd.f32 0.0, %v1569
        %v1571 = vpop.f32.mrf.mxu0
        %1572 = vdwg.mxu0
        %1573 = vmatpush.bf16.msra.mxu0 0
        %1574 = vmatpush.bf16.msra.mxu0 0
        %1575 = vmatpush.bf16.msra.mxu0 0
        %1576 = vmatpush.bf16.msra.mxu0 0
        %1577 = vmatpush.bf16.msra.mxu0 0
        %1578 = vmatpush.bf16.msra.mxu0 0
        %1579 = vmatpush.bf16.msra.mxu0 0
        %1580 = vmatpush.bf16.msra.mxu0 %v1412
        %1581 = vmatmul.bf16.gmra.mxu0 %v1373
        %v1582 = vpop.f32.mrf.mxu0
        %v1583 = vadd.f32 0.0, %v1582
        %v1584 = vpop.f32.mrf.mxu0
        %1585 = vdwg.mxu0
        %1586 = vmatpush.bf16.msra.mxu0 0
        %1587 = vmatpush.bf16.msra.mxu0 0
        %1588 = vmatpush.bf16.msra.mxu0 0
        %1589 = vmatpush.bf16.msra.mxu0 0
        %1590 = vmatpush.bf16.msra.mxu0 0
        %1591 = vmatpush.bf16.msra.mxu0 0
        %1592 = vmatpush.bf16.msra.mxu0 0
        %1593 = vmatpush.bf16.msra.mxu0 %v1415
        %1594 = vmatmul.bf16.gmra.mxu0 %v1373
        %v1595 = vpop.f32.mrf.mxu0
        %v1596 = vadd.f32 0.0, %v1595
        %v1597 = vpop.f32.mrf.mxu0
        %1598 = vdwg.mxu0
        %v1599 = vadd.f32 %v1311, %v1427
        %v1600 = vadd.f32 %v1312, %v1440
        %v1601 = vadd.f32 %v1313, %v1453
        %v1602 = vadd.f32 %v1314, %v1466
        %v1603 = vadd.f32 %v1315, %v1479
        %v1604 = vadd.f32 %v1316, %v1492
        %v1605 = vadd.f32 %v1317, %v1505
        %v1606 = vadd.f32 %v1318, %v1518
        %v1607 = vadd.f32 %v1319, %v1531
        %v1608 = vadd.f32 %v1320, %v1544
        %v1609 = vadd.f32 %v1321, %v1557
        %v1610 = vadd.f32 %v1322, %v1570
        %v1611 = vadd.f32 %v1323, %v1583
        %v1612 = vadd.f32 %v1324, %v1596
        %v1613 = vld [vmem:[%s1 + $0x28] sm:$0xff]
        %v1614 = vpack.c.bf16 %v1613, %v1613
        %1615 = vrot.lane.b32.xlu0 %v233, 114
        %v1616 = vpop.permute.xlu0 %1615
        %1617 = vrot.lane.b32.xlu0 %v234, 114
        %v1618 = vpop.permute.xlu0 %1617
        %1619 = vrot.lane.b32.xlu0 %v235, 114
        %v1620 = vpop.permute.xlu0 %1619
        %1621 = vrot.lane.b32.xlu0 %v236, 114
        %v1622 = vpop.permute.xlu0 %1621
        %1623 = vrot.lane.b32.xlu0 %v237, 114
        %v1624 = vpop.permute.xlu0 %1623
        %1625 = vrot.lane.b32.xlu0 %v238, 114
        %v1626 = vpop.permute.xlu0 %1625
        %1627 = vrot.lane.b32.xlu0 %v239, 114
        %v1628 = vpop.permute.xlu0 %1627
        %1629 = vrot.lane.b32.xlu0 %v240, 114
        %v1630 = vpop.permute.xlu0 %1629
        %1631 = vrot.lane.b32.xlu0 %v241, 114
        %v1632 = vpop.permute.xlu0 %1631
        %1633 = vrot.lane.b32.xlu0 %v242, 114
        %v1634 = vpop.permute.xlu0 %1633
        %1635 = vrot.lane.b32.xlu0 %v243, 114
        %v1636 = vpop.permute.xlu0 %1635
        %1637 = vrot.lane.b32.xlu0 %v244, 114
        %v1638 = vpop.permute.xlu0 %1637
        %1639 = vrot.lane.b32.xlu0 %v245, 114
        %v1640 = vpop.permute.xlu0 %1639
        %1641 = vrot.lane.b32.xlu0 %v246, 114
        %v1642 = vpop.permute.xlu0 %1641
        %1643 = vrot.lane.b32.xlu0 %v247, 114
        %v1644 = vpop.permute.xlu0 %1643
        %vm1645 = vcmask 932864
        %v1646 = vsel %vm1645, %v1616, %v1618
        %v1647 = vsel %vm1645, %v1618, %v1620
        %v1648 = vsel %vm1645, %v1620, %v1622
        %v1649 = vsel %vm1645, %v1622, %v1624
        %v1650 = vsel %vm1645, %v1624, %v1626
        %v1651 = vsel %vm1645, %v1626, %v1628
        %v1652 = vsel %vm1645, %v1628, %v1630
        %v1653 = vsel %vm1645, %v1630, %v1632
        %v1654 = vsel %vm1645, %v1632, %v1634
        %v1655 = vsel %vm1645, %v1634, %v1636
        %v1656 = vsel %vm1645, %v1636, %v1638
        %v1657 = vsel %vm1645, %v1638, %v1640
        %v1658 = vsel %vm1645, %v1640, %v1642
        %v1659 = vsel %vm1645, %v1642, %v1644
        %v1661 = vsel %vm293, %v1614, 0
        %v1664 = vsel %vm297, %v1646, 0
        %v1667 = vsel %vm297, %v1647, 0
        %v1670 = vsel %vm297, %v1648, 0
        %v1673 = vsel %vm297, %v1649, 0
        %v1676 = vsel %vm297, %v1650, 0
        %v1679 = vsel %vm297, %v1651, 0
        %v1682 = vsel %vm297, %v1652, 0
        %v1685 = vsel %vm297, %v1653, 0
        %v1688 = vsel %vm297, %v1654, 0
        %v1691 = vsel %vm297, %v1655, 0
        %v1694 = vsel %vm297, %v1656, 0
        %v1697 = vsel %vm297, %v1657, 0
        %v1700 = vsel %vm297, %v1658, 0
        %v1703 = vsel %vm297, %v1659, 0
        %1705 = vmatpush.bf16.msra.mxu0 0
        %1706 = vmatpush.bf16.msra.mxu0 0
        %1707 = vmatpush.bf16.msra.mxu0 0
        %1708 = vmatpush.bf16.msra.mxu0 0
        %1709 = vmatpush.bf16.msra.mxu0 0
        %1710 = vmatpush.bf16.msra.mxu0 0
        %1711 = vmatpush.bf16.msra.mxu0 0
        %1712 = vmatpush.bf16.msra.mxu0 %v1664
        %1713 = vmatmul.bf16.gmra.mxu0 %v1661
        %v1714 = vpop.f32.mrf.mxu0
        %v1715 = vadd.f32 0.0, %v1714
        %v1716 = vpop.f32.mrf.mxu0
        %1717 = vdwg.mxu0
        %1718 = vmatpush.bf16.msra.mxu0 0
        %1719 = vmatpush.bf16.msra.mxu0 0
        %1720 = vmatpush.bf16.msra.mxu0 0
        %1721 = vmatpush.bf16.msra.mxu0 0
        %1722 = vmatpush.bf16.msra.mxu0 0
        %1723 = vmatpush.bf16.msra.mxu0 0
        %1724 = vmatpush.bf16.msra.mxu0 0
        %1725 = vmatpush.bf16.msra.mxu0 %v1667
        %1726 = vmatmul.bf16.gmra.mxu0 %v1661
        %v1727 = vpop.f32.mrf.mxu0
        %v1728 = vadd.f32 0.0, %v1727
        %v1729 = vpop.f32.mrf.mxu0
        %1730 = vdwg.mxu0
        %1731 = vmatpush.bf16.msra.mxu0 0
        %1732 = vmatpush.bf16.msra.mxu0 0
        %1733 = vmatpush.bf16.msra.mxu0 0
        %1734 = vmatpush.bf16.msra.mxu0 0
        %1735 = vmatpush.bf16.msra.mxu0 0
        %1736 = vmatpush.bf16.msra.mxu0 0
        %1737 = vmatpush.bf16.msra.mxu0 0
        %1738 = vmatpush.bf16.msra.mxu0 %v1670
        %1739 = vmatmul.bf16.gmra.mxu0 %v1661
        %v1740 = vpop.f32.mrf.mxu0
        %v1741 = vadd.f32 0.0, %v1740
        %v1742 = vpop.f32.mrf.mxu0
        %1743 = vdwg.mxu0
        %1744 = vmatpush.bf16.msra.mxu0 0
        %1745 = vmatpush.bf16.msra.mxu0 0
        %1746 = vmatpush.bf16.msra.mxu0 0
        %1747 = vmatpush.bf16.msra.mxu0 0
        %1748 = vmatpush.bf16.msra.mxu0 0
        %1749 = vmatpush.bf16.msra.mxu0 0
        %1750 = vmatpush.bf16.msra.mxu0 0
        %1751 = vmatpush.bf16.msra.mxu0 %v1673
        %1752 = vmatmul.bf16.gmra.mxu0 %v1661
        %v1753 = vpop.f32.mrf.mxu0
        %v1754 = vadd.f32 0.0, %v1753
        %v1755 = vpop.f32.mrf.mxu0
        %1756 = vdwg.mxu0
        %1757 = vmatpush.bf16.msra.mxu0 0
        %1758 = vmatpush.bf16.msra.mxu0 0
        %1759 = vmatpush.bf16.msra.mxu0 0
        %1760 = vmatpush.bf16.msra.mxu0 0
        %1761 = vmatpush.bf16.msra.mxu0 0
        %1762 = vmatpush.bf16.msra.mxu0 0
        %1763 = vmatpush.bf16.msra.mxu0 0
        %1764 = vmatpush.bf16.msra.mxu0 %v1676
        %1765 = vmatmul.bf16.gmra.mxu0 %v1661
        %v1766 = vpop.f32.mrf.mxu0
        %v1767 = vadd.f32 0.0, %v1766
        %v1768 = vpop.f32.mrf.mxu0
        %1769 = vdwg.mxu0
        %1770 = vmatpush.bf16.msra.mxu0 0
        %1771 = vmatpush.bf16.msra.mxu0 0
        %1772 = vmatpush.bf16.msra.mxu0 0
        %1773 = vmatpush.bf16.msra.mxu0 0
        %1774 = vmatpush.bf16.msra.mxu0 0
        %1775 = vmatpush.bf16.msra.mxu0 0
        %1776 = vmatpush.bf16.msra.mxu0 0
        %1777 = vmatpush.bf16.msra.mxu0 %v1679
        %1778 = vmatmul.bf16.gmra.mxu0 %v1661
        %v1779 = vpop.f32.mrf.mxu0
        %v1780 = vadd.f32 0.0, %v1779
        %v1781 = vpop.f32.mrf.mxu0
        %1782 = vdwg.mxu0
        %1783 = vmatpush.bf16.msra.mxu0 0
        %1784 = vmatpush.bf16.msra.mxu0 0
        %1785 = vmatpush.bf16.msra.mxu0 0
        %1786 = vmatpush.bf16.msra.mxu0 0
        %1787 = vmatpush.bf16.msra.mxu0 0
        %1788 = vmatpush.bf16.msra.mxu0 0
        %1789 = vmatpush.bf16.msra.mxu0 0
        %1790 = vmatpush.bf16.msra.mxu0 %v1682
        %1791 = vmatmul.bf16.gmra.mxu0 %v1661
        %v1792 = vpop.f32.mrf.mxu0
        %v1793 = vadd.f32 0.0, %v1792
        %v1794 = vpop.f32.mrf.mxu0
        %1795 = vdwg.mxu0
        %1796 = vmatpush.bf16.msra.mxu0 0
        %1797 = vmatpush.bf16.msra.mxu0 0
        %1798 = vmatpush.bf16.msra.mxu0 0
        %1799 = vmatpush.bf16.msra.mxu0 0
        %1800 = vmatpush.bf16.msra.mxu0 0
        %1801 = vmatpush.bf16.msra.mxu0 0
        %1802 = vmatpush.bf16.msra.mxu0 0
        %1803 = vmatpush.bf16.msra.mxu0 %v1685
        %1804 = vmatmul.bf16.gmra.mxu0 %v1661
        %v1805 = vpop.f32.mrf.mxu0
        %v1806 = vadd.f32 0.0, %v1805
        %v1807 = vpop.f32.mrf.mxu0
        %1808 = vdwg.mxu0
        %1809 = vmatpush.bf16.msra.mxu0 0
        %1810 = vmatpush.bf16.msra.mxu0 0
        %1811 = vmatpush.bf16.msra.mxu0 0
        %1812 = vmatpush.bf16.msra.mxu0 0
        %1813 = vmatpush.bf16.msra.mxu0 0
        %1814 = vmatpush.bf16.msra.mxu0 0
        %1815 = vmatpush.bf16.msra.mxu0 0
        %1816 = vmatpush.bf16.msra.mxu0 %v1688
        %1817 = vmatmul.bf16.gmra.mxu0 %v1661
        %v1818 = vpop.f32.mrf.mxu0
        %v1819 = vadd.f32 0.0, %v1818
        %v1820 = vpop.f32.mrf.mxu0
        %1821 = vdwg.mxu0
        %1822 = vmatpush.bf16.msra.mxu0 0
        %1823 = vmatpush.bf16.msra.mxu0 0
        %1824 = vmatpush.bf16.msra.mxu0 0
        %1825 = vmatpush.bf16.msra.mxu0 0
        %1826 = vmatpush.bf16.msra.mxu0 0
        %1827 = vmatpush.bf16.msra.mxu0 0
        %1828 = vmatpush.bf16.msra.mxu0 0
        %1829 = vmatpush.bf16.msra.mxu0 %v1691
        %1830 = vmatmul.bf16.gmra.mxu0 %v1661
        %v1831 = vpop.f32.mrf.mxu0
        %v1832 = vadd.f32 0.0, %v1831
        %v1833 = vpop.f32.mrf.mxu0
        %1834 = vdwg.mxu0
        %1835 = vmatpush.bf16.msra.mxu0 0
        %1836 = vmatpush.bf16.msra.mxu0 0
        %1837 = vmatpush.bf16.msra.mxu0 0
        %1838 = vmatpush.bf16.msra.mxu0 0
        %1839 = vmatpush.bf16.msra.mxu0 0
        %1840 = vmatpush.bf16.msra.mxu0 0
        %1841 = vmatpush.bf16.msra.mxu0 0
        %1842 = vmatpush.bf16.msra.mxu0 %v1694
        %1843 = vmatmul.bf16.gmra.mxu0 %v1661
        %v1844 = vpop.f32.mrf.mxu0
        %v1845 = vadd.f32 0.0, %v1844
        %v1846 = vpop.f32.mrf.mxu0
        %1847 = vdwg.mxu0
        %1848 = vmatpush.bf16.msra.mxu0 0
        %1849 = vmatpush.bf16.msra.mxu0 0
        %1850 = vmatpush.bf16.msra.mxu0 0
        %1851 = vmatpush.bf16.msra.mxu0 0
        %1852 = vmatpush.bf16.msra.mxu0 0
        %1853 = vmatpush.bf16.msra.mxu0 0
        %1854 = vmatpush.bf16.msra.mxu0 0
        %1855 = vmatpush.bf16.msra.mxu0 %v1697
        %1856 = vmatmul.bf16.gmra.mxu0 %v1661
        %v1857 = vpop.f32.mrf.mxu0
        %v1858 = vadd.f32 0.0, %v1857
        %v1859 = vpop.f32.mrf.mxu0
        %1860 = vdwg.mxu0
        %1861 = vmatpush.bf16.msra.mxu0 0
        %1862 = vmatpush.bf16.msra.mxu0 0
        %1863 = vmatpush.bf16.msra.mxu0 0
        %1864 = vmatpush.bf16.msra.mxu0 0
        %1865 = vmatpush.bf16.msra.mxu0 0
        %1866 = vmatpush.bf16.msra.mxu0 0
        %1867 = vmatpush.bf16.msra.mxu0 0
        %1868 = vmatpush.bf16.msra.mxu0 %v1700
        %1869 = vmatmul.bf16.gmra.mxu0 %v1661
        %v1870 = vpop.f32.mrf.mxu0
        %v1871 = vadd.f32 0.0, %v1870
        %v1872 = vpop.f32.mrf.mxu0
        %1873 = vdwg.mxu0
        %1874 = vmatpush.bf16.msra.mxu0 0
        %1875 = vmatpush.bf16.msra.mxu0 0
        %1876 = vmatpush.bf16.msra.mxu0 0
        %1877 = vmatpush.bf16.msra.mxu0 0
        %1878 = vmatpush.bf16.msra.mxu0 0
        %1879 = vmatpush.bf16.msra.mxu0 0
        %1880 = vmatpush.bf16.msra.mxu0 0
        %1881 = vmatpush.bf16.msra.mxu0 %v1703
        %1882 = vmatmul.bf16.gmra.mxu0 %v1661
        %v1883 = vpop.f32.mrf.mxu0
        %v1884 = vadd.f32 0.0, %v1883
        %v1885 = vpop.f32.mrf.mxu0
        %1886 = vdwg.mxu0
        %v1887 = vadd.f32 %v1599, %v1715
        %v1888 = vadd.f32 %v1600, %v1728
        %v1889 = vadd.f32 %v1601, %v1741
        %v1890 = vadd.f32 %v1602, %v1754
        %v1891 = vadd.f32 %v1603, %v1767
        %v1892 = vadd.f32 %v1604, %v1780
        %v1893 = vadd.f32 %v1605, %v1793
        %v1894 = vadd.f32 %v1606, %v1806
        %v1895 = vadd.f32 %v1607, %v1819
        %v1896 = vadd.f32 %v1608, %v1832
        %v1897 = vadd.f32 %v1609, %v1845
        %v1898 = vadd.f32 %v1610, %v1858
        %v1899 = vadd.f32 %v1611, %v1871
        %v1900 = vadd.f32 %v1612, %v1884
        %v1901 = vld [vmem:[%s1 + $0x30] sm:$0xff]
        %v1902 = vpack.c.bf16 %v1901, %v1901
        %1903 = vrot.lane.b32.xlu0 %v233, 104
        %v1904 = vpop.permute.xlu0 %1903
        %1905 = vrot.lane.b32.xlu0 %v234, 104
        %v1906 = vpop.permute.xlu0 %1905
        %1907 = vrot.lane.b32.xlu0 %v235, 104
        %v1908 = vpop.permute.xlu0 %1907
        %1909 = vrot.lane.b32.xlu0 %v236, 104
        %v1910 = vpop.permute.xlu0 %1909
        %1911 = vrot.lane.b32.xlu0 %v237, 104
        %v1912 = vpop.permute.xlu0 %1911
        %1913 = vrot.lane.b32.xlu0 %v238, 104
        %v1914 = vpop.permute.xlu0 %1913
        %1915 = vrot.lane.b32.xlu0 %v239, 104
        %v1916 = vpop.permute.xlu0 %1915
        %1917 = vrot.lane.b32.xlu0 %v240, 104
        %v1918 = vpop.permute.xlu0 %1917
        %1919 = vrot.lane.b32.xlu0 %v241, 104
        %v1920 = vpop.permute.xlu0 %1919
        %1921 = vrot.lane.b32.xlu0 %v242, 104
        %v1922 = vpop.permute.xlu0 %1921
        %1923 = vrot.lane.b32.xlu0 %v243, 104
        %v1924 = vpop.permute.xlu0 %1923
        %1925 = vrot.lane.b32.xlu0 %v244, 104
        %v1926 = vpop.permute.xlu0 %1925
        %1927 = vrot.lane.b32.xlu0 %v245, 104
        %v1928 = vpop.permute.xlu0 %1927
        %1929 = vrot.lane.b32.xlu0 %v246, 104
        %v1930 = vpop.permute.xlu0 %1929
        %1931 = vrot.lane.b32.xlu0 %v247, 104
        %v1932 = vpop.permute.xlu0 %1931
        %vm1933 = vcmask 850944
        %v1934 = vsel %vm1933, %v1904, %v1906
        %v1935 = vsel %vm1933, %v1906, %v1908
        %v1936 = vsel %vm1933, %v1908, %v1910
        %v1937 = vsel %vm1933, %v1910, %v1912
        %v1938 = vsel %vm1933, %v1912, %v1914
        %v1939 = vsel %vm1933, %v1914, %v1916
        %v1940 = vsel %vm1933, %v1916, %v1918
        %v1941 = vsel %vm1933, %v1918, %v1920
        %v1942 = vsel %vm1933, %v1920, %v1922
        %v1943 = vsel %vm1933, %v1922, %v1924
        %v1944 = vsel %vm1933, %v1924, %v1926
        %v1945 = vsel %vm1933, %v1926, %v1928
        %v1946 = vsel %vm1933, %v1928, %v1930
        %v1947 = vsel %vm1933, %v1930, %v1932
        %v1949 = vsel %vm293, %v1902, 0
        %v1952 = vsel %vm297, %v1934, 0
        %v1955 = vsel %vm297, %v1935, 0
        %v1958 = vsel %vm297, %v1936, 0
        %v1961 = vsel %vm297, %v1937, 0
        %v1964 = vsel %vm297, %v1938, 0
        %v1967 = vsel %vm297, %v1939, 0
        %v1970 = vsel %vm297, %v1940, 0
        %v1973 = vsel %vm297, %v1941, 0
        %v1976 = vsel %vm297, %v1942, 0
        %v1979 = vsel %vm297, %v1943, 0
        %v1982 = vsel %vm297, %v1944, 0
        %v1985 = vsel %vm297, %v1945, 0
        %v1988 = vsel %vm297, %v1946, 0
        %v1991 = vsel %vm297, %v1947, 0
        %1993 = vmatpush.bf16.msra.mxu0 0
        %1994 = vmatpush.bf16.msra.mxu0 0
        %1995 = vmatpush.bf16.msra.mxu0 0
        %1996 = vmatpush.bf16.msra.mxu0 0
        %1997 = vmatpush.bf16.msra.mxu0 0
        %1998 = vmatpush.bf16.msra.mxu0 0
        %1999 = vmatpush.bf16.msra.mxu0 0
        %2000 = vmatpush.bf16.msra.mxu0 %v1952
        %2001 = vmatmul.bf16.gmra.mxu0 %v1949
        %v2002 = vpop.f32.mrf.mxu0
        %v2003 = vadd.f32 0.0, %v2002
        %v2004 = vpop.f32.mrf.mxu0
        %2005 = vdwg.mxu0
        %2006 = vmatpush.bf16.msra.mxu0 0
        %2007 = vmatpush.bf16.msra.mxu0 0
        %2008 = vmatpush.bf16.msra.mxu0 0
        %2009 = vmatpush.bf16.msra.mxu0 0
        %2010 = vmatpush.bf16.msra.mxu0 0
        %2011 = vmatpush.bf16.msra.mxu0 0
        %2012 = vmatpush.bf16.msra.mxu0 0
        %2013 = vmatpush.bf16.msra.mxu0 %v1955
        %2014 = vmatmul.bf16.gmra.mxu0 %v1949
        %v2015 = vpop.f32.mrf.mxu0
        %v2016 = vadd.f32 0.0, %v2015
        %v2017 = vpop.f32.mrf.mxu0
        %2018 = vdwg.mxu0
        %2019 = vmatpush.bf16.msra.mxu0 0
        %2020 = vmatpush.bf16.msra.mxu0 0
        %2021 = vmatpush.bf16.msra.mxu0 0
        %2022 = vmatpush.bf16.msra.mxu0 0
        %2023 = vmatpush.bf16.msra.mxu0 0
        %2024 = vmatpush.bf16.msra.mxu0 0
        %2025 = vmatpush.bf16.msra.mxu0 0
        %2026 = vmatpush.bf16.msra.mxu0 %v1958
        %2027 = vmatmul.bf16.gmra.mxu0 %v1949
        %v2028 = vpop.f32.mrf.mxu0
        %v2029 = vadd.f32 0.0, %v2028
        %v2030 = vpop.f32.mrf.mxu0
        %2031 = vdwg.mxu0
        %2032 = vmatpush.bf16.msra.mxu0 0
        %2033 = vmatpush.bf16.msra.mxu0 0
        %2034 = vmatpush.bf16.msra.mxu0 0
        %2035 = vmatpush.bf16.msra.mxu0 0
        %2036 = vmatpush.bf16.msra.mxu0 0
        %2037 = vmatpush.bf16.msra.mxu0 0
        %2038 = vmatpush.bf16.msra.mxu0 0
        %2039 = vmatpush.bf16.msra.mxu0 %v1961
        %2040 = vmatmul.bf16.gmra.mxu0 %v1949
        %v2041 = vpop.f32.mrf.mxu0
        %v2042 = vadd.f32 0.0, %v2041
        %v2043 = vpop.f32.mrf.mxu0
        %2044 = vdwg.mxu0
        %2045 = vmatpush.bf16.msra.mxu0 0
        %2046 = vmatpush.bf16.msra.mxu0 0
        %2047 = vmatpush.bf16.msra.mxu0 0
        %2048 = vmatpush.bf16.msra.mxu0 0
        %2049 = vmatpush.bf16.msra.mxu0 0
        %2050 = vmatpush.bf16.msra.mxu0 0
        %2051 = vmatpush.bf16.msra.mxu0 0
        %2052 = vmatpush.bf16.msra.mxu0 %v1964
        %2053 = vmatmul.bf16.gmra.mxu0 %v1949
        %v2054 = vpop.f32.mrf.mxu0
        %v2055 = vadd.f32 0.0, %v2054
        %v2056 = vpop.f32.mrf.mxu0
        %2057 = vdwg.mxu0
        %2058 = vmatpush.bf16.msra.mxu0 0
        %2059 = vmatpush.bf16.msra.mxu0 0
        %2060 = vmatpush.bf16.msra.mxu0 0
        %2061 = vmatpush.bf16.msra.mxu0 0
        %2062 = vmatpush.bf16.msra.mxu0 0
        %2063 = vmatpush.bf16.msra.mxu0 0
        %2064 = vmatpush.bf16.msra.mxu0 0
        %2065 = vmatpush.bf16.msra.mxu0 %v1967
        %2066 = vmatmul.bf16.gmra.mxu0 %v1949
        %v2067 = vpop.f32.mrf.mxu0
        %v2068 = vadd.f32 0.0, %v2067
        %v2069 = vpop.f32.mrf.mxu0
        %2070 = vdwg.mxu0
        %2071 = vmatpush.bf16.msra.mxu0 0
        %2072 = vmatpush.bf16.msra.mxu0 0
        %2073 = vmatpush.bf16.msra.mxu0 0
        %2074 = vmatpush.bf16.msra.mxu0 0
        %2075 = vmatpush.bf16.msra.mxu0 0
        %2076 = vmatpush.bf16.msra.mxu0 0
        %2077 = vmatpush.bf16.msra.mxu0 0
        %2078 = vmatpush.bf16.msra.mxu0 %v1970
        %2079 = vmatmul.bf16.gmra.mxu0 %v1949
        %v2080 = vpop.f32.mrf.mxu0
        %v2081 = vadd.f32 0.0, %v2080
        %v2082 = vpop.f32.mrf.mxu0
        %2083 = vdwg.mxu0
        %2084 = vmatpush.bf16.msra.mxu0 0
        %2085 = vmatpush.bf16.msra.mxu0 0
        %2086 = vmatpush.bf16.msra.mxu0 0
        %2087 = vmatpush.bf16.msra.mxu0 0
        %2088 = vmatpush.bf16.msra.mxu0 0
        %2089 = vmatpush.bf16.msra.mxu0 0
        %2090 = vmatpush.bf16.msra.mxu0 0
        %2091 = vmatpush.bf16.msra.mxu0 %v1973
        %2092 = vmatmul.bf16.gmra.mxu0 %v1949
        %v2093 = vpop.f32.mrf.mxu0
        %v2094 = vadd.f32 0.0, %v2093
        %v2095 = vpop.f32.mrf.mxu0
        %2096 = vdwg.mxu0
        %2097 = vmatpush.bf16.msra.mxu0 0
        %2098 = vmatpush.bf16.msra.mxu0 0
        %2099 = vmatpush.bf16.msra.mxu0 0
        %2100 = vmatpush.bf16.msra.mxu0 0
        %2101 = vmatpush.bf16.msra.mxu0 0
        %2102 = vmatpush.bf16.msra.mxu0 0
        %2103 = vmatpush.bf16.msra.mxu0 0
        %2104 = vmatpush.bf16.msra.mxu0 %v1976
        %2105 = vmatmul.bf16.gmra.mxu0 %v1949
        %v2106 = vpop.f32.mrf.mxu0
        %v2107 = vadd.f32 0.0, %v2106
        %v2108 = vpop.f32.mrf.mxu0
        %2109 = vdwg.mxu0
        %2110 = vmatpush.bf16.msra.mxu0 0
        %2111 = vmatpush.bf16.msra.mxu0 0
        %2112 = vmatpush.bf16.msra.mxu0 0
        %2113 = vmatpush.bf16.msra.mxu0 0
        %2114 = vmatpush.bf16.msra.mxu0 0
        %2115 = vmatpush.bf16.msra.mxu0 0
        %2116 = vmatpush.bf16.msra.mxu0 0
        %2117 = vmatpush.bf16.msra.mxu0 %v1979
        %2118 = vmatmul.bf16.gmra.mxu0 %v1949
        %v2119 = vpop.f32.mrf.mxu0
        %v2120 = vadd.f32 0.0, %v2119
        %v2121 = vpop.f32.mrf.mxu0
        %2122 = vdwg.mxu0
        %2123 = vmatpush.bf16.msra.mxu0 0
        %2124 = vmatpush.bf16.msra.mxu0 0
        %2125 = vmatpush.bf16.msra.mxu0 0
        %2126 = vmatpush.bf16.msra.mxu0 0
        %2127 = vmatpush.bf16.msra.mxu0 0
        %2128 = vmatpush.bf16.msra.mxu0 0
        %2129 = vmatpush.bf16.msra.mxu0 0
        %2130 = vmatpush.bf16.msra.mxu0 %v1982
        %2131 = vmatmul.bf16.gmra.mxu0 %v1949
        %v2132 = vpop.f32.mrf.mxu0
        %v2133 = vadd.f32 0.0, %v2132
        %v2134 = vpop.f32.mrf.mxu0
        %2135 = vdwg.mxu0
        %2136 = vmatpush.bf16.msra.mxu0 0
        %2137 = vmatpush.bf16.msra.mxu0 0
        %2138 = vmatpush.bf16.msra.mxu0 0
        %2139 = vmatpush.bf16.msra.mxu0 0
        %2140 = vmatpush.bf16.msra.mxu0 0
        %2141 = vmatpush.bf16.msra.mxu0 0
        %2142 = vmatpush.bf16.msra.mxu0 0
        %2143 = vmatpush.bf16.msra.mxu0 %v1985
        %2144 = vmatmul.bf16.gmra.mxu0 %v1949
        %v2145 = vpop.f32.mrf.mxu0
        %v2146 = vadd.f32 0.0, %v2145
        %v2147 = vpop.f32.mrf.mxu0
        %2148 = vdwg.mxu0
        %2149 = vmatpush.bf16.msra.mxu0 0
        %2150 = vmatpush.bf16.msra.mxu0 0
        %2151 = vmatpush.bf16.msra.mxu0 0
        %2152 = vmatpush.bf16.msra.mxu0 0
        %2153 = vmatpush.bf16.msra.mxu0 0
        %2154 = vmatpush.bf16.msra.mxu0 0
        %2155 = vmatpush.bf16.msra.mxu0 0
        %2156 = vmatpush.bf16.msra.mxu0 %v1988
        %2157 = vmatmul.bf16.gmra.mxu0 %v1949
        %v2158 = vpop.f32.mrf.mxu0
        %v2159 = vadd.f32 0.0, %v2158
        %v2160 = vpop.f32.mrf.mxu0
        %2161 = vdwg.mxu0
        %2162 = vmatpush.bf16.msra.mxu0 0
        %2163 = vmatpush.bf16.msra.mxu0 0
        %2164 = vmatpush.bf16.msra.mxu0 0
        %2165 = vmatpush.bf16.msra.mxu0 0
        %2166 = vmatpush.bf16.msra.mxu0 0
        %2167 = vmatpush.bf16.msra.mxu0 0
        %2168 = vmatpush.bf16.msra.mxu0 0
        %2169 = vmatpush.bf16.msra.mxu0 %v1991
        %2170 = vmatmul.bf16.gmra.mxu0 %v1949
        %v2171 = vpop.f32.mrf.mxu0
        %v2172 = vadd.f32 0.0, %v2171
        %v2173 = vpop.f32.mrf.mxu0
        %2174 = vdwg.mxu0
        %v2175 = vadd.f32 %v1887, %v2003
        %v2176 = vadd.f32 %v1888, %v2016
        %v2177 = vadd.f32 %v1889, %v2029
        %v2178 = vadd.f32 %v1890, %v2042
        %v2179 = vadd.f32 %v1891, %v2055
        %v2180 = vadd.f32 %v1892, %v2068
        %v2181 = vadd.f32 %v1893, %v2081
        %v2182 = vadd.f32 %v1894, %v2094
        %v2183 = vadd.f32 %v1895, %v2107
        %v2184 = vadd.f32 %v1896, %v2120
        %v2185 = vadd.f32 %v1897, %v2133
        %v2186 = vadd.f32 %v1898, %v2146
        %v2187 = vadd.f32 %v1899, %v2159
        %v2188 = vadd.f32 %v1900, %v2172
        %v2189 = vld [vmem:[%s1 + $0x38] sm:$0xff]
        %v2190 = vpack.c.bf16 %v2189, %v2189
        %2191 = vrot.lane.b32.xlu0 %v233, 103
        %v2192 = vpop.permute.xlu0 %2191
        %2193 = vrot.lane.b32.xlu0 %v234, 103
        %v2194 = vpop.permute.xlu0 %2193
        %2195 = vrot.lane.b32.xlu0 %v235, 103
        %v2196 = vpop.permute.xlu0 %2195
        %2197 = vrot.lane.b32.xlu0 %v236, 103
        %v2198 = vpop.permute.xlu0 %2197
        %2199 = vrot.lane.b32.xlu0 %v237, 103
        %v2200 = vpop.permute.xlu0 %2199
        %2201 = vrot.lane.b32.xlu0 %v238, 103
        %v2202 = vpop.permute.xlu0 %2201
        %2203 = vrot.lane.b32.xlu0 %v239, 103
        %v2204 = vpop.permute.xlu0 %2203
        %2205 = vrot.lane.b32.xlu0 %v240, 103
        %v2206 = vpop.permute.xlu0 %2205
        %2207 = vrot.lane.b32.xlu0 %v241, 103
        %v2208 = vpop.permute.xlu0 %2207
        %2209 = vrot.lane.b32.xlu0 %v242, 103
        %v2210 = vpop.permute.xlu0 %2209
        %2211 = vrot.lane.b32.xlu0 %v243, 103
        %v2212 = vpop.permute.xlu0 %2211
        %2213 = vrot.lane.b32.xlu0 %v244, 103
        %v2214 = vpop.permute.xlu0 %2213
        %2215 = vrot.lane.b32.xlu0 %v245, 103
        %v2216 = vpop.permute.xlu0 %2215
        %2217 = vrot.lane.b32.xlu0 %v246, 103
        %v2218 = vpop.permute.xlu0 %2217
        %2219 = vrot.lane.b32.xlu0 %v247, 103
        %v2220 = vpop.permute.xlu0 %2219
        %vm2221 = vcmask 842752
        %v2222 = vsel %vm2221, %v2192, %v2194
        %v2223 = vsel %vm2221, %v2194, %v2196
        %v2224 = vsel %vm2221, %v2196, %v2198
        %v2225 = vsel %vm2221, %v2198, %v2200
        %v2226 = vsel %vm2221, %v2200, %v2202
        %v2227 = vsel %vm2221, %v2202, %v2204
        %v2228 = vsel %vm2221, %v2204, %v2206
        %v2229 = vsel %vm2221, %v2206, %v2208
        %v2230 = vsel %vm2221, %v2208, %v2210
        %v2231 = vsel %vm2221, %v2210, %v2212
        %v2232 = vsel %vm2221, %v2212, %v2214
        %v2233 = vsel %vm2221, %v2214, %v2216
        %v2234 = vsel %vm2221, %v2216, %v2218
        %v2235 = vsel %vm2221, %v2218, %v2220
        %v2237 = vsel %vm293, %v2190, 0
        %v2240 = vsel %vm297, %v2222, 0
        %v2243 = vsel %vm297, %v2223, 0
        %v2246 = vsel %vm297, %v2224, 0
        %v2249 = vsel %vm297, %v2225, 0
        %v2252 = vsel %vm297, %v2226, 0
        %v2255 = vsel %vm297, %v2227, 0
        %v2258 = vsel %vm297, %v2228, 0
        %v2261 = vsel %vm297, %v2229, 0
        %v2264 = vsel %vm297, %v2230, 0
        %v2267 = vsel %vm297, %v2231, 0
        %v2270 = vsel %vm297, %v2232, 0
        %v2273 = vsel %vm297, %v2233, 0
        %v2276 = vsel %vm297, %v2234, 0
        %v2279 = vsel %vm297, %v2235, 0
        %2281 = vmatpush.bf16.msra.mxu0 0
        %2282 = vmatpush.bf16.msra.mxu0 0
        %2283 = vmatpush.bf16.msra.mxu0 0
        %2284 = vmatpush.bf16.msra.mxu0 0
        %2285 = vmatpush.bf16.msra.mxu0 0
        %2286 = vmatpush.bf16.msra.mxu0 0
        %2287 = vmatpush.bf16.msra.mxu0 0
        %2288 = vmatpush.bf16.msra.mxu0 %v2240
        %2289 = vmatmul.bf16.gmra.mxu0 %v2237
        %v2290 = vpop.f32.mrf.mxu0
        %v2291 = vadd.f32 0.0, %v2290
        %v2292 = vpop.f32.mrf.mxu0
        %2293 = vdwg.mxu0
        %2294 = vmatpush.bf16.msra.mxu0 0
        %2295 = vmatpush.bf16.msra.mxu0 0
        %2296 = vmatpush.bf16.msra.mxu0 0
        %2297 = vmatpush.bf16.msra.mxu0 0
        %2298 = vmatpush.bf16.msra.mxu0 0
        %2299 = vmatpush.bf16.msra.mxu0 0
        %2300 = vmatpush.bf16.msra.mxu0 0
        %2301 = vmatpush.bf16.msra.mxu0 %v2243
        %2302 = vmatmul.bf16.gmra.mxu0 %v2237
        %v2303 = vpop.f32.mrf.mxu0
        %v2304 = vadd.f32 0.0, %v2303
        %v2305 = vpop.f32.mrf.mxu0
        %2306 = vdwg.mxu0
        %2307 = vmatpush.bf16.msra.mxu0 0
        %2308 = vmatpush.bf16.msra.mxu0 0
        %2309 = vmatpush.bf16.msra.mxu0 0
        %2310 = vmatpush.bf16.msra.mxu0 0
        %2311 = vmatpush.bf16.msra.mxu0 0
        %2312 = vmatpush.bf16.msra.mxu0 0
        %2313 = vmatpush.bf16.msra.mxu0 0
        %2314 = vmatpush.bf16.msra.mxu0 %v2246
        %2315 = vmatmul.bf16.gmra.mxu0 %v2237
        %v2316 = vpop.f32.mrf.mxu0
        %v2317 = vadd.f32 0.0, %v2316
        %v2318 = vpop.f32.mrf.mxu0
        %2319 = vdwg.mxu0
        %2320 = vmatpush.bf16.msra.mxu0 0
        %2321 = vmatpush.bf16.msra.mxu0 0
        %2322 = vmatpush.bf16.msra.mxu0 0
        %2323 = vmatpush.bf16.msra.mxu0 0
        %2324 = vmatpush.bf16.msra.mxu0 0
        %2325 = vmatpush.bf16.msra.mxu0 0
        %2326 = vmatpush.bf16.msra.mxu0 0
        %2327 = vmatpush.bf16.msra.mxu0 %v2249
        %2328 = vmatmul.bf16.gmra.mxu0 %v2237
        %v2329 = vpop.f32.mrf.mxu0
        %v2330 = vadd.f32 0.0, %v2329
        %v2331 = vpop.f32.mrf.mxu0
        %2332 = vdwg.mxu0
        %2333 = vmatpush.bf16.msra.mxu0 0
        %2334 = vmatpush.bf16.msra.mxu0 0
        %2335 = vmatpush.bf16.msra.mxu0 0
        %2336 = vmatpush.bf16.msra.mxu0 0
        %2337 = vmatpush.bf16.msra.mxu0 0
        %2338 = vmatpush.bf16.msra.mxu0 0
        %2339 = vmatpush.bf16.msra.mxu0 0
        %2340 = vmatpush.bf16.msra.mxu0 %v2252
        %2341 = vmatmul.bf16.gmra.mxu0 %v2237
        %v2342 = vpop.f32.mrf.mxu0
        %v2343 = vadd.f32 0.0, %v2342
        %v2344 = vpop.f32.mrf.mxu0
        %2345 = vdwg.mxu0
        %2346 = vmatpush.bf16.msra.mxu0 0
        %2347 = vmatpush.bf16.msra.mxu0 0
        %2348 = vmatpush.bf16.msra.mxu0 0
        %2349 = vmatpush.bf16.msra.mxu0 0
        %2350 = vmatpush.bf16.msra.mxu0 0
        %2351 = vmatpush.bf16.msra.mxu0 0
        %2352 = vmatpush.bf16.msra.mxu0 0
        %2353 = vmatpush.bf16.msra.mxu0 %v2255
        %2354 = vmatmul.bf16.gmra.mxu0 %v2237
        %v2355 = vpop.f32.mrf.mxu0
        %v2356 = vadd.f32 0.0, %v2355
        %v2357 = vpop.f32.mrf.mxu0
        %2358 = vdwg.mxu0
        %2359 = vmatpush.bf16.msra.mxu0 0
        %2360 = vmatpush.bf16.msra.mxu0 0
        %2361 = vmatpush.bf16.msra.mxu0 0
        %2362 = vmatpush.bf16.msra.mxu0 0
        %2363 = vmatpush.bf16.msra.mxu0 0
        %2364 = vmatpush.bf16.msra.mxu0 0
        %2365 = vmatpush.bf16.msra.mxu0 0
        %2366 = vmatpush.bf16.msra.mxu0 %v2258
        %2367 = vmatmul.bf16.gmra.mxu0 %v2237
        %v2368 = vpop.f32.mrf.mxu0
        %v2369 = vadd.f32 0.0, %v2368
        %v2370 = vpop.f32.mrf.mxu0
        %2371 = vdwg.mxu0
        %2372 = vmatpush.bf16.msra.mxu0 0
        %2373 = vmatpush.bf16.msra.mxu0 0
        %2374 = vmatpush.bf16.msra.mxu0 0
        %2375 = vmatpush.bf16.msra.mxu0 0
        %2376 = vmatpush.bf16.msra.mxu0 0
        %2377 = vmatpush.bf16.msra.mxu0 0
        %2378 = vmatpush.bf16.msra.mxu0 0
        %2379 = vmatpush.bf16.msra.mxu0 %v2261
        %2380 = vmatmul.bf16.gmra.mxu0 %v2237
        %v2381 = vpop.f32.mrf.mxu0
        %v2382 = vadd.f32 0.0, %v2381
        %v2383 = vpop.f32.mrf.mxu0
        %2384 = vdwg.mxu0
        %2385 = vmatpush.bf16.msra.mxu0 0
        %2386 = vmatpush.bf16.msra.mxu0 0
        %2387 = vmatpush.bf16.msra.mxu0 0
        %2388 = vmatpush.bf16.msra.mxu0 0
        %2389 = vmatpush.bf16.msra.mxu0 0
        %2390 = vmatpush.bf16.msra.mxu0 0
        %2391 = vmatpush.bf16.msra.mxu0 0
        %2392 = vmatpush.bf16.msra.mxu0 %v2264
        %2393 = vmatmul.bf16.gmra.mxu0 %v2237
        %v2394 = vpop.f32.mrf.mxu0
        %v2395 = vadd.f32 0.0, %v2394
        %v2396 = vpop.f32.mrf.mxu0
        %2397 = vdwg.mxu0
        %2398 = vmatpush.bf16.msra.mxu0 0
        %2399 = vmatpush.bf16.msra.mxu0 0
        %2400 = vmatpush.bf16.msra.mxu0 0
        %2401 = vmatpush.bf16.msra.mxu0 0
        %2402 = vmatpush.bf16.msra.mxu0 0
        %2403 = vmatpush.bf16.msra.mxu0 0
        %2404 = vmatpush.bf16.msra.mxu0 0
        %2405 = vmatpush.bf16.msra.mxu0 %v2267
        %2406 = vmatmul.bf16.gmra.mxu0 %v2237
        %v2407 = vpop.f32.mrf.mxu0
        %v2408 = vadd.f32 0.0, %v2407
        %v2409 = vpop.f32.mrf.mxu0
        %2410 = vdwg.mxu0
        %2411 = vmatpush.bf16.msra.mxu0 0
        %2412 = vmatpush.bf16.msra.mxu0 0
        %2413 = vmatpush.bf16.msra.mxu0 0
        %2414 = vmatpush.bf16.msra.mxu0 0
        %2415 = vmatpush.bf16.msra.mxu0 0
        %2416 = vmatpush.bf16.msra.mxu0 0
        %2417 = vmatpush.bf16.msra.mxu0 0
        %2418 = vmatpush.bf16.msra.mxu0 %v2270
        %2419 = vmatmul.bf16.gmra.mxu0 %v2237
        %v2420 = vpop.f32.mrf.mxu0
        %v2421 = vadd.f32 0.0, %v2420
        %v2422 = vpop.f32.mrf.mxu0
        %2423 = vdwg.mxu0
        %2424 = vmatpush.bf16.msra.mxu0 0
        %2425 = vmatpush.bf16.msra.mxu0 0
        %2426 = vmatpush.bf16.msra.mxu0 0
        %2427 = vmatpush.bf16.msra.mxu0 0
        %2428 = vmatpush.bf16.msra.mxu0 0
        %2429 = vmatpush.bf16.msra.mxu0 0
        %2430 = vmatpush.bf16.msra.mxu0 0
        %2431 = vmatpush.bf16.msra.mxu0 %v2273
        %2432 = vmatmul.bf16.gmra.mxu0 %v2237
        %v2433 = vpop.f32.mrf.mxu0
        %v2434 = vadd.f32 0.0, %v2433
        %v2435 = vpop.f32.mrf.mxu0
        %2436 = vdwg.mxu0
        %2437 = vmatpush.bf16.msra.mxu0 0
        %2438 = vmatpush.bf16.msra.mxu0 0
        %2439 = vmatpush.bf16.msra.mxu0 0
        %2440 = vmatpush.bf16.msra.mxu0 0
        %2441 = vmatpush.bf16.msra.mxu0 0
        %2442 = vmatpush.bf16.msra.mxu0 0
        %2443 = vmatpush.bf16.msra.mxu0 0
        %2444 = vmatpush.bf16.msra.mxu0 %v2276
        %2445 = vmatmul.bf16.gmra.mxu0 %v2237
        %v2446 = vpop.f32.mrf.mxu0
        %v2447 = vadd.f32 0.0, %v2446
        %v2448 = vpop.f32.mrf.mxu0
        %2449 = vdwg.mxu0
        %2450 = vmatpush.bf16.msra.mxu0 0
        %2451 = vmatpush.bf16.msra.mxu0 0
        %2452 = vmatpush.bf16.msra.mxu0 0
        %2453 = vmatpush.bf16.msra.mxu0 0
        %2454 = vmatpush.bf16.msra.mxu0 0
        %2455 = vmatpush.bf16.msra.mxu0 0
        %2456 = vmatpush.bf16.msra.mxu0 0
        %2457 = vmatpush.bf16.msra.mxu0 %v2279
        %2458 = vmatmul.bf16.gmra.mxu0 %v2237
        %v2459 = vpop.f32.mrf.mxu0
        %v2460 = vadd.f32 0.0, %v2459
        %v2461 = vpop.f32.mrf.mxu0
        %2462 = vdwg.mxu0
        %v2463 = vadd.f32 %v2175, %v2291
        %v2464 = vadd.f32 %v2176, %v2304
        %v2465 = vadd.f32 %v2177, %v2317
        %v2466 = vadd.f32 %v2178, %v2330
        %v2467 = vadd.f32 %v2179, %v2343
        %v2468 = vadd.f32 %v2180, %v2356
        %v2469 = vadd.f32 %v2181, %v2369
        %v2470 = vadd.f32 %v2182, %v2382
        %v2471 = vadd.f32 %v2183, %v2395
        %v2472 = vadd.f32 %v2184, %v2408
        %v2473 = vadd.f32 %v2185, %v2421
        %v2474 = vadd.f32 %v2186, %v2434
        %v2475 = vadd.f32 %v2187, %v2447
        %v2476 = vadd.f32 %v2188, %v2460
        %v2477 = vld [vmem:[%s1 + $0x40] sm:$0xff]
        %v2478 = vpack.c.bf16 %v2477, %v2477
        %2479 = vrot.lane.b32.xlu0 %v233, 102
        %v2480 = vpop.permute.xlu0 %2479
        %2481 = vrot.lane.b32.xlu0 %v234, 102
        %v2482 = vpop.permute.xlu0 %2481
        %2483 = vrot.lane.b32.xlu0 %v235, 102
        %v2484 = vpop.permute.xlu0 %2483
        %2485 = vrot.lane.b32.xlu0 %v236, 102
        %v2486 = vpop.permute.xlu0 %2485
        %2487 = vrot.lane.b32.xlu0 %v237, 102
        %v2488 = vpop.permute.xlu0 %2487
        %2489 = vrot.lane.b32.xlu0 %v238, 102
        %v2490 = vpop.permute.xlu0 %2489
        %2491 = vrot.lane.b32.xlu0 %v239, 102
        %v2492 = vpop.permute.xlu0 %2491
        %2493 = vrot.lane.b32.xlu0 %v240, 102
        %v2494 = vpop.permute.xlu0 %2493
        %2495 = vrot.lane.b32.xlu0 %v241, 102
        %v2496 = vpop.permute.xlu0 %2495
        %2497 = vrot.lane.b32.xlu0 %v242, 102
        %v2498 = vpop.permute.xlu0 %2497
        %2499 = vrot.lane.b32.xlu0 %v243, 102
        %v2500 = vpop.permute.xlu0 %2499
        %2501 = vrot.lane.b32.xlu0 %v244, 102
        %v2502 = vpop.permute.xlu0 %2501
        %2503 = vrot.lane.b32.xlu0 %v245, 102
        %v2504 = vpop.permute.xlu0 %2503
        %2505 = vrot.lane.b32.xlu0 %v246, 102
        %v2506 = vpop.permute.xlu0 %2505
        %2507 = vrot.lane.b32.xlu0 %v247, 102
        %v2508 = vpop.permute.xlu0 %2507
        %vm2509 = vcmask 834560
        %v2510 = vsel %vm2509, %v2480, %v2482
        %v2511 = vsel %vm2509, %v2482, %v2484
        %v2512 = vsel %vm2509, %v2484, %v2486
        %v2513 = vsel %vm2509, %v2486, %v2488
        %v2514 = vsel %vm2509, %v2488, %v2490
        %v2515 = vsel %vm2509, %v2490, %v2492
        %v2516 = vsel %vm2509, %v2492, %v2494
        %v2517 = vsel %vm2509, %v2494, %v2496
        %v2518 = vsel %vm2509, %v2496, %v2498
        %v2519 = vsel %vm2509, %v2498, %v2500
        %v2520 = vsel %vm2509, %v2500, %v2502
        %v2521 = vsel %vm2509, %v2502, %v2504
        %v2522 = vsel %vm2509, %v2504, %v2506
        %v2523 = vsel %vm2509, %v2506, %v2508
        %v2525 = vsel %vm293, %v2478, 0
        %v2528 = vsel %vm297, %v2510, 0
        %v2531 = vsel %vm297, %v2511, 0
        %v2534 = vsel %vm297, %v2512, 0
        %v2537 = vsel %vm297, %v2513, 0
        %v2540 = vsel %vm297, %v2514, 0
        %v2543 = vsel %vm297, %v2515, 0
        %v2546 = vsel %vm297, %v2516, 0
        %v2549 = vsel %vm297, %v2517, 0
        %v2552 = vsel %vm297, %v2518, 0
        %v2555 = vsel %vm297, %v2519, 0
        %v2558 = vsel %vm297, %v2520, 0
        %v2561 = vsel %vm297, %v2521, 0
        %v2564 = vsel %vm297, %v2522, 0
        %v2567 = vsel %vm297, %v2523, 0
        %2569 = vmatpush.bf16.msra.mxu0 0
        %2570 = vmatpush.bf16.msra.mxu0 0
        %2571 = vmatpush.bf16.msra.mxu0 0
        %2572 = vmatpush.bf16.msra.mxu0 0
        %2573 = vmatpush.bf16.msra.mxu0 0
        %2574 = vmatpush.bf16.msra.mxu0 0
        %2575 = vmatpush.bf16.msra.mxu0 0
        %2576 = vmatpush.bf16.msra.mxu0 %v2528
        %2577 = vmatmul.bf16.gmra.mxu0 %v2525
        %v2578 = vpop.f32.mrf.mxu0
        %v2579 = vadd.f32 0.0, %v2578
        %v2580 = vpop.f32.mrf.mxu0
        %2581 = vdwg.mxu0
        %2582 = vmatpush.bf16.msra.mxu0 0
        %2583 = vmatpush.bf16.msra.mxu0 0
        %2584 = vmatpush.bf16.msra.mxu0 0
        %2585 = vmatpush.bf16.msra.mxu0 0
        %2586 = vmatpush.bf16.msra.mxu0 0
        %2587 = vmatpush.bf16.msra.mxu0 0
        %2588 = vmatpush.bf16.msra.mxu0 0
        %2589 = vmatpush.bf16.msra.mxu0 %v2531
        %2590 = vmatmul.bf16.gmra.mxu0 %v2525
        %v2591 = vpop.f32.mrf.mxu0
        %v2592 = vadd.f32 0.0, %v2591
        %v2593 = vpop.f32.mrf.mxu0
        %2594 = vdwg.mxu0
        %2595 = vmatpush.bf16.msra.mxu0 0
        %2596 = vmatpush.bf16.msra.mxu0 0
        %2597 = vmatpush.bf16.msra.mxu0 0
        %2598 = vmatpush.bf16.msra.mxu0 0
        %2599 = vmatpush.bf16.msra.mxu0 0
        %2600 = vmatpush.bf16.msra.mxu0 0
        %2601 = vmatpush.bf16.msra.mxu0 0
        %2602 = vmatpush.bf16.msra.mxu0 %v2534
        %2603 = vmatmul.bf16.gmra.mxu0 %v2525
        %v2604 = vpop.f32.mrf.mxu0
        %v2605 = vadd.f32 0.0, %v2604
        %v2606 = vpop.f32.mrf.mxu0
        %2607 = vdwg.mxu0
        %2608 = vmatpush.bf16.msra.mxu0 0
        %2609 = vmatpush.bf16.msra.mxu0 0
        %2610 = vmatpush.bf16.msra.mxu0 0
        %2611 = vmatpush.bf16.msra.mxu0 0
        %2612 = vmatpush.bf16.msra.mxu0 0
        %2613 = vmatpush.bf16.msra.mxu0 0
        %2614 = vmatpush.bf16.msra.mxu0 0
        %2615 = vmatpush.bf16.msra.mxu0 %v2537
        %2616 = vmatmul.bf16.gmra.mxu0 %v2525
        %v2617 = vpop.f32.mrf.mxu0
        %v2618 = vadd.f32 0.0, %v2617
        %v2619 = vpop.f32.mrf.mxu0
        %2620 = vdwg.mxu0
        %2621 = vmatpush.bf16.msra.mxu0 0
        %2622 = vmatpush.bf16.msra.mxu0 0
        %2623 = vmatpush.bf16.msra.mxu0 0
        %2624 = vmatpush.bf16.msra.mxu0 0
        %2625 = vmatpush.bf16.msra.mxu0 0
        %2626 = vmatpush.bf16.msra.mxu0 0
        %2627 = vmatpush.bf16.msra.mxu0 0
        %2628 = vmatpush.bf16.msra.mxu0 %v2540
        %2629 = vmatmul.bf16.gmra.mxu0 %v2525
        %v2630 = vpop.f32.mrf.mxu0
        %v2631 = vadd.f32 0.0, %v2630
        %v2632 = vpop.f32.mrf.mxu0
        %2633 = vdwg.mxu0
        %2634 = vmatpush.bf16.msra.mxu0 0
        %2635 = vmatpush.bf16.msra.mxu0 0
        %2636 = vmatpush.bf16.msra.mxu0 0
        %2637 = vmatpush.bf16.msra.mxu0 0
        %2638 = vmatpush.bf16.msra.mxu0 0
        %2639 = vmatpush.bf16.msra.mxu0 0
        %2640 = vmatpush.bf16.msra.mxu0 0
        %2641 = vmatpush.bf16.msra.mxu0 %v2543
        %2642 = vmatmul.bf16.gmra.mxu0 %v2525
        %v2643 = vpop.f32.mrf.mxu0
        %v2644 = vadd.f32 0.0, %v2643
        %v2645 = vpop.f32.mrf.mxu0
        %2646 = vdwg.mxu0
        %2647 = vmatpush.bf16.msra.mxu0 0
        %2648 = vmatpush.bf16.msra.mxu0 0
        %2649 = vmatpush.bf16.msra.mxu0 0
        %2650 = vmatpush.bf16.msra.mxu0 0
        %2651 = vmatpush.bf16.msra.mxu0 0
        %2652 = vmatpush.bf16.msra.mxu0 0
        %2653 = vmatpush.bf16.msra.mxu0 0
        %2654 = vmatpush.bf16.msra.mxu0 %v2546
        %2655 = vmatmul.bf16.gmra.mxu0 %v2525
        %v2656 = vpop.f32.mrf.mxu0
        %v2657 = vadd.f32 0.0, %v2656
        %v2658 = vpop.f32.mrf.mxu0
        %2659 = vdwg.mxu0
        %2660 = vmatpush.bf16.msra.mxu0 0
        %2661 = vmatpush.bf16.msra.mxu0 0
        %2662 = vmatpush.bf16.msra.mxu0 0
        %2663 = vmatpush.bf16.msra.mxu0 0
        %2664 = vmatpush.bf16.msra.mxu0 0
        %2665 = vmatpush.bf16.msra.mxu0 0
        %2666 = vmatpush.bf16.msra.mxu0 0
        %2667 = vmatpush.bf16.msra.mxu0 %v2549
        %2668 = vmatmul.bf16.gmra.mxu0 %v2525
        %v2669 = vpop.f32.mrf.mxu0
        %v2670 = vadd.f32 0.0, %v2669
        %v2671 = vpop.f32.mrf.mxu0
        %2672 = vdwg.mxu0
        %2673 = vmatpush.bf16.msra.mxu0 0
        %2674 = vmatpush.bf16.msra.mxu0 0
        %2675 = vmatpush.bf16.msra.mxu0 0
        %2676 = vmatpush.bf16.msra.mxu0 0
        %2677 = vmatpush.bf16.msra.mxu0 0
        %2678 = vmatpush.bf16.msra.mxu0 0
        %2679 = vmatpush.bf16.msra.mxu0 0
        %2680 = vmatpush.bf16.msra.mxu0 %v2552
        %2681 = vmatmul.bf16.gmra.mxu0 %v2525
        %v2682 = vpop.f32.mrf.mxu0
        %v2683 = vadd.f32 0.0, %v2682
        %v2684 = vpop.f32.mrf.mxu0
        %2685 = vdwg.mxu0
        %2686 = vmatpush.bf16.msra.mxu0 0
        %2687 = vmatpush.bf16.msra.mxu0 0
        %2688 = vmatpush.bf16.msra.mxu0 0
        %2689 = vmatpush.bf16.msra.mxu0 0
        %2690 = vmatpush.bf16.msra.mxu0 0
        %2691 = vmatpush.bf16.msra.mxu0 0
        %2692 = vmatpush.bf16.msra.mxu0 0
        %2693 = vmatpush.bf16.msra.mxu0 %v2555
        %2694 = vmatmul.bf16.gmra.mxu0 %v2525
        %v2695 = vpop.f32.mrf.mxu0
        %v2696 = vadd.f32 0.0, %v2695
        %v2697 = vpop.f32.mrf.mxu0
        %2698 = vdwg.mxu0
        %2699 = vmatpush.bf16.msra.mxu0 0
        %2700 = vmatpush.bf16.msra.mxu0 0
        %2701 = vmatpush.bf16.msra.mxu0 0
        %2702 = vmatpush.bf16.msra.mxu0 0
        %2703 = vmatpush.bf16.msra.mxu0 0
        %2704 = vmatpush.bf16.msra.mxu0 0
        %2705 = vmatpush.bf16.msra.mxu0 0
        %2706 = vmatpush.bf16.msra.mxu0 %v2558
        %2707 = vmatmul.bf16.gmra.mxu0 %v2525
        %v2708 = vpop.f32.mrf.mxu0
        %v2709 = vadd.f32 0.0, %v2708
        %v2710 = vpop.f32.mrf.mxu0
        %2711 = vdwg.mxu0
        %2712 = vmatpush.bf16.msra.mxu0 0
        %2713 = vmatpush.bf16.msra.mxu0 0
        %2714 = vmatpush.bf16.msra.mxu0 0
        %2715 = vmatpush.bf16.msra.mxu0 0
        %2716 = vmatpush.bf16.msra.mxu0 0
        %2717 = vmatpush.bf16.msra.mxu0 0
        %2718 = vmatpush.bf16.msra.mxu0 0
        %2719 = vmatpush.bf16.msra.mxu0 %v2561
        %2720 = vmatmul.bf16.gmra.mxu0 %v2525
        %v2721 = vpop.f32.mrf.mxu0
        %v2722 = vadd.f32 0.0, %v2721
        %v2723 = vpop.f32.mrf.mxu0
        %2724 = vdwg.mxu0
        %2725 = vmatpush.bf16.msra.mxu0 0
        %2726 = vmatpush.bf16.msra.mxu0 0
        %2727 = vmatpush.bf16.msra.mxu0 0
        %2728 = vmatpush.bf16.msra.mxu0 0
        %2729 = vmatpush.bf16.msra.mxu0 0
        %2730 = vmatpush.bf16.msra.mxu0 0
        %2731 = vmatpush.bf16.msra.mxu0 0
        %2732 = vmatpush.bf16.msra.mxu0 %v2564
        %2733 = vmatmul.bf16.gmra.mxu0 %v2525
        %v2734 = vpop.f32.mrf.mxu0
        %v2735 = vadd.f32 0.0, %v2734
        %v2736 = vpop.f32.mrf.mxu0
        %2737 = vdwg.mxu0
        %2738 = vmatpush.bf16.msra.mxu0 0
        %2739 = vmatpush.bf16.msra.mxu0 0
        %2740 = vmatpush.bf16.msra.mxu0 0
        %2741 = vmatpush.bf16.msra.mxu0 0
        %2742 = vmatpush.bf16.msra.mxu0 0
        %2743 = vmatpush.bf16.msra.mxu0 0
        %2744 = vmatpush.bf16.msra.mxu0 0
        %2745 = vmatpush.bf16.msra.mxu0 %v2567
        %2746 = vmatmul.bf16.gmra.mxu0 %v2525
        %v2747 = vpop.f32.mrf.mxu0
        %v2748 = vadd.f32 0.0, %v2747
        %v2749 = vpop.f32.mrf.mxu0
        %2750 = vdwg.mxu0
        %v2751 = vadd.f32 %v2463, %v2579
        %v2752 = vadd.f32 %v2464, %v2592
        %v2753 = vadd.f32 %v2465, %v2605
        %v2754 = vadd.f32 %v2466, %v2618
        %v2755 = vadd.f32 %v2467, %v2631
        %v2756 = vadd.f32 %v2468, %v2644
        %v2757 = vadd.f32 %v2469, %v2657
        %v2758 = vadd.f32 %v2470, %v2670
        %v2759 = vadd.f32 %v2471, %v2683
        %v2760 = vadd.f32 %v2472, %v2696
        %v2761 = vadd.f32 %v2473, %v2709
        %v2762 = vadd.f32 %v2474, %v2722
        %v2763 = vadd.f32 %v2475, %v2735
        %v2764 = vadd.f32 %v2476, %v2748
        %v2765 = vld [vmem:[%s1 + $0x48] sm:$0xff]
        %v2766 = vpack.c.bf16 %v2765, %v2765
        %v2768 = vunpack.c.l.b16 %v205
        %v2769 = vpack.c.b16 %v2768, %v2768
        %2770 = vrot.lane.b32.xlu0 %v234, 112
        %v2771 = vpop.permute.xlu0 %2770
        %2772 = vrot.lane.b32.xlu0 %v235, 112
        %v2773 = vpop.permute.xlu0 %2772
        %2774 = vrot.lane.b32.xlu0 %v236, 112
        %v2775 = vpop.permute.xlu0 %2774
        %2776 = vrot.lane.b32.xlu0 %v237, 112
        %v2777 = vpop.permute.xlu0 %2776
        %2778 = vrot.lane.b32.xlu0 %v238, 112
        %v2779 = vpop.permute.xlu0 %2778
        %2780 = vrot.lane.b32.xlu0 %v239, 112
        %v2781 = vpop.permute.xlu0 %2780
        %2782 = vrot.lane.b32.xlu0 %v240, 112
        %v2783 = vpop.permute.xlu0 %2782
        %2784 = vrot.lane.b32.xlu0 %v241, 112
        %v2785 = vpop.permute.xlu0 %2784
        %2786 = vrot.lane.b32.xlu0 %v242, 112
        %v2787 = vpop.permute.xlu0 %2786
        %2788 = vrot.lane.b32.xlu0 %v243, 112
        %v2789 = vpop.permute.xlu0 %2788
        %2790 = vrot.lane.b32.xlu0 %v244, 112
        %v2791 = vpop.permute.xlu0 %2790
        %2792 = vrot.lane.b32.xlu0 %v245, 112
        %v2793 = vpop.permute.xlu0 %2792
        %2794 = vrot.lane.b32.xlu0 %v246, 112
        %v2795 = vpop.permute.xlu0 %2794
        %2796 = vrot.lane.b32.xlu0 %v247, 112
        %v2797 = vpop.permute.xlu0 %2796
        %2798 = vrot.lane.b32.xlu0 %v2769, 112
        %v2799 = vpop.permute.xlu0 %2798
        %vm2800 = vcmask 916480
        %v2801 = vsel %vm2800, %v2771, %v2773
        %v2802 = vsel %vm2800, %v2773, %v2775
        %v2803 = vsel %vm2800, %v2775, %v2777
        %v2804 = vsel %vm2800, %v2777, %v2779
        %v2805 = vsel %vm2800, %v2779, %v2781
        %v2806 = vsel %vm2800, %v2781, %v2783
        %v2807 = vsel %vm2800, %v2783, %v2785
        %v2808 = vsel %vm2800, %v2785, %v2787
        %v2809 = vsel %vm2800, %v2787, %v2789
        %v2810 = vsel %vm2800, %v2789, %v2791
        %v2811 = vsel %vm2800, %v2791, %v2793
        %v2812 = vsel %vm2800, %v2793, %v2795
        %v2813 = vsel %vm2800, %v2795, %v2797
        %v2814 = vsel %vm2800, %v2797, %v2799
        %v2816 = vsel %vm293, %v2766, 0
        %v2819 = vsel %vm297, %v2801, 0
        %v2822 = vsel %vm297, %v2802, 0
        %v2825 = vsel %vm297, %v2803, 0
        %v2828 = vsel %vm297, %v2804, 0
        %v2831 = vsel %vm297, %v2805, 0
        %v2834 = vsel %vm297, %v2806, 0
        %v2837 = vsel %vm297, %v2807, 0
        %v2840 = vsel %vm297, %v2808, 0
        %v2843 = vsel %vm297, %v2809, 0
        %v2846 = vsel %vm297, %v2810, 0
        %v2849 = vsel %vm297, %v2811, 0
        %v2852 = vsel %vm297, %v2812, 0
        %v2855 = vsel %vm297, %v2813, 0
        %v2858 = vsel %vm297, %v2814, 0
        %2860 = vmatpush.bf16.msra.mxu0 0
        %2861 = vmatpush.bf16.msra.mxu0 0
        %2862 = vmatpush.bf16.msra.mxu0 0
        %2863 = vmatpush.bf16.msra.mxu0 0
        %2864 = vmatpush.bf16.msra.mxu0 0
        %2865 = vmatpush.bf16.msra.mxu0 0
        %2866 = vmatpush.bf16.msra.mxu0 0
        %2867 = vmatpush.bf16.msra.mxu0 %v2819
        %2868 = vmatmul.bf16.gmra.mxu0 %v2816
        %v2869 = vpop.f32.mrf.mxu0
        %v2870 = vadd.f32 0.0, %v2869
        %v2871 = vpop.f32.mrf.mxu0
        %2872 = vdwg.mxu0
        %2873 = vmatpush.bf16.msra.mxu0 0
        %2874 = vmatpush.bf16.msra.mxu0 0
        %2875 = vmatpush.bf16.msra.mxu0 0
        %2876 = vmatpush.bf16.msra.mxu0 0
        %2877 = vmatpush.bf16.msra.mxu0 0
        %2878 = vmatpush.bf16.msra.mxu0 0
        %2879 = vmatpush.bf16.msra.mxu0 0
        %2880 = vmatpush.bf16.msra.mxu0 %v2822
        %2881 = vmatmul.bf16.gmra.mxu0 %v2816
        %v2882 = vpop.f32.mrf.mxu0
        %v2883 = vadd.f32 0.0, %v2882
        %v2884 = vpop.f32.mrf.mxu0
        %2885 = vdwg.mxu0
        %2886 = vmatpush.bf16.msra.mxu0 0
        %2887 = vmatpush.bf16.msra.mxu0 0
        %2888 = vmatpush.bf16.msra.mxu0 0
        %2889 = vmatpush.bf16.msra.mxu0 0
        %2890 = vmatpush.bf16.msra.mxu0 0
        %2891 = vmatpush.bf16.msra.mxu0 0
        %2892 = vmatpush.bf16.msra.mxu0 0
        %2893 = vmatpush.bf16.msra.mxu0 %v2825
        %2894 = vmatmul.bf16.gmra.mxu0 %v2816
        %v2895 = vpop.f32.mrf.mxu0
        %v2896 = vadd.f32 0.0, %v2895
        %v2897 = vpop.f32.mrf.mxu0
        %2898 = vdwg.mxu0
        %2899 = vmatpush.bf16.msra.mxu0 0
        %2900 = vmatpush.bf16.msra.mxu0 0
        %2901 = vmatpush.bf16.msra.mxu0 0
        %2902 = vmatpush.bf16.msra.mxu0 0
        %2903 = vmatpush.bf16.msra.mxu0 0
        %2904 = vmatpush.bf16.msra.mxu0 0
        %2905 = vmatpush.bf16.msra.mxu0 0
        %2906 = vmatpush.bf16.msra.mxu0 %v2828
        %2907 = vmatmul.bf16.gmra.mxu0 %v2816
        %v2908 = vpop.f32.mrf.mxu0
        %v2909 = vadd.f32 0.0, %v2908
        %v2910 = vpop.f32.mrf.mxu0
        %2911 = vdwg.mxu0
        %2912 = vmatpush.bf16.msra.mxu0 0
        %2913 = vmatpush.bf16.msra.mxu0 0
        %2914 = vmatpush.bf16.msra.mxu0 0
        %2915 = vmatpush.bf16.msra.mxu0 0
        %2916 = vmatpush.bf16.msra.mxu0 0
        %2917 = vmatpush.bf16.msra.mxu0 0
        %2918 = vmatpush.bf16.msra.mxu0 0
        %2919 = vmatpush.bf16.msra.mxu0 %v2831
        %2920 = vmatmul.bf16.gmra.mxu0 %v2816
        %v2921 = vpop.f32.mrf.mxu0
        %v2922 = vadd.f32 0.0, %v2921
        %v2923 = vpop.f32.mrf.mxu0
        %2924 = vdwg.mxu0
        %2925 = vmatpush.bf16.msra.mxu0 0
        %2926 = vmatpush.bf16.msra.mxu0 0
        %2927 = vmatpush.bf16.msra.mxu0 0
        %2928 = vmatpush.bf16.msra.mxu0 0
        %2929 = vmatpush.bf16.msra.mxu0 0
        %2930 = vmatpush.bf16.msra.mxu0 0
        %2931 = vmatpush.bf16.msra.mxu0 0
        %2932 = vmatpush.bf16.msra.mxu0 %v2834
        %2933 = vmatmul.bf16.gmra.mxu0 %v2816
        %v2934 = vpop.f32.mrf.mxu0
        %v2935 = vadd.f32 0.0, %v2934
        %v2936 = vpop.f32.mrf.mxu0
        %2937 = vdwg.mxu0
        %2938 = vmatpush.bf16.msra.mxu0 0
        %2939 = vmatpush.bf16.msra.mxu0 0
        %2940 = vmatpush.bf16.msra.mxu0 0
        %2941 = vmatpush.bf16.msra.mxu0 0
        %2942 = vmatpush.bf16.msra.mxu0 0
        %2943 = vmatpush.bf16.msra.mxu0 0
        %2944 = vmatpush.bf16.msra.mxu0 0
        %2945 = vmatpush.bf16.msra.mxu0 %v2837
        %2946 = vmatmul.bf16.gmra.mxu0 %v2816
        %v2947 = vpop.f32.mrf.mxu0
        %v2948 = vadd.f32 0.0, %v2947
        %v2949 = vpop.f32.mrf.mxu0
        %2950 = vdwg.mxu0
        %2951 = vmatpush.bf16.msra.mxu0 0
        %2952 = vmatpush.bf16.msra.mxu0 0
        %2953 = vmatpush.bf16.msra.mxu0 0
        %2954 = vmatpush.bf16.msra.mxu0 0
        %2955 = vmatpush.bf16.msra.mxu0 0
        %2956 = vmatpush.bf16.msra.mxu0 0
        %2957 = vmatpush.bf16.msra.mxu0 0
        %2958 = vmatpush.bf16.msra.mxu0 %v2840
        %2959 = vmatmul.bf16.gmra.mxu0 %v2816
        %v2960 = vpop.f32.mrf.mxu0
        %v2961 = vadd.f32 0.0, %v2960
        %v2962 = vpop.f32.mrf.mxu0
        %2963 = vdwg.mxu0
        %2964 = vmatpush.bf16.msra.mxu0 0
        %2965 = vmatpush.bf16.msra.mxu0 0
        %2966 = vmatpush.bf16.msra.mxu0 0
        %2967 = vmatpush.bf16.msra.mxu0 0
        %2968 = vmatpush.bf16.msra.mxu0 0
        %2969 = vmatpush.bf16.msra.mxu0 0
        %2970 = vmatpush.bf16.msra.mxu0 0
        %2971 = vmatpush.bf16.msra.mxu0 %v2843
        %2972 = vmatmul.bf16.gmra.mxu0 %v2816
        %v2973 = vpop.f32.mrf.mxu0
        %v2974 = vadd.f32 0.0, %v2973
        %v2975 = vpop.f32.mrf.mxu0
        %2976 = vdwg.mxu0
        %2977 = vmatpush.bf16.msra.mxu0 0
        %2978 = vmatpush.bf16.msra.mxu0 0
        %2979 = vmatpush.bf16.msra.mxu0 0
        %2980 = vmatpush.bf16.msra.mxu0 0
        %2981 = vmatpush.bf16.msra.mxu0 0
        %2982 = vmatpush.bf16.msra.mxu0 0
        %2983 = vmatpush.bf16.msra.mxu0 0
        %2984 = vmatpush.bf16.msra.mxu0 %v2846
        %2985 = vmatmul.bf16.gmra.mxu0 %v2816
        %v2986 = vpop.f32.mrf.mxu0
        %v2987 = vadd.f32 0.0, %v2986
        %v2988 = vpop.f32.mrf.mxu0
        %2989 = vdwg.mxu0
        %2990 = vmatpush.bf16.msra.mxu0 0
        %2991 = vmatpush.bf16.msra.mxu0 0
        %2992 = vmatpush.bf16.msra.mxu0 0
        %2993 = vmatpush.bf16.msra.mxu0 0
        %2994 = vmatpush.bf16.msra.mxu0 0
        %2995 = vmatpush.bf16.msra.mxu0 0
        %2996 = vmatpush.bf16.msra.mxu0 0
        %2997 = vmatpush.bf16.msra.mxu0 %v2849
        %2998 = vmatmul.bf16.gmra.mxu0 %v2816
        %v2999 = vpop.f32.mrf.mxu0
        %v3000 = vadd.f32 0.0, %v2999
        %v3001 = vpop.f32.mrf.mxu0
        %3002 = vdwg.mxu0
        %3003 = vmatpush.bf16.msra.mxu0 0
        %3004 = vmatpush.bf16.msra.mxu0 0
        %3005 = vmatpush.bf16.msra.mxu0 0
        %3006 = vmatpush.bf16.msra.mxu0 0
        %3007 = vmatpush.bf16.msra.mxu0 0
        %3008 = vmatpush.bf16.msra.mxu0 0
        %3009 = vmatpush.bf16.msra.mxu0 0
        %3010 = vmatpush.bf16.msra.mxu0 %v2852
        %3011 = vmatmul.bf16.gmra.mxu0 %v2816
        %v3012 = vpop.f32.mrf.mxu0
        %v3013 = vadd.f32 0.0, %v3012
        %v3014 = vpop.f32.mrf.mxu0
        %3015 = vdwg.mxu0
        %3016 = vmatpush.bf16.msra.mxu0 0
        %3017 = vmatpush.bf16.msra.mxu0 0
        %3018 = vmatpush.bf16.msra.mxu0 0
        %3019 = vmatpush.bf16.msra.mxu0 0
        %3020 = vmatpush.bf16.msra.mxu0 0
        %3021 = vmatpush.bf16.msra.mxu0 0
        %3022 = vmatpush.bf16.msra.mxu0 0
        %3023 = vmatpush.bf16.msra.mxu0 %v2855
        %3024 = vmatmul.bf16.gmra.mxu0 %v2816
        %v3025 = vpop.f32.mrf.mxu0
        %v3026 = vadd.f32 0.0, %v3025
        %v3027 = vpop.f32.mrf.mxu0
        %3028 = vdwg.mxu0
        %3029 = vmatpush.bf16.msra.mxu0 0
        %3030 = vmatpush.bf16.msra.mxu0 0
        %3031 = vmatpush.bf16.msra.mxu0 0
        %3032 = vmatpush.bf16.msra.mxu0 0
        %3033 = vmatpush.bf16.msra.mxu0 0
        %3034 = vmatpush.bf16.msra.mxu0 0
        %3035 = vmatpush.bf16.msra.mxu0 0
        %3036 = vmatpush.bf16.msra.mxu0 %v2858
        %3037 = vmatmul.bf16.gmra.mxu0 %v2816
        %v3038 = vpop.f32.mrf.mxu0
        %v3039 = vadd.f32 0.0, %v3038
        %v3040 = vpop.f32.mrf.mxu0
        %3041 = vdwg.mxu0
        %v3042 = vadd.f32 %v2751, %v2870
        %v3043 = vadd.f32 %v2752, %v2883
        %v3044 = vadd.f32 %v2753, %v2896
        %v3045 = vadd.f32 %v2754, %v2909
        %v3046 = vadd.f32 %v2755, %v2922
        %v3047 = vadd.f32 %v2756, %v2935
        %v3048 = vadd.f32 %v2757, %v2948
        %v3049 = vadd.f32 %v2758, %v2961
        %v3050 = vadd.f32 %v2759, %v2974
        %v3051 = vadd.f32 %v2760, %v2987
        %v3052 = vadd.f32 %v2761, %v3000
        %v3053 = vadd.f32 %v2762, %v3013
        %v3054 = vadd.f32 %v2763, %v3026
        %v3055 = vadd.f32 %v2764, %v3039
        %v3056 = vld [vmem:[%s1 + $0x50] sm:$0xff]
        %v3057 = vpack.c.bf16 %v3056, %v3056
        %3058 = vrot.lane.b32.xlu0 %v234, 111
        %v3059 = vpop.permute.xlu0 %3058
        %3060 = vrot.lane.b32.xlu0 %v235, 111
        %v3061 = vpop.permute.xlu0 %3060
        %3062 = vrot.lane.b32.xlu0 %v236, 111
        %v3063 = vpop.permute.xlu0 %3062
        %3064 = vrot.lane.b32.xlu0 %v237, 111
        %v3065 = vpop.permute.xlu0 %3064
        %3066 = vrot.lane.b32.xlu0 %v238, 111
        %v3067 = vpop.permute.xlu0 %3066
        %3068 = vrot.lane.b32.xlu0 %v239, 111
        %v3069 = vpop.permute.xlu0 %3068
        %3070 = vrot.lane.b32.xlu0 %v240, 111
        %v3071 = vpop.permute.xlu0 %3070
        %3072 = vrot.lane.b32.xlu0 %v241, 111
        %v3073 = vpop.permute.xlu0 %3072
        %3074 = vrot.lane.b32.xlu0 %v242, 111
        %v3075 = vpop.permute.xlu0 %3074
        %3076 = vrot.lane.b32.xlu0 %v243, 111
        %v3077 = vpop.permute.xlu0 %3076
        %3078 = vrot.lane.b32.xlu0 %v244, 111
        %v3079 = vpop.permute.xlu0 %3078
        %3080 = vrot.lane.b32.xlu0 %v245, 111
        %v3081 = vpop.permute.xlu0 %3080
        %3082 = vrot.lane.b32.xlu0 %v246, 111
        %v3083 = vpop.permute.xlu0 %3082
        %3084 = vrot.lane.b32.xlu0 %v247, 111
        %v3085 = vpop.permute.xlu0 %3084
        %3086 = vrot.lane.b32.xlu0 %v2769, 111
        %v3087 = vpop.permute.xlu0 %3086
        %vm3088 = vcmask 908288
        %v3089 = vsel %vm3088, %v3059, %v3061
        %v3090 = vsel %vm3088, %v3061, %v3063
        %v3091 = vsel %vm3088, %v3063, %v3065
        %v3092 = vsel %vm3088, %v3065, %v3067
        %v3093 = vsel %vm3088, %v3067, %v3069
        %v3094 = vsel %vm3088, %v3069, %v3071
        %v3095 = vsel %vm3088, %v3071, %v3073
        %v3096 = vsel %vm3088, %v3073, %v3075
        %v3097 = vsel %vm3088, %v3075, %v3077
        %v3098 = vsel %vm3088, %v3077, %v3079
        %v3099 = vsel %vm3088, %v3079, %v3081
        %v3100 = vsel %vm3088, %v3081, %v3083
        %v3101 = vsel %vm3088, %v3083, %v3085
        %v3102 = vsel %vm3088, %v3085, %v3087
        %v3104 = vsel %vm293, %v3057, 0
        %v3107 = vsel %vm297, %v3089, 0
        %v3110 = vsel %vm297, %v3090, 0
        %v3113 = vsel %vm297, %v3091, 0
        %v3116 = vsel %vm297, %v3092, 0
        %v3119 = vsel %vm297, %v3093, 0
        %v3122 = vsel %vm297, %v3094, 0
        %v3125 = vsel %vm297, %v3095, 0
        %v3128 = vsel %vm297, %v3096, 0
        %v3131 = vsel %vm297, %v3097, 0
        %v3134 = vsel %vm297, %v3098, 0
        %v3137 = vsel %vm297, %v3099, 0
        %v3140 = vsel %vm297, %v3100, 0
        %v3143 = vsel %vm297, %v3101, 0
        %v3146 = vsel %vm297, %v3102, 0
        %3148 = vmatpush.bf16.msra.mxu0 0
        %3149 = vmatpush.bf16.msra.mxu0 0
        %3150 = vmatpush.bf16.msra.mxu0 0
        %3151 = vmatpush.bf16.msra.mxu0 0
        %3152 = vmatpush.bf16.msra.mxu0 0
        %3153 = vmatpush.bf16.msra.mxu0 0
        %3154 = vmatpush.bf16.msra.mxu0 0
        %3155 = vmatpush.bf16.msra.mxu0 %v3107
        %3156 = vmatmul.bf16.gmra.mxu0 %v3104
        %v3157 = vpop.f32.mrf.mxu0
        %v3158 = vadd.f32 0.0, %v3157
        %v3159 = vpop.f32.mrf.mxu0
        %3160 = vdwg.mxu0
        %3161 = vmatpush.bf16.msra.mxu0 0
        %3162 = vmatpush.bf16.msra.mxu0 0
        %3163 = vmatpush.bf16.msra.mxu0 0
        %3164 = vmatpush.bf16.msra.mxu0 0
        %3165 = vmatpush.bf16.msra.mxu0 0
        %3166 = vmatpush.bf16.msra.mxu0 0
        %3167 = vmatpush.bf16.msra.mxu0 0
        %3168 = vmatpush.bf16.msra.mxu0 %v3110
        %3169 = vmatmul.bf16.gmra.mxu0 %v3104
        %v3170 = vpop.f32.mrf.mxu0
        %v3171 = vadd.f32 0.0, %v3170
        %v3172 = vpop.f32.mrf.mxu0
        %3173 = vdwg.mxu0
        %3174 = vmatpush.bf16.msra.mxu0 0
        %3175 = vmatpush.bf16.msra.mxu0 0
        %3176 = vmatpush.bf16.msra.mxu0 0
        %3177 = vmatpush.bf16.msra.mxu0 0
        %3178 = vmatpush.bf16.msra.mxu0 0
        %3179 = vmatpush.bf16.msra.mxu0 0
        %3180 = vmatpush.bf16.msra.mxu0 0
        %3181 = vmatpush.bf16.msra.mxu0 %v3113
        %3182 = vmatmul.bf16.gmra.mxu0 %v3104
        %v3183 = vpop.f32.mrf.mxu0
        %v3184 = vadd.f32 0.0, %v3183
        %v3185 = vpop.f32.mrf.mxu0
        %3186 = vdwg.mxu0
        %3187 = vmatpush.bf16.msra.mxu0 0
        %3188 = vmatpush.bf16.msra.mxu0 0
        %3189 = vmatpush.bf16.msra.mxu0 0
        %3190 = vmatpush.bf16.msra.mxu0 0
        %3191 = vmatpush.bf16.msra.mxu0 0
        %3192 = vmatpush.bf16.msra.mxu0 0
        %3193 = vmatpush.bf16.msra.mxu0 0
        %3194 = vmatpush.bf16.msra.mxu0 %v3116
        %3195 = vmatmul.bf16.gmra.mxu0 %v3104
        %v3196 = vpop.f32.mrf.mxu0
        %v3197 = vadd.f32 0.0, %v3196
        %v3198 = vpop.f32.mrf.mxu0
        %3199 = vdwg.mxu0
        %3200 = vmatpush.bf16.msra.mxu0 0
        %3201 = vmatpush.bf16.msra.mxu0 0
        %3202 = vmatpush.bf16.msra.mxu0 0
        %3203 = vmatpush.bf16.msra.mxu0 0
        %3204 = vmatpush.bf16.msra.mxu0 0
        %3205 = vmatpush.bf16.msra.mxu0 0
        %3206 = vmatpush.bf16.msra.mxu0 0
        %3207 = vmatpush.bf16.msra.mxu0 %v3119
        %3208 = vmatmul.bf16.gmra.mxu0 %v3104
        %v3209 = vpop.f32.mrf.mxu0
        %v3210 = vadd.f32 0.0, %v3209
        %v3211 = vpop.f32.mrf.mxu0
        %3212 = vdwg.mxu0
        %3213 = vmatpush.bf16.msra.mxu0 0
        %3214 = vmatpush.bf16.msra.mxu0 0
        %3215 = vmatpush.bf16.msra.mxu0 0
        %3216 = vmatpush.bf16.msra.mxu0 0
        %3217 = vmatpush.bf16.msra.mxu0 0
        %3218 = vmatpush.bf16.msra.mxu0 0
        %3219 = vmatpush.bf16.msra.mxu0 0
        %3220 = vmatpush.bf16.msra.mxu0 %v3122
        %3221 = vmatmul.bf16.gmra.mxu0 %v3104
        %v3222 = vpop.f32.mrf.mxu0
        %v3223 = vadd.f32 0.0, %v3222
        %v3224 = vpop.f32.mrf.mxu0
        %3225 = vdwg.mxu0
        %3226 = vmatpush.bf16.msra.mxu0 0
        %3227 = vmatpush.bf16.msra.mxu0 0
        %3228 = vmatpush.bf16.msra.mxu0 0
        %3229 = vmatpush.bf16.msra.mxu0 0
        %3230 = vmatpush.bf16.msra.mxu0 0
        %3231 = vmatpush.bf16.msra.mxu0 0
        %3232 = vmatpush.bf16.msra.mxu0 0
        %3233 = vmatpush.bf16.msra.mxu0 %v3125
        %3234 = vmatmul.bf16.gmra.mxu0 %v3104
        %v3235 = vpop.f32.mrf.mxu0
        %v3236 = vadd.f32 0.0, %v3235
        %v3237 = vpop.f32.mrf.mxu0
        %3238 = vdwg.mxu0
        %3239 = vmatpush.bf16.msra.mxu0 0
        %3240 = vmatpush.bf16.msra.mxu0 0
        %3241 = vmatpush.bf16.msra.mxu0 0
        %3242 = vmatpush.bf16.msra.mxu0 0
        %3243 = vmatpush.bf16.msra.mxu0 0
        %3244 = vmatpush.bf16.msra.mxu0 0
        %3245 = vmatpush.bf16.msra.mxu0 0
        %3246 = vmatpush.bf16.msra.mxu0 %v3128
        %3247 = vmatmul.bf16.gmra.mxu0 %v3104
        %v3248 = vpop.f32.mrf.mxu0
        %v3249 = vadd.f32 0.0, %v3248
        %v3250 = vpop.f32.mrf.mxu0
        %3251 = vdwg.mxu0
        %3252 = vmatpush.bf16.msra.mxu0 0
        %3253 = vmatpush.bf16.msra.mxu0 0
        %3254 = vmatpush.bf16.msra.mxu0 0
        %3255 = vmatpush.bf16.msra.mxu0 0
        %3256 = vmatpush.bf16.msra.mxu0 0
        %3257 = vmatpush.bf16.msra.mxu0 0
        %3258 = vmatpush.bf16.msra.mxu0 0
        %3259 = vmatpush.bf16.msra.mxu0 %v3131
        %3260 = vmatmul.bf16.gmra.mxu0 %v3104
        %v3261 = vpop.f32.mrf.mxu0
        %v3262 = vadd.f32 0.0, %v3261
        %v3263 = vpop.f32.mrf.mxu0
        %3264 = vdwg.mxu0
        %3265 = vmatpush.bf16.msra.mxu0 0
        %3266 = vmatpush.bf16.msra.mxu0 0
        %3267 = vmatpush.bf16.msra.mxu0 0
        %3268 = vmatpush.bf16.msra.mxu0 0
        %3269 = vmatpush.bf16.msra.mxu0 0
        %3270 = vmatpush.bf16.msra.mxu0 0
        %3271 = vmatpush.bf16.msra.mxu0 0
        %3272 = vmatpush.bf16.msra.mxu0 %v3134
        %3273 = vmatmul.bf16.gmra.mxu0 %v3104
        %v3274 = vpop.f32.mrf.mxu0
        %v3275 = vadd.f32 0.0, %v3274
        %v3276 = vpop.f32.mrf.mxu0
        %3277 = vdwg.mxu0
        %3278 = vmatpush.bf16.msra.mxu0 0
        %3279 = vmatpush.bf16.msra.mxu0 0
        %3280 = vmatpush.bf16.msra.mxu0 0
        %3281 = vmatpush.bf16.msra.mxu0 0
        %3282 = vmatpush.bf16.msra.mxu0 0
        %3283 = vmatpush.bf16.msra.mxu0 0
        %3284 = vmatpush.bf16.msra.mxu0 0
        %3285 = vmatpush.bf16.msra.mxu0 %v3137
        %3286 = vmatmul.bf16.gmra.mxu0 %v3104
        %v3287 = vpop.f32.mrf.mxu0
        %v3288 = vadd.f32 0.0, %v3287
        %v3289 = vpop.f32.mrf.mxu0
        %3290 = vdwg.mxu0
        %3291 = vmatpush.bf16.msra.mxu0 0
        %3292 = vmatpush.bf16.msra.mxu0 0
        %3293 = vmatpush.bf16.msra.mxu0 0
        %3294 = vmatpush.bf16.msra.mxu0 0
        %3295 = vmatpush.bf16.msra.mxu0 0
        %3296 = vmatpush.bf16.msra.mxu0 0
        %3297 = vmatpush.bf16.msra.mxu0 0
        %3298 = vmatpush.bf16.msra.mxu0 %v3140
        %3299 = vmatmul.bf16.gmra.mxu0 %v3104
        %v3300 = vpop.f32.mrf.mxu0
        %v3301 = vadd.f32 0.0, %v3300
        %v3302 = vpop.f32.mrf.mxu0
        %3303 = vdwg.mxu0
        %3304 = vmatpush.bf16.msra.mxu0 0
        %3305 = vmatpush.bf16.msra.mxu0 0
        %3306 = vmatpush.bf16.msra.mxu0 0
        %3307 = vmatpush.bf16.msra.mxu0 0
        %3308 = vmatpush.bf16.msra.mxu0 0
        %3309 = vmatpush.bf16.msra.mxu0 0
        %3310 = vmatpush.bf16.msra.mxu0 0
        %3311 = vmatpush.bf16.msra.mxu0 %v3143
        %3312 = vmatmul.bf16.gmra.mxu0 %v3104
        %v3313 = vpop.f32.mrf.mxu0
        %v3314 = vadd.f32 0.0, %v3313
        %v3315 = vpop.f32.mrf.mxu0
        %3316 = vdwg.mxu0
        %3317 = vmatpush.bf16.msra.mxu0 0
        %3318 = vmatpush.bf16.msra.mxu0 0
        %3319 = vmatpush.bf16.msra.mxu0 0
        %3320 = vmatpush.bf16.msra.mxu0 0
        %3321 = vmatpush.bf16.msra.mxu0 0
        %3322 = vmatpush.bf16.msra.mxu0 0
        %3323 = vmatpush.bf16.msra.mxu0 0
        %3324 = vmatpush.bf16.msra.mxu0 %v3146
        %3325 = vmatmul.bf16.gmra.mxu0 %v3104
        %v3326 = vpop.f32.mrf.mxu0
        %v3327 = vadd.f32 0.0, %v3326
        %v3328 = vpop.f32.mrf.mxu0
        %3329 = vdwg.mxu0
        %v3330 = vadd.f32 %v3042, %v3158
        %v3331 = vadd.f32 %v3043, %v3171
        %v3332 = vadd.f32 %v3044, %v3184
        %v3333 = vadd.f32 %v3045, %v3197
        %v3334 = vadd.f32 %v3046, %v3210
        %v3335 = vadd.f32 %v3047, %v3223
        %v3336 = vadd.f32 %v3048, %v3236
        %v3337 = vadd.f32 %v3049, %v3249
        %v3338 = vadd.f32 %v3050, %v3262
        %v3339 = vadd.f32 %v3051, %v3275
        %v3340 = vadd.f32 %v3052, %v3288
        %v3341 = vadd.f32 %v3053, %v3301
        %v3342 = vadd.f32 %v3054, %v3314
        %v3343 = vadd.f32 %v3055, %v3327
        %v3344 = vld [vmem:[%s1 + $0x58] sm:$0xff]
        %v3345 = vpack.c.bf16 %v3344, %v3344
        %3346 = vrot.lane.b32.xlu0 %v234, 110
        %v3347 = vpop.permute.xlu0 %3346
        %3348 = vrot.lane.b32.xlu0 %v235, 110
        %v3349 = vpop.permute.xlu0 %3348
        %3350 = vrot.lane.b32.xlu0 %v236, 110
        %v3351 = vpop.permute.xlu0 %3350
        %3352 = vrot.lane.b32.xlu0 %v237, 110
        %v3353 = vpop.permute.xlu0 %3352
        %3354 = vrot.lane.b32.xlu0 %v238, 110
        %v3355 = vpop.permute.xlu0 %3354
        %3356 = vrot.lane.b32.xlu0 %v239, 110
        %v3357 = vpop.permute.xlu0 %3356
        %3358 = vrot.lane.b32.xlu0 %v240, 110
        %v3359 = vpop.permute.xlu0 %3358
        %3360 = vrot.lane.b32.xlu0 %v241, 110
        %v3361 = vpop.permute.xlu0 %3360
        %3362 = vrot.lane.b32.xlu0 %v242, 110
        %v3363 = vpop.permute.xlu0 %3362
        %3364 = vrot.lane.b32.xlu0 %v243, 110
        %v3365 = vpop.permute.xlu0 %3364
        %3366 = vrot.lane.b32.xlu0 %v244, 110
        %v3367 = vpop.permute.xlu0 %3366
        %3368 = vrot.lane.b32.xlu0 %v245, 110
        %v3369 = vpop.permute.xlu0 %3368
        %3370 = vrot.lane.b32.xlu0 %v246, 110
        %v3371 = vpop.permute.xlu0 %3370
        %3372 = vrot.lane.b32.xlu0 %v247, 110
        %v3373 = vpop.permute.xlu0 %3372
        %3374 = vrot.lane.b32.xlu0 %v2769, 110
        %v3375 = vpop.permute.xlu0 %3374
        %vm3376 = vcmask 900096
        %v3377 = vsel %vm3376, %v3347, %v3349
        %v3378 = vsel %vm3376, %v3349, %v3351
        %v3379 = vsel %vm3376, %v3351, %v3353
        %v3380 = vsel %vm3376, %v3353, %v3355
        %v3381 = vsel %vm3376, %v3355, %v3357
        %v3382 = vsel %vm3376, %v3357, %v3359
        %v3383 = vsel %vm3376, %v3359, %v3361
        %v3384 = vsel %vm3376, %v3361, %v3363
        %v3385 = vsel %vm3376, %v3363, %v3365
        %v3386 = vsel %vm3376, %v3365, %v3367
        %v3387 = vsel %vm3376, %v3367, %v3369
        %v3388 = vsel %vm3376, %v3369, %v3371
        %v3389 = vsel %vm3376, %v3371, %v3373
        %v3390 = vsel %vm3376, %v3373, %v3375
        %v3392 = vsel %vm293, %v3345, 0
        %v3395 = vsel %vm297, %v3377, 0
        %v3398 = vsel %vm297, %v3378, 0
        %v3401 = vsel %vm297, %v3379, 0
        %v3404 = vsel %vm297, %v3380, 0
        %v3407 = vsel %vm297, %v3381, 0
        %v3410 = vsel %vm297, %v3382, 0
        %v3413 = vsel %vm297, %v3383, 0
        %v3416 = vsel %vm297, %v3384, 0
        %v3419 = vsel %vm297, %v3385, 0
        %v3422 = vsel %vm297, %v3386, 0
        %v3425 = vsel %vm297, %v3387, 0
        %v3428 = vsel %vm297, %v3388, 0
        %v3431 = vsel %vm297, %v3389, 0
        %v3434 = vsel %vm297, %v3390, 0
        %3436 = vmatpush.bf16.msra.mxu0 0
        %3437 = vmatpush.bf16.msra.mxu0 0
        %3438 = vmatpush.bf16.msra.mxu0 0
        %3439 = vmatpush.bf16.msra.mxu0 0
        %3440 = vmatpush.bf16.msra.mxu0 0
        %3441 = vmatpush.bf16.msra.mxu0 0
        %3442 = vmatpush.bf16.msra.mxu0 0
        %3443 = vmatpush.bf16.msra.mxu0 %v3395
        %3444 = vmatmul.bf16.gmra.mxu0 %v3392
        %v3445 = vpop.f32.mrf.mxu0
        %v3446 = vadd.f32 0.0, %v3445
        %v3447 = vpop.f32.mrf.mxu0
        %3448 = vdwg.mxu0
        %3449 = vmatpush.bf16.msra.mxu0 0
        %3450 = vmatpush.bf16.msra.mxu0 0
        %3451 = vmatpush.bf16.msra.mxu0 0
        %3452 = vmatpush.bf16.msra.mxu0 0
        %3453 = vmatpush.bf16.msra.mxu0 0
        %3454 = vmatpush.bf16.msra.mxu0 0
        %3455 = vmatpush.bf16.msra.mxu0 0
        %3456 = vmatpush.bf16.msra.mxu0 %v3398
        %3457 = vmatmul.bf16.gmra.mxu0 %v3392
        %v3458 = vpop.f32.mrf.mxu0
        %v3459 = vadd.f32 0.0, %v3458
        %v3460 = vpop.f32.mrf.mxu0
        %3461 = vdwg.mxu0
        %3462 = vmatpush.bf16.msra.mxu0 0
        %3463 = vmatpush.bf16.msra.mxu0 0
        %3464 = vmatpush.bf16.msra.mxu0 0
        %3465 = vmatpush.bf16.msra.mxu0 0
        %3466 = vmatpush.bf16.msra.mxu0 0
        %3467 = vmatpush.bf16.msra.mxu0 0
        %3468 = vmatpush.bf16.msra.mxu0 0
        %3469 = vmatpush.bf16.msra.mxu0 %v3401
        %3470 = vmatmul.bf16.gmra.mxu0 %v3392
        %v3471 = vpop.f32.mrf.mxu0
        %v3472 = vadd.f32 0.0, %v3471
        %v3473 = vpop.f32.mrf.mxu0
        %3474 = vdwg.mxu0
        %3475 = vmatpush.bf16.msra.mxu0 0
        %3476 = vmatpush.bf16.msra.mxu0 0
        %3477 = vmatpush.bf16.msra.mxu0 0
        %3478 = vmatpush.bf16.msra.mxu0 0
        %3479 = vmatpush.bf16.msra.mxu0 0
        %3480 = vmatpush.bf16.msra.mxu0 0
        %3481 = vmatpush.bf16.msra.mxu0 0
        %3482 = vmatpush.bf16.msra.mxu0 %v3404
        %3483 = vmatmul.bf16.gmra.mxu0 %v3392
        %v3484 = vpop.f32.mrf.mxu0
        %v3485 = vadd.f32 0.0, %v3484
        %v3486 = vpop.f32.mrf.mxu0
        %3487 = vdwg.mxu0
        %3488 = vmatpush.bf16.msra.mxu0 0
        %3489 = vmatpush.bf16.msra.mxu0 0
        %3490 = vmatpush.bf16.msra.mxu0 0
        %3491 = vmatpush.bf16.msra.mxu0 0
        %3492 = vmatpush.bf16.msra.mxu0 0
        %3493 = vmatpush.bf16.msra.mxu0 0
        %3494 = vmatpush.bf16.msra.mxu0 0
        %3495 = vmatpush.bf16.msra.mxu0 %v3407
        %3496 = vmatmul.bf16.gmra.mxu0 %v3392
        %v3497 = vpop.f32.mrf.mxu0
        %v3498 = vadd.f32 0.0, %v3497
        %v3499 = vpop.f32.mrf.mxu0
        %3500 = vdwg.mxu0
        %3501 = vmatpush.bf16.msra.mxu0 0
        %3502 = vmatpush.bf16.msra.mxu0 0
        %3503 = vmatpush.bf16.msra.mxu0 0
        %3504 = vmatpush.bf16.msra.mxu0 0
        %3505 = vmatpush.bf16.msra.mxu0 0
        %3506 = vmatpush.bf16.msra.mxu0 0
        %3507 = vmatpush.bf16.msra.mxu0 0
        %3508 = vmatpush.bf16.msra.mxu0 %v3410
        %3509 = vmatmul.bf16.gmra.mxu0 %v3392
        %v3510 = vpop.f32.mrf.mxu0
        %v3511 = vadd.f32 0.0, %v3510
        %v3512 = vpop.f32.mrf.mxu0
        %3513 = vdwg.mxu0
        %3514 = vmatpush.bf16.msra.mxu0 0
        %3515 = vmatpush.bf16.msra.mxu0 0
        %3516 = vmatpush.bf16.msra.mxu0 0
        %3517 = vmatpush.bf16.msra.mxu0 0
        %3518 = vmatpush.bf16.msra.mxu0 0
        %3519 = vmatpush.bf16.msra.mxu0 0
        %3520 = vmatpush.bf16.msra.mxu0 0
        %3521 = vmatpush.bf16.msra.mxu0 %v3413
        %3522 = vmatmul.bf16.gmra.mxu0 %v3392
        %v3523 = vpop.f32.mrf.mxu0
        %v3524 = vadd.f32 0.0, %v3523
        %v3525 = vpop.f32.mrf.mxu0
        %3526 = vdwg.mxu0
        %3527 = vmatpush.bf16.msra.mxu0 0
        %3528 = vmatpush.bf16.msra.mxu0 0
        %3529 = vmatpush.bf16.msra.mxu0 0
        %3530 = vmatpush.bf16.msra.mxu0 0
        %3531 = vmatpush.bf16.msra.mxu0 0
        %3532 = vmatpush.bf16.msra.mxu0 0
        %3533 = vmatpush.bf16.msra.mxu0 0
        %3534 = vmatpush.bf16.msra.mxu0 %v3416
        %3535 = vmatmul.bf16.gmra.mxu0 %v3392
        %v3536 = vpop.f32.mrf.mxu0
        %v3537 = vadd.f32 0.0, %v3536
        %v3538 = vpop.f32.mrf.mxu0
        %3539 = vdwg.mxu0
        %3540 = vmatpush.bf16.msra.mxu0 0
        %3541 = vmatpush.bf16.msra.mxu0 0
        %3542 = vmatpush.bf16.msra.mxu0 0
        %3543 = vmatpush.bf16.msra.mxu0 0
        %3544 = vmatpush.bf16.msra.mxu0 0
        %3545 = vmatpush.bf16.msra.mxu0 0
        %3546 = vmatpush.bf16.msra.mxu0 0
        %3547 = vmatpush.bf16.msra.mxu0 %v3419
        %3548 = vmatmul.bf16.gmra.mxu0 %v3392
        %v3549 = vpop.f32.mrf.mxu0
        %v3550 = vadd.f32 0.0, %v3549
        %v3551 = vpop.f32.mrf.mxu0
        %3552 = vdwg.mxu0
        %3553 = vmatpush.bf16.msra.mxu0 0
        %3554 = vmatpush.bf16.msra.mxu0 0
        %3555 = vmatpush.bf16.msra.mxu0 0
        %3556 = vmatpush.bf16.msra.mxu0 0
        %3557 = vmatpush.bf16.msra.mxu0 0
        %3558 = vmatpush.bf16.msra.mxu0 0
        %3559 = vmatpush.bf16.msra.mxu0 0
        %3560 = vmatpush.bf16.msra.mxu0 %v3422
        %3561 = vmatmul.bf16.gmra.mxu0 %v3392
        %v3562 = vpop.f32.mrf.mxu0
        %v3563 = vadd.f32 0.0, %v3562
        %v3564 = vpop.f32.mrf.mxu0
        %3565 = vdwg.mxu0
        %3566 = vmatpush.bf16.msra.mxu0 0
        %3567 = vmatpush.bf16.msra.mxu0 0
        %3568 = vmatpush.bf16.msra.mxu0 0
        %3569 = vmatpush.bf16.msra.mxu0 0
        %3570 = vmatpush.bf16.msra.mxu0 0
        %3571 = vmatpush.bf16.msra.mxu0 0
        %3572 = vmatpush.bf16.msra.mxu0 0
        %3573 = vmatpush.bf16.msra.mxu0 %v3425
        %3574 = vmatmul.bf16.gmra.mxu0 %v3392
        %v3575 = vpop.f32.mrf.mxu0
        %v3576 = vadd.f32 0.0, %v3575
        %v3577 = vpop.f32.mrf.mxu0
        %3578 = vdwg.mxu0
        %3579 = vmatpush.bf16.msra.mxu0 0
        %3580 = vmatpush.bf16.msra.mxu0 0
        %3581 = vmatpush.bf16.msra.mxu0 0
        %3582 = vmatpush.bf16.msra.mxu0 0
        %3583 = vmatpush.bf16.msra.mxu0 0
        %3584 = vmatpush.bf16.msra.mxu0 0
        %3585 = vmatpush.bf16.msra.mxu0 0
        %3586 = vmatpush.bf16.msra.mxu0 %v3428
        %3587 = vmatmul.bf16.gmra.mxu0 %v3392
        %v3588 = vpop.f32.mrf.mxu0
        %v3589 = vadd.f32 0.0, %v3588
        %v3590 = vpop.f32.mrf.mxu0
        %3591 = vdwg.mxu0
        %3592 = vmatpush.bf16.msra.mxu0 0
        %3593 = vmatpush.bf16.msra.mxu0 0
        %3594 = vmatpush.bf16.msra.mxu0 0
        %3595 = vmatpush.bf16.msra.mxu0 0
        %3596 = vmatpush.bf16.msra.mxu0 0
        %3597 = vmatpush.bf16.msra.mxu0 0
        %3598 = vmatpush.bf16.msra.mxu0 0
        %3599 = vmatpush.bf16.msra.mxu0 %v3431
        %3600 = vmatmul.bf16.gmra.mxu0 %v3392
        %v3601 = vpop.f32.mrf.mxu0
        %v3602 = vadd.f32 0.0, %v3601
        %v3603 = vpop.f32.mrf.mxu0
        %3604 = vdwg.mxu0
        %3605 = vmatpush.bf16.msra.mxu0 0
        %3606 = vmatpush.bf16.msra.mxu0 0
        %3607 = vmatpush.bf16.msra.mxu0 0
        %3608 = vmatpush.bf16.msra.mxu0 0
        %3609 = vmatpush.bf16.msra.mxu0 0
        %3610 = vmatpush.bf16.msra.mxu0 0
        %3611 = vmatpush.bf16.msra.mxu0 0
        %3612 = vmatpush.bf16.msra.mxu0 %v3434
        %3613 = vmatmul.bf16.gmra.mxu0 %v3392
        %v3614 = vpop.f32.mrf.mxu0
        %v3615 = vadd.f32 0.0, %v3614
        %v3616 = vpop.f32.mrf.mxu0
        %3617 = vdwg.mxu0
        %v3618 = vadd.f32 %v3330, %v3446
        %v3619 = vadd.f32 %v3331, %v3459
        %v3620 = vadd.f32 %v3332, %v3472
        %v3621 = vadd.f32 %v3333, %v3485
        %v3622 = vadd.f32 %v3334, %v3498
        %v3623 = vadd.f32 %v3335, %v3511
        %v3624 = vadd.f32 %v3336, %v3524
        %v3625 = vadd.f32 %v3337, %v3537
        %v3626 = vadd.f32 %v3338, %v3550
        %v3627 = vadd.f32 %v3339, %v3563
        %v3628 = vadd.f32 %v3340, %v3576
        %v3629 = vadd.f32 %v3341, %v3589
        %v3630 = vadd.f32 %v3342, %v3602
        %v3631 = vadd.f32 %v3343, %v3615
        %v3632 = vld [vmem:[%s1 + $0x60] sm:$0xff]
        %v3633 = vpack.c.bf16 %v3632, %v3632
        %3634 = vrot.lane.b32.xlu0 %v234, 100
        %v3635 = vpop.permute.xlu0 %3634
        %3636 = vrot.lane.b32.xlu0 %v235, 100
        %v3637 = vpop.permute.xlu0 %3636
        %3638 = vrot.lane.b32.xlu0 %v236, 100
        %v3639 = vpop.permute.xlu0 %3638
        %3640 = vrot.lane.b32.xlu0 %v237, 100
        %v3641 = vpop.permute.xlu0 %3640
        %3642 = vrot.lane.b32.xlu0 %v238, 100
        %v3643 = vpop.permute.xlu0 %3642
        %3644 = vrot.lane.b32.xlu0 %v239, 100
        %v3645 = vpop.permute.xlu0 %3644
        %3646 = vrot.lane.b32.xlu0 %v240, 100
        %v3647 = vpop.permute.xlu0 %3646
        %3648 = vrot.lane.b32.xlu0 %v241, 100
        %v3649 = vpop.permute.xlu0 %3648
        %3650 = vrot.lane.b32.xlu0 %v242, 100
        %v3651 = vpop.permute.xlu0 %3650
        %3652 = vrot.lane.b32.xlu0 %v243, 100
        %v3653 = vpop.permute.xlu0 %3652
        %3654 = vrot.lane.b32.xlu0 %v244, 100
        %v3655 = vpop.permute.xlu0 %3654
        %3656 = vrot.lane.b32.xlu0 %v245, 100
        %v3657 = vpop.permute.xlu0 %3656
        %3658 = vrot.lane.b32.xlu0 %v246, 100
        %v3659 = vpop.permute.xlu0 %3658
        %3660 = vrot.lane.b32.xlu0 %v247, 100
        %v3661 = vpop.permute.xlu0 %3660
        %3662 = vrot.lane.b32.xlu0 %v2769, 100
        %v3663 = vpop.permute.xlu0 %3662
        %vm3664 = vcmask 818176
        %v3665 = vsel %vm3664, %v3635, %v3637
        %v3666 = vsel %vm3664, %v3637, %v3639
        %v3667 = vsel %vm3664, %v3639, %v3641
        %v3668 = vsel %vm3664, %v3641, %v3643
        %v3669 = vsel %vm3664, %v3643, %v3645
        %v3670 = vsel %vm3664, %v3645, %v3647
        %v3671 = vsel %vm3664, %v3647, %v3649
        %v3672 = vsel %vm3664, %v3649, %v3651
        %v3673 = vsel %vm3664, %v3651, %v3653
        %v3674 = vsel %vm3664, %v3653, %v3655
        %v3675 = vsel %vm3664, %v3655, %v3657
        %v3676 = vsel %vm3664, %v3657, %v3659
        %v3677 = vsel %vm3664, %v3659, %v3661
        %v3678 = vsel %vm3664, %v3661, %v3663
        %v3680 = vsel %vm293, %v3633, 0
        %v3683 = vsel %vm297, %v3665, 0
        %v3686 = vsel %vm297, %v3666, 0
        %v3689 = vsel %vm297, %v3667, 0
        %v3692 = vsel %vm297, %v3668, 0
        %v3695 = vsel %vm297, %v3669, 0
        %v3698 = vsel %vm297, %v3670, 0
        %v3701 = vsel %vm297, %v3671, 0
        %v3704 = vsel %vm297, %v3672, 0
        %v3707 = vsel %vm297, %v3673, 0
        %v3710 = vsel %vm297, %v3674, 0
        %v3713 = vsel %vm297, %v3675, 0
        %v3716 = vsel %vm297, %v3676, 0
        %v3719 = vsel %vm297, %v3677, 0
        %v3722 = vsel %vm297, %v3678, 0
        %3724 = vmatpush.bf16.msra.mxu0 0
        %3725 = vmatpush.bf16.msra.mxu0 0
        %3726 = vmatpush.bf16.msra.mxu0 0
        %3727 = vmatpush.bf16.msra.mxu0 0
        %3728 = vmatpush.bf16.msra.mxu0 0
        %3729 = vmatpush.bf16.msra.mxu0 0
        %3730 = vmatpush.bf16.msra.mxu0 0
        %3731 = vmatpush.bf16.msra.mxu0 %v3683
        %3732 = vmatmul.bf16.gmra.mxu0 %v3680
        %v3733 = vpop.f32.mrf.mxu0
        %v3734 = vadd.f32 0.0, %v3733
        %v3735 = vpop.f32.mrf.mxu0
        %3736 = vdwg.mxu0
        %3737 = vmatpush.bf16.msra.mxu0 0
        %3738 = vmatpush.bf16.msra.mxu0 0
        %3739 = vmatpush.bf16.msra.mxu0 0
        %3740 = vmatpush.bf16.msra.mxu0 0
        %3741 = vmatpush.bf16.msra.mxu0 0
        %3742 = vmatpush.bf16.msra.mxu0 0
        %3743 = vmatpush.bf16.msra.mxu0 0
        %3744 = vmatpush.bf16.msra.mxu0 %v3686
        %3745 = vmatmul.bf16.gmra.mxu0 %v3680
        %v3746 = vpop.f32.mrf.mxu0
        %v3747 = vadd.f32 0.0, %v3746
        %v3748 = vpop.f32.mrf.mxu0
        %3749 = vdwg.mxu0
        %3750 = vmatpush.bf16.msra.mxu0 0
        %3751 = vmatpush.bf16.msra.mxu0 0
        %3752 = vmatpush.bf16.msra.mxu0 0
        %3753 = vmatpush.bf16.msra.mxu0 0
        %3754 = vmatpush.bf16.msra.mxu0 0
        %3755 = vmatpush.bf16.msra.mxu0 0
        %3756 = vmatpush.bf16.msra.mxu0 0
        %3757 = vmatpush.bf16.msra.mxu0 %v3689
        %3758 = vmatmul.bf16.gmra.mxu0 %v3680
        %v3759 = vpop.f32.mrf.mxu0
        %v3760 = vadd.f32 0.0, %v3759
        %v3761 = vpop.f32.mrf.mxu0
        %3762 = vdwg.mxu0
        %3763 = vmatpush.bf16.msra.mxu0 0
        %3764 = vmatpush.bf16.msra.mxu0 0
        %3765 = vmatpush.bf16.msra.mxu0 0
        %3766 = vmatpush.bf16.msra.mxu0 0
        %3767 = vmatpush.bf16.msra.mxu0 0
        %3768 = vmatpush.bf16.msra.mxu0 0
        %3769 = vmatpush.bf16.msra.mxu0 0
        %3770 = vmatpush.bf16.msra.mxu0 %v3692
        %3771 = vmatmul.bf16.gmra.mxu0 %v3680
        %v3772 = vpop.f32.mrf.mxu0
        %v3773 = vadd.f32 0.0, %v3772
        %v3774 = vpop.f32.mrf.mxu0
        %3775 = vdwg.mxu0
        %3776 = vmatpush.bf16.msra.mxu0 0
        %3777 = vmatpush.bf16.msra.mxu0 0
        %3778 = vmatpush.bf16.msra.mxu0 0
        %3779 = vmatpush.bf16.msra.mxu0 0
        %3780 = vmatpush.bf16.msra.mxu0 0
        %3781 = vmatpush.bf16.msra.mxu0 0
        %3782 = vmatpush.bf16.msra.mxu0 0
        %3783 = vmatpush.bf16.msra.mxu0 %v3695
        %3784 = vmatmul.bf16.gmra.mxu0 %v3680
        %v3785 = vpop.f32.mrf.mxu0
        %v3786 = vadd.f32 0.0, %v3785
        %v3787 = vpop.f32.mrf.mxu0
        %3788 = vdwg.mxu0
        %3789 = vmatpush.bf16.msra.mxu0 0
        %3790 = vmatpush.bf16.msra.mxu0 0
        %3791 = vmatpush.bf16.msra.mxu0 0
        %3792 = vmatpush.bf16.msra.mxu0 0
        %3793 = vmatpush.bf16.msra.mxu0 0
        %3794 = vmatpush.bf16.msra.mxu0 0
        %3795 = vmatpush.bf16.msra.mxu0 0
        %3796 = vmatpush.bf16.msra.mxu0 %v3698
        %3797 = vmatmul.bf16.gmra.mxu0 %v3680
        %v3798 = vpop.f32.mrf.mxu0
        %v3799 = vadd.f32 0.0, %v3798
        %v3800 = vpop.f32.mrf.mxu0
        %3801 = vdwg.mxu0
        %3802 = vmatpush.bf16.msra.mxu0 0
        %3803 = vmatpush.bf16.msra.mxu0 0
        %3804 = vmatpush.bf16.msra.mxu0 0
        %3805 = vmatpush.bf16.msra.mxu0 0
        %3806 = vmatpush.bf16.msra.mxu0 0
        %3807 = vmatpush.bf16.msra.mxu0 0
        %3808 = vmatpush.bf16.msra.mxu0 0
        %3809 = vmatpush.bf16.msra.mxu0 %v3701
        %3810 = vmatmul.bf16.gmra.mxu0 %v3680
        %v3811 = vpop.f32.mrf.mxu0
        %v3812 = vadd.f32 0.0, %v3811
        %v3813 = vpop.f32.mrf.mxu0
        %3814 = vdwg.mxu0
        %3815 = vmatpush.bf16.msra.mxu0 0
        %3816 = vmatpush.bf16.msra.mxu0 0
        %3817 = vmatpush.bf16.msra.mxu0 0
        %3818 = vmatpush.bf16.msra.mxu0 0
        %3819 = vmatpush.bf16.msra.mxu0 0
        %3820 = vmatpush.bf16.msra.mxu0 0
        %3821 = vmatpush.bf16.msra.mxu0 0
        %3822 = vmatpush.bf16.msra.mxu0 %v3704
        %3823 = vmatmul.bf16.gmra.mxu0 %v3680
        %v3824 = vpop.f32.mrf.mxu0
        %v3825 = vadd.f32 0.0, %v3824
        %v3826 = vpop.f32.mrf.mxu0
        %3827 = vdwg.mxu0
        %3828 = vmatpush.bf16.msra.mxu0 0
        %3829 = vmatpush.bf16.msra.mxu0 0
        %3830 = vmatpush.bf16.msra.mxu0 0
        %3831 = vmatpush.bf16.msra.mxu0 0
        %3832 = vmatpush.bf16.msra.mxu0 0
        %3833 = vmatpush.bf16.msra.mxu0 0
        %3834 = vmatpush.bf16.msra.mxu0 0
        %3835 = vmatpush.bf16.msra.mxu0 %v3707
        %3836 = vmatmul.bf16.gmra.mxu0 %v3680
        %v3837 = vpop.f32.mrf.mxu0
        %v3838 = vadd.f32 0.0, %v3837
        %v3839 = vpop.f32.mrf.mxu0
        %3840 = vdwg.mxu0
        %3841 = vmatpush.bf16.msra.mxu0 0
        %3842 = vmatpush.bf16.msra.mxu0 0
        %3843 = vmatpush.bf16.msra.mxu0 0
        %3844 = vmatpush.bf16.msra.mxu0 0
        %3845 = vmatpush.bf16.msra.mxu0 0
        %3846 = vmatpush.bf16.msra.mxu0 0
        %3847 = vmatpush.bf16.msra.mxu0 0
        %3848 = vmatpush.bf16.msra.mxu0 %v3710
        %3849 = vmatmul.bf16.gmra.mxu0 %v3680
        %v3850 = vpop.f32.mrf.mxu0
        %v3851 = vadd.f32 0.0, %v3850
        %v3852 = vpop.f32.mrf.mxu0
        %3853 = vdwg.mxu0
        %3854 = vmatpush.bf16.msra.mxu0 0
        %3855 = vmatpush.bf16.msra.mxu0 0
        %3856 = vmatpush.bf16.msra.mxu0 0
        %3857 = vmatpush.bf16.msra.mxu0 0
        %3858 = vmatpush.bf16.msra.mxu0 0
        %3859 = vmatpush.bf16.msra.mxu0 0
        %3860 = vmatpush.bf16.msra.mxu0 0
        %3861 = vmatpush.bf16.msra.mxu0 %v3713
        %3862 = vmatmul.bf16.gmra.mxu0 %v3680
        %v3863 = vpop.f32.mrf.mxu0
        %v3864 = vadd.f32 0.0, %v3863
        %v3865 = vpop.f32.mrf.mxu0
        %3866 = vdwg.mxu0
        %3867 = vmatpush.bf16.msra.mxu0 0
        %3868 = vmatpush.bf16.msra.mxu0 0
        %3869 = vmatpush.bf16.msra.mxu0 0
        %3870 = vmatpush.bf16.msra.mxu0 0
        %3871 = vmatpush.bf16.msra.mxu0 0
        %3872 = vmatpush.bf16.msra.mxu0 0
        %3873 = vmatpush.bf16.msra.mxu0 0
        %3874 = vmatpush.bf16.msra.mxu0 %v3716
        %3875 = vmatmul.bf16.gmra.mxu0 %v3680
        %v3876 = vpop.f32.mrf.mxu0
        %v3877 = vadd.f32 0.0, %v3876
        %v3878 = vpop.f32.mrf.mxu0
        %3879 = vdwg.mxu0
        %3880 = vmatpush.bf16.msra.mxu0 0
        %3881 = vmatpush.bf16.msra.mxu0 0
        %3882 = vmatpush.bf16.msra.mxu0 0
        %3883 = vmatpush.bf16.msra.mxu0 0
        %3884 = vmatpush.bf16.msra.mxu0 0
        %3885 = vmatpush.bf16.msra.mxu0 0
        %3886 = vmatpush.bf16.msra.mxu0 0
        %3887 = vmatpush.bf16.msra.mxu0 %v3719
        %3888 = vmatmul.bf16.gmra.mxu0 %v3680
        %v3889 = vpop.f32.mrf.mxu0
        %v3890 = vadd.f32 0.0, %v3889
        %v3891 = vpop.f32.mrf.mxu0
        %3892 = vdwg.mxu0
        %3893 = vmatpush.bf16.msra.mxu0 0
        %3894 = vmatpush.bf16.msra.mxu0 0
        %3895 = vmatpush.bf16.msra.mxu0 0
        %3896 = vmatpush.bf16.msra.mxu0 0
        %3897 = vmatpush.bf16.msra.mxu0 0
        %3898 = vmatpush.bf16.msra.mxu0 0
        %3899 = vmatpush.bf16.msra.mxu0 0
        %3900 = vmatpush.bf16.msra.mxu0 %v3722
        %3901 = vmatmul.bf16.gmra.mxu0 %v3680
        %v3902 = vpop.f32.mrf.mxu0
        %v3903 = vadd.f32 0.0, %v3902
        %v3904 = vpop.f32.mrf.mxu0
        %3905 = vdwg.mxu0
        %v3906 = vadd.f32 %v3618, %v3734
        %v3907 = vadd.f32 %v3619, %v3747
        %v3908 = vadd.f32 %v3620, %v3760
        %v3909 = vadd.f32 %v3621, %v3773
        %v3910 = vadd.f32 %v3622, %v3786
        %v3911 = vadd.f32 %v3623, %v3799
        %v3912 = vadd.f32 %v3624, %v3812
        %v3913 = vadd.f32 %v3625, %v3825
        %v3914 = vadd.f32 %v3626, %v3838
        %v3915 = vadd.f32 %v3627, %v3851
        %v3916 = vadd.f32 %v3628, %v3864
        %v3917 = vadd.f32 %v3629, %v3877
        %v3918 = vadd.f32 %v3630, %v3890
        %v3919 = vadd.f32 %v3631, %v3903
        %v3920 = vld [vmem:[%s1 + $0x68] sm:$0xff]
        %v3921 = vpack.c.bf16 %v3920, %v3920
        %3922 = vrot.lane.b32.xlu0 %v234, 99
        %v3923 = vpop.permute.xlu0 %3922
        %3924 = vrot.lane.b32.xlu0 %v235, 99
        %v3925 = vpop.permute.xlu0 %3924
        %3926 = vrot.lane.b32.xlu0 %v236, 99
        %v3927 = vpop.permute.xlu0 %3926
        %3928 = vrot.lane.b32.xlu0 %v237, 99
        %v3929 = vpop.permute.xlu0 %3928
        %3930 = vrot.lane.b32.xlu0 %v238, 99
        %v3931 = vpop.permute.xlu0 %3930
        %3932 = vrot.lane.b32.xlu0 %v239, 99
        %v3933 = vpop.permute.xlu0 %3932
        %3934 = vrot.lane.b32.xlu0 %v240, 99
        %v3935 = vpop.permute.xlu0 %3934
        %3936 = vrot.lane.b32.xlu0 %v241, 99
        %v3937 = vpop.permute.xlu0 %3936
        %3938 = vrot.lane.b32.xlu0 %v242, 99
        %v3939 = vpop.permute.xlu0 %3938
        %3940 = vrot.lane.b32.xlu0 %v243, 99
        %v3941 = vpop.permute.xlu0 %3940
        %3942 = vrot.lane.b32.xlu0 %v244, 99
        %v3943 = vpop.permute.xlu0 %3942
        %3944 = vrot.lane.b32.xlu0 %v245, 99
        %v3945 = vpop.permute.xlu0 %3944
        %3946 = vrot.lane.b32.xlu0 %v246, 99
        %v3947 = vpop.permute.xlu0 %3946
        %3948 = vrot.lane.b32.xlu0 %v247, 99
        %v3949 = vpop.permute.xlu0 %3948
        %3950 = vrot.lane.b32.xlu0 %v2769, 99
        %v3951 = vpop.permute.xlu0 %3950
        %vm3952 = vcmask 809984
        %v3953 = vsel %vm3952, %v3923, %v3925
        %v3954 = vsel %vm3952, %v3925, %v3927
        %v3955 = vsel %vm3952, %v3927, %v3929
        %v3956 = vsel %vm3952, %v3929, %v3931
        %v3957 = vsel %vm3952, %v3931, %v3933
        %v3958 = vsel %vm3952, %v3933, %v3935
        %v3959 = vsel %vm3952, %v3935, %v3937
        %v3960 = vsel %vm3952, %v3937, %v3939
        %v3961 = vsel %vm3952, %v3939, %v3941
        %v3962 = vsel %vm3952, %v3941, %v3943
        %v3963 = vsel %vm3952, %v3943, %v3945
        %v3964 = vsel %vm3952, %v3945, %v3947
        %v3965 = vsel %vm3952, %v3947, %v3949
        %v3966 = vsel %vm3952, %v3949, %v3951
        %v3968 = vsel %vm293, %v3921, 0
        %v3971 = vsel %vm297, %v3953, 0
        %v3974 = vsel %vm297, %v3954, 0
        %v3977 = vsel %vm297, %v3955, 0
        %v3980 = vsel %vm297, %v3956, 0
        %v3983 = vsel %vm297, %v3957, 0
        %v3986 = vsel %vm297, %v3958, 0
        %v3989 = vsel %vm297, %v3959, 0
        %v3992 = vsel %vm297, %v3960, 0
        %v3995 = vsel %vm297, %v3961, 0
        %v3998 = vsel %vm297, %v3962, 0
        %v4001 = vsel %vm297, %v3963, 0
        %v4004 = vsel %vm297, %v3964, 0
        %v4007 = vsel %vm297, %v3965, 0
        %v4010 = vsel %vm297, %v3966, 0
        %4012 = vmatpush.bf16.msra.mxu0 0
        %4013 = vmatpush.bf16.msra.mxu0 0
        %4014 = vmatpush.bf16.msra.mxu0 0
        %4015 = vmatpush.bf16.msra.mxu0 0
        %4016 = vmatpush.bf16.msra.mxu0 0
        %4017 = vmatpush.bf16.msra.mxu0 0
        %4018 = vmatpush.bf16.msra.mxu0 0
        %4019 = vmatpush.bf16.msra.mxu0 %v3971
        %4020 = vmatmul.bf16.gmra.mxu0 %v3968
        %v4021 = vpop.f32.mrf.mxu0
        %v4022 = vadd.f32 0.0, %v4021
        %v4023 = vpop.f32.mrf.mxu0
        %4024 = vdwg.mxu0
        %4025 = vmatpush.bf16.msra.mxu0 0
        %4026 = vmatpush.bf16.msra.mxu0 0
        %4027 = vmatpush.bf16.msra.mxu0 0
        %4028 = vmatpush.bf16.msra.mxu0 0
        %4029 = vmatpush.bf16.msra.mxu0 0
        %4030 = vmatpush.bf16.msra.mxu0 0
        %4031 = vmatpush.bf16.msra.mxu0 0
        %4032 = vmatpush.bf16.msra.mxu0 %v3974
        %4033 = vmatmul.bf16.gmra.mxu0 %v3968
        %v4034 = vpop.f32.mrf.mxu0
        %v4035 = vadd.f32 0.0, %v4034
        %v4036 = vpop.f32.mrf.mxu0
        %4037 = vdwg.mxu0
        %4038 = vmatpush.bf16.msra.mxu0 0
        %4039 = vmatpush.bf16.msra.mxu0 0
        %4040 = vmatpush.bf16.msra.mxu0 0
        %4041 = vmatpush.bf16.msra.mxu0 0
        %4042 = vmatpush.bf16.msra.mxu0 0
        %4043 = vmatpush.bf16.msra.mxu0 0
        %4044 = vmatpush.bf16.msra.mxu0 0
        %4045 = vmatpush.bf16.msra.mxu0 %v3977
        %4046 = vmatmul.bf16.gmra.mxu0 %v3968
        %v4047 = vpop.f32.mrf.mxu0
        %v4048 = vadd.f32 0.0, %v4047
        %v4049 = vpop.f32.mrf.mxu0
        %4050 = vdwg.mxu0
        %4051 = vmatpush.bf16.msra.mxu0 0
        %4052 = vmatpush.bf16.msra.mxu0 0
        %4053 = vmatpush.bf16.msra.mxu0 0
        %4054 = vmatpush.bf16.msra.mxu0 0
        %4055 = vmatpush.bf16.msra.mxu0 0
        %4056 = vmatpush.bf16.msra.mxu0 0
        %4057 = vmatpush.bf16.msra.mxu0 0
        %4058 = vmatpush.bf16.msra.mxu0 %v3980
        %4059 = vmatmul.bf16.gmra.mxu0 %v3968
        %v4060 = vpop.f32.mrf.mxu0
        %v4061 = vadd.f32 0.0, %v4060
        %v4062 = vpop.f32.mrf.mxu0
        %4063 = vdwg.mxu0
        %4064 = vmatpush.bf16.msra.mxu0 0
        %4065 = vmatpush.bf16.msra.mxu0 0
        %4066 = vmatpush.bf16.msra.mxu0 0
        %4067 = vmatpush.bf16.msra.mxu0 0
        %4068 = vmatpush.bf16.msra.mxu0 0
        %4069 = vmatpush.bf16.msra.mxu0 0
        %4070 = vmatpush.bf16.msra.mxu0 0
        %4071 = vmatpush.bf16.msra.mxu0 %v3983
        %4072 = vmatmul.bf16.gmra.mxu0 %v3968
        %v4073 = vpop.f32.mrf.mxu0
        %v4074 = vadd.f32 0.0, %v4073
        %v4075 = vpop.f32.mrf.mxu0
        %4076 = vdwg.mxu0
        %4077 = vmatpush.bf16.msra.mxu0 0
        %4078 = vmatpush.bf16.msra.mxu0 0
        %4079 = vmatpush.bf16.msra.mxu0 0
        %4080 = vmatpush.bf16.msra.mxu0 0
        %4081 = vmatpush.bf16.msra.mxu0 0
        %4082 = vmatpush.bf16.msra.mxu0 0
        %4083 = vmatpush.bf16.msra.mxu0 0
        %4084 = vmatpush.bf16.msra.mxu0 %v3986
        %4085 = vmatmul.bf16.gmra.mxu0 %v3968
        %v4086 = vpop.f32.mrf.mxu0
        %v4087 = vadd.f32 0.0, %v4086
        %v4088 = vpop.f32.mrf.mxu0
        %4089 = vdwg.mxu0
        %4090 = vmatpush.bf16.msra.mxu0 0
        %4091 = vmatpush.bf16.msra.mxu0 0
        %4092 = vmatpush.bf16.msra.mxu0 0
        %4093 = vmatpush.bf16.msra.mxu0 0
        %4094 = vmatpush.bf16.msra.mxu0 0
        %4095 = vmatpush.bf16.msra.mxu0 0
        %4096 = vmatpush.bf16.msra.mxu0 0
        %4097 = vmatpush.bf16.msra.mxu0 %v3989
        %4098 = vmatmul.bf16.gmra.mxu0 %v3968
        %v4099 = vpop.f32.mrf.mxu0
        %v4100 = vadd.f32 0.0, %v4099
        %v4101 = vpop.f32.mrf.mxu0
        %4102 = vdwg.mxu0
        %4103 = vmatpush.bf16.msra.mxu0 0
        %4104 = vmatpush.bf16.msra.mxu0 0
        %4105 = vmatpush.bf16.msra.mxu0 0
        %4106 = vmatpush.bf16.msra.mxu0 0
        %4107 = vmatpush.bf16.msra.mxu0 0
        %4108 = vmatpush.bf16.msra.mxu0 0
        %4109 = vmatpush.bf16.msra.mxu0 0
        %4110 = vmatpush.bf16.msra.mxu0 %v3992
        %4111 = vmatmul.bf16.gmra.mxu0 %v3968
        %v4112 = vpop.f32.mrf.mxu0
        %v4113 = vadd.f32 0.0, %v4112
        %v4114 = vpop.f32.mrf.mxu0
        %4115 = vdwg.mxu0
        %4116 = vmatpush.bf16.msra.mxu0 0
        %4117 = vmatpush.bf16.msra.mxu0 0
        %4118 = vmatpush.bf16.msra.mxu0 0
        %4119 = vmatpush.bf16.msra.mxu0 0
        %4120 = vmatpush.bf16.msra.mxu0 0
        %4121 = vmatpush.bf16.msra.mxu0 0
        %4122 = vmatpush.bf16.msra.mxu0 0
        %4123 = vmatpush.bf16.msra.mxu0 %v3995
        %4124 = vmatmul.bf16.gmra.mxu0 %v3968
        %v4125 = vpop.f32.mrf.mxu0
        %v4126 = vadd.f32 0.0, %v4125
        %v4127 = vpop.f32.mrf.mxu0
        %4128 = vdwg.mxu0
        %4129 = vmatpush.bf16.msra.mxu0 0
        %4130 = vmatpush.bf16.msra.mxu0 0
        %4131 = vmatpush.bf16.msra.mxu0 0
        %4132 = vmatpush.bf16.msra.mxu0 0
        %4133 = vmatpush.bf16.msra.mxu0 0
        %4134 = vmatpush.bf16.msra.mxu0 0
        %4135 = vmatpush.bf16.msra.mxu0 0
        %4136 = vmatpush.bf16.msra.mxu0 %v3998
        %4137 = vmatmul.bf16.gmra.mxu0 %v3968
        %v4138 = vpop.f32.mrf.mxu0
        %v4139 = vadd.f32 0.0, %v4138
        %v4140 = vpop.f32.mrf.mxu0
        %4141 = vdwg.mxu0
        %4142 = vmatpush.bf16.msra.mxu0 0
        %4143 = vmatpush.bf16.msra.mxu0 0
        %4144 = vmatpush.bf16.msra.mxu0 0
        %4145 = vmatpush.bf16.msra.mxu0 0
        %4146 = vmatpush.bf16.msra.mxu0 0
        %4147 = vmatpush.bf16.msra.mxu0 0
        %4148 = vmatpush.bf16.msra.mxu0 0
        %4149 = vmatpush.bf16.msra.mxu0 %v4001
        %4150 = vmatmul.bf16.gmra.mxu0 %v3968
        %v4151 = vpop.f32.mrf.mxu0
        %v4152 = vadd.f32 0.0, %v4151
        %v4153 = vpop.f32.mrf.mxu0
        %4154 = vdwg.mxu0
        %4155 = vmatpush.bf16.msra.mxu0 0
        %4156 = vmatpush.bf16.msra.mxu0 0
        %4157 = vmatpush.bf16.msra.mxu0 0
        %4158 = vmatpush.bf16.msra.mxu0 0
        %4159 = vmatpush.bf16.msra.mxu0 0
        %4160 = vmatpush.bf16.msra.mxu0 0
        %4161 = vmatpush.bf16.msra.mxu0 0
        %4162 = vmatpush.bf16.msra.mxu0 %v4004
        %4163 = vmatmul.bf16.gmra.mxu0 %v3968
        %v4164 = vpop.f32.mrf.mxu0
        %v4165 = vadd.f32 0.0, %v4164
        %v4166 = vpop.f32.mrf.mxu0
        %4167 = vdwg.mxu0
        %4168 = vmatpush.bf16.msra.mxu0 0
        %4169 = vmatpush.bf16.msra.mxu0 0
        %4170 = vmatpush.bf16.msra.mxu0 0
        %4171 = vmatpush.bf16.msra.mxu0 0
        %4172 = vmatpush.bf16.msra.mxu0 0
        %4173 = vmatpush.bf16.msra.mxu0 0
        %4174 = vmatpush.bf16.msra.mxu0 0
        %4175 = vmatpush.bf16.msra.mxu0 %v4007
        %4176 = vmatmul.bf16.gmra.mxu0 %v3968
        %v4177 = vpop.f32.mrf.mxu0
        %v4178 = vadd.f32 0.0, %v4177
        %v4179 = vpop.f32.mrf.mxu0
        %4180 = vdwg.mxu0
        %4181 = vmatpush.bf16.msra.mxu0 0
        %4182 = vmatpush.bf16.msra.mxu0 0
        %4183 = vmatpush.bf16.msra.mxu0 0
        %4184 = vmatpush.bf16.msra.mxu0 0
        %4185 = vmatpush.bf16.msra.mxu0 0
        %4186 = vmatpush.bf16.msra.mxu0 0
        %4187 = vmatpush.bf16.msra.mxu0 0
        %4188 = vmatpush.bf16.msra.mxu0 %v4010
        %4189 = vmatmul.bf16.gmra.mxu0 %v3968
        %v4190 = vpop.f32.mrf.mxu0
        %v4191 = vadd.f32 0.0, %v4190
        %v4192 = vpop.f32.mrf.mxu0
        %4193 = vdwg.mxu0
        %v4194 = vadd.f32 %v3906, %v4022
        %v4195 = vadd.f32 %v3907, %v4035
        %v4196 = vadd.f32 %v3908, %v4048
        %v4197 = vadd.f32 %v3909, %v4061
        %v4198 = vadd.f32 %v3910, %v4074
        %v4199 = vadd.f32 %v3911, %v4087
        %v4200 = vadd.f32 %v3912, %v4100
        %v4201 = vadd.f32 %v3913, %v4113
        %v4202 = vadd.f32 %v3914, %v4126
        %v4203 = vadd.f32 %v3915, %v4139
        %v4204 = vadd.f32 %v3916, %v4152
        %v4205 = vadd.f32 %v3917, %v4165
        %v4206 = vadd.f32 %v3918, %v4178
        %v4207 = vadd.f32 %v3919, %v4191
        %v4208 = vld [vmem:[%s1 + $0x70] sm:$0xff]
        %v4209 = vpack.c.bf16 %v4208, %v4208
        %4210 = vrot.lane.b32.xlu0 %v234, 98
        %v4211 = vpop.permute.xlu0 %4210
        %4212 = vrot.lane.b32.xlu0 %v235, 98
        %v4213 = vpop.permute.xlu0 %4212
        %4214 = vrot.lane.b32.xlu0 %v236, 98
        %v4215 = vpop.permute.xlu0 %4214
        %4216 = vrot.lane.b32.xlu0 %v237, 98
        %v4217 = vpop.permute.xlu0 %4216
        %4218 = vrot.lane.b32.xlu0 %v238, 98
        %v4219 = vpop.permute.xlu0 %4218
        %4220 = vrot.lane.b32.xlu0 %v239, 98
        %v4221 = vpop.permute.xlu0 %4220
        %4222 = vrot.lane.b32.xlu0 %v240, 98
        %v4223 = vpop.permute.xlu0 %4222
        %4224 = vrot.lane.b32.xlu0 %v241, 98
        %v4225 = vpop.permute.xlu0 %4224
        %4226 = vrot.lane.b32.xlu0 %v242, 98
        %v4227 = vpop.permute.xlu0 %4226
        %4228 = vrot.lane.b32.xlu0 %v243, 98
        %v4229 = vpop.permute.xlu0 %4228
        %4230 = vrot.lane.b32.xlu0 %v244, 98
        %v4231 = vpop.permute.xlu0 %4230
        %4232 = vrot.lane.b32.xlu0 %v245, 98
        %v4233 = vpop.permute.xlu0 %4232
        %4234 = vrot.lane.b32.xlu0 %v246, 98
        %v4235 = vpop.permute.xlu0 %4234
        %4236 = vrot.lane.b32.xlu0 %v247, 98
        %v4237 = vpop.permute.xlu0 %4236
        %4238 = vrot.lane.b32.xlu0 %v2769, 98
        %v4239 = vpop.permute.xlu0 %4238
        %vm4240 = vcmask 801792
        %v4241 = vsel %vm4240, %v4211, %v4213
        %v4242 = vsel %vm4240, %v4213, %v4215
        %v4243 = vsel %vm4240, %v4215, %v4217
        %v4244 = vsel %vm4240, %v4217, %v4219
        %v4245 = vsel %vm4240, %v4219, %v4221
        %v4246 = vsel %vm4240, %v4221, %v4223
        %v4247 = vsel %vm4240, %v4223, %v4225
        %v4248 = vsel %vm4240, %v4225, %v4227
        %v4249 = vsel %vm4240, %v4227, %v4229
        %v4250 = vsel %vm4240, %v4229, %v4231
        %v4251 = vsel %vm4240, %v4231, %v4233
        %v4252 = vsel %vm4240, %v4233, %v4235
        %v4253 = vsel %vm4240, %v4235, %v4237
        %v4254 = vsel %vm4240, %v4237, %v4239
        %v4256 = vsel %vm293, %v4209, 0
        %v4259 = vsel %vm297, %v4241, 0
        %v4262 = vsel %vm297, %v4242, 0
        %v4265 = vsel %vm297, %v4243, 0
        %v4268 = vsel %vm297, %v4244, 0
        %v4271 = vsel %vm297, %v4245, 0
        %v4274 = vsel %vm297, %v4246, 0
        %v4277 = vsel %vm297, %v4247, 0
        %v4280 = vsel %vm297, %v4248, 0
        %v4283 = vsel %vm297, %v4249, 0
        %v4286 = vsel %vm297, %v4250, 0
        %v4289 = vsel %vm297, %v4251, 0
        %v4292 = vsel %vm297, %v4252, 0
        %v4295 = vsel %vm297, %v4253, 0
        %v4298 = vsel %vm297, %v4254, 0
        %4300 = vmatpush.bf16.msra.mxu0 0
        %4301 = vmatpush.bf16.msra.mxu0 0
        %4302 = vmatpush.bf16.msra.mxu0 0
        %4303 = vmatpush.bf16.msra.mxu0 0
        %4304 = vmatpush.bf16.msra.mxu0 0
        %4305 = vmatpush.bf16.msra.mxu0 0
        %4306 = vmatpush.bf16.msra.mxu0 0
        %4307 = vmatpush.bf16.msra.mxu0 %v4259
        %4308 = vmatmul.bf16.gmra.mxu0 %v4256
        %v4309 = vpop.f32.mrf.mxu0
        %v4310 = vadd.f32 0.0, %v4309
        %v4311 = vpop.f32.mrf.mxu0
        %4312 = vdwg.mxu0
        %4313 = vmatpush.bf16.msra.mxu0 0
        %4314 = vmatpush.bf16.msra.mxu0 0
        %4315 = vmatpush.bf16.msra.mxu0 0
        %4316 = vmatpush.bf16.msra.mxu0 0
        %4317 = vmatpush.bf16.msra.mxu0 0
        %4318 = vmatpush.bf16.msra.mxu0 0
        %4319 = vmatpush.bf16.msra.mxu0 0
        %4320 = vmatpush.bf16.msra.mxu0 %v4262
        %4321 = vmatmul.bf16.gmra.mxu0 %v4256
        %v4322 = vpop.f32.mrf.mxu0
        %v4323 = vadd.f32 0.0, %v4322
        %v4324 = vpop.f32.mrf.mxu0
        %4325 = vdwg.mxu0
        %4326 = vmatpush.bf16.msra.mxu0 0
        %4327 = vmatpush.bf16.msra.mxu0 0
        %4328 = vmatpush.bf16.msra.mxu0 0
        %4329 = vmatpush.bf16.msra.mxu0 0
        %4330 = vmatpush.bf16.msra.mxu0 0
        %4331 = vmatpush.bf16.msra.mxu0 0
        %4332 = vmatpush.bf16.msra.mxu0 0
        %4333 = vmatpush.bf16.msra.mxu0 %v4265
        %4334 = vmatmul.bf16.gmra.mxu0 %v4256
        %v4335 = vpop.f32.mrf.mxu0
        %v4336 = vadd.f32 0.0, %v4335
        %v4337 = vpop.f32.mrf.mxu0
        %4338 = vdwg.mxu0
        %4339 = vmatpush.bf16.msra.mxu0 0
        %4340 = vmatpush.bf16.msra.mxu0 0
        %4341 = vmatpush.bf16.msra.mxu0 0
        %4342 = vmatpush.bf16.msra.mxu0 0
        %4343 = vmatpush.bf16.msra.mxu0 0
        %4344 = vmatpush.bf16.msra.mxu0 0
        %4345 = vmatpush.bf16.msra.mxu0 0
        %4346 = vmatpush.bf16.msra.mxu0 %v4268
        %4347 = vmatmul.bf16.gmra.mxu0 %v4256
        %v4348 = vpop.f32.mrf.mxu0
        %v4349 = vadd.f32 0.0, %v4348
        %v4350 = vpop.f32.mrf.mxu0
        %4351 = vdwg.mxu0
        %4352 = vmatpush.bf16.msra.mxu0 0
        %4353 = vmatpush.bf16.msra.mxu0 0
        %4354 = vmatpush.bf16.msra.mxu0 0
        %4355 = vmatpush.bf16.msra.mxu0 0
        %4356 = vmatpush.bf16.msra.mxu0 0
        %4357 = vmatpush.bf16.msra.mxu0 0
        %4358 = vmatpush.bf16.msra.mxu0 0
        %4359 = vmatpush.bf16.msra.mxu0 %v4271
        %4360 = vmatmul.bf16.gmra.mxu0 %v4256
        %v4361 = vpop.f32.mrf.mxu0
        %v4362 = vadd.f32 0.0, %v4361
        %v4363 = vpop.f32.mrf.mxu0
        %4364 = vdwg.mxu0
        %4365 = vmatpush.bf16.msra.mxu0 0
        %4366 = vmatpush.bf16.msra.mxu0 0
        %4367 = vmatpush.bf16.msra.mxu0 0
        %4368 = vmatpush.bf16.msra.mxu0 0
        %4369 = vmatpush.bf16.msra.mxu0 0
        %4370 = vmatpush.bf16.msra.mxu0 0
        %4371 = vmatpush.bf16.msra.mxu0 0
        %4372 = vmatpush.bf16.msra.mxu0 %v4274
        %4373 = vmatmul.bf16.gmra.mxu0 %v4256
        %v4374 = vpop.f32.mrf.mxu0
        %v4375 = vadd.f32 0.0, %v4374
        %v4376 = vpop.f32.mrf.mxu0
        %4377 = vdwg.mxu0
        %4378 = vmatpush.bf16.msra.mxu0 0
        %4379 = vmatpush.bf16.msra.mxu0 0
        %4380 = vmatpush.bf16.msra.mxu0 0
        %4381 = vmatpush.bf16.msra.mxu0 0
        %4382 = vmatpush.bf16.msra.mxu0 0
        %4383 = vmatpush.bf16.msra.mxu0 0
        %4384 = vmatpush.bf16.msra.mxu0 0
        %4385 = vmatpush.bf16.msra.mxu0 %v4277
        %4386 = vmatmul.bf16.gmra.mxu0 %v4256
        %v4387 = vpop.f32.mrf.mxu0
        %v4388 = vadd.f32 0.0, %v4387
        %v4389 = vpop.f32.mrf.mxu0
        %4390 = vdwg.mxu0
        %4391 = vmatpush.bf16.msra.mxu0 0
        %4392 = vmatpush.bf16.msra.mxu0 0
        %4393 = vmatpush.bf16.msra.mxu0 0
        %4394 = vmatpush.bf16.msra.mxu0 0
        %4395 = vmatpush.bf16.msra.mxu0 0
        %4396 = vmatpush.bf16.msra.mxu0 0
        %4397 = vmatpush.bf16.msra.mxu0 0
        %4398 = vmatpush.bf16.msra.mxu0 %v4280
        %4399 = vmatmul.bf16.gmra.mxu0 %v4256
        %v4400 = vpop.f32.mrf.mxu0
        %v4401 = vadd.f32 0.0, %v4400
        %v4402 = vpop.f32.mrf.mxu0
        %4403 = vdwg.mxu0
        %4404 = vmatpush.bf16.msra.mxu0 0
        %4405 = vmatpush.bf16.msra.mxu0 0
        %4406 = vmatpush.bf16.msra.mxu0 0
        %4407 = vmatpush.bf16.msra.mxu0 0
        %4408 = vmatpush.bf16.msra.mxu0 0
        %4409 = vmatpush.bf16.msra.mxu0 0
        %4410 = vmatpush.bf16.msra.mxu0 0
        %4411 = vmatpush.bf16.msra.mxu0 %v4283
        %4412 = vmatmul.bf16.gmra.mxu0 %v4256
        %v4413 = vpop.f32.mrf.mxu0
        %v4414 = vadd.f32 0.0, %v4413
        %v4415 = vpop.f32.mrf.mxu0
        %4416 = vdwg.mxu0
        %4417 = vmatpush.bf16.msra.mxu0 0
        %4418 = vmatpush.bf16.msra.mxu0 0
        %4419 = vmatpush.bf16.msra.mxu0 0
        %4420 = vmatpush.bf16.msra.mxu0 0
        %4421 = vmatpush.bf16.msra.mxu0 0
        %4422 = vmatpush.bf16.msra.mxu0 0
        %4423 = vmatpush.bf16.msra.mxu0 0
        %4424 = vmatpush.bf16.msra.mxu0 %v4286
        %4425 = vmatmul.bf16.gmra.mxu0 %v4256
        %v4426 = vpop.f32.mrf.mxu0
        %v4427 = vadd.f32 0.0, %v4426
        %v4428 = vpop.f32.mrf.mxu0
        %4429 = vdwg.mxu0
        %4430 = vmatpush.bf16.msra.mxu0 0
        %4431 = vmatpush.bf16.msra.mxu0 0
        %4432 = vmatpush.bf16.msra.mxu0 0
        %4433 = vmatpush.bf16.msra.mxu0 0
        %4434 = vmatpush.bf16.msra.mxu0 0
        %4435 = vmatpush.bf16.msra.mxu0 0
        %4436 = vmatpush.bf16.msra.mxu0 0
        %4437 = vmatpush.bf16.msra.mxu0 %v4289
        %4438 = vmatmul.bf16.gmra.mxu0 %v4256
        %v4439 = vpop.f32.mrf.mxu0
        %v4440 = vadd.f32 0.0, %v4439
        %v4441 = vpop.f32.mrf.mxu0
        %4442 = vdwg.mxu0
        %4443 = vmatpush.bf16.msra.mxu0 0
        %4444 = vmatpush.bf16.msra.mxu0 0
        %4445 = vmatpush.bf16.msra.mxu0 0
        %4446 = vmatpush.bf16.msra.mxu0 0
        %4447 = vmatpush.bf16.msra.mxu0 0
        %4448 = vmatpush.bf16.msra.mxu0 0
        %4449 = vmatpush.bf16.msra.mxu0 0
        %4450 = vmatpush.bf16.msra.mxu0 %v4292
        %4451 = vmatmul.bf16.gmra.mxu0 %v4256
        %v4452 = vpop.f32.mrf.mxu0
        %v4453 = vadd.f32 0.0, %v4452
        %v4454 = vpop.f32.mrf.mxu0
        %4455 = vdwg.mxu0
        %4456 = vmatpush.bf16.msra.mxu0 0
        %4457 = vmatpush.bf16.msra.mxu0 0
        %4458 = vmatpush.bf16.msra.mxu0 0
        %4459 = vmatpush.bf16.msra.mxu0 0
        %4460 = vmatpush.bf16.msra.mxu0 0
        %4461 = vmatpush.bf16.msra.mxu0 0
        %4462 = vmatpush.bf16.msra.mxu0 0
        %4463 = vmatpush.bf16.msra.mxu0 %v4295
        %4464 = vmatmul.bf16.gmra.mxu0 %v4256
        %v4465 = vpop.f32.mrf.mxu0
        %v4466 = vadd.f32 0.0, %v4465
        %v4467 = vpop.f32.mrf.mxu0
        %4468 = vdwg.mxu0
        %4469 = vmatpush.bf16.msra.mxu0 0
        %4470 = vmatpush.bf16.msra.mxu0 0
        %4471 = vmatpush.bf16.msra.mxu0 0
        %4472 = vmatpush.bf16.msra.mxu0 0
        %4473 = vmatpush.bf16.msra.mxu0 0
        %4474 = vmatpush.bf16.msra.mxu0 0
        %4475 = vmatpush.bf16.msra.mxu0 0
        %4476 = vmatpush.bf16.msra.mxu0 %v4298
        %4477 = vmatmul.bf16.gmra.mxu0 %v4256
        %v4478 = vpop.f32.mrf.mxu0
        %v4479 = vadd.f32 0.0, %v4478
        %v4480 = vpop.f32.mrf.mxu0
        %4481 = vdwg.mxu0
        %v4482 = vadd.f32 %v4194, %v4310
        %v4483 = vadd.f32 %v4195, %v4323
        %v4484 = vadd.f32 %v4196, %v4336
        %v4485 = vadd.f32 %v4197, %v4349
        %v4486 = vadd.f32 %v4198, %v4362
        %v4487 = vadd.f32 %v4199, %v4375
        %v4488 = vadd.f32 %v4200, %v4388
        %v4489 = vadd.f32 %v4201, %v4401
        %v4490 = vadd.f32 %v4202, %v4414
        %v4491 = vadd.f32 %v4203, %v4427
        %v4492 = vadd.f32 %v4204, %v4440
        %v4493 = vadd.f32 %v4205, %v4453
        %v4494 = vadd.f32 %v4206, %v4466
        %v4495 = vadd.f32 %v4207, %v4479
        %v4496 = vld [vmem:[%s1 + $0x78] sm:$0xff]
        %v4497 = vpack.c.bf16 %v4496, %v4496
        %4498 = vrot.lane.b32.xlu0 %v234, 88
        %v4499 = vpop.permute.xlu0 %4498
        %4500 = vrot.lane.b32.xlu0 %v235, 88
        %v4501 = vpop.permute.xlu0 %4500
        %4502 = vrot.lane.b32.xlu0 %v236, 88
        %v4503 = vpop.permute.xlu0 %4502
        %4504 = vrot.lane.b32.xlu0 %v237, 88
        %v4505 = vpop.permute.xlu0 %4504
        %4506 = vrot.lane.b32.xlu0 %v238, 88
        %v4507 = vpop.permute.xlu0 %4506
        %4508 = vrot.lane.b32.xlu0 %v239, 88
        %v4509 = vpop.permute.xlu0 %4508
        %4510 = vrot.lane.b32.xlu0 %v240, 88
        %v4511 = vpop.permute.xlu0 %4510
        %4512 = vrot.lane.b32.xlu0 %v241, 88
        %v4513 = vpop.permute.xlu0 %4512
        %4514 = vrot.lane.b32.xlu0 %v242, 88
        %v4515 = vpop.permute.xlu0 %4514
        %4516 = vrot.lane.b32.xlu0 %v243, 88
        %v4517 = vpop.permute.xlu0 %4516
        %4518 = vrot.lane.b32.xlu0 %v244, 88
        %v4519 = vpop.permute.xlu0 %4518
        %4520 = vrot.lane.b32.xlu0 %v245, 88
        %v4521 = vpop.permute.xlu0 %4520
        %4522 = vrot.lane.b32.xlu0 %v246, 88
        %v4523 = vpop.permute.xlu0 %4522
        %4524 = vrot.lane.b32.xlu0 %v247, 88
        %v4525 = vpop.permute.xlu0 %4524
        %4526 = vrot.lane.b32.xlu0 %v2769, 88
        %v4527 = vpop.permute.xlu0 %4526
        %vm4528 = vcmask 719872
        %v4529 = vsel %vm4528, %v4499, %v4501
        %v4530 = vsel %vm4528, %v4501, %v4503
        %v4531 = vsel %vm4528, %v4503, %v4505
        %v4532 = vsel %vm4528, %v4505, %v4507
        %v4533 = vsel %vm4528, %v4507, %v4509
        %v4534 = vsel %vm4528, %v4509, %v4511
        %v4535 = vsel %vm4528, %v4511, %v4513
        %v4536 = vsel %vm4528, %v4513, %v4515
        %v4537 = vsel %vm4528, %v4515, %v4517
        %v4538 = vsel %vm4528, %v4517, %v4519
        %v4539 = vsel %vm4528, %v4519, %v4521
        %v4540 = vsel %vm4528, %v4521, %v4523
        %v4541 = vsel %vm4528, %v4523, %v4525
        %v4542 = vsel %vm4528, %v4525, %v4527
        %v4544 = vsel %vm293, %v4497, 0
        %v4547 = vsel %vm297, %v4529, 0
        %v4550 = vsel %vm297, %v4530, 0
        %v4553 = vsel %vm297, %v4531, 0
        %v4556 = vsel %vm297, %v4532, 0
        %v4559 = vsel %vm297, %v4533, 0
        %v4562 = vsel %vm297, %v4534, 0
        %v4565 = vsel %vm297, %v4535, 0
        %v4568 = vsel %vm297, %v4536, 0
        %v4571 = vsel %vm297, %v4537, 0
        %v4574 = vsel %vm297, %v4538, 0
        %v4577 = vsel %vm297, %v4539, 0
        %v4580 = vsel %vm297, %v4540, 0
        %v4583 = vsel %vm297, %v4541, 0
        %v4586 = vsel %vm297, %v4542, 0
        %4588 = vmatpush.bf16.msra.mxu0 0
        %4589 = vmatpush.bf16.msra.mxu0 0
        %4590 = vmatpush.bf16.msra.mxu0 0
        %4591 = vmatpush.bf16.msra.mxu0 0
        %4592 = vmatpush.bf16.msra.mxu0 0
        %4593 = vmatpush.bf16.msra.mxu0 0
        %4594 = vmatpush.bf16.msra.mxu0 0
        %4595 = vmatpush.bf16.msra.mxu0 %v4547
        %4596 = vmatmul.bf16.gmra.mxu0 %v4544
        %v4597 = vpop.f32.mrf.mxu0
        %v4598 = vadd.f32 0.0, %v4597
        %v4599 = vpop.f32.mrf.mxu0
        %4600 = vdwg.mxu0
        %4601 = vmatpush.bf16.msra.mxu0 0
        %4602 = vmatpush.bf16.msra.mxu0 0
        %4603 = vmatpush.bf16.msra.mxu0 0
        %4604 = vmatpush.bf16.msra.mxu0 0
        %4605 = vmatpush.bf16.msra.mxu0 0
        %4606 = vmatpush.bf16.msra.mxu0 0
        %4607 = vmatpush.bf16.msra.mxu0 0
        %4608 = vmatpush.bf16.msra.mxu0 %v4550
        %4609 = vmatmul.bf16.gmra.mxu0 %v4544
        %v4610 = vpop.f32.mrf.mxu0
        %v4611 = vadd.f32 0.0, %v4610
        %v4612 = vpop.f32.mrf.mxu0
        %4613 = vdwg.mxu0
        %4614 = vmatpush.bf16.msra.mxu0 0
        %4615 = vmatpush.bf16.msra.mxu0 0
        %4616 = vmatpush.bf16.msra.mxu0 0
        %4617 = vmatpush.bf16.msra.mxu0 0
        %4618 = vmatpush.bf16.msra.mxu0 0
        %4619 = vmatpush.bf16.msra.mxu0 0
        %4620 = vmatpush.bf16.msra.mxu0 0
        %4621 = vmatpush.bf16.msra.mxu0 %v4553
        %4622 = vmatmul.bf16.gmra.mxu0 %v4544
        %v4623 = vpop.f32.mrf.mxu0
        %v4624 = vadd.f32 0.0, %v4623
        %v4625 = vpop.f32.mrf.mxu0
        %4626 = vdwg.mxu0
        %4627 = vmatpush.bf16.msra.mxu0 0
        %4628 = vmatpush.bf16.msra.mxu0 0
        %4629 = vmatpush.bf16.msra.mxu0 0
        %4630 = vmatpush.bf16.msra.mxu0 0
        %4631 = vmatpush.bf16.msra.mxu0 0
        %4632 = vmatpush.bf16.msra.mxu0 0
        %4633 = vmatpush.bf16.msra.mxu0 0
        %4634 = vmatpush.bf16.msra.mxu0 %v4556
        %4635 = vmatmul.bf16.gmra.mxu0 %v4544
        %v4636 = vpop.f32.mrf.mxu0
        %v4637 = vadd.f32 0.0, %v4636
        %v4638 = vpop.f32.mrf.mxu0
        %4639 = vdwg.mxu0
        %4640 = vmatpush.bf16.msra.mxu0 0
        %4641 = vmatpush.bf16.msra.mxu0 0
        %4642 = vmatpush.bf16.msra.mxu0 0
        %4643 = vmatpush.bf16.msra.mxu0 0
        %4644 = vmatpush.bf16.msra.mxu0 0
        %4645 = vmatpush.bf16.msra.mxu0 0
        %4646 = vmatpush.bf16.msra.mxu0 0
        %4647 = vmatpush.bf16.msra.mxu0 %v4559
        %4648 = vmatmul.bf16.gmra.mxu0 %v4544
        %v4649 = vpop.f32.mrf.mxu0
        %v4650 = vadd.f32 0.0, %v4649
        %v4651 = vpop.f32.mrf.mxu0
        %4652 = vdwg.mxu0
        %4653 = vmatpush.bf16.msra.mxu0 0
        %4654 = vmatpush.bf16.msra.mxu0 0
        %4655 = vmatpush.bf16.msra.mxu0 0
        %4656 = vmatpush.bf16.msra.mxu0 0
        %4657 = vmatpush.bf16.msra.mxu0 0
        %4658 = vmatpush.bf16.msra.mxu0 0
        %4659 = vmatpush.bf16.msra.mxu0 0
        %4660 = vmatpush.bf16.msra.mxu0 %v4562
        %4661 = vmatmul.bf16.gmra.mxu0 %v4544
        %v4662 = vpop.f32.mrf.mxu0
        %v4663 = vadd.f32 0.0, %v4662
        %v4664 = vpop.f32.mrf.mxu0
        %4665 = vdwg.mxu0
        %4666 = vmatpush.bf16.msra.mxu0 0
        %4667 = vmatpush.bf16.msra.mxu0 0
        %4668 = vmatpush.bf16.msra.mxu0 0
        %4669 = vmatpush.bf16.msra.mxu0 0
        %4670 = vmatpush.bf16.msra.mxu0 0
        %4671 = vmatpush.bf16.msra.mxu0 0
        %4672 = vmatpush.bf16.msra.mxu0 0
        %4673 = vmatpush.bf16.msra.mxu0 %v4565
        %4674 = vmatmul.bf16.gmra.mxu0 %v4544
        %v4675 = vpop.f32.mrf.mxu0
        %v4676 = vadd.f32 0.0, %v4675
        %v4677 = vpop.f32.mrf.mxu0
        %4678 = vdwg.mxu0
        %4679 = vmatpush.bf16.msra.mxu0 0
        %4680 = vmatpush.bf16.msra.mxu0 0
        %4681 = vmatpush.bf16.msra.mxu0 0
        %4682 = vmatpush.bf16.msra.mxu0 0
        %4683 = vmatpush.bf16.msra.mxu0 0
        %4684 = vmatpush.bf16.msra.mxu0 0
        %4685 = vmatpush.bf16.msra.mxu0 0
        %4686 = vmatpush.bf16.msra.mxu0 %v4568
        %4687 = vmatmul.bf16.gmra.mxu0 %v4544
        %v4688 = vpop.f32.mrf.mxu0
        %v4689 = vadd.f32 0.0, %v4688
        %v4690 = vpop.f32.mrf.mxu0
        %4691 = vdwg.mxu0
        %4692 = vmatpush.bf16.msra.mxu0 0
        %4693 = vmatpush.bf16.msra.mxu0 0
        %4694 = vmatpush.bf16.msra.mxu0 0
        %4695 = vmatpush.bf16.msra.mxu0 0
        %4696 = vmatpush.bf16.msra.mxu0 0
        %4697 = vmatpush.bf16.msra.mxu0 0
        %4698 = vmatpush.bf16.msra.mxu0 0
        %4699 = vmatpush.bf16.msra.mxu0 %v4571
        %4700 = vmatmul.bf16.gmra.mxu0 %v4544
        %v4701 = vpop.f32.mrf.mxu0
        %v4702 = vadd.f32 0.0, %v4701
        %v4703 = vpop.f32.mrf.mxu0
        %4704 = vdwg.mxu0
        %4705 = vmatpush.bf16.msra.mxu0 0
        %4706 = vmatpush.bf16.msra.mxu0 0
        %4707 = vmatpush.bf16.msra.mxu0 0
        %4708 = vmatpush.bf16.msra.mxu0 0
        %4709 = vmatpush.bf16.msra.mxu0 0
        %4710 = vmatpush.bf16.msra.mxu0 0
        %4711 = vmatpush.bf16.msra.mxu0 0
        %4712 = vmatpush.bf16.msra.mxu0 %v4574
        %4713 = vmatmul.bf16.gmra.mxu0 %v4544
        %v4714 = vpop.f32.mrf.mxu0
        %v4715 = vadd.f32 0.0, %v4714
        %v4716 = vpop.f32.mrf.mxu0
        %4717 = vdwg.mxu0
        %4718 = vmatpush.bf16.msra.mxu0 0
        %4719 = vmatpush.bf16.msra.mxu0 0
        %4720 = vmatpush.bf16.msra.mxu0 0
        %4721 = vmatpush.bf16.msra.mxu0 0
        %4722 = vmatpush.bf16.msra.mxu0 0
        %4723 = vmatpush.bf16.msra.mxu0 0
        %4724 = vmatpush.bf16.msra.mxu0 0
        %4725 = vmatpush.bf16.msra.mxu0 %v4577
        %4726 = vmatmul.bf16.gmra.mxu0 %v4544
        %v4727 = vpop.f32.mrf.mxu0
        %v4728 = vadd.f32 0.0, %v4727
        %v4729 = vpop.f32.mrf.mxu0
        %4730 = vdwg.mxu0
        %4731 = vmatpush.bf16.msra.mxu0 0
        %4732 = vmatpush.bf16.msra.mxu0 0
        %4733 = vmatpush.bf16.msra.mxu0 0
        %4734 = vmatpush.bf16.msra.mxu0 0
        %4735 = vmatpush.bf16.msra.mxu0 0
        %4736 = vmatpush.bf16.msra.mxu0 0
        %4737 = vmatpush.bf16.msra.mxu0 0
        %4738 = vmatpush.bf16.msra.mxu0 %v4580
        %4739 = vmatmul.bf16.gmra.mxu0 %v4544
        %v4740 = vpop.f32.mrf.mxu0
        %v4741 = vadd.f32 0.0, %v4740
        %v4742 = vpop.f32.mrf.mxu0
        %4743 = vdwg.mxu0
        %4744 = vmatpush.bf16.msra.mxu0 0
        %4745 = vmatpush.bf16.msra.mxu0 0
        %4746 = vmatpush.bf16.msra.mxu0 0
        %4747 = vmatpush.bf16.msra.mxu0 0
        %4748 = vmatpush.bf16.msra.mxu0 0
        %4749 = vmatpush.bf16.msra.mxu0 0
        %4750 = vmatpush.bf16.msra.mxu0 0
        %4751 = vmatpush.bf16.msra.mxu0 %v4583
        %4752 = vmatmul.bf16.gmra.mxu0 %v4544
        %v4753 = vpop.f32.mrf.mxu0
        %v4754 = vadd.f32 0.0, %v4753
        %v4755 = vpop.f32.mrf.mxu0
        %4756 = vdwg.mxu0
        %4757 = vmatpush.bf16.msra.mxu0 0
        %4758 = vmatpush.bf16.msra.mxu0 0
        %4759 = vmatpush.bf16.msra.mxu0 0
        %4760 = vmatpush.bf16.msra.mxu0 0
        %4761 = vmatpush.bf16.msra.mxu0 0
        %4762 = vmatpush.bf16.msra.mxu0 0
        %4763 = vmatpush.bf16.msra.mxu0 0
        %4764 = vmatpush.bf16.msra.mxu0 %v4586
        %4765 = vmatmul.bf16.gmra.mxu0 %v4544
        %v4766 = vpop.f32.mrf.mxu0
        %v4767 = vadd.f32 0.0, %v4766
        %v4768 = vpop.f32.mrf.mxu0
        %4769 = vdwg.mxu0
        %v4770 = vadd.f32 %v4482, %v4598
        %v4771 = vadd.f32 %v4483, %v4611
        %v4772 = vadd.f32 %v4484, %v4624
        %v4773 = vadd.f32 %v4485, %v4637
        %v4774 = vadd.f32 %v4486, %v4650
        %v4775 = vadd.f32 %v4487, %v4663
        %v4776 = vadd.f32 %v4488, %v4676
        %v4777 = vadd.f32 %v4489, %v4689
        %v4778 = vadd.f32 %v4490, %v4702
        %v4779 = vadd.f32 %v4491, %v4715
        %v4780 = vadd.f32 %v4492, %v4728
        %v4781 = vadd.f32 %v4493, %v4741
        %v4782 = vadd.f32 %v4494, %v4754
        %v4783 = vadd.f32 %v4495, %v4767
        %v4784 = vld [vmem:[%s1 + $0x80] sm:$0xff]
        %v4785 = vpack.c.bf16 %v4784, %v4784
        %4786 = vrot.lane.b32.xlu0 %v234, 87
        %v4787 = vpop.permute.xlu0 %4786
        %4788 = vrot.lane.b32.xlu0 %v235, 87
        %v4789 = vpop.permute.xlu0 %4788
        %4790 = vrot.lane.b32.xlu0 %v236, 87
        %v4791 = vpop.permute.xlu0 %4790
        %4792 = vrot.lane.b32.xlu0 %v237, 87
        %v4793 = vpop.permute.xlu0 %4792
        %4794 = vrot.lane.b32.xlu0 %v238, 87
        %v4795 = vpop.permute.xlu0 %4794
        %4796 = vrot.lane.b32.xlu0 %v239, 87
        %v4797 = vpop.permute.xlu0 %4796
        %4798 = vrot.lane.b32.xlu0 %v240, 87
        %v4799 = vpop.permute.xlu0 %4798
        %4800 = vrot.lane.b32.xlu0 %v241, 87
        %v4801 = vpop.permute.xlu0 %4800
        %4802 = vrot.lane.b32.xlu0 %v242, 87
        %v4803 = vpop.permute.xlu0 %4802
        %4804 = vrot.lane.b32.xlu0 %v243, 87
        %v4805 = vpop.permute.xlu0 %4804
        %4806 = vrot.lane.b32.xlu0 %v244, 87
        %v4807 = vpop.permute.xlu0 %4806
        %4808 = vrot.lane.b32.xlu0 %v245, 87
        %v4809 = vpop.permute.xlu0 %4808
        %4810 = vrot.lane.b32.xlu0 %v246, 87
        %v4811 = vpop.permute.xlu0 %4810
        %4812 = vrot.lane.b32.xlu0 %v247, 87
        %v4813 = vpop.permute.xlu0 %4812
        %4814 = vrot.lane.b32.xlu0 %v2769, 87
        %v4815 = vpop.permute.xlu0 %4814
        %vm4816 = vcmask 711680
        %v4817 = vsel %vm4816, %v4787, %v4789
        %v4818 = vsel %vm4816, %v4789, %v4791
        %v4819 = vsel %vm4816, %v4791, %v4793
        %v4820 = vsel %vm4816, %v4793, %v4795
        %v4821 = vsel %vm4816, %v4795, %v4797
        %v4822 = vsel %vm4816, %v4797, %v4799
        %v4823 = vsel %vm4816, %v4799, %v4801
        %v4824 = vsel %vm4816, %v4801, %v4803
        %v4825 = vsel %vm4816, %v4803, %v4805
        %v4826 = vsel %vm4816, %v4805, %v4807
        %v4827 = vsel %vm4816, %v4807, %v4809
        %v4828 = vsel %vm4816, %v4809, %v4811
        %v4829 = vsel %vm4816, %v4811, %v4813
        %v4830 = vsel %vm4816, %v4813, %v4815
        %v4832 = vsel %vm293, %v4785, 0
        %v4835 = vsel %vm297, %v4817, 0
        %v4838 = vsel %vm297, %v4818, 0
        %v4841 = vsel %vm297, %v4819, 0
        %v4844 = vsel %vm297, %v4820, 0
        %v4847 = vsel %vm297, %v4821, 0
        %v4850 = vsel %vm297, %v4822, 0
        %v4853 = vsel %vm297, %v4823, 0
        %v4856 = vsel %vm297, %v4824, 0
        %v4859 = vsel %vm297, %v4825, 0
        %v4862 = vsel %vm297, %v4826, 0
        %v4865 = vsel %vm297, %v4827, 0
        %v4868 = vsel %vm297, %v4828, 0
        %v4871 = vsel %vm297, %v4829, 0
        %v4874 = vsel %vm297, %v4830, 0
        %4876 = vmatpush.bf16.msra.mxu0 0
        %4877 = vmatpush.bf16.msra.mxu0 0
        %4878 = vmatpush.bf16.msra.mxu0 0
        %4879 = vmatpush.bf16.msra.mxu0 0
        %4880 = vmatpush.bf16.msra.mxu0 0
        %4881 = vmatpush.bf16.msra.mxu0 0
        %4882 = vmatpush.bf16.msra.mxu0 0
        %4883 = vmatpush.bf16.msra.mxu0 %v4835
        %4884 = vmatmul.bf16.gmra.mxu0 %v4832
        %v4885 = vpop.f32.mrf.mxu0
        %v4886 = vadd.f32 0.0, %v4885
        %v4887 = vpop.f32.mrf.mxu0
        %4888 = vdwg.mxu0
        %4889 = vmatpush.bf16.msra.mxu0 0
        %4890 = vmatpush.bf16.msra.mxu0 0
        %4891 = vmatpush.bf16.msra.mxu0 0
        %4892 = vmatpush.bf16.msra.mxu0 0
        %4893 = vmatpush.bf16.msra.mxu0 0
        %4894 = vmatpush.bf16.msra.mxu0 0
        %4895 = vmatpush.bf16.msra.mxu0 0
        %4896 = vmatpush.bf16.msra.mxu0 %v4838
        %4897 = vmatmul.bf16.gmra.mxu0 %v4832
        %v4898 = vpop.f32.mrf.mxu0
        %v4899 = vadd.f32 0.0, %v4898
        %v4900 = vpop.f32.mrf.mxu0
        %4901 = vdwg.mxu0
        %4902 = vmatpush.bf16.msra.mxu0 0
        %4903 = vmatpush.bf16.msra.mxu0 0
        %4904 = vmatpush.bf16.msra.mxu0 0
        %4905 = vmatpush.bf16.msra.mxu0 0
        %4906 = vmatpush.bf16.msra.mxu0 0
        %4907 = vmatpush.bf16.msra.mxu0 0
        %4908 = vmatpush.bf16.msra.mxu0 0
        %4909 = vmatpush.bf16.msra.mxu0 %v4841
        %4910 = vmatmul.bf16.gmra.mxu0 %v4832
        %v4911 = vpop.f32.mrf.mxu0
        %v4912 = vadd.f32 0.0, %v4911
        %v4913 = vpop.f32.mrf.mxu0
        %4914 = vdwg.mxu0
        %4915 = vmatpush.bf16.msra.mxu0 0
        %4916 = vmatpush.bf16.msra.mxu0 0
        %4917 = vmatpush.bf16.msra.mxu0 0
        %4918 = vmatpush.bf16.msra.mxu0 0
        %4919 = vmatpush.bf16.msra.mxu0 0
        %4920 = vmatpush.bf16.msra.mxu0 0
        %4921 = vmatpush.bf16.msra.mxu0 0
        %4922 = vmatpush.bf16.msra.mxu0 %v4844
        %4923 = vmatmul.bf16.gmra.mxu0 %v4832
        %v4924 = vpop.f32.mrf.mxu0
        %v4925 = vadd.f32 0.0, %v4924
        %v4926 = vpop.f32.mrf.mxu0
        %4927 = vdwg.mxu0
        %4928 = vmatpush.bf16.msra.mxu0 0
        %4929 = vmatpush.bf16.msra.mxu0 0
        %4930 = vmatpush.bf16.msra.mxu0 0
        %4931 = vmatpush.bf16.msra.mxu0 0
        %4932 = vmatpush.bf16.msra.mxu0 0
        %4933 = vmatpush.bf16.msra.mxu0 0
        %4934 = vmatpush.bf16.msra.mxu0 0
        %4935 = vmatpush.bf16.msra.mxu0 %v4847
        %4936 = vmatmul.bf16.gmra.mxu0 %v4832
        %v4937 = vpop.f32.mrf.mxu0
        %v4938 = vadd.f32 0.0, %v4937
        %v4939 = vpop.f32.mrf.mxu0
        %4940 = vdwg.mxu0
        %4941 = vmatpush.bf16.msra.mxu0 0
        %4942 = vmatpush.bf16.msra.mxu0 0
        %4943 = vmatpush.bf16.msra.mxu0 0
        %4944 = vmatpush.bf16.msra.mxu0 0
        %4945 = vmatpush.bf16.msra.mxu0 0
        %4946 = vmatpush.bf16.msra.mxu0 0
        %4947 = vmatpush.bf16.msra.mxu0 0
        %4948 = vmatpush.bf16.msra.mxu0 %v4850
        %4949 = vmatmul.bf16.gmra.mxu0 %v4832
        %v4950 = vpop.f32.mrf.mxu0
        %v4951 = vadd.f32 0.0, %v4950
        %v4952 = vpop.f32.mrf.mxu0
        %4953 = vdwg.mxu0
        %4954 = vmatpush.bf16.msra.mxu0 0
        %4955 = vmatpush.bf16.msra.mxu0 0
        %4956 = vmatpush.bf16.msra.mxu0 0
        %4957 = vmatpush.bf16.msra.mxu0 0
        %4958 = vmatpush.bf16.msra.mxu0 0
        %4959 = vmatpush.bf16.msra.mxu0 0
        %4960 = vmatpush.bf16.msra.mxu0 0
        %4961 = vmatpush.bf16.msra.mxu0 %v4853
        %4962 = vmatmul.bf16.gmra.mxu0 %v4832
        %v4963 = vpop.f32.mrf.mxu0
        %v4964 = vadd.f32 0.0, %v4963
        %v4965 = vpop.f32.mrf.mxu0
        %4966 = vdwg.mxu0
        %4967 = vmatpush.bf16.msra.mxu0 0
        %4968 = vmatpush.bf16.msra.mxu0 0
        %4969 = vmatpush.bf16.msra.mxu0 0
        %4970 = vmatpush.bf16.msra.mxu0 0
        %4971 = vmatpush.bf16.msra.mxu0 0
        %4972 = vmatpush.bf16.msra.mxu0 0
        %4973 = vmatpush.bf16.msra.mxu0 0
        %4974 = vmatpush.bf16.msra.mxu0 %v4856
        %4975 = vmatmul.bf16.gmra.mxu0 %v4832
        %v4976 = vpop.f32.mrf.mxu0
        %v4977 = vadd.f32 0.0, %v4976
        %v4978 = vpop.f32.mrf.mxu0
        %4979 = vdwg.mxu0
        %4980 = vmatpush.bf16.msra.mxu0 0
        %4981 = vmatpush.bf16.msra.mxu0 0
        %4982 = vmatpush.bf16.msra.mxu0 0
        %4983 = vmatpush.bf16.msra.mxu0 0
        %4984 = vmatpush.bf16.msra.mxu0 0
        %4985 = vmatpush.bf16.msra.mxu0 0
        %4986 = vmatpush.bf16.msra.mxu0 0
        %4987 = vmatpush.bf16.msra.mxu0 %v4859
        %4988 = vmatmul.bf16.gmra.mxu0 %v4832
        %v4989 = vpop.f32.mrf.mxu0
        %v4990 = vadd.f32 0.0, %v4989
        %v4991 = vpop.f32.mrf.mxu0
        %4992 = vdwg.mxu0
        %4993 = vmatpush.bf16.msra.mxu0 0
        %4994 = vmatpush.bf16.msra.mxu0 0
        %4995 = vmatpush.bf16.msra.mxu0 0
        %4996 = vmatpush.bf16.msra.mxu0 0
        %4997 = vmatpush.bf16.msra.mxu0 0
        %4998 = vmatpush.bf16.msra.mxu0 0
        %4999 = vmatpush.bf16.msra.mxu0 0
        %5000 = vmatpush.bf16.msra.mxu0 %v4862
        %5001 = vmatmul.bf16.gmra.mxu0 %v4832
        %v5002 = vpop.f32.mrf.mxu0
        %v5003 = vadd.f32 0.0, %v5002
        %v5004 = vpop.f32.mrf.mxu0
        %5005 = vdwg.mxu0
        %5006 = vmatpush.bf16.msra.mxu0 0
        %5007 = vmatpush.bf16.msra.mxu0 0
        %5008 = vmatpush.bf16.msra.mxu0 0
        %5009 = vmatpush.bf16.msra.mxu0 0
        %5010 = vmatpush.bf16.msra.mxu0 0
        %5011 = vmatpush.bf16.msra.mxu0 0
        %5012 = vmatpush.bf16.msra.mxu0 0
        %5013 = vmatpush.bf16.msra.mxu0 %v4865
        %5014 = vmatmul.bf16.gmra.mxu0 %v4832
        %v5015 = vpop.f32.mrf.mxu0
        %v5016 = vadd.f32 0.0, %v5015
        %v5017 = vpop.f32.mrf.mxu0
        %5018 = vdwg.mxu0
        %5019 = vmatpush.bf16.msra.mxu0 0
        %5020 = vmatpush.bf16.msra.mxu0 0
        %5021 = vmatpush.bf16.msra.mxu0 0
        %5022 = vmatpush.bf16.msra.mxu0 0
        %5023 = vmatpush.bf16.msra.mxu0 0
        %5024 = vmatpush.bf16.msra.mxu0 0
        %5025 = vmatpush.bf16.msra.mxu0 0
        %5026 = vmatpush.bf16.msra.mxu0 %v4868
        %5027 = vmatmul.bf16.gmra.mxu0 %v4832
        %v5028 = vpop.f32.mrf.mxu0
        %v5029 = vadd.f32 0.0, %v5028
        %v5030 = vpop.f32.mrf.mxu0
        %5031 = vdwg.mxu0
        %5032 = vmatpush.bf16.msra.mxu0 0
        %5033 = vmatpush.bf16.msra.mxu0 0
        %5034 = vmatpush.bf16.msra.mxu0 0
        %5035 = vmatpush.bf16.msra.mxu0 0
        %5036 = vmatpush.bf16.msra.mxu0 0
        %5037 = vmatpush.bf16.msra.mxu0 0
        %5038 = vmatpush.bf16.msra.mxu0 0
        %5039 = vmatpush.bf16.msra.mxu0 %v4871
        %5040 = vmatmul.bf16.gmra.mxu0 %v4832
        %v5041 = vpop.f32.mrf.mxu0
        %v5042 = vadd.f32 0.0, %v5041
        %v5043 = vpop.f32.mrf.mxu0
        %5044 = vdwg.mxu0
        %5045 = vmatpush.bf16.msra.mxu0 0
        %5046 = vmatpush.bf16.msra.mxu0 0
        %5047 = vmatpush.bf16.msra.mxu0 0
        %5048 = vmatpush.bf16.msra.mxu0 0
        %5049 = vmatpush.bf16.msra.mxu0 0
        %5050 = vmatpush.bf16.msra.mxu0 0
        %5051 = vmatpush.bf16.msra.mxu0 0
        %5052 = vmatpush.bf16.msra.mxu0 %v4874
        %5053 = vmatmul.bf16.gmra.mxu0 %v4832
        %v5054 = vpop.f32.mrf.mxu0
        %v5055 = vadd.f32 0.0, %v5054
        %v5056 = vpop.f32.mrf.mxu0
        %5057 = vdwg.mxu0
        %v5058 = vadd.f32 %v4770, %v4886
        %v5059 = vadd.f32 %v4771, %v4899
        %v5060 = vadd.f32 %v4772, %v4912
        %v5061 = vadd.f32 %v4773, %v4925
        %v5062 = vadd.f32 %v4774, %v4938
        %v5063 = vadd.f32 %v4775, %v4951
        %v5064 = vadd.f32 %v4776, %v4964
        %v5065 = vadd.f32 %v4777, %v4977
        %v5066 = vadd.f32 %v4778, %v4990
        %v5067 = vadd.f32 %v4779, %v5003
        %v5068 = vadd.f32 %v4780, %v5016
        %v5069 = vadd.f32 %v4781, %v5029
        %v5070 = vadd.f32 %v4782, %v5042
        %v5071 = vadd.f32 %v4783, %v5055
        %v5072 = vld [vmem:[%s1 + $0x88] sm:$0xff]
        %v5073 = vpack.c.bf16 %v5072, %v5072
        %5074 = vrot.lane.b32.xlu0 %v234, 86
        %v5075 = vpop.permute.xlu0 %5074
        %5076 = vrot.lane.b32.xlu0 %v235, 86
        %v5077 = vpop.permute.xlu0 %5076
        %5078 = vrot.lane.b32.xlu0 %v236, 86
        %v5079 = vpop.permute.xlu0 %5078
        %5080 = vrot.lane.b32.xlu0 %v237, 86
        %v5081 = vpop.permute.xlu0 %5080
        %5082 = vrot.lane.b32.xlu0 %v238, 86
        %v5083 = vpop.permute.xlu0 %5082
        %5084 = vrot.lane.b32.xlu0 %v239, 86
        %v5085 = vpop.permute.xlu0 %5084
        %5086 = vrot.lane.b32.xlu0 %v240, 86
        %v5087 = vpop.permute.xlu0 %5086
        %5088 = vrot.lane.b32.xlu0 %v241, 86
        %v5089 = vpop.permute.xlu0 %5088
        %5090 = vrot.lane.b32.xlu0 %v242, 86
        %v5091 = vpop.permute.xlu0 %5090
        %5092 = vrot.lane.b32.xlu0 %v243, 86
        %v5093 = vpop.permute.xlu0 %5092
        %5094 = vrot.lane.b32.xlu0 %v244, 86
        %v5095 = vpop.permute.xlu0 %5094
        %5096 = vrot.lane.b32.xlu0 %v245, 86
        %v5097 = vpop.permute.xlu0 %5096
        %5098 = vrot.lane.b32.xlu0 %v246, 86
        %v5099 = vpop.permute.xlu0 %5098
        %5100 = vrot.lane.b32.xlu0 %v247, 86
        %v5101 = vpop.permute.xlu0 %5100
        %5102 = vrot.lane.b32.xlu0 %v2769, 86
        %v5103 = vpop.permute.xlu0 %5102
        %vm5104 = vcmask 703488
        %v5105 = vsel %vm5104, %v5075, %v5077
        %v5106 = vsel %vm5104, %v5077, %v5079
        %v5107 = vsel %vm5104, %v5079, %v5081
        %v5108 = vsel %vm5104, %v5081, %v5083
        %v5109 = vsel %vm5104, %v5083, %v5085
        %v5110 = vsel %vm5104, %v5085, %v5087
        %v5111 = vsel %vm5104, %v5087, %v5089
        %v5112 = vsel %vm5104, %v5089, %v5091
        %v5113 = vsel %vm5104, %v5091, %v5093
        %v5114 = vsel %vm5104, %v5093, %v5095
        %v5115 = vsel %vm5104, %v5095, %v5097
        %v5116 = vsel %vm5104, %v5097, %v5099
        %v5117 = vsel %vm5104, %v5099, %v5101
        %v5118 = vsel %vm5104, %v5101, %v5103
        %v5120 = vsel %vm293, %v5073, 0
        %v5123 = vsel %vm297, %v5105, 0
        %v5126 = vsel %vm297, %v5106, 0
        %v5129 = vsel %vm297, %v5107, 0
        %v5132 = vsel %vm297, %v5108, 0
        %v5135 = vsel %vm297, %v5109, 0
        %v5138 = vsel %vm297, %v5110, 0
        %v5141 = vsel %vm297, %v5111, 0
        %v5144 = vsel %vm297, %v5112, 0
        %v5147 = vsel %vm297, %v5113, 0
        %v5150 = vsel %vm297, %v5114, 0
        %v5153 = vsel %vm297, %v5115, 0
        %v5156 = vsel %vm297, %v5116, 0
        %v5159 = vsel %vm297, %v5117, 0
        %v5162 = vsel %vm297, %v5118, 0
        %5164 = vmatpush.bf16.msra.mxu0 0
        %5165 = vmatpush.bf16.msra.mxu0 0
        %5166 = vmatpush.bf16.msra.mxu0 0
        %5167 = vmatpush.bf16.msra.mxu0 0
        %5168 = vmatpush.bf16.msra.mxu0 0
        %5169 = vmatpush.bf16.msra.mxu0 0
        %5170 = vmatpush.bf16.msra.mxu0 0
        %5171 = vmatpush.bf16.msra.mxu0 %v5123
        %5172 = vmatmul.bf16.gmra.mxu0 %v5120
        %v5173 = vpop.f32.mrf.mxu0
        %v5174 = vadd.f32 0.0, %v5173
        %v5175 = vpop.f32.mrf.mxu0
        %5176 = vdwg.mxu0
        %5177 = vmatpush.bf16.msra.mxu0 0
        %5178 = vmatpush.bf16.msra.mxu0 0
        %5179 = vmatpush.bf16.msra.mxu0 0
        %5180 = vmatpush.bf16.msra.mxu0 0
        %5181 = vmatpush.bf16.msra.mxu0 0
        %5182 = vmatpush.bf16.msra.mxu0 0
        %5183 = vmatpush.bf16.msra.mxu0 0
        %5184 = vmatpush.bf16.msra.mxu0 %v5126
        %5185 = vmatmul.bf16.gmra.mxu0 %v5120
        %v5186 = vpop.f32.mrf.mxu0
        %v5187 = vadd.f32 0.0, %v5186
        %v5188 = vpop.f32.mrf.mxu0
        %5189 = vdwg.mxu0
        %5190 = vmatpush.bf16.msra.mxu0 0
        %5191 = vmatpush.bf16.msra.mxu0 0
        %5192 = vmatpush.bf16.msra.mxu0 0
        %5193 = vmatpush.bf16.msra.mxu0 0
        %5194 = vmatpush.bf16.msra.mxu0 0
        %5195 = vmatpush.bf16.msra.mxu0 0
        %5196 = vmatpush.bf16.msra.mxu0 0
        %5197 = vmatpush.bf16.msra.mxu0 %v5129
        %5198 = vmatmul.bf16.gmra.mxu0 %v5120
        %v5199 = vpop.f32.mrf.mxu0
        %v5200 = vadd.f32 0.0, %v5199
        %v5201 = vpop.f32.mrf.mxu0
        %5202 = vdwg.mxu0
        %5203 = vmatpush.bf16.msra.mxu0 0
        %5204 = vmatpush.bf16.msra.mxu0 0
        %5205 = vmatpush.bf16.msra.mxu0 0
        %5206 = vmatpush.bf16.msra.mxu0 0
        %5207 = vmatpush.bf16.msra.mxu0 0
        %5208 = vmatpush.bf16.msra.mxu0 0
        %5209 = vmatpush.bf16.msra.mxu0 0
        %5210 = vmatpush.bf16.msra.mxu0 %v5132
        %5211 = vmatmul.bf16.gmra.mxu0 %v5120
        %v5212 = vpop.f32.mrf.mxu0
        %v5213 = vadd.f32 0.0, %v5212
        %v5214 = vpop.f32.mrf.mxu0
        %5215 = vdwg.mxu0
        %5216 = vmatpush.bf16.msra.mxu0 0
        %5217 = vmatpush.bf16.msra.mxu0 0
        %5218 = vmatpush.bf16.msra.mxu0 0
        %5219 = vmatpush.bf16.msra.mxu0 0
        %5220 = vmatpush.bf16.msra.mxu0 0
        %5221 = vmatpush.bf16.msra.mxu0 0
        %5222 = vmatpush.bf16.msra.mxu0 0
        %5223 = vmatpush.bf16.msra.mxu0 %v5135
        %5224 = vmatmul.bf16.gmra.mxu0 %v5120
        %v5225 = vpop.f32.mrf.mxu0
        %v5226 = vadd.f32 0.0, %v5225
        %v5227 = vpop.f32.mrf.mxu0
        %5228 = vdwg.mxu0
        %5229 = vmatpush.bf16.msra.mxu0 0
        %5230 = vmatpush.bf16.msra.mxu0 0
        %5231 = vmatpush.bf16.msra.mxu0 0
        %5232 = vmatpush.bf16.msra.mxu0 0
        %5233 = vmatpush.bf16.msra.mxu0 0
        %5234 = vmatpush.bf16.msra.mxu0 0
        %5235 = vmatpush.bf16.msra.mxu0 0
        %5236 = vmatpush.bf16.msra.mxu0 %v5138
        %5237 = vmatmul.bf16.gmra.mxu0 %v5120
        %v5238 = vpop.f32.mrf.mxu0
        %v5239 = vadd.f32 0.0, %v5238
        %v5240 = vpop.f32.mrf.mxu0
        %5241 = vdwg.mxu0
        %5242 = vmatpush.bf16.msra.mxu0 0
        %5243 = vmatpush.bf16.msra.mxu0 0
        %5244 = vmatpush.bf16.msra.mxu0 0
        %5245 = vmatpush.bf16.msra.mxu0 0
        %5246 = vmatpush.bf16.msra.mxu0 0
        %5247 = vmatpush.bf16.msra.mxu0 0
        %5248 = vmatpush.bf16.msra.mxu0 0
        %5249 = vmatpush.bf16.msra.mxu0 %v5141
        %5250 = vmatmul.bf16.gmra.mxu0 %v5120
        %v5251 = vpop.f32.mrf.mxu0
        %v5252 = vadd.f32 0.0, %v5251
        %v5253 = vpop.f32.mrf.mxu0
        %5254 = vdwg.mxu0
        %5255 = vmatpush.bf16.msra.mxu0 0
        %5256 = vmatpush.bf16.msra.mxu0 0
        %5257 = vmatpush.bf16.msra.mxu0 0
        %5258 = vmatpush.bf16.msra.mxu0 0
        %5259 = vmatpush.bf16.msra.mxu0 0
        %5260 = vmatpush.bf16.msra.mxu0 0
        %5261 = vmatpush.bf16.msra.mxu0 0
        %5262 = vmatpush.bf16.msra.mxu0 %v5144
        %5263 = vmatmul.bf16.gmra.mxu0 %v5120
        %v5264 = vpop.f32.mrf.mxu0
        %v5265 = vadd.f32 0.0, %v5264
        %v5266 = vpop.f32.mrf.mxu0
        %5267 = vdwg.mxu0
        %5268 = vmatpush.bf16.msra.mxu0 0
        %5269 = vmatpush.bf16.msra.mxu0 0
        %5270 = vmatpush.bf16.msra.mxu0 0
        %5271 = vmatpush.bf16.msra.mxu0 0
        %5272 = vmatpush.bf16.msra.mxu0 0
        %5273 = vmatpush.bf16.msra.mxu0 0
        %5274 = vmatpush.bf16.msra.mxu0 0
        %5275 = vmatpush.bf16.msra.mxu0 %v5147
        %5276 = vmatmul.bf16.gmra.mxu0 %v5120
        %v5277 = vpop.f32.mrf.mxu0
        %v5278 = vadd.f32 0.0, %v5277
        %v5279 = vpop.f32.mrf.mxu0
        %5280 = vdwg.mxu0
        %5281 = vmatpush.bf16.msra.mxu0 0
        %5282 = vmatpush.bf16.msra.mxu0 0
        %5283 = vmatpush.bf16.msra.mxu0 0
        %5284 = vmatpush.bf16.msra.mxu0 0
        %5285 = vmatpush.bf16.msra.mxu0 0
        %5286 = vmatpush.bf16.msra.mxu0 0
        %5287 = vmatpush.bf16.msra.mxu0 0
        %5288 = vmatpush.bf16.msra.mxu0 %v5150
        %5289 = vmatmul.bf16.gmra.mxu0 %v5120
        %v5290 = vpop.f32.mrf.mxu0
        %v5291 = vadd.f32 0.0, %v5290
        %v5292 = vpop.f32.mrf.mxu0
        %5293 = vdwg.mxu0
        %5294 = vmatpush.bf16.msra.mxu0 0
        %5295 = vmatpush.bf16.msra.mxu0 0
        %5296 = vmatpush.bf16.msra.mxu0 0
        %5297 = vmatpush.bf16.msra.mxu0 0
        %5298 = vmatpush.bf16.msra.mxu0 0
        %5299 = vmatpush.bf16.msra.mxu0 0
        %5300 = vmatpush.bf16.msra.mxu0 0
        %5301 = vmatpush.bf16.msra.mxu0 %v5153
        %5302 = vmatmul.bf16.gmra.mxu0 %v5120
        %v5303 = vpop.f32.mrf.mxu0
        %v5304 = vadd.f32 0.0, %v5303
        %v5305 = vpop.f32.mrf.mxu0
        %5306 = vdwg.mxu0
        %5307 = vmatpush.bf16.msra.mxu0 0
        %5308 = vmatpush.bf16.msra.mxu0 0
        %5309 = vmatpush.bf16.msra.mxu0 0
        %5310 = vmatpush.bf16.msra.mxu0 0
        %5311 = vmatpush.bf16.msra.mxu0 0
        %5312 = vmatpush.bf16.msra.mxu0 0
        %5313 = vmatpush.bf16.msra.mxu0 0
        %5314 = vmatpush.bf16.msra.mxu0 %v5156
        %5315 = vmatmul.bf16.gmra.mxu0 %v5120
        %v5316 = vpop.f32.mrf.mxu0
        %v5317 = vadd.f32 0.0, %v5316
        %v5318 = vpop.f32.mrf.mxu0
        %5319 = vdwg.mxu0
        %5320 = vmatpush.bf16.msra.mxu0 0
        %5321 = vmatpush.bf16.msra.mxu0 0
        %5322 = vmatpush.bf16.msra.mxu0 0
        %5323 = vmatpush.bf16.msra.mxu0 0
        %5324 = vmatpush.bf16.msra.mxu0 0
        %5325 = vmatpush.bf16.msra.mxu0 0
        %5326 = vmatpush.bf16.msra.mxu0 0
        %5327 = vmatpush.bf16.msra.mxu0 %v5159
        %5328 = vmatmul.bf16.gmra.mxu0 %v5120
        %v5329 = vpop.f32.mrf.mxu0
        %v5330 = vadd.f32 0.0, %v5329
        %v5331 = vpop.f32.mrf.mxu0
        %5332 = vdwg.mxu0
        %5333 = vmatpush.bf16.msra.mxu0 0
        %5334 = vmatpush.bf16.msra.mxu0 0
        %5335 = vmatpush.bf16.msra.mxu0 0
        %5336 = vmatpush.bf16.msra.mxu0 0
        %5337 = vmatpush.bf16.msra.mxu0 0
        %5338 = vmatpush.bf16.msra.mxu0 0
        %5339 = vmatpush.bf16.msra.mxu0 0
        %5340 = vmatpush.bf16.msra.mxu0 %v5162
        %5341 = vmatmul.bf16.gmra.mxu0 %v5120
        %v5342 = vpop.f32.mrf.mxu0
        %v5343 = vadd.f32 0.0, %v5342
        %v5344 = vpop.f32.mrf.mxu0
        %5345 = vdwg.mxu0
        %v5346 = vadd.f32 %v5058, %v5174
        %v5347 = vadd.f32 %v5059, %v5187
        %v5348 = vadd.f32 %v5060, %v5200
        %v5349 = vadd.f32 %v5061, %v5213
        %v5350 = vadd.f32 %v5062, %v5226
        %v5351 = vadd.f32 %v5063, %v5239
        %v5352 = vadd.f32 %v5064, %v5252
        %v5353 = vadd.f32 %v5065, %v5265
        %v5354 = vadd.f32 %v5066, %v5278
        %v5355 = vadd.f32 %v5067, %v5291
        %v5356 = vadd.f32 %v5068, %v5304
        %v5357 = vadd.f32 %v5069, %v5317
        %v5358 = vadd.f32 %v5070, %v5330
        %v5359 = vadd.f32 %v5071, %v5343
        %v5360 = vld [vmem:[%s1 + $0x90] sm:$0xff]
        %v5361 = vpack.c.bf16 %v5360, %v5360
        %v5362 = vunpack.c.h.b16 %v205
        %v5363 = vpack.c.b16 %v5362, %v5362
        %5364 = vrot.lane.b32.xlu0 %v235, 96
        %v5365 = vpop.permute.xlu0 %5364
        %5366 = vrot.lane.b32.xlu0 %v236, 96
        %v5367 = vpop.permute.xlu0 %5366
        %5368 = vrot.lane.b32.xlu0 %v237, 96
        %v5369 = vpop.permute.xlu0 %5368
        %5370 = vrot.lane.b32.xlu0 %v238, 96
        %v5371 = vpop.permute.xlu0 %5370
        %5372 = vrot.lane.b32.xlu0 %v239, 96
        %v5373 = vpop.permute.xlu0 %5372
        %5374 = vrot.lane.b32.xlu0 %v240, 96
        %v5375 = vpop.permute.xlu0 %5374
        %5376 = vrot.lane.b32.xlu0 %v241, 96
        %v5377 = vpop.permute.xlu0 %5376
        %5378 = vrot.lane.b32.xlu0 %v242, 96
        %v5379 = vpop.permute.xlu0 %5378
        %5380 = vrot.lane.b32.xlu0 %v243, 96
        %v5381 = vpop.permute.xlu0 %5380
        %5382 = vrot.lane.b32.xlu0 %v244, 96
        %v5383 = vpop.permute.xlu0 %5382
        %5384 = vrot.lane.b32.xlu0 %v245, 96
        %v5385 = vpop.permute.xlu0 %5384
        %5386 = vrot.lane.b32.xlu0 %v246, 96
        %v5387 = vpop.permute.xlu0 %5386
        %5388 = vrot.lane.b32.xlu0 %v247, 96
        %v5389 = vpop.permute.xlu0 %5388
        %5390 = vrot.lane.b32.xlu0 %v2769, 96
        %v5391 = vpop.permute.xlu0 %5390
        %5392 = vrot.lane.b32.xlu0 %v5363, 96
        %v5393 = vpop.permute.xlu0 %5392
        %vm5394 = vcmask 785408
        %v5395 = vsel %vm5394, %v5365, %v5367
        %v5396 = vsel %vm5394, %v5367, %v5369
        %v5397 = vsel %vm5394, %v5369, %v5371
        %v5398 = vsel %vm5394, %v5371, %v5373
        %v5399 = vsel %vm5394, %v5373, %v5375
        %v5400 = vsel %vm5394, %v5375, %v5377
        %v5401 = vsel %vm5394, %v5377, %v5379
        %v5402 = vsel %vm5394, %v5379, %v5381
        %v5403 = vsel %vm5394, %v5381, %v5383
        %v5404 = vsel %vm5394, %v5383, %v5385
        %v5405 = vsel %vm5394, %v5385, %v5387
        %v5406 = vsel %vm5394, %v5387, %v5389
        %v5407 = vsel %vm5394, %v5389, %v5391
        %v5408 = vsel %vm5394, %v5391, %v5393
        %v5410 = vsel %vm293, %v5361, 0
        %v5413 = vsel %vm297, %v5395, 0
        %v5416 = vsel %vm297, %v5396, 0
        %v5419 = vsel %vm297, %v5397, 0
        %v5422 = vsel %vm297, %v5398, 0
        %v5425 = vsel %vm297, %v5399, 0
        %v5428 = vsel %vm297, %v5400, 0
        %v5431 = vsel %vm297, %v5401, 0
        %v5434 = vsel %vm297, %v5402, 0
        %v5437 = vsel %vm297, %v5403, 0
        %v5440 = vsel %vm297, %v5404, 0
        %v5443 = vsel %vm297, %v5405, 0
        %v5446 = vsel %vm297, %v5406, 0
        %v5449 = vsel %vm297, %v5407, 0
        %v5452 = vsel %vm297, %v5408, 0
        %5454 = vmatpush.bf16.msra.mxu0 0
        %5455 = vmatpush.bf16.msra.mxu0 0
        %5456 = vmatpush.bf16.msra.mxu0 0
        %5457 = vmatpush.bf16.msra.mxu0 0
        %5458 = vmatpush.bf16.msra.mxu0 0
        %5459 = vmatpush.bf16.msra.mxu0 0
        %5460 = vmatpush.bf16.msra.mxu0 0
        %5461 = vmatpush.bf16.msra.mxu0 %v5413
        %5462 = vmatmul.bf16.gmra.mxu0 %v5410
        %v5463 = vpop.f32.mrf.mxu0
        %v5464 = vadd.f32 0.0, %v5463
        %v5465 = vpop.f32.mrf.mxu0
        %5466 = vdwg.mxu0
        %5467 = vmatpush.bf16.msra.mxu0 0
        %5468 = vmatpush.bf16.msra.mxu0 0
        %5469 = vmatpush.bf16.msra.mxu0 0
        %5470 = vmatpush.bf16.msra.mxu0 0
        %5471 = vmatpush.bf16.msra.mxu0 0
        %5472 = vmatpush.bf16.msra.mxu0 0
        %5473 = vmatpush.bf16.msra.mxu0 0
        %5474 = vmatpush.bf16.msra.mxu0 %v5416
        %5475 = vmatmul.bf16.gmra.mxu0 %v5410
        %v5476 = vpop.f32.mrf.mxu0
        %v5477 = vadd.f32 0.0, %v5476
        %v5478 = vpop.f32.mrf.mxu0
        %5479 = vdwg.mxu0
        %5480 = vmatpush.bf16.msra.mxu0 0
        %5481 = vmatpush.bf16.msra.mxu0 0
        %5482 = vmatpush.bf16.msra.mxu0 0
        %5483 = vmatpush.bf16.msra.mxu0 0
        %5484 = vmatpush.bf16.msra.mxu0 0
        %5485 = vmatpush.bf16.msra.mxu0 0
        %5486 = vmatpush.bf16.msra.mxu0 0
        %5487 = vmatpush.bf16.msra.mxu0 %v5419
        %5488 = vmatmul.bf16.gmra.mxu0 %v5410
        %v5489 = vpop.f32.mrf.mxu0
        %v5490 = vadd.f32 0.0, %v5489
        %v5491 = vpop.f32.mrf.mxu0
        %5492 = vdwg.mxu0
        %5493 = vmatpush.bf16.msra.mxu0 0
        %5494 = vmatpush.bf16.msra.mxu0 0
        %5495 = vmatpush.bf16.msra.mxu0 0
        %5496 = vmatpush.bf16.msra.mxu0 0
        %5497 = vmatpush.bf16.msra.mxu0 0
        %5498 = vmatpush.bf16.msra.mxu0 0
        %5499 = vmatpush.bf16.msra.mxu0 0
        %5500 = vmatpush.bf16.msra.mxu0 %v5422
        %5501 = vmatmul.bf16.gmra.mxu0 %v5410
        %v5502 = vpop.f32.mrf.mxu0
        %v5503 = vadd.f32 0.0, %v5502
        %v5504 = vpop.f32.mrf.mxu0
        %5505 = vdwg.mxu0
        %5506 = vmatpush.bf16.msra.mxu0 0
        %5507 = vmatpush.bf16.msra.mxu0 0
        %5508 = vmatpush.bf16.msra.mxu0 0
        %5509 = vmatpush.bf16.msra.mxu0 0
        %5510 = vmatpush.bf16.msra.mxu0 0
        %5511 = vmatpush.bf16.msra.mxu0 0
        %5512 = vmatpush.bf16.msra.mxu0 0
        %5513 = vmatpush.bf16.msra.mxu0 %v5425
        %5514 = vmatmul.bf16.gmra.mxu0 %v5410
        %v5515 = vpop.f32.mrf.mxu0
        %v5516 = vadd.f32 0.0, %v5515
        %v5517 = vpop.f32.mrf.mxu0
        %5518 = vdwg.mxu0
        %5519 = vmatpush.bf16.msra.mxu0 0
        %5520 = vmatpush.bf16.msra.mxu0 0
        %5521 = vmatpush.bf16.msra.mxu0 0
        %5522 = vmatpush.bf16.msra.mxu0 0
        %5523 = vmatpush.bf16.msra.mxu0 0
        %5524 = vmatpush.bf16.msra.mxu0 0
        %5525 = vmatpush.bf16.msra.mxu0 0
        %5526 = vmatpush.bf16.msra.mxu0 %v5428
        %5527 = vmatmul.bf16.gmra.mxu0 %v5410
        %v5528 = vpop.f32.mrf.mxu0
        %v5529 = vadd.f32 0.0, %v5528
        %v5530 = vpop.f32.mrf.mxu0
        %5531 = vdwg.mxu0
        %5532 = vmatpush.bf16.msra.mxu0 0
        %5533 = vmatpush.bf16.msra.mxu0 0
        %5534 = vmatpush.bf16.msra.mxu0 0
        %5535 = vmatpush.bf16.msra.mxu0 0
        %5536 = vmatpush.bf16.msra.mxu0 0
        %5537 = vmatpush.bf16.msra.mxu0 0
        %5538 = vmatpush.bf16.msra.mxu0 0
        %5539 = vmatpush.bf16.msra.mxu0 %v5431
        %5540 = vmatmul.bf16.gmra.mxu0 %v5410
        %v5541 = vpop.f32.mrf.mxu0
        %v5542 = vadd.f32 0.0, %v5541
        %v5543 = vpop.f32.mrf.mxu0
        %5544 = vdwg.mxu0
        %5545 = vmatpush.bf16.msra.mxu0 0
        %5546 = vmatpush.bf16.msra.mxu0 0
        %5547 = vmatpush.bf16.msra.mxu0 0
        %5548 = vmatpush.bf16.msra.mxu0 0
        %5549 = vmatpush.bf16.msra.mxu0 0
        %5550 = vmatpush.bf16.msra.mxu0 0
        %5551 = vmatpush.bf16.msra.mxu0 0
        %5552 = vmatpush.bf16.msra.mxu0 %v5434
        %5553 = vmatmul.bf16.gmra.mxu0 %v5410
        %v5554 = vpop.f32.mrf.mxu0
        %v5555 = vadd.f32 0.0, %v5554
        %v5556 = vpop.f32.mrf.mxu0
        %5557 = vdwg.mxu0
        %5558 = vmatpush.bf16.msra.mxu0 0
        %5559 = vmatpush.bf16.msra.mxu0 0
        %5560 = vmatpush.bf16.msra.mxu0 0
        %5561 = vmatpush.bf16.msra.mxu0 0
        %5562 = vmatpush.bf16.msra.mxu0 0
        %5563 = vmatpush.bf16.msra.mxu0 0
        %5564 = vmatpush.bf16.msra.mxu0 0
        %5565 = vmatpush.bf16.msra.mxu0 %v5437
        %5566 = vmatmul.bf16.gmra.mxu0 %v5410
        %v5567 = vpop.f32.mrf.mxu0
        %v5568 = vadd.f32 0.0, %v5567
        %v5569 = vpop.f32.mrf.mxu0
        %5570 = vdwg.mxu0
        %5571 = vmatpush.bf16.msra.mxu0 0
        %5572 = vmatpush.bf16.msra.mxu0 0
        %5573 = vmatpush.bf16.msra.mxu0 0
        %5574 = vmatpush.bf16.msra.mxu0 0
        %5575 = vmatpush.bf16.msra.mxu0 0
        %5576 = vmatpush.bf16.msra.mxu0 0
        %5577 = vmatpush.bf16.msra.mxu0 0
        %5578 = vmatpush.bf16.msra.mxu0 %v5440
        %5579 = vmatmul.bf16.gmra.mxu0 %v5410
        %v5580 = vpop.f32.mrf.mxu0
        %v5581 = vadd.f32 0.0, %v5580
        %v5582 = vpop.f32.mrf.mxu0
        %5583 = vdwg.mxu0
        %5584 = vmatpush.bf16.msra.mxu0 0
        %5585 = vmatpush.bf16.msra.mxu0 0
        %5586 = vmatpush.bf16.msra.mxu0 0
        %5587 = vmatpush.bf16.msra.mxu0 0
        %5588 = vmatpush.bf16.msra.mxu0 0
        %5589 = vmatpush.bf16.msra.mxu0 0
        %5590 = vmatpush.bf16.msra.mxu0 0
        %5591 = vmatpush.bf16.msra.mxu0 %v5443
        %5592 = vmatmul.bf16.gmra.mxu0 %v5410
        %v5593 = vpop.f32.mrf.mxu0
        %v5594 = vadd.f32 0.0, %v5593
        %v5595 = vpop.f32.mrf.mxu0
        %5596 = vdwg.mxu0
        %5597 = vmatpush.bf16.msra.mxu0 0
        %5598 = vmatpush.bf16.msra.mxu0 0
        %5599 = vmatpush.bf16.msra.mxu0 0
        %5600 = vmatpush.bf16.msra.mxu0 0
        %5601 = vmatpush.bf16.msra.mxu0 0
        %5602 = vmatpush.bf16.msra.mxu0 0
        %5603 = vmatpush.bf16.msra.mxu0 0
        %5604 = vmatpush.bf16.msra.mxu0 %v5446
        %5605 = vmatmul.bf16.gmra.mxu0 %v5410
        %v5606 = vpop.f32.mrf.mxu0
        %v5607 = vadd.f32 0.0, %v5606
        %v5608 = vpop.f32.mrf.mxu0
        %5609 = vdwg.mxu0
        %5610 = vmatpush.bf16.msra.mxu0 0
        %5611 = vmatpush.bf16.msra.mxu0 0
        %5612 = vmatpush.bf16.msra.mxu0 0
        %5613 = vmatpush.bf16.msra.mxu0 0
        %5614 = vmatpush.bf16.msra.mxu0 0
        %5615 = vmatpush.bf16.msra.mxu0 0
        %5616 = vmatpush.bf16.msra.mxu0 0
        %5617 = vmatpush.bf16.msra.mxu0 %v5449
        %5618 = vmatmul.bf16.gmra.mxu0 %v5410
        %v5619 = vpop.f32.mrf.mxu0
        %v5620 = vadd.f32 0.0, %v5619
        %v5621 = vpop.f32.mrf.mxu0
        %5622 = vdwg.mxu0
        %5623 = vmatpush.bf16.msra.mxu0 0
        %5624 = vmatpush.bf16.msra.mxu0 0
        %5625 = vmatpush.bf16.msra.mxu0 0
        %5626 = vmatpush.bf16.msra.mxu0 0
        %5627 = vmatpush.bf16.msra.mxu0 0
        %5628 = vmatpush.bf16.msra.mxu0 0
        %5629 = vmatpush.bf16.msra.mxu0 0
        %5630 = vmatpush.bf16.msra.mxu0 %v5452
        %5631 = vmatmul.bf16.gmra.mxu0 %v5410
        %v5632 = vpop.f32.mrf.mxu0
        %v5633 = vadd.f32 0.0, %v5632
        %v5634 = vpop.f32.mrf.mxu0
        %5635 = vdwg.mxu0
        %v5636 = vadd.f32 %v5346, %v5464
        %v5637 = vadd.f32 %v5347, %v5477
        %v5638 = vadd.f32 %v5348, %v5490
        %v5639 = vadd.f32 %v5349, %v5503
        %v5640 = vadd.f32 %v5350, %v5516
        %v5641 = vadd.f32 %v5351, %v5529
        %v5642 = vadd.f32 %v5352, %v5542
        %v5643 = vadd.f32 %v5353, %v5555
        %v5644 = vadd.f32 %v5354, %v5568
        %v5645 = vadd.f32 %v5355, %v5581
        %v5646 = vadd.f32 %v5356, %v5594
        %v5647 = vadd.f32 %v5357, %v5607
        %v5648 = vadd.f32 %v5358, %v5620
        %v5649 = vadd.f32 %v5359, %v5633
        %v5650 = vld [vmem:[%s1 + $0x98] sm:$0xff]
        %v5651 = vpack.c.bf16 %v5650, %v5650
        %5652 = vrot.lane.b32.xlu0 %v235, 95
        %v5653 = vpop.permute.xlu0 %5652
        %5654 = vrot.lane.b32.xlu0 %v236, 95
        %v5655 = vpop.permute.xlu0 %5654
        %5656 = vrot.lane.b32.xlu0 %v237, 95
        %v5657 = vpop.permute.xlu0 %5656
        %5658 = vrot.lane.b32.xlu0 %v238, 95
        %v5659 = vpop.permute.xlu0 %5658
        %5660 = vrot.lane.b32.xlu0 %v239, 95
        %v5661 = vpop.permute.xlu0 %5660
        %5662 = vrot.lane.b32.xlu0 %v240, 95
        %v5663 = vpop.permute.xlu0 %5662
        %5664 = vrot.lane.b32.xlu0 %v241, 95
        %v5665 = vpop.permute.xlu0 %5664
        %5666 = vrot.lane.b32.xlu0 %v242, 95
        %v5667 = vpop.permute.xlu0 %5666
        %5668 = vrot.lane.b32.xlu0 %v243, 95
        %v5669 = vpop.permute.xlu0 %5668
        %5670 = vrot.lane.b32.xlu0 %v244, 95
        %v5671 = vpop.permute.xlu0 %5670
        %5672 = vrot.lane.b32.xlu0 %v245, 95
        %v5673 = vpop.permute.xlu0 %5672
        %5674 = vrot.lane.b32.xlu0 %v246, 95
        %v5675 = vpop.permute.xlu0 %5674
        %5676 = vrot.lane.b32.xlu0 %v247, 95
        %v5677 = vpop.permute.xlu0 %5676
        %5678 = vrot.lane.b32.xlu0 %v2769, 95
        %v5679 = vpop.permute.xlu0 %5678
        %5680 = vrot.lane.b32.xlu0 %v5363, 95
        %v5681 = vpop.permute.xlu0 %5680
        %vm5682 = vcmask 777216
        %v5683 = vsel %vm5682, %v5653, %v5655
        %v5684 = vsel %vm5682, %v5655, %v5657
        %v5685 = vsel %vm5682, %v5657, %v5659
        %v5686 = vsel %vm5682, %v5659, %v5661
        %v5687 = vsel %vm5682, %v5661, %v5663
        %v5688 = vsel %vm5682, %v5663, %v5665
        %v5689 = vsel %vm5682, %v5665, %v5667
        %v5690 = vsel %vm5682, %v5667, %v5669
        %v5691 = vsel %vm5682, %v5669, %v5671
        %v5692 = vsel %vm5682, %v5671, %v5673
        %v5693 = vsel %vm5682, %v5673, %v5675
        %v5694 = vsel %vm5682, %v5675, %v5677
        %v5695 = vsel %vm5682, %v5677, %v5679
        %v5696 = vsel %vm5682, %v5679, %v5681
        %v5698 = vsel %vm293, %v5651, 0
        %v5701 = vsel %vm297, %v5683, 0
        %v5704 = vsel %vm297, %v5684, 0
        %v5707 = vsel %vm297, %v5685, 0
        %v5710 = vsel %vm297, %v5686, 0
        %v5713 = vsel %vm297, %v5687, 0
        %v5716 = vsel %vm297, %v5688, 0
        %v5719 = vsel %vm297, %v5689, 0
        %v5722 = vsel %vm297, %v5690, 0
        %v5725 = vsel %vm297, %v5691, 0
        %v5728 = vsel %vm297, %v5692, 0
        %v5731 = vsel %vm297, %v5693, 0
        %v5734 = vsel %vm297, %v5694, 0
        %v5737 = vsel %vm297, %v5695, 0
        %v5740 = vsel %vm297, %v5696, 0
        %5742 = vmatpush.bf16.msra.mxu0 0
        %5743 = vmatpush.bf16.msra.mxu0 0
        %5744 = vmatpush.bf16.msra.mxu0 0
        %5745 = vmatpush.bf16.msra.mxu0 0
        %5746 = vmatpush.bf16.msra.mxu0 0
        %5747 = vmatpush.bf16.msra.mxu0 0
        %5748 = vmatpush.bf16.msra.mxu0 0
        %5749 = vmatpush.bf16.msra.mxu0 %v5701
        %5750 = vmatmul.bf16.gmra.mxu0 %v5698
        %v5751 = vpop.f32.mrf.mxu0
        %v5752 = vadd.f32 0.0, %v5751
        %v5753 = vpop.f32.mrf.mxu0
        %5754 = vdwg.mxu0
        %5755 = vmatpush.bf16.msra.mxu0 0
        %5756 = vmatpush.bf16.msra.mxu0 0
        %5757 = vmatpush.bf16.msra.mxu0 0
        %5758 = vmatpush.bf16.msra.mxu0 0
        %5759 = vmatpush.bf16.msra.mxu0 0
        %5760 = vmatpush.bf16.msra.mxu0 0
        %5761 = vmatpush.bf16.msra.mxu0 0
        %5762 = vmatpush.bf16.msra.mxu0 %v5704
        %5763 = vmatmul.bf16.gmra.mxu0 %v5698
        %v5764 = vpop.f32.mrf.mxu0
        %v5765 = vadd.f32 0.0, %v5764
        %v5766 = vpop.f32.mrf.mxu0
        %5767 = vdwg.mxu0
        %5768 = vmatpush.bf16.msra.mxu0 0
        %5769 = vmatpush.bf16.msra.mxu0 0
        %5770 = vmatpush.bf16.msra.mxu0 0
        %5771 = vmatpush.bf16.msra.mxu0 0
        %5772 = vmatpush.bf16.msra.mxu0 0
        %5773 = vmatpush.bf16.msra.mxu0 0
        %5774 = vmatpush.bf16.msra.mxu0 0
        %5775 = vmatpush.bf16.msra.mxu0 %v5707
        %5776 = vmatmul.bf16.gmra.mxu0 %v5698
        %v5777 = vpop.f32.mrf.mxu0
        %v5778 = vadd.f32 0.0, %v5777
        %v5779 = vpop.f32.mrf.mxu0
        %5780 = vdwg.mxu0
        %5781 = vmatpush.bf16.msra.mxu0 0
        %5782 = vmatpush.bf16.msra.mxu0 0
        %5783 = vmatpush.bf16.msra.mxu0 0
        %5784 = vmatpush.bf16.msra.mxu0 0
        %5785 = vmatpush.bf16.msra.mxu0 0
        %5786 = vmatpush.bf16.msra.mxu0 0
        %5787 = vmatpush.bf16.msra.mxu0 0
        %5788 = vmatpush.bf16.msra.mxu0 %v5710
        %5789 = vmatmul.bf16.gmra.mxu0 %v5698
        %v5790 = vpop.f32.mrf.mxu0
        %v5791 = vadd.f32 0.0, %v5790
        %v5792 = vpop.f32.mrf.mxu0
        %5793 = vdwg.mxu0
        %5794 = vmatpush.bf16.msra.mxu0 0
        %5795 = vmatpush.bf16.msra.mxu0 0
        %5796 = vmatpush.bf16.msra.mxu0 0
        %5797 = vmatpush.bf16.msra.mxu0 0
        %5798 = vmatpush.bf16.msra.mxu0 0
        %5799 = vmatpush.bf16.msra.mxu0 0
        %5800 = vmatpush.bf16.msra.mxu0 0
        %5801 = vmatpush.bf16.msra.mxu0 %v5713
        %5802 = vmatmul.bf16.gmra.mxu0 %v5698
        %v5803 = vpop.f32.mrf.mxu0
        %v5804 = vadd.f32 0.0, %v5803
        %v5805 = vpop.f32.mrf.mxu0
        %5806 = vdwg.mxu0
        %5807 = vmatpush.bf16.msra.mxu0 0
        %5808 = vmatpush.bf16.msra.mxu0 0
        %5809 = vmatpush.bf16.msra.mxu0 0
        %5810 = vmatpush.bf16.msra.mxu0 0
        %5811 = vmatpush.bf16.msra.mxu0 0
        %5812 = vmatpush.bf16.msra.mxu0 0
        %5813 = vmatpush.bf16.msra.mxu0 0
        %5814 = vmatpush.bf16.msra.mxu0 %v5716
        %5815 = vmatmul.bf16.gmra.mxu0 %v5698
        %v5816 = vpop.f32.mrf.mxu0
        %v5817 = vadd.f32 0.0, %v5816
        %v5818 = vpop.f32.mrf.mxu0
        %5819 = vdwg.mxu0
        %5820 = vmatpush.bf16.msra.mxu0 0
        %5821 = vmatpush.bf16.msra.mxu0 0
        %5822 = vmatpush.bf16.msra.mxu0 0
        %5823 = vmatpush.bf16.msra.mxu0 0
        %5824 = vmatpush.bf16.msra.mxu0 0
        %5825 = vmatpush.bf16.msra.mxu0 0
        %5826 = vmatpush.bf16.msra.mxu0 0
        %5827 = vmatpush.bf16.msra.mxu0 %v5719
        %5828 = vmatmul.bf16.gmra.mxu0 %v5698
        %v5829 = vpop.f32.mrf.mxu0
        %v5830 = vadd.f32 0.0, %v5829
        %v5831 = vpop.f32.mrf.mxu0
        %5832 = vdwg.mxu0
        %5833 = vmatpush.bf16.msra.mxu0 0
        %5834 = vmatpush.bf16.msra.mxu0 0
        %5835 = vmatpush.bf16.msra.mxu0 0
        %5836 = vmatpush.bf16.msra.mxu0 0
        %5837 = vmatpush.bf16.msra.mxu0 0
        %5838 = vmatpush.bf16.msra.mxu0 0
        %5839 = vmatpush.bf16.msra.mxu0 0
        %5840 = vmatpush.bf16.msra.mxu0 %v5722
        %5841 = vmatmul.bf16.gmra.mxu0 %v5698
        %v5842 = vpop.f32.mrf.mxu0
        %v5843 = vadd.f32 0.0, %v5842
        %v5844 = vpop.f32.mrf.mxu0
        %5845 = vdwg.mxu0
        %5846 = vmatpush.bf16.msra.mxu0 0
        %5847 = vmatpush.bf16.msra.mxu0 0
        %5848 = vmatpush.bf16.msra.mxu0 0
        %5849 = vmatpush.bf16.msra.mxu0 0
        %5850 = vmatpush.bf16.msra.mxu0 0
        %5851 = vmatpush.bf16.msra.mxu0 0
        %5852 = vmatpush.bf16.msra.mxu0 0
        %5853 = vmatpush.bf16.msra.mxu0 %v5725
        %5854 = vmatmul.bf16.gmra.mxu0 %v5698
        %v5855 = vpop.f32.mrf.mxu0
        %v5856 = vadd.f32 0.0, %v5855
        %v5857 = vpop.f32.mrf.mxu0
        %5858 = vdwg.mxu0
        %5859 = vmatpush.bf16.msra.mxu0 0
        %5860 = vmatpush.bf16.msra.mxu0 0
        %5861 = vmatpush.bf16.msra.mxu0 0
        %5862 = vmatpush.bf16.msra.mxu0 0
        %5863 = vmatpush.bf16.msra.mxu0 0
        %5864 = vmatpush.bf16.msra.mxu0 0
        %5865 = vmatpush.bf16.msra.mxu0 0
        %5866 = vmatpush.bf16.msra.mxu0 %v5728
        %5867 = vmatmul.bf16.gmra.mxu0 %v5698
        %v5868 = vpop.f32.mrf.mxu0
        %v5869 = vadd.f32 0.0, %v5868
        %v5870 = vpop.f32.mrf.mxu0
        %5871 = vdwg.mxu0
        %5872 = vmatpush.bf16.msra.mxu0 0
        %5873 = vmatpush.bf16.msra.mxu0 0
        %5874 = vmatpush.bf16.msra.mxu0 0
        %5875 = vmatpush.bf16.msra.mxu0 0
        %5876 = vmatpush.bf16.msra.mxu0 0
        %5877 = vmatpush.bf16.msra.mxu0 0
        %5878 = vmatpush.bf16.msra.mxu0 0
        %5879 = vmatpush.bf16.msra.mxu0 %v5731
        %5880 = vmatmul.bf16.gmra.mxu0 %v5698
        %v5881 = vpop.f32.mrf.mxu0
        %v5882 = vadd.f32 0.0, %v5881
        %v5883 = vpop.f32.mrf.mxu0
        %5884 = vdwg.mxu0
        %5885 = vmatpush.bf16.msra.mxu0 0
        %5886 = vmatpush.bf16.msra.mxu0 0
        %5887 = vmatpush.bf16.msra.mxu0 0
        %5888 = vmatpush.bf16.msra.mxu0 0
        %5889 = vmatpush.bf16.msra.mxu0 0
        %5890 = vmatpush.bf16.msra.mxu0 0
        %5891 = vmatpush.bf16.msra.mxu0 0
        %5892 = vmatpush.bf16.msra.mxu0 %v5734
        %5893 = vmatmul.bf16.gmra.mxu0 %v5698
        %v5894 = vpop.f32.mrf.mxu0
        %v5895 = vadd.f32 0.0, %v5894
        %v5896 = vpop.f32.mrf.mxu0
        %5897 = vdwg.mxu0
        %5898 = vmatpush.bf16.msra.mxu0 0
        %5899 = vmatpush.bf16.msra.mxu0 0
        %5900 = vmatpush.bf16.msra.mxu0 0
        %5901 = vmatpush.bf16.msra.mxu0 0
        %5902 = vmatpush.bf16.msra.mxu0 0
        %5903 = vmatpush.bf16.msra.mxu0 0
        %5904 = vmatpush.bf16.msra.mxu0 0
        %5905 = vmatpush.bf16.msra.mxu0 %v5737
        %5906 = vmatmul.bf16.gmra.mxu0 %v5698
        %v5907 = vpop.f32.mrf.mxu0
        %v5908 = vadd.f32 0.0, %v5907
        %v5909 = vpop.f32.mrf.mxu0
        %5910 = vdwg.mxu0
        %5911 = vmatpush.bf16.msra.mxu0 0
        %5912 = vmatpush.bf16.msra.mxu0 0
        %5913 = vmatpush.bf16.msra.mxu0 0
        %5914 = vmatpush.bf16.msra.mxu0 0
        %5915 = vmatpush.bf16.msra.mxu0 0
        %5916 = vmatpush.bf16.msra.mxu0 0
        %5917 = vmatpush.bf16.msra.mxu0 0
        %5918 = vmatpush.bf16.msra.mxu0 %v5740
        %5919 = vmatmul.bf16.gmra.mxu0 %v5698
        %v5920 = vpop.f32.mrf.mxu0
        %v5921 = vadd.f32 0.0, %v5920
        %v5922 = vpop.f32.mrf.mxu0
        %5923 = vdwg.mxu0
        %v5924 = vadd.f32 %v5636, %v5752
        %v5925 = vadd.f32 %v5637, %v5765
        %v5926 = vadd.f32 %v5638, %v5778
        %v5927 = vadd.f32 %v5639, %v5791
        %v5928 = vadd.f32 %v5640, %v5804
        %v5929 = vadd.f32 %v5641, %v5817
        %v5930 = vadd.f32 %v5642, %v5830
        %v5931 = vadd.f32 %v5643, %v5843
        %v5932 = vadd.f32 %v5644, %v5856
        %v5933 = vadd.f32 %v5645, %v5869
        %v5934 = vadd.f32 %v5646, %v5882
        %v5935 = vadd.f32 %v5647, %v5895
        %v5936 = vadd.f32 %v5648, %v5908
        %v5937 = vadd.f32 %v5649, %v5921
        %v5938 = vld [vmem:[%s1 + $0xa0] sm:$0xff]
        %v5939 = vpack.c.bf16 %v5938, %v5938
        %5940 = vrot.lane.b32.xlu0 %v235, 94
        %v5941 = vpop.permute.xlu0 %5940
        %5942 = vrot.lane.b32.xlu0 %v236, 94
        %v5943 = vpop.permute.xlu0 %5942
        %5944 = vrot.lane.b32.xlu0 %v237, 94
        %v5945 = vpop.permute.xlu0 %5944
        %5946 = vrot.lane.b32.xlu0 %v238, 94
        %v5947 = vpop.permute.xlu0 %5946
        %5948 = vrot.lane.b32.xlu0 %v239, 94
        %v5949 = vpop.permute.xlu0 %5948
        %5950 = vrot.lane.b32.xlu0 %v240, 94
        %v5951 = vpop.permute.xlu0 %5950
        %5952 = vrot.lane.b32.xlu0 %v241, 94
        %v5953 = vpop.permute.xlu0 %5952
        %5954 = vrot.lane.b32.xlu0 %v242, 94
        %v5955 = vpop.permute.xlu0 %5954
        %5956 = vrot.lane.b32.xlu0 %v243, 94
        %v5957 = vpop.permute.xlu0 %5956
        %5958 = vrot.lane.b32.xlu0 %v244, 94
        %v5959 = vpop.permute.xlu0 %5958
        %5960 = vrot.lane.b32.xlu0 %v245, 94
        %v5961 = vpop.permute.xlu0 %5960
        %5962 = vrot.lane.b32.xlu0 %v246, 94
        %v5963 = vpop.permute.xlu0 %5962
        %5964 = vrot.lane.b32.xlu0 %v247, 94
        %v5965 = vpop.permute.xlu0 %5964
        %5966 = vrot.lane.b32.xlu0 %v2769, 94
        %v5967 = vpop.permute.xlu0 %5966
        %5968 = vrot.lane.b32.xlu0 %v5363, 94
        %v5969 = vpop.permute.xlu0 %5968
        %vm5970 = vcmask 769024
        %v5971 = vsel %vm5970, %v5941, %v5943
        %v5972 = vsel %vm5970, %v5943, %v5945
        %v5973 = vsel %vm5970, %v5945, %v5947
        %v5974 = vsel %vm5970, %v5947, %v5949
        %v5975 = vsel %vm5970, %v5949, %v5951
        %v5976 = vsel %vm5970, %v5951, %v5953
        %v5977 = vsel %vm5970, %v5953, %v5955
        %v5978 = vsel %vm5970, %v5955, %v5957
        %v5979 = vsel %vm5970, %v5957, %v5959
        %v5980 = vsel %vm5970, %v5959, %v5961
        %v5981 = vsel %vm5970, %v5961, %v5963
        %v5982 = vsel %vm5970, %v5963, %v5965
        %v5983 = vsel %vm5970, %v5965, %v5967
        %v5984 = vsel %vm5970, %v5967, %v5969
        %v5986 = vsel %vm293, %v5939, 0
        %v5989 = vsel %vm297, %v5971, 0
        %v5992 = vsel %vm297, %v5972, 0
        %v5995 = vsel %vm297, %v5973, 0
        %v5998 = vsel %vm297, %v5974, 0
        %v6001 = vsel %vm297, %v5975, 0
        %v6004 = vsel %vm297, %v5976, 0
        %v6007 = vsel %vm297, %v5977, 0
        %v6010 = vsel %vm297, %v5978, 0
        %v6013 = vsel %vm297, %v5979, 0
        %v6016 = vsel %vm297, %v5980, 0
        %v6019 = vsel %vm297, %v5981, 0
        %v6022 = vsel %vm297, %v5982, 0
        %v6025 = vsel %vm297, %v5983, 0
        %v6028 = vsel %vm297, %v5984, 0
        %6030 = vmatpush.bf16.msra.mxu0 0
        %6031 = vmatpush.bf16.msra.mxu0 0
        %6032 = vmatpush.bf16.msra.mxu0 0
        %6033 = vmatpush.bf16.msra.mxu0 0
        %6034 = vmatpush.bf16.msra.mxu0 0
        %6035 = vmatpush.bf16.msra.mxu0 0
        %6036 = vmatpush.bf16.msra.mxu0 0
        %6037 = vmatpush.bf16.msra.mxu0 %v5989
        %6038 = vmatmul.bf16.gmra.mxu0 %v5986
        %v6039 = vpop.f32.mrf.mxu0
        %v6040 = vadd.f32 0.0, %v6039
        %v6041 = vpop.f32.mrf.mxu0
        %6042 = vdwg.mxu0
        %6043 = vmatpush.bf16.msra.mxu0 0
        %6044 = vmatpush.bf16.msra.mxu0 0
        %6045 = vmatpush.bf16.msra.mxu0 0
        %6046 = vmatpush.bf16.msra.mxu0 0
        %6047 = vmatpush.bf16.msra.mxu0 0
        %6048 = vmatpush.bf16.msra.mxu0 0
        %6049 = vmatpush.bf16.msra.mxu0 0
        %6050 = vmatpush.bf16.msra.mxu0 %v5992
        %6051 = vmatmul.bf16.gmra.mxu0 %v5986
        %v6052 = vpop.f32.mrf.mxu0
        %v6053 = vadd.f32 0.0, %v6052
        %v6054 = vpop.f32.mrf.mxu0
        %6055 = vdwg.mxu0
        %6056 = vmatpush.bf16.msra.mxu0 0
        %6057 = vmatpush.bf16.msra.mxu0 0
        %6058 = vmatpush.bf16.msra.mxu0 0
        %6059 = vmatpush.bf16.msra.mxu0 0
        %6060 = vmatpush.bf16.msra.mxu0 0
        %6061 = vmatpush.bf16.msra.mxu0 0
        %6062 = vmatpush.bf16.msra.mxu0 0
        %6063 = vmatpush.bf16.msra.mxu0 %v5995
        %6064 = vmatmul.bf16.gmra.mxu0 %v5986
        %v6065 = vpop.f32.mrf.mxu0
        %v6066 = vadd.f32 0.0, %v6065
        %v6067 = vpop.f32.mrf.mxu0
        %6068 = vdwg.mxu0
        %6069 = vmatpush.bf16.msra.mxu0 0
        %6070 = vmatpush.bf16.msra.mxu0 0
        %6071 = vmatpush.bf16.msra.mxu0 0
        %6072 = vmatpush.bf16.msra.mxu0 0
        %6073 = vmatpush.bf16.msra.mxu0 0
        %6074 = vmatpush.bf16.msra.mxu0 0
        %6075 = vmatpush.bf16.msra.mxu0 0
        %6076 = vmatpush.bf16.msra.mxu0 %v5998
        %6077 = vmatmul.bf16.gmra.mxu0 %v5986
        %v6078 = vpop.f32.mrf.mxu0
        %v6079 = vadd.f32 0.0, %v6078
        %v6080 = vpop.f32.mrf.mxu0
        %6081 = vdwg.mxu0
        %6082 = vmatpush.bf16.msra.mxu0 0
        %6083 = vmatpush.bf16.msra.mxu0 0
        %6084 = vmatpush.bf16.msra.mxu0 0
        %6085 = vmatpush.bf16.msra.mxu0 0
        %6086 = vmatpush.bf16.msra.mxu0 0
        %6087 = vmatpush.bf16.msra.mxu0 0
        %6088 = vmatpush.bf16.msra.mxu0 0
        %6089 = vmatpush.bf16.msra.mxu0 %v6001
        %6090 = vmatmul.bf16.gmra.mxu0 %v5986
        %v6091 = vpop.f32.mrf.mxu0
        %v6092 = vadd.f32 0.0, %v6091
        %v6093 = vpop.f32.mrf.mxu0
        %6094 = vdwg.mxu0
        %6095 = vmatpush.bf16.msra.mxu0 0
        %6096 = vmatpush.bf16.msra.mxu0 0
        %6097 = vmatpush.bf16.msra.mxu0 0
        %6098 = vmatpush.bf16.msra.mxu0 0
        %6099 = vmatpush.bf16.msra.mxu0 0
        %6100 = vmatpush.bf16.msra.mxu0 0
        %6101 = vmatpush.bf16.msra.mxu0 0
        %6102 = vmatpush.bf16.msra.mxu0 %v6004
        %6103 = vmatmul.bf16.gmra.mxu0 %v5986
        %v6104 = vpop.f32.mrf.mxu0
        %v6105 = vadd.f32 0.0, %v6104
        %v6106 = vpop.f32.mrf.mxu0
        %6107 = vdwg.mxu0
        %6108 = vmatpush.bf16.msra.mxu0 0
        %6109 = vmatpush.bf16.msra.mxu0 0
        %6110 = vmatpush.bf16.msra.mxu0 0
        %6111 = vmatpush.bf16.msra.mxu0 0
        %6112 = vmatpush.bf16.msra.mxu0 0
        %6113 = vmatpush.bf16.msra.mxu0 0
        %6114 = vmatpush.bf16.msra.mxu0 0
        %6115 = vmatpush.bf16.msra.mxu0 %v6007
        %6116 = vmatmul.bf16.gmra.mxu0 %v5986
        %v6117 = vpop.f32.mrf.mxu0
        %v6118 = vadd.f32 0.0, %v6117
        %v6119 = vpop.f32.mrf.mxu0
        %6120 = vdwg.mxu0
        %6121 = vmatpush.bf16.msra.mxu0 0
        %6122 = vmatpush.bf16.msra.mxu0 0
        %6123 = vmatpush.bf16.msra.mxu0 0
        %6124 = vmatpush.bf16.msra.mxu0 0
        %6125 = vmatpush.bf16.msra.mxu0 0
        %6126 = vmatpush.bf16.msra.mxu0 0
        %6127 = vmatpush.bf16.msra.mxu0 0
        %6128 = vmatpush.bf16.msra.mxu0 %v6010
        %6129 = vmatmul.bf16.gmra.mxu0 %v5986
        %v6130 = vpop.f32.mrf.mxu0
        %v6131 = vadd.f32 0.0, %v6130
        %v6132 = vpop.f32.mrf.mxu0
        %6133 = vdwg.mxu0
        %6134 = vmatpush.bf16.msra.mxu0 0
        %6135 = vmatpush.bf16.msra.mxu0 0
        %6136 = vmatpush.bf16.msra.mxu0 0
        %6137 = vmatpush.bf16.msra.mxu0 0
        %6138 = vmatpush.bf16.msra.mxu0 0
        %6139 = vmatpush.bf16.msra.mxu0 0
        %6140 = vmatpush.bf16.msra.mxu0 0
        %6141 = vmatpush.bf16.msra.mxu0 %v6013
        %6142 = vmatmul.bf16.gmra.mxu0 %v5986
        %v6143 = vpop.f32.mrf.mxu0
        %v6144 = vadd.f32 0.0, %v6143
        %v6145 = vpop.f32.mrf.mxu0
        %6146 = vdwg.mxu0
        %6147 = vmatpush.bf16.msra.mxu0 0
        %6148 = vmatpush.bf16.msra.mxu0 0
        %6149 = vmatpush.bf16.msra.mxu0 0
        %6150 = vmatpush.bf16.msra.mxu0 0
        %6151 = vmatpush.bf16.msra.mxu0 0
        %6152 = vmatpush.bf16.msra.mxu0 0
        %6153 = vmatpush.bf16.msra.mxu0 0
        %6154 = vmatpush.bf16.msra.mxu0 %v6016
        %6155 = vmatmul.bf16.gmra.mxu0 %v5986
        %v6156 = vpop.f32.mrf.mxu0
        %v6157 = vadd.f32 0.0, %v6156
        %v6158 = vpop.f32.mrf.mxu0
        %6159 = vdwg.mxu0
        %6160 = vmatpush.bf16.msra.mxu0 0
        %6161 = vmatpush.bf16.msra.mxu0 0
        %6162 = vmatpush.bf16.msra.mxu0 0
        %6163 = vmatpush.bf16.msra.mxu0 0
        %6164 = vmatpush.bf16.msra.mxu0 0
        %6165 = vmatpush.bf16.msra.mxu0 0
        %6166 = vmatpush.bf16.msra.mxu0 0
        %6167 = vmatpush.bf16.msra.mxu0 %v6019
        %6168 = vmatmul.bf16.gmra.mxu0 %v5986
        %v6169 = vpop.f32.mrf.mxu0
        %v6170 = vadd.f32 0.0, %v6169
        %v6171 = vpop.f32.mrf.mxu0
        %6172 = vdwg.mxu0
        %6173 = vmatpush.bf16.msra.mxu0 0
        %6174 = vmatpush.bf16.msra.mxu0 0
        %6175 = vmatpush.bf16.msra.mxu0 0
        %6176 = vmatpush.bf16.msra.mxu0 0
        %6177 = vmatpush.bf16.msra.mxu0 0
        %6178 = vmatpush.bf16.msra.mxu0 0
        %6179 = vmatpush.bf16.msra.mxu0 0
        %6180 = vmatpush.bf16.msra.mxu0 %v6022
        %6181 = vmatmul.bf16.gmra.mxu0 %v5986
        %v6182 = vpop.f32.mrf.mxu0
        %v6183 = vadd.f32 0.0, %v6182
        %v6184 = vpop.f32.mrf.mxu0
        %6185 = vdwg.mxu0
        %6186 = vmatpush.bf16.msra.mxu0 0
        %6187 = vmatpush.bf16.msra.mxu0 0
        %6188 = vmatpush.bf16.msra.mxu0 0
        %6189 = vmatpush.bf16.msra.mxu0 0
        %6190 = vmatpush.bf16.msra.mxu0 0
        %6191 = vmatpush.bf16.msra.mxu0 0
        %6192 = vmatpush.bf16.msra.mxu0 0
        %6193 = vmatpush.bf16.msra.mxu0 %v6025
        %6194 = vmatmul.bf16.gmra.mxu0 %v5986
        %v6195 = vpop.f32.mrf.mxu0
        %v6196 = vadd.f32 0.0, %v6195
        %v6197 = vpop.f32.mrf.mxu0
        %6198 = vdwg.mxu0
        %6199 = vmatpush.bf16.msra.mxu0 0
        %6200 = vmatpush.bf16.msra.mxu0 0
        %6201 = vmatpush.bf16.msra.mxu0 0
        %6202 = vmatpush.bf16.msra.mxu0 0
        %6203 = vmatpush.bf16.msra.mxu0 0
        %6204 = vmatpush.bf16.msra.mxu0 0
        %6205 = vmatpush.bf16.msra.mxu0 0
        %6206 = vmatpush.bf16.msra.mxu0 %v6028
        %6207 = vmatmul.bf16.gmra.mxu0 %v5986
        %v6208 = vpop.f32.mrf.mxu0
        %v6209 = vadd.f32 0.0, %v6208
        %v6210 = vpop.f32.mrf.mxu0
        %6211 = vdwg.mxu0
        %v6212 = vadd.f32 %v5924, %v6040
        %v6213 = vadd.f32 %v5925, %v6053
        %v6214 = vadd.f32 %v5926, %v6066
        %v6215 = vadd.f32 %v5927, %v6079
        %v6216 = vadd.f32 %v5928, %v6092
        %v6217 = vadd.f32 %v5929, %v6105
        %v6218 = vadd.f32 %v5930, %v6118
        %v6219 = vadd.f32 %v5931, %v6131
        %v6220 = vadd.f32 %v5932, %v6144
        %v6221 = vadd.f32 %v5933, %v6157
        %v6222 = vadd.f32 %v5934, %v6170
        %v6223 = vadd.f32 %v5935, %v6183
        %v6224 = vadd.f32 %v5936, %v6196
        %v6225 = vadd.f32 %v5937, %v6209
        %v6226 = vld [vmem:[%s1 + $0xa8] sm:$0xff]
        %v6227 = vpack.c.bf16 %v6226, %v6226
        %6228 = vrot.lane.b32.xlu0 %v235, 84
        %v6229 = vpop.permute.xlu0 %6228
        %6230 = vrot.lane.b32.xlu0 %v236, 84
        %v6231 = vpop.permute.xlu0 %6230
        %6232 = vrot.lane.b32.xlu0 %v237, 84
        %v6233 = vpop.permute.xlu0 %6232
        %6234 = vrot.lane.b32.xlu0 %v238, 84
        %v6235 = vpop.permute.xlu0 %6234
        %6236 = vrot.lane.b32.xlu0 %v239, 84
        %v6237 = vpop.permute.xlu0 %6236
        %6238 = vrot.lane.b32.xlu0 %v240, 84
        %v6239 = vpop.permute.xlu0 %6238
        %6240 = vrot.lane.b32.xlu0 %v241, 84
        %v6241 = vpop.permute.xlu0 %6240
        %6242 = vrot.lane.b32.xlu0 %v242, 84
        %v6243 = vpop.permute.xlu0 %6242
        %6244 = vrot.lane.b32.xlu0 %v243, 84
        %v6245 = vpop.permute.xlu0 %6244
        %6246 = vrot.lane.b32.xlu0 %v244, 84
        %v6247 = vpop.permute.xlu0 %6246
        %6248 = vrot.lane.b32.xlu0 %v245, 84
        %v6249 = vpop.permute.xlu0 %6248
        %6250 = vrot.lane.b32.xlu0 %v246, 84
        %v6251 = vpop.permute.xlu0 %6250
        %6252 = vrot.lane.b32.xlu0 %v247, 84
        %v6253 = vpop.permute.xlu0 %6252
        %6254 = vrot.lane.b32.xlu0 %v2769, 84
        %v6255 = vpop.permute.xlu0 %6254
        %6256 = vrot.lane.b32.xlu0 %v5363, 84
        %v6257 = vpop.permute.xlu0 %6256
        %vm6258 = vcmask 687104
        %v6259 = vsel %vm6258, %v6229, %v6231
        %v6260 = vsel %vm6258, %v6231, %v6233
        %v6261 = vsel %vm6258, %v6233, %v6235
        %v6262 = vsel %vm6258, %v6235, %v6237
        %v6263 = vsel %vm6258, %v6237, %v6239
        %v6264 = vsel %vm6258, %v6239, %v6241
        %v6265 = vsel %vm6258, %v6241, %v6243
        %v6266 = vsel %vm6258, %v6243, %v6245
        %v6267 = vsel %vm6258, %v6245, %v6247
        %v6268 = vsel %vm6258, %v6247, %v6249
        %v6269 = vsel %vm6258, %v6249, %v6251
        %v6270 = vsel %vm6258, %v6251, %v6253
        %v6271 = vsel %vm6258, %v6253, %v6255
        %v6272 = vsel %vm6258, %v6255, %v6257
        %v6274 = vsel %vm293, %v6227, 0
        %v6277 = vsel %vm297, %v6259, 0
        %v6280 = vsel %vm297, %v6260, 0
        %v6283 = vsel %vm297, %v6261, 0
        %v6286 = vsel %vm297, %v6262, 0
        %v6289 = vsel %vm297, %v6263, 0
        %v6292 = vsel %vm297, %v6264, 0
        %v6295 = vsel %vm297, %v6265, 0
        %v6298 = vsel %vm297, %v6266, 0
        %v6301 = vsel %vm297, %v6267, 0
        %v6304 = vsel %vm297, %v6268, 0
        %v6307 = vsel %vm297, %v6269, 0
        %v6310 = vsel %vm297, %v6270, 0
        %v6313 = vsel %vm297, %v6271, 0
        %v6316 = vsel %vm297, %v6272, 0
        %6318 = vmatpush.bf16.msra.mxu0 0
        %6319 = vmatpush.bf16.msra.mxu0 0
        %6320 = vmatpush.bf16.msra.mxu0 0
        %6321 = vmatpush.bf16.msra.mxu0 0
        %6322 = vmatpush.bf16.msra.mxu0 0
        %6323 = vmatpush.bf16.msra.mxu0 0
        %6324 = vmatpush.bf16.msra.mxu0 0
        %6325 = vmatpush.bf16.msra.mxu0 %v6277
        %6326 = vmatmul.bf16.gmra.mxu0 %v6274
        %v6327 = vpop.f32.mrf.mxu0
        %v6328 = vadd.f32 0.0, %v6327
        %v6329 = vpop.f32.mrf.mxu0
        %6330 = vdwg.mxu0
        %6331 = vmatpush.bf16.msra.mxu0 0
        %6332 = vmatpush.bf16.msra.mxu0 0
        %6333 = vmatpush.bf16.msra.mxu0 0
        %6334 = vmatpush.bf16.msra.mxu0 0
        %6335 = vmatpush.bf16.msra.mxu0 0
        %6336 = vmatpush.bf16.msra.mxu0 0
        %6337 = vmatpush.bf16.msra.mxu0 0
        %6338 = vmatpush.bf16.msra.mxu0 %v6280
        %6339 = vmatmul.bf16.gmra.mxu0 %v6274
        %v6340 = vpop.f32.mrf.mxu0
        %v6341 = vadd.f32 0.0, %v6340
        %v6342 = vpop.f32.mrf.mxu0
        %6343 = vdwg.mxu0
        %6344 = vmatpush.bf16.msra.mxu0 0
        %6345 = vmatpush.bf16.msra.mxu0 0
        %6346 = vmatpush.bf16.msra.mxu0 0
        %6347 = vmatpush.bf16.msra.mxu0 0
        %6348 = vmatpush.bf16.msra.mxu0 0
        %6349 = vmatpush.bf16.msra.mxu0 0
        %6350 = vmatpush.bf16.msra.mxu0 0
        %6351 = vmatpush.bf16.msra.mxu0 %v6283
        %6352 = vmatmul.bf16.gmra.mxu0 %v6274
        %v6353 = vpop.f32.mrf.mxu0
        %v6354 = vadd.f32 0.0, %v6353
        %v6355 = vpop.f32.mrf.mxu0
        %6356 = vdwg.mxu0
        %6357 = vmatpush.bf16.msra.mxu0 0
        %6358 = vmatpush.bf16.msra.mxu0 0
        %6359 = vmatpush.bf16.msra.mxu0 0
        %6360 = vmatpush.bf16.msra.mxu0 0
        %6361 = vmatpush.bf16.msra.mxu0 0
        %6362 = vmatpush.bf16.msra.mxu0 0
        %6363 = vmatpush.bf16.msra.mxu0 0
        %6364 = vmatpush.bf16.msra.mxu0 %v6286
        %6365 = vmatmul.bf16.gmra.mxu0 %v6274
        %v6366 = vpop.f32.mrf.mxu0
        %v6367 = vadd.f32 0.0, %v6366
        %v6368 = vpop.f32.mrf.mxu0
        %6369 = vdwg.mxu0
        %6370 = vmatpush.bf16.msra.mxu0 0
        %6371 = vmatpush.bf16.msra.mxu0 0
        %6372 = vmatpush.bf16.msra.mxu0 0
        %6373 = vmatpush.bf16.msra.mxu0 0
        %6374 = vmatpush.bf16.msra.mxu0 0
        %6375 = vmatpush.bf16.msra.mxu0 0
        %6376 = vmatpush.bf16.msra.mxu0 0
        %6377 = vmatpush.bf16.msra.mxu0 %v6289
        %6378 = vmatmul.bf16.gmra.mxu0 %v6274
        %v6379 = vpop.f32.mrf.mxu0
        %v6380 = vadd.f32 0.0, %v6379
        %v6381 = vpop.f32.mrf.mxu0
        %6382 = vdwg.mxu0
        %6383 = vmatpush.bf16.msra.mxu0 0
        %6384 = vmatpush.bf16.msra.mxu0 0
        %6385 = vmatpush.bf16.msra.mxu0 0
        %6386 = vmatpush.bf16.msra.mxu0 0
        %6387 = vmatpush.bf16.msra.mxu0 0
        %6388 = vmatpush.bf16.msra.mxu0 0
        %6389 = vmatpush.bf16.msra.mxu0 0
        %6390 = vmatpush.bf16.msra.mxu0 %v6292
        %6391 = vmatmul.bf16.gmra.mxu0 %v6274
        %v6392 = vpop.f32.mrf.mxu0
        %v6393 = vadd.f32 0.0, %v6392
        %v6394 = vpop.f32.mrf.mxu0
        %6395 = vdwg.mxu0
        %6396 = vmatpush.bf16.msra.mxu0 0
        %6397 = vmatpush.bf16.msra.mxu0 0
        %6398 = vmatpush.bf16.msra.mxu0 0
        %6399 = vmatpush.bf16.msra.mxu0 0
        %6400 = vmatpush.bf16.msra.mxu0 0
        %6401 = vmatpush.bf16.msra.mxu0 0
        %6402 = vmatpush.bf16.msra.mxu0 0
        %6403 = vmatpush.bf16.msra.mxu0 %v6295
        %6404 = vmatmul.bf16.gmra.mxu0 %v6274
        %v6405 = vpop.f32.mrf.mxu0
        %v6406 = vadd.f32 0.0, %v6405
        %v6407 = vpop.f32.mrf.mxu0
        %6408 = vdwg.mxu0
        %6409 = vmatpush.bf16.msra.mxu0 0
        %6410 = vmatpush.bf16.msra.mxu0 0
        %6411 = vmatpush.bf16.msra.mxu0 0
        %6412 = vmatpush.bf16.msra.mxu0 0
        %6413 = vmatpush.bf16.msra.mxu0 0
        %6414 = vmatpush.bf16.msra.mxu0 0
        %6415 = vmatpush.bf16.msra.mxu0 0
        %6416 = vmatpush.bf16.msra.mxu0 %v6298
        %6417 = vmatmul.bf16.gmra.mxu0 %v6274
        %v6418 = vpop.f32.mrf.mxu0
        %v6419 = vadd.f32 0.0, %v6418
        %v6420 = vpop.f32.mrf.mxu0
        %6421 = vdwg.mxu0
        %6422 = vmatpush.bf16.msra.mxu0 0
        %6423 = vmatpush.bf16.msra.mxu0 0
        %6424 = vmatpush.bf16.msra.mxu0 0
        %6425 = vmatpush.bf16.msra.mxu0 0
        %6426 = vmatpush.bf16.msra.mxu0 0
        %6427 = vmatpush.bf16.msra.mxu0 0
        %6428 = vmatpush.bf16.msra.mxu0 0
        %6429 = vmatpush.bf16.msra.mxu0 %v6301
        %6430 = vmatmul.bf16.gmra.mxu0 %v6274
        %v6431 = vpop.f32.mrf.mxu0
        %v6432 = vadd.f32 0.0, %v6431
        %v6433 = vpop.f32.mrf.mxu0
        %6434 = vdwg.mxu0
        %6435 = vmatpush.bf16.msra.mxu0 0
        %6436 = vmatpush.bf16.msra.mxu0 0
        %6437 = vmatpush.bf16.msra.mxu0 0
        %6438 = vmatpush.bf16.msra.mxu0 0
        %6439 = vmatpush.bf16.msra.mxu0 0
        %6440 = vmatpush.bf16.msra.mxu0 0
        %6441 = vmatpush.bf16.msra.mxu0 0
        %6442 = vmatpush.bf16.msra.mxu0 %v6304
        %6443 = vmatmul.bf16.gmra.mxu0 %v6274
        %v6444 = vpop.f32.mrf.mxu0
        %v6445 = vadd.f32 0.0, %v6444
        %v6446 = vpop.f32.mrf.mxu0
        %6447 = vdwg.mxu0
        %6448 = vmatpush.bf16.msra.mxu0 0
        %6449 = vmatpush.bf16.msra.mxu0 0
        %6450 = vmatpush.bf16.msra.mxu0 0
        %6451 = vmatpush.bf16.msra.mxu0 0
        %6452 = vmatpush.bf16.msra.mxu0 0
        %6453 = vmatpush.bf16.msra.mxu0 0
        %6454 = vmatpush.bf16.msra.mxu0 0
        %6455 = vmatpush.bf16.msra.mxu0 %v6307
        %6456 = vmatmul.bf16.gmra.mxu0 %v6274
        %v6457 = vpop.f32.mrf.mxu0
        %v6458 = vadd.f32 0.0, %v6457
        %v6459 = vpop.f32.mrf.mxu0
        %6460 = vdwg.mxu0
        %6461 = vmatpush.bf16.msra.mxu0 0
        %6462 = vmatpush.bf16.msra.mxu0 0
        %6463 = vmatpush.bf16.msra.mxu0 0
        %6464 = vmatpush.bf16.msra.mxu0 0
        %6465 = vmatpush.bf16.msra.mxu0 0
        %6466 = vmatpush.bf16.msra.mxu0 0
        %6467 = vmatpush.bf16.msra.mxu0 0
        %6468 = vmatpush.bf16.msra.mxu0 %v6310
        %6469 = vmatmul.bf16.gmra.mxu0 %v6274
        %v6470 = vpop.f32.mrf.mxu0
        %v6471 = vadd.f32 0.0, %v6470
        %v6472 = vpop.f32.mrf.mxu0
        %6473 = vdwg.mxu0
        %6474 = vmatpush.bf16.msra.mxu0 0
        %6475 = vmatpush.bf16.msra.mxu0 0
        %6476 = vmatpush.bf16.msra.mxu0 0
        %6477 = vmatpush.bf16.msra.mxu0 0
        %6478 = vmatpush.bf16.msra.mxu0 0
        %6479 = vmatpush.bf16.msra.mxu0 0
        %6480 = vmatpush.bf16.msra.mxu0 0
        %6481 = vmatpush.bf16.msra.mxu0 %v6313
        %6482 = vmatmul.bf16.gmra.mxu0 %v6274
        %v6483 = vpop.f32.mrf.mxu0
        %v6484 = vadd.f32 0.0, %v6483
        %v6485 = vpop.f32.mrf.mxu0
        %6486 = vdwg.mxu0
        %6487 = vmatpush.bf16.msra.mxu0 0
        %6488 = vmatpush.bf16.msra.mxu0 0
        %6489 = vmatpush.bf16.msra.mxu0 0
        %6490 = vmatpush.bf16.msra.mxu0 0
        %6491 = vmatpush.bf16.msra.mxu0 0
        %6492 = vmatpush.bf16.msra.mxu0 0
        %6493 = vmatpush.bf16.msra.mxu0 0
        %6494 = vmatpush.bf16.msra.mxu0 %v6316
        %6495 = vmatmul.bf16.gmra.mxu0 %v6274
        %v6496 = vpop.f32.mrf.mxu0
        %v6497 = vadd.f32 0.0, %v6496
        %v6498 = vpop.f32.mrf.mxu0
        %6499 = vdwg.mxu0
        %v6500 = vadd.f32 %v6212, %v6328
        %v6501 = vadd.f32 %v6213, %v6341
        %v6502 = vadd.f32 %v6214, %v6354
        %v6503 = vadd.f32 %v6215, %v6367
        %v6504 = vadd.f32 %v6216, %v6380
        %v6505 = vadd.f32 %v6217, %v6393
        %v6506 = vadd.f32 %v6218, %v6406
        %v6507 = vadd.f32 %v6219, %v6419
        %v6508 = vadd.f32 %v6220, %v6432
        %v6509 = vadd.f32 %v6221, %v6445
        %v6510 = vadd.f32 %v6222, %v6458
        %v6511 = vadd.f32 %v6223, %v6471
        %v6512 = vadd.f32 %v6224, %v6484
        %v6513 = vadd.f32 %v6225, %v6497
        %v6514 = vld [vmem:[%s1 + $0xb0] sm:$0xff]
        %v6515 = vpack.c.bf16 %v6514, %v6514
        %6516 = vrot.lane.b32.xlu0 %v235, 83
        %v6517 = vpop.permute.xlu0 %6516
        %6518 = vrot.lane.b32.xlu0 %v236, 83
        %v6519 = vpop.permute.xlu0 %6518
        %6520 = vrot.lane.b32.xlu0 %v237, 83
        %v6521 = vpop.permute.xlu0 %6520
        %6522 = vrot.lane.b32.xlu0 %v238, 83
        %v6523 = vpop.permute.xlu0 %6522
        %6524 = vrot.lane.b32.xlu0 %v239, 83
        %v6525 = vpop.permute.xlu0 %6524
        %6526 = vrot.lane.b32.xlu0 %v240, 83
        %v6527 = vpop.permute.xlu0 %6526
        %6528 = vrot.lane.b32.xlu0 %v241, 83
        %v6529 = vpop.permute.xlu0 %6528
        %6530 = vrot.lane.b32.xlu0 %v242, 83
        %v6531 = vpop.permute.xlu0 %6530
        %6532 = vrot.lane.b32.xlu0 %v243, 83
        %v6533 = vpop.permute.xlu0 %6532
        %6534 = vrot.lane.b32.xlu0 %v244, 83
        %v6535 = vpop.permute.xlu0 %6534
        %6536 = vrot.lane.b32.xlu0 %v245, 83
        %v6537 = vpop.permute.xlu0 %6536
        %6538 = vrot.lane.b32.xlu0 %v246, 83
        %v6539 = vpop.permute.xlu0 %6538
        %6540 = vrot.lane.b32.xlu0 %v247, 83
        %v6541 = vpop.permute.xlu0 %6540
        %6542 = vrot.lane.b32.xlu0 %v2769, 83
        %v6543 = vpop.permute.xlu0 %6542
        %6544 = vrot.lane.b32.xlu0 %v5363, 83
        %v6545 = vpop.permute.xlu0 %6544
        %vm6546 = vcmask 678912
        %v6547 = vsel %vm6546, %v6517, %v6519
        %v6548 = vsel %vm6546, %v6519, %v6521
        %v6549 = vsel %vm6546, %v6521, %v6523
        %v6550 = vsel %vm6546, %v6523, %v6525
        %v6551 = vsel %vm6546, %v6525, %v6527
        %v6552 = vsel %vm6546, %v6527, %v6529
        %v6553 = vsel %vm6546, %v6529, %v6531
        %v6554 = vsel %vm6546, %v6531, %v6533
        %v6555 = vsel %vm6546, %v6533, %v6535
        %v6556 = vsel %vm6546, %v6535, %v6537
        %v6557 = vsel %vm6546, %v6537, %v6539
        %v6558 = vsel %vm6546, %v6539, %v6541
        %v6559 = vsel %vm6546, %v6541, %v6543
        %v6560 = vsel %vm6546, %v6543, %v6545
        %v6562 = vsel %vm293, %v6515, 0
        %v6565 = vsel %vm297, %v6547, 0
        %v6568 = vsel %vm297, %v6548, 0
        %v6571 = vsel %vm297, %v6549, 0
        %v6574 = vsel %vm297, %v6550, 0
        %v6577 = vsel %vm297, %v6551, 0
        %v6580 = vsel %vm297, %v6552, 0
        %v6583 = vsel %vm297, %v6553, 0
        %v6586 = vsel %vm297, %v6554, 0
        %v6589 = vsel %vm297, %v6555, 0
        %v6592 = vsel %vm297, %v6556, 0
        %v6595 = vsel %vm297, %v6557, 0
        %v6598 = vsel %vm297, %v6558, 0
        %v6601 = vsel %vm297, %v6559, 0
        %v6604 = vsel %vm297, %v6560, 0
        %6606 = vmatpush.bf16.msra.mxu0 0
        %6607 = vmatpush.bf16.msra.mxu0 0
        %6608 = vmatpush.bf16.msra.mxu0 0
        %6609 = vmatpush.bf16.msra.mxu0 0
        %6610 = vmatpush.bf16.msra.mxu0 0
        %6611 = vmatpush.bf16.msra.mxu0 0
        %6612 = vmatpush.bf16.msra.mxu0 0
        %6613 = vmatpush.bf16.msra.mxu0 %v6565
        %6614 = vmatmul.bf16.gmra.mxu0 %v6562
        %v6615 = vpop.f32.mrf.mxu0
        %v6616 = vadd.f32 0.0, %v6615
        %v6617 = vpop.f32.mrf.mxu0
        %6618 = vdwg.mxu0
        %6619 = vmatpush.bf16.msra.mxu0 0
        %6620 = vmatpush.bf16.msra.mxu0 0
        %6621 = vmatpush.bf16.msra.mxu0 0
        %6622 = vmatpush.bf16.msra.mxu0 0
        %6623 = vmatpush.bf16.msra.mxu0 0
        %6624 = vmatpush.bf16.msra.mxu0 0
        %6625 = vmatpush.bf16.msra.mxu0 0
        %6626 = vmatpush.bf16.msra.mxu0 %v6568
        %6627 = vmatmul.bf16.gmra.mxu0 %v6562
        %v6628 = vpop.f32.mrf.mxu0
        %v6629 = vadd.f32 0.0, %v6628
        %v6630 = vpop.f32.mrf.mxu0
        %6631 = vdwg.mxu0
        %6632 = vmatpush.bf16.msra.mxu0 0
        %6633 = vmatpush.bf16.msra.mxu0 0
        %6634 = vmatpush.bf16.msra.mxu0 0
        %6635 = vmatpush.bf16.msra.mxu0 0
        %6636 = vmatpush.bf16.msra.mxu0 0
        %6637 = vmatpush.bf16.msra.mxu0 0
        %6638 = vmatpush.bf16.msra.mxu0 0
        %6639 = vmatpush.bf16.msra.mxu0 %v6571
        %6640 = vmatmul.bf16.gmra.mxu0 %v6562
        %v6641 = vpop.f32.mrf.mxu0
        %v6642 = vadd.f32 0.0, %v6641
        %v6643 = vpop.f32.mrf.mxu0
        %6644 = vdwg.mxu0
        %6645 = vmatpush.bf16.msra.mxu0 0
        %6646 = vmatpush.bf16.msra.mxu0 0
        %6647 = vmatpush.bf16.msra.mxu0 0
        %6648 = vmatpush.bf16.msra.mxu0 0
        %6649 = vmatpush.bf16.msra.mxu0 0
        %6650 = vmatpush.bf16.msra.mxu0 0
        %6651 = vmatpush.bf16.msra.mxu0 0
        %6652 = vmatpush.bf16.msra.mxu0 %v6574
        %6653 = vmatmul.bf16.gmra.mxu0 %v6562
        %v6654 = vpop.f32.mrf.mxu0
        %v6655 = vadd.f32 0.0, %v6654
        %v6656 = vpop.f32.mrf.mxu0
        %6657 = vdwg.mxu0
        %6658 = vmatpush.bf16.msra.mxu0 0
        %6659 = vmatpush.bf16.msra.mxu0 0
        %6660 = vmatpush.bf16.msra.mxu0 0
        %6661 = vmatpush.bf16.msra.mxu0 0
        %6662 = vmatpush.bf16.msra.mxu0 0
        %6663 = vmatpush.bf16.msra.mxu0 0
        %6664 = vmatpush.bf16.msra.mxu0 0
        %6665 = vmatpush.bf16.msra.mxu0 %v6577
        %6666 = vmatmul.bf16.gmra.mxu0 %v6562
        %v6667 = vpop.f32.mrf.mxu0
        %v6668 = vadd.f32 0.0, %v6667
        %v6669 = vpop.f32.mrf.mxu0
        %6670 = vdwg.mxu0
        %6671 = vmatpush.bf16.msra.mxu0 0
        %6672 = vmatpush.bf16.msra.mxu0 0
        %6673 = vmatpush.bf16.msra.mxu0 0
        %6674 = vmatpush.bf16.msra.mxu0 0
        %6675 = vmatpush.bf16.msra.mxu0 0
        %6676 = vmatpush.bf16.msra.mxu0 0
        %6677 = vmatpush.bf16.msra.mxu0 0
        %6678 = vmatpush.bf16.msra.mxu0 %v6580
        %6679 = vmatmul.bf16.gmra.mxu0 %v6562
        %v6680 = vpop.f32.mrf.mxu0
        %v6681 = vadd.f32 0.0, %v6680
        %v6682 = vpop.f32.mrf.mxu0
        %6683 = vdwg.mxu0
        %6684 = vmatpush.bf16.msra.mxu0 0
        %6685 = vmatpush.bf16.msra.mxu0 0
        %6686 = vmatpush.bf16.msra.mxu0 0
        %6687 = vmatpush.bf16.msra.mxu0 0
        %6688 = vmatpush.bf16.msra.mxu0 0
        %6689 = vmatpush.bf16.msra.mxu0 0
        %6690 = vmatpush.bf16.msra.mxu0 0
        %6691 = vmatpush.bf16.msra.mxu0 %v6583
        %6692 = vmatmul.bf16.gmra.mxu0 %v6562
        %v6693 = vpop.f32.mrf.mxu0
        %v6694 = vadd.f32 0.0, %v6693
        %v6695 = vpop.f32.mrf.mxu0
        %6696 = vdwg.mxu0
        %6697 = vmatpush.bf16.msra.mxu0 0
        %6698 = vmatpush.bf16.msra.mxu0 0
        %6699 = vmatpush.bf16.msra.mxu0 0
        %6700 = vmatpush.bf16.msra.mxu0 0
        %6701 = vmatpush.bf16.msra.mxu0 0
        %6702 = vmatpush.bf16.msra.mxu0 0
        %6703 = vmatpush.bf16.msra.mxu0 0
        %6704 = vmatpush.bf16.msra.mxu0 %v6586
        %6705 = vmatmul.bf16.gmra.mxu0 %v6562
        %v6706 = vpop.f32.mrf.mxu0
        %v6707 = vadd.f32 0.0, %v6706
        %v6708 = vpop.f32.mrf.mxu0
        %6709 = vdwg.mxu0
        %6710 = vmatpush.bf16.msra.mxu0 0
        %6711 = vmatpush.bf16.msra.mxu0 0
        %6712 = vmatpush.bf16.msra.mxu0 0
        %6713 = vmatpush.bf16.msra.mxu0 0
        %6714 = vmatpush.bf16.msra.mxu0 0
        %6715 = vmatpush.bf16.msra.mxu0 0
        %6716 = vmatpush.bf16.msra.mxu0 0
        %6717 = vmatpush.bf16.msra.mxu0 %v6589
        %6718 = vmatmul.bf16.gmra.mxu0 %v6562
        %v6719 = vpop.f32.mrf.mxu0
        %v6720 = vadd.f32 0.0, %v6719
        %v6721 = vpop.f32.mrf.mxu0
        %6722 = vdwg.mxu0
        %6723 = vmatpush.bf16.msra.mxu0 0
        %6724 = vmatpush.bf16.msra.mxu0 0
        %6725 = vmatpush.bf16.msra.mxu0 0
        %6726 = vmatpush.bf16.msra.mxu0 0
        %6727 = vmatpush.bf16.msra.mxu0 0
        %6728 = vmatpush.bf16.msra.mxu0 0
        %6729 = vmatpush.bf16.msra.mxu0 0
        %6730 = vmatpush.bf16.msra.mxu0 %v6592
        %6731 = vmatmul.bf16.gmra.mxu0 %v6562
        %v6732 = vpop.f32.mrf.mxu0
        %v6733 = vadd.f32 0.0, %v6732
        %v6734 = vpop.f32.mrf.mxu0
        %6735 = vdwg.mxu0
        %6736 = vmatpush.bf16.msra.mxu0 0
        %6737 = vmatpush.bf16.msra.mxu0 0
        %6738 = vmatpush.bf16.msra.mxu0 0
        %6739 = vmatpush.bf16.msra.mxu0 0
        %6740 = vmatpush.bf16.msra.mxu0 0
        %6741 = vmatpush.bf16.msra.mxu0 0
        %6742 = vmatpush.bf16.msra.mxu0 0
        %6743 = vmatpush.bf16.msra.mxu0 %v6595
        %6744 = vmatmul.bf16.gmra.mxu0 %v6562
        %v6745 = vpop.f32.mrf.mxu0
        %v6746 = vadd.f32 0.0, %v6745
        %v6747 = vpop.f32.mrf.mxu0
        %6748 = vdwg.mxu0
        %6749 = vmatpush.bf16.msra.mxu0 0
        %6750 = vmatpush.bf16.msra.mxu0 0
        %6751 = vmatpush.bf16.msra.mxu0 0
        %6752 = vmatpush.bf16.msra.mxu0 0
        %6753 = vmatpush.bf16.msra.mxu0 0
        %6754 = vmatpush.bf16.msra.mxu0 0
        %6755 = vmatpush.bf16.msra.mxu0 0
        %6756 = vmatpush.bf16.msra.mxu0 %v6598
        %6757 = vmatmul.bf16.gmra.mxu0 %v6562
        %v6758 = vpop.f32.mrf.mxu0
        %v6759 = vadd.f32 0.0, %v6758
        %v6760 = vpop.f32.mrf.mxu0
        %6761 = vdwg.mxu0
        %6762 = vmatpush.bf16.msra.mxu0 0
        %6763 = vmatpush.bf16.msra.mxu0 0
        %6764 = vmatpush.bf16.msra.mxu0 0
        %6765 = vmatpush.bf16.msra.mxu0 0
        %6766 = vmatpush.bf16.msra.mxu0 0
        %6767 = vmatpush.bf16.msra.mxu0 0
        %6768 = vmatpush.bf16.msra.mxu0 0
        %6769 = vmatpush.bf16.msra.mxu0 %v6601
        %6770 = vmatmul.bf16.gmra.mxu0 %v6562
        %v6771 = vpop.f32.mrf.mxu0
        %v6772 = vadd.f32 0.0, %v6771
        %v6773 = vpop.f32.mrf.mxu0
        %6774 = vdwg.mxu0
        %6775 = vmatpush.bf16.msra.mxu0 0
        %6776 = vmatpush.bf16.msra.mxu0 0
        %6777 = vmatpush.bf16.msra.mxu0 0
        %6778 = vmatpush.bf16.msra.mxu0 0
        %6779 = vmatpush.bf16.msra.mxu0 0
        %6780 = vmatpush.bf16.msra.mxu0 0
        %6781 = vmatpush.bf16.msra.mxu0 0
        %6782 = vmatpush.bf16.msra.mxu0 %v6604
        %6783 = vmatmul.bf16.gmra.mxu0 %v6562
        %v6784 = vpop.f32.mrf.mxu0
        %v6785 = vadd.f32 0.0, %v6784
        %v6786 = vpop.f32.mrf.mxu0
        %6787 = vdwg.mxu0
        %v6788 = vadd.f32 %v6500, %v6616
        %v6789 = vadd.f32 %v6501, %v6629
        %v6790 = vadd.f32 %v6502, %v6642
        %v6791 = vadd.f32 %v6503, %v6655
        %v6792 = vadd.f32 %v6504, %v6668
        %v6793 = vadd.f32 %v6505, %v6681
        %v6794 = vadd.f32 %v6506, %v6694
        %v6795 = vadd.f32 %v6507, %v6707
        %v6796 = vadd.f32 %v6508, %v6720
        %v6797 = vadd.f32 %v6509, %v6733
        %v6798 = vadd.f32 %v6510, %v6746
        %v6799 = vadd.f32 %v6511, %v6759
        %v6800 = vadd.f32 %v6512, %v6772
        %v6801 = vadd.f32 %v6513, %v6785
        %v6802 = vld [vmem:[%s1 + $0xb8] sm:$0xff]
        %v6803 = vpack.c.bf16 %v6802, %v6802
        %6804 = vrot.lane.b32.xlu0 %v235, 82
        %v6805 = vpop.permute.xlu0 %6804
        %6806 = vrot.lane.b32.xlu0 %v236, 82
        %v6807 = vpop.permute.xlu0 %6806
        %6808 = vrot.lane.b32.xlu0 %v237, 82
        %v6809 = vpop.permute.xlu0 %6808
        %6810 = vrot.lane.b32.xlu0 %v238, 82
        %v6811 = vpop.permute.xlu0 %6810
        %6812 = vrot.lane.b32.xlu0 %v239, 82
        %v6813 = vpop.permute.xlu0 %6812
        %6814 = vrot.lane.b32.xlu0 %v240, 82
        %v6815 = vpop.permute.xlu0 %6814
        %6816 = vrot.lane.b32.xlu0 %v241, 82
        %v6817 = vpop.permute.xlu0 %6816
        %6818 = vrot.lane.b32.xlu0 %v242, 82
        %v6819 = vpop.permute.xlu0 %6818
        %6820 = vrot.lane.b32.xlu0 %v243, 82
        %v6821 = vpop.permute.xlu0 %6820
        %6822 = vrot.lane.b32.xlu0 %v244, 82
        %v6823 = vpop.permute.xlu0 %6822
        %6824 = vrot.lane.b32.xlu0 %v245, 82
        %v6825 = vpop.permute.xlu0 %6824
        %6826 = vrot.lane.b32.xlu0 %v246, 82
        %v6827 = vpop.permute.xlu0 %6826
        %6828 = vrot.lane.b32.xlu0 %v247, 82
        %v6829 = vpop.permute.xlu0 %6828
        %6830 = vrot.lane.b32.xlu0 %v2769, 82
        %v6831 = vpop.permute.xlu0 %6830
        %6832 = vrot.lane.b32.xlu0 %v5363, 82
        %v6833 = vpop.permute.xlu0 %6832
        %vm6834 = vcmask 670720
        %v6835 = vsel %vm6834, %v6805, %v6807
        %v6836 = vsel %vm6834, %v6807, %v6809
        %v6837 = vsel %vm6834, %v6809, %v6811
        %v6838 = vsel %vm6834, %v6811, %v6813
        %v6839 = vsel %vm6834, %v6813, %v6815
        %v6840 = vsel %vm6834, %v6815, %v6817
        %v6841 = vsel %vm6834, %v6817, %v6819
        %v6842 = vsel %vm6834, %v6819, %v6821
        %v6843 = vsel %vm6834, %v6821, %v6823
        %v6844 = vsel %vm6834, %v6823, %v6825
        %v6845 = vsel %vm6834, %v6825, %v6827
        %v6846 = vsel %vm6834, %v6827, %v6829
        %v6847 = vsel %vm6834, %v6829, %v6831
        %v6848 = vsel %vm6834, %v6831, %v6833
        %v6850 = vsel %vm293, %v6803, 0
        %v6853 = vsel %vm297, %v6835, 0
        %v6856 = vsel %vm297, %v6836, 0
        %v6859 = vsel %vm297, %v6837, 0
        %v6862 = vsel %vm297, %v6838, 0
        %v6865 = vsel %vm297, %v6839, 0
        %v6868 = vsel %vm297, %v6840, 0
        %v6871 = vsel %vm297, %v6841, 0
        %v6874 = vsel %vm297, %v6842, 0
        %v6877 = vsel %vm297, %v6843, 0
        %v6880 = vsel %vm297, %v6844, 0
        %v6883 = vsel %vm297, %v6845, 0
        %v6886 = vsel %vm297, %v6846, 0
        %v6889 = vsel %vm297, %v6847, 0
        %v6892 = vsel %vm297, %v6848, 0
        %6894 = vmatpush.bf16.msra.mxu0 0
        %6895 = vmatpush.bf16.msra.mxu0 0
        %6896 = vmatpush.bf16.msra.mxu0 0
        %6897 = vmatpush.bf16.msra.mxu0 0
        %6898 = vmatpush.bf16.msra.mxu0 0
        %6899 = vmatpush.bf16.msra.mxu0 0
        %6900 = vmatpush.bf16.msra.mxu0 0
        %6901 = vmatpush.bf16.msra.mxu0 %v6853
        %6902 = vmatmul.bf16.gmra.mxu0 %v6850
        %v6903 = vpop.f32.mrf.mxu0
        %v6904 = vadd.f32 0.0, %v6903
        %v6905 = vpop.f32.mrf.mxu0
        %6906 = vdwg.mxu0
        %6907 = vmatpush.bf16.msra.mxu0 0
        %6908 = vmatpush.bf16.msra.mxu0 0
        %6909 = vmatpush.bf16.msra.mxu0 0
        %6910 = vmatpush.bf16.msra.mxu0 0
        %6911 = vmatpush.bf16.msra.mxu0 0
        %6912 = vmatpush.bf16.msra.mxu0 0
        %6913 = vmatpush.bf16.msra.mxu0 0
        %6914 = vmatpush.bf16.msra.mxu0 %v6856
        %6915 = vmatmul.bf16.gmra.mxu0 %v6850
        %v6916 = vpop.f32.mrf.mxu0
        %v6917 = vadd.f32 0.0, %v6916
        %v6918 = vpop.f32.mrf.mxu0
        %6919 = vdwg.mxu0
        %6920 = vmatpush.bf16.msra.mxu0 0
        %6921 = vmatpush.bf16.msra.mxu0 0
        %6922 = vmatpush.bf16.msra.mxu0 0
        %6923 = vmatpush.bf16.msra.mxu0 0
        %6924 = vmatpush.bf16.msra.mxu0 0
        %6925 = vmatpush.bf16.msra.mxu0 0
        %6926 = vmatpush.bf16.msra.mxu0 0
        %6927 = vmatpush.bf16.msra.mxu0 %v6859
        %6928 = vmatmul.bf16.gmra.mxu0 %v6850
        %v6929 = vpop.f32.mrf.mxu0
        %v6930 = vadd.f32 0.0, %v6929
        %v6931 = vpop.f32.mrf.mxu0
        %6932 = vdwg.mxu0
        %6933 = vmatpush.bf16.msra.mxu0 0
        %6934 = vmatpush.bf16.msra.mxu0 0
        %6935 = vmatpush.bf16.msra.mxu0 0
        %6936 = vmatpush.bf16.msra.mxu0 0
        %6937 = vmatpush.bf16.msra.mxu0 0
        %6938 = vmatpush.bf16.msra.mxu0 0
        %6939 = vmatpush.bf16.msra.mxu0 0
        %6940 = vmatpush.bf16.msra.mxu0 %v6862
        %6941 = vmatmul.bf16.gmra.mxu0 %v6850
        %v6942 = vpop.f32.mrf.mxu0
        %v6943 = vadd.f32 0.0, %v6942
        %v6944 = vpop.f32.mrf.mxu0
        %6945 = vdwg.mxu0
        %6946 = vmatpush.bf16.msra.mxu0 0
        %6947 = vmatpush.bf16.msra.mxu0 0
        %6948 = vmatpush.bf16.msra.mxu0 0
        %6949 = vmatpush.bf16.msra.mxu0 0
        %6950 = vmatpush.bf16.msra.mxu0 0
        %6951 = vmatpush.bf16.msra.mxu0 0
        %6952 = vmatpush.bf16.msra.mxu0 0
        %6953 = vmatpush.bf16.msra.mxu0 %v6865
        %6954 = vmatmul.bf16.gmra.mxu0 %v6850
        %v6955 = vpop.f32.mrf.mxu0
        %v6956 = vadd.f32 0.0, %v6955
        %v6957 = vpop.f32.mrf.mxu0
        %6958 = vdwg.mxu0
        %6959 = vmatpush.bf16.msra.mxu0 0
        %6960 = vmatpush.bf16.msra.mxu0 0
        %6961 = vmatpush.bf16.msra.mxu0 0
        %6962 = vmatpush.bf16.msra.mxu0 0
        %6963 = vmatpush.bf16.msra.mxu0 0
        %6964 = vmatpush.bf16.msra.mxu0 0
        %6965 = vmatpush.bf16.msra.mxu0 0
        %6966 = vmatpush.bf16.msra.mxu0 %v6868
        %6967 = vmatmul.bf16.gmra.mxu0 %v6850
        %v6968 = vpop.f32.mrf.mxu0
        %v6969 = vadd.f32 0.0, %v6968
        %v6970 = vpop.f32.mrf.mxu0
        %6971 = vdwg.mxu0
        %6972 = vmatpush.bf16.msra.mxu0 0
        %6973 = vmatpush.bf16.msra.mxu0 0
        %6974 = vmatpush.bf16.msra.mxu0 0
        %6975 = vmatpush.bf16.msra.mxu0 0
        %6976 = vmatpush.bf16.msra.mxu0 0
        %6977 = vmatpush.bf16.msra.mxu0 0
        %6978 = vmatpush.bf16.msra.mxu0 0
        %6979 = vmatpush.bf16.msra.mxu0 %v6871
        %6980 = vmatmul.bf16.gmra.mxu0 %v6850
        %v6981 = vpop.f32.mrf.mxu0
        %v6982 = vadd.f32 0.0, %v6981
        %v6983 = vpop.f32.mrf.mxu0
        %6984 = vdwg.mxu0
        %6985 = vmatpush.bf16.msra.mxu0 0
        %6986 = vmatpush.bf16.msra.mxu0 0
        %6987 = vmatpush.bf16.msra.mxu0 0
        %6988 = vmatpush.bf16.msra.mxu0 0
        %6989 = vmatpush.bf16.msra.mxu0 0
        %6990 = vmatpush.bf16.msra.mxu0 0
        %6991 = vmatpush.bf16.msra.mxu0 0
        %6992 = vmatpush.bf16.msra.mxu0 %v6874
        %6993 = vmatmul.bf16.gmra.mxu0 %v6850
        %v6994 = vpop.f32.mrf.mxu0
        %v6995 = vadd.f32 0.0, %v6994
        %v6996 = vpop.f32.mrf.mxu0
        %6997 = vdwg.mxu0
        %6998 = vmatpush.bf16.msra.mxu0 0
        %6999 = vmatpush.bf16.msra.mxu0 0
        %7000 = vmatpush.bf16.msra.mxu0 0
        %7001 = vmatpush.bf16.msra.mxu0 0
        %7002 = vmatpush.bf16.msra.mxu0 0
        %7003 = vmatpush.bf16.msra.mxu0 0
        %7004 = vmatpush.bf16.msra.mxu0 0
        %7005 = vmatpush.bf16.msra.mxu0 %v6877
        %7006 = vmatmul.bf16.gmra.mxu0 %v6850
        %v7007 = vpop.f32.mrf.mxu0
        %v7008 = vadd.f32 0.0, %v7007
        %v7009 = vpop.f32.mrf.mxu0
        %7010 = vdwg.mxu0
        %7011 = vmatpush.bf16.msra.mxu0 0
        %7012 = vmatpush.bf16.msra.mxu0 0
        %7013 = vmatpush.bf16.msra.mxu0 0
        %7014 = vmatpush.bf16.msra.mxu0 0
        %7015 = vmatpush.bf16.msra.mxu0 0
        %7016 = vmatpush.bf16.msra.mxu0 0
        %7017 = vmatpush.bf16.msra.mxu0 0
        %7018 = vmatpush.bf16.msra.mxu0 %v6880
        %7019 = vmatmul.bf16.gmra.mxu0 %v6850
        %v7020 = vpop.f32.mrf.mxu0
        %v7021 = vadd.f32 0.0, %v7020
        %v7022 = vpop.f32.mrf.mxu0
        %7023 = vdwg.mxu0
        %7024 = vmatpush.bf16.msra.mxu0 0
        %7025 = vmatpush.bf16.msra.mxu0 0
        %7026 = vmatpush.bf16.msra.mxu0 0
        %7027 = vmatpush.bf16.msra.mxu0 0
        %7028 = vmatpush.bf16.msra.mxu0 0
        %7029 = vmatpush.bf16.msra.mxu0 0
        %7030 = vmatpush.bf16.msra.mxu0 0
        %7031 = vmatpush.bf16.msra.mxu0 %v6883
        %7032 = vmatmul.bf16.gmra.mxu0 %v6850
        %v7033 = vpop.f32.mrf.mxu0
        %v7034 = vadd.f32 0.0, %v7033
        %v7035 = vpop.f32.mrf.mxu0
        %7036 = vdwg.mxu0
        %7037 = vmatpush.bf16.msra.mxu0 0
        %7038 = vmatpush.bf16.msra.mxu0 0
        %7039 = vmatpush.bf16.msra.mxu0 0
        %7040 = vmatpush.bf16.msra.mxu0 0
        %7041 = vmatpush.bf16.msra.mxu0 0
        %7042 = vmatpush.bf16.msra.mxu0 0
        %7043 = vmatpush.bf16.msra.mxu0 0
        %7044 = vmatpush.bf16.msra.mxu0 %v6886
        %7045 = vmatmul.bf16.gmra.mxu0 %v6850
        %v7046 = vpop.f32.mrf.mxu0
        %v7047 = vadd.f32 0.0, %v7046
        %v7048 = vpop.f32.mrf.mxu0
        %7049 = vdwg.mxu0
        %7050 = vmatpush.bf16.msra.mxu0 0
        %7051 = vmatpush.bf16.msra.mxu0 0
        %7052 = vmatpush.bf16.msra.mxu0 0
        %7053 = vmatpush.bf16.msra.mxu0 0
        %7054 = vmatpush.bf16.msra.mxu0 0
        %7055 = vmatpush.bf16.msra.mxu0 0
        %7056 = vmatpush.bf16.msra.mxu0 0
        %7057 = vmatpush.bf16.msra.mxu0 %v6889
        %7058 = vmatmul.bf16.gmra.mxu0 %v6850
        %v7059 = vpop.f32.mrf.mxu0
        %v7060 = vadd.f32 0.0, %v7059
        %v7061 = vpop.f32.mrf.mxu0
        %7062 = vdwg.mxu0
        %7063 = vmatpush.bf16.msra.mxu0 0
        %7064 = vmatpush.bf16.msra.mxu0 0
        %7065 = vmatpush.bf16.msra.mxu0 0
        %7066 = vmatpush.bf16.msra.mxu0 0
        %7067 = vmatpush.bf16.msra.mxu0 0
        %7068 = vmatpush.bf16.msra.mxu0 0
        %7069 = vmatpush.bf16.msra.mxu0 0
        %7070 = vmatpush.bf16.msra.mxu0 %v6892
        %7071 = vmatmul.bf16.gmra.mxu0 %v6850
        %v7072 = vpop.f32.mrf.mxu0
        %v7073 = vadd.f32 0.0, %v7072
        %v7074 = vpop.f32.mrf.mxu0
        %7075 = vdwg.mxu0
        %v7076 = vadd.f32 %v6788, %v6904
        %v7077 = vadd.f32 %v6789, %v6917
        %v7078 = vadd.f32 %v6790, %v6930
        %v7079 = vadd.f32 %v6791, %v6943
        %v7080 = vadd.f32 %v6792, %v6956
        %v7081 = vadd.f32 %v6793, %v6969
        %v7082 = vadd.f32 %v6794, %v6982
        %v7083 = vadd.f32 %v6795, %v6995
        %v7084 = vadd.f32 %v6796, %v7008
        %v7085 = vadd.f32 %v6797, %v7021
        %v7086 = vadd.f32 %v6798, %v7034
        %v7087 = vadd.f32 %v6799, %v7047
        %v7088 = vadd.f32 %v6800, %v7060
        %v7089 = vadd.f32 %v6801, %v7073
        %v7090 = vld [vmem:[%s1 + $0xc0] sm:$0xff]
        %v7091 = vpack.c.bf16 %v7090, %v7090
        %7092 = vrot.lane.b32.xlu0 %v235, 72
        %v7093 = vpop.permute.xlu0 %7092
        %7094 = vrot.lane.b32.xlu0 %v236, 72
        %v7095 = vpop.permute.xlu0 %7094
        %7096 = vrot.lane.b32.xlu0 %v237, 72
        %v7097 = vpop.permute.xlu0 %7096
        %7098 = vrot.lane.b32.xlu0 %v238, 72
        %v7099 = vpop.permute.xlu0 %7098
        %7100 = vrot.lane.b32.xlu0 %v239, 72
        %v7101 = vpop.permute.xlu0 %7100
        %7102 = vrot.lane.b32.xlu0 %v240, 72
        %v7103 = vpop.permute.xlu0 %7102
        %7104 = vrot.lane.b32.xlu0 %v241, 72
        %v7105 = vpop.permute.xlu0 %7104
        %7106 = vrot.lane.b32.xlu0 %v242, 72
        %v7107 = vpop.permute.xlu0 %7106
        %7108 = vrot.lane.b32.xlu0 %v243, 72
        %v7109 = vpop.permute.xlu0 %7108
        %7110 = vrot.lane.b32.xlu0 %v244, 72
        %v7111 = vpop.permute.xlu0 %7110
        %7112 = vrot.lane.b32.xlu0 %v245, 72
        %v7113 = vpop.permute.xlu0 %7112
        %7114 = vrot.lane.b32.xlu0 %v246, 72
        %v7115 = vpop.permute.xlu0 %7114
        %7116 = vrot.lane.b32.xlu0 %v247, 72
        %v7117 = vpop.permute.xlu0 %7116
        %7118 = vrot.lane.b32.xlu0 %v2769, 72
        %v7119 = vpop.permute.xlu0 %7118
        %7120 = vrot.lane.b32.xlu0 %v5363, 72
        %v7121 = vpop.permute.xlu0 %7120
        %vm7122 = vcmask 588800
        %v7123 = vsel %vm7122, %v7093, %v7095
        %v7124 = vsel %vm7122, %v7095, %v7097
        %v7125 = vsel %vm7122, %v7097, %v7099
        %v7126 = vsel %vm7122, %v7099, %v7101
        %v7127 = vsel %vm7122, %v7101, %v7103
        %v7128 = vsel %vm7122, %v7103, %v7105
        %v7129 = vsel %vm7122, %v7105, %v7107
        %v7130 = vsel %vm7122, %v7107, %v7109
        %v7131 = vsel %vm7122, %v7109, %v7111
        %v7132 = vsel %vm7122, %v7111, %v7113
        %v7133 = vsel %vm7122, %v7113, %v7115
        %v7134 = vsel %vm7122, %v7115, %v7117
        %v7135 = vsel %vm7122, %v7117, %v7119
        %v7136 = vsel %vm7122, %v7119, %v7121
        %v7138 = vsel %vm293, %v7091, 0
        %v7141 = vsel %vm297, %v7123, 0
        %v7144 = vsel %vm297, %v7124, 0
        %v7147 = vsel %vm297, %v7125, 0
        %v7150 = vsel %vm297, %v7126, 0
        %v7153 = vsel %vm297, %v7127, 0
        %v7156 = vsel %vm297, %v7128, 0
        %v7159 = vsel %vm297, %v7129, 0
        %v7162 = vsel %vm297, %v7130, 0
        %v7165 = vsel %vm297, %v7131, 0
        %v7168 = vsel %vm297, %v7132, 0
        %v7171 = vsel %vm297, %v7133, 0
        %v7174 = vsel %vm297, %v7134, 0
        %v7177 = vsel %vm297, %v7135, 0
        %v7180 = vsel %vm297, %v7136, 0
        %7182 = vmatpush.bf16.msra.mxu0 0
        %7183 = vmatpush.bf16.msra.mxu0 0
        %7184 = vmatpush.bf16.msra.mxu0 0
        %7185 = vmatpush.bf16.msra.mxu0 0
        %7186 = vmatpush.bf16.msra.mxu0 0
        %7187 = vmatpush.bf16.msra.mxu0 0
        %7188 = vmatpush.bf16.msra.mxu0 0
        %7189 = vmatpush.bf16.msra.mxu0 %v7141
        %7190 = vmatmul.bf16.gmra.mxu0 %v7138
        %v7191 = vpop.f32.mrf.mxu0
        %v7192 = vadd.f32 0.0, %v7191
        %v7193 = vpop.f32.mrf.mxu0
        %7194 = vdwg.mxu0
        %7195 = vmatpush.bf16.msra.mxu0 0
        %7196 = vmatpush.bf16.msra.mxu0 0
        %7197 = vmatpush.bf16.msra.mxu0 0
        %7198 = vmatpush.bf16.msra.mxu0 0
        %7199 = vmatpush.bf16.msra.mxu0 0
        %7200 = vmatpush.bf16.msra.mxu0 0
        %7201 = vmatpush.bf16.msra.mxu0 0
        %7202 = vmatpush.bf16.msra.mxu0 %v7144
        %7203 = vmatmul.bf16.gmra.mxu0 %v7138
        %v7204 = vpop.f32.mrf.mxu0
        %v7205 = vadd.f32 0.0, %v7204
        %v7206 = vpop.f32.mrf.mxu0
        %7207 = vdwg.mxu0
        %7208 = vmatpush.bf16.msra.mxu0 0
        %7209 = vmatpush.bf16.msra.mxu0 0
        %7210 = vmatpush.bf16.msra.mxu0 0
        %7211 = vmatpush.bf16.msra.mxu0 0
        %7212 = vmatpush.bf16.msra.mxu0 0
        %7213 = vmatpush.bf16.msra.mxu0 0
        %7214 = vmatpush.bf16.msra.mxu0 0
        %7215 = vmatpush.bf16.msra.mxu0 %v7147
        %7216 = vmatmul.bf16.gmra.mxu0 %v7138
        %v7217 = vpop.f32.mrf.mxu0
        %v7218 = vadd.f32 0.0, %v7217
        %v7219 = vpop.f32.mrf.mxu0
        %7220 = vdwg.mxu0
        %7221 = vmatpush.bf16.msra.mxu0 0
        %7222 = vmatpush.bf16.msra.mxu0 0
        %7223 = vmatpush.bf16.msra.mxu0 0
        %7224 = vmatpush.bf16.msra.mxu0 0
        %7225 = vmatpush.bf16.msra.mxu0 0
        %7226 = vmatpush.bf16.msra.mxu0 0
        %7227 = vmatpush.bf16.msra.mxu0 0
        %7228 = vmatpush.bf16.msra.mxu0 %v7150
        %7229 = vmatmul.bf16.gmra.mxu0 %v7138
        %v7230 = vpop.f32.mrf.mxu0
        %v7231 = vadd.f32 0.0, %v7230
        %v7232 = vpop.f32.mrf.mxu0
        %7233 = vdwg.mxu0
        %7234 = vmatpush.bf16.msra.mxu0 0
        %7235 = vmatpush.bf16.msra.mxu0 0
        %7236 = vmatpush.bf16.msra.mxu0 0
        %7237 = vmatpush.bf16.msra.mxu0 0
        %7238 = vmatpush.bf16.msra.mxu0 0
        %7239 = vmatpush.bf16.msra.mxu0 0
        %7240 = vmatpush.bf16.msra.mxu0 0
        %7241 = vmatpush.bf16.msra.mxu0 %v7153
        %7242 = vmatmul.bf16.gmra.mxu0 %v7138
        %v7243 = vpop.f32.mrf.mxu0
        %v7244 = vadd.f32 0.0, %v7243
        %v7245 = vpop.f32.mrf.mxu0
        %7246 = vdwg.mxu0
        %7247 = vmatpush.bf16.msra.mxu0 0
        %7248 = vmatpush.bf16.msra.mxu0 0
        %7249 = vmatpush.bf16.msra.mxu0 0
        %7250 = vmatpush.bf16.msra.mxu0 0
        %7251 = vmatpush.bf16.msra.mxu0 0
        %7252 = vmatpush.bf16.msra.mxu0 0
        %7253 = vmatpush.bf16.msra.mxu0 0
        %7254 = vmatpush.bf16.msra.mxu0 %v7156
        %7255 = vmatmul.bf16.gmra.mxu0 %v7138
        %v7256 = vpop.f32.mrf.mxu0
        %v7257 = vadd.f32 0.0, %v7256
        %v7258 = vpop.f32.mrf.mxu0
        %7259 = vdwg.mxu0
        %7260 = vmatpush.bf16.msra.mxu0 0
        %7261 = vmatpush.bf16.msra.mxu0 0
        %7262 = vmatpush.bf16.msra.mxu0 0
        %7263 = vmatpush.bf16.msra.mxu0 0
        %7264 = vmatpush.bf16.msra.mxu0 0
        %7265 = vmatpush.bf16.msra.mxu0 0
        %7266 = vmatpush.bf16.msra.mxu0 0
        %7267 = vmatpush.bf16.msra.mxu0 %v7159
        %7268 = vmatmul.bf16.gmra.mxu0 %v7138
        %v7269 = vpop.f32.mrf.mxu0
        %v7270 = vadd.f32 0.0, %v7269
        %v7271 = vpop.f32.mrf.mxu0
        %7272 = vdwg.mxu0
        %7273 = vmatpush.bf16.msra.mxu0 0
        %7274 = vmatpush.bf16.msra.mxu0 0
        %7275 = vmatpush.bf16.msra.mxu0 0
        %7276 = vmatpush.bf16.msra.mxu0 0
        %7277 = vmatpush.bf16.msra.mxu0 0
        %7278 = vmatpush.bf16.msra.mxu0 0
        %7279 = vmatpush.bf16.msra.mxu0 0
        %7280 = vmatpush.bf16.msra.mxu0 %v7162
        %7281 = vmatmul.bf16.gmra.mxu0 %v7138
        %v7282 = vpop.f32.mrf.mxu0
        %v7283 = vadd.f32 0.0, %v7282
        %v7284 = vpop.f32.mrf.mxu0
        %7285 = vdwg.mxu0
        %7286 = vmatpush.bf16.msra.mxu0 0
        %7287 = vmatpush.bf16.msra.mxu0 0
        %7288 = vmatpush.bf16.msra.mxu0 0
        %7289 = vmatpush.bf16.msra.mxu0 0
        %7290 = vmatpush.bf16.msra.mxu0 0
        %7291 = vmatpush.bf16.msra.mxu0 0
        %7292 = vmatpush.bf16.msra.mxu0 0
        %7293 = vmatpush.bf16.msra.mxu0 %v7165
        %7294 = vmatmul.bf16.gmra.mxu0 %v7138
        %v7295 = vpop.f32.mrf.mxu0
        %v7296 = vadd.f32 0.0, %v7295
        %v7297 = vpop.f32.mrf.mxu0
        %7298 = vdwg.mxu0
        %7299 = vmatpush.bf16.msra.mxu0 0
        %7300 = vmatpush.bf16.msra.mxu0 0
        %7301 = vmatpush.bf16.msra.mxu0 0
        %7302 = vmatpush.bf16.msra.mxu0 0
        %7303 = vmatpush.bf16.msra.mxu0 0
        %7304 = vmatpush.bf16.msra.mxu0 0
        %7305 = vmatpush.bf16.msra.mxu0 0
        %7306 = vmatpush.bf16.msra.mxu0 %v7168
        %7307 = vmatmul.bf16.gmra.mxu0 %v7138
        %v7308 = vpop.f32.mrf.mxu0
        %v7309 = vadd.f32 0.0, %v7308
        %v7310 = vpop.f32.mrf.mxu0
        %7311 = vdwg.mxu0
        %7312 = vmatpush.bf16.msra.mxu0 0
        %7313 = vmatpush.bf16.msra.mxu0 0
        %7314 = vmatpush.bf16.msra.mxu0 0
        %7315 = vmatpush.bf16.msra.mxu0 0
        %7316 = vmatpush.bf16.msra.mxu0 0
        %7317 = vmatpush.bf16.msra.mxu0 0
        %7318 = vmatpush.bf16.msra.mxu0 0
        %7319 = vmatpush.bf16.msra.mxu0 %v7171
        %7320 = vmatmul.bf16.gmra.mxu0 %v7138
        %v7321 = vpop.f32.mrf.mxu0
        %v7322 = vadd.f32 0.0, %v7321
        %v7323 = vpop.f32.mrf.mxu0
        %7324 = vdwg.mxu0
        %7325 = vmatpush.bf16.msra.mxu0 0
        %7326 = vmatpush.bf16.msra.mxu0 0
        %7327 = vmatpush.bf16.msra.mxu0 0
        %7328 = vmatpush.bf16.msra.mxu0 0
        %7329 = vmatpush.bf16.msra.mxu0 0
        %7330 = vmatpush.bf16.msra.mxu0 0
        %7331 = vmatpush.bf16.msra.mxu0 0
        %7332 = vmatpush.bf16.msra.mxu0 %v7174
        %7333 = vmatmul.bf16.gmra.mxu0 %v7138
        %v7334 = vpop.f32.mrf.mxu0
        %v7335 = vadd.f32 0.0, %v7334
        %v7336 = vpop.f32.mrf.mxu0
        %7337 = vdwg.mxu0
        %7338 = vmatpush.bf16.msra.mxu0 0
        %7339 = vmatpush.bf16.msra.mxu0 0
        %7340 = vmatpush.bf16.msra.mxu0 0
        %7341 = vmatpush.bf16.msra.mxu0 0
        %7342 = vmatpush.bf16.msra.mxu0 0
        %7343 = vmatpush.bf16.msra.mxu0 0
        %7344 = vmatpush.bf16.msra.mxu0 0
        %7345 = vmatpush.bf16.msra.mxu0 %v7177
        %7346 = vmatmul.bf16.gmra.mxu0 %v7138
        %v7347 = vpop.f32.mrf.mxu0
        %v7348 = vadd.f32 0.0, %v7347
        %v7349 = vpop.f32.mrf.mxu0
        %7350 = vdwg.mxu0
        %7351 = vmatpush.bf16.msra.mxu0 0
        %7352 = vmatpush.bf16.msra.mxu0 0
        %7353 = vmatpush.bf16.msra.mxu0 0
        %7354 = vmatpush.bf16.msra.mxu0 0
        %7355 = vmatpush.bf16.msra.mxu0 0
        %7356 = vmatpush.bf16.msra.mxu0 0
        %7357 = vmatpush.bf16.msra.mxu0 0
        %7358 = vmatpush.bf16.msra.mxu0 %v7180
        %7359 = vmatmul.bf16.gmra.mxu0 %v7138
        %v7360 = vpop.f32.mrf.mxu0
        %v7361 = vadd.f32 0.0, %v7360
        %v7362 = vpop.f32.mrf.mxu0
        %7363 = vdwg.mxu0
        %v7364 = vadd.f32 %v7076, %v7192
        %v7365 = vadd.f32 %v7077, %v7205
        %v7366 = vadd.f32 %v7078, %v7218
        %v7367 = vadd.f32 %v7079, %v7231
        %v7368 = vadd.f32 %v7080, %v7244
        %v7369 = vadd.f32 %v7081, %v7257
        %v7370 = vadd.f32 %v7082, %v7270
        %v7371 = vadd.f32 %v7083, %v7283
        %v7372 = vadd.f32 %v7084, %v7296
        %v7373 = vadd.f32 %v7085, %v7309
        %v7374 = vadd.f32 %v7086, %v7322
        %v7375 = vadd.f32 %v7087, %v7335
        %v7376 = vadd.f32 %v7088, %v7348
        %v7377 = vadd.f32 %v7089, %v7361
        %v7378 = vld [vmem:[%s1 + $0xc8] sm:$0xff]
        %v7379 = vpack.c.bf16 %v7378, %v7378
        %7380 = vrot.lane.b32.xlu0 %v235, 71
        %v7381 = vpop.permute.xlu0 %7380
        %7382 = vrot.lane.b32.xlu0 %v236, 71
        %v7383 = vpop.permute.xlu0 %7382
        %7384 = vrot.lane.b32.xlu0 %v237, 71
        %v7385 = vpop.permute.xlu0 %7384
        %7386 = vrot.lane.b32.xlu0 %v238, 71
        %v7387 = vpop.permute.xlu0 %7386
        %7388 = vrot.lane.b32.xlu0 %v239, 71
        %v7389 = vpop.permute.xlu0 %7388
        %7390 = vrot.lane.b32.xlu0 %v240, 71
        %v7391 = vpop.permute.xlu0 %7390
        %7392 = vrot.lane.b32.xlu0 %v241, 71
        %v7393 = vpop.permute.xlu0 %7392
        %7394 = vrot.lane.b32.xlu0 %v242, 71
        %v7395 = vpop.permute.xlu0 %7394
        %7396 = vrot.lane.b32.xlu0 %v243, 71
        %v7397 = vpop.permute.xlu0 %7396
        %7398 = vrot.lane.b32.xlu0 %v244, 71
        %v7399 = vpop.permute.xlu0 %7398
        %7400 = vrot.lane.b32.xlu0 %v245, 71
        %v7401 = vpop.permute.xlu0 %7400
        %7402 = vrot.lane.b32.xlu0 %v246, 71
        %v7403 = vpop.permute.xlu0 %7402
        %7404 = vrot.lane.b32.xlu0 %v247, 71
        %v7405 = vpop.permute.xlu0 %7404
        %7406 = vrot.lane.b32.xlu0 %v2769, 71
        %v7407 = vpop.permute.xlu0 %7406
        %7408 = vrot.lane.b32.xlu0 %v5363, 71
        %v7409 = vpop.permute.xlu0 %7408
        %vm7410 = vcmask 580608
        %v7411 = vsel %vm7410, %v7381, %v7383
        %v7412 = vsel %vm7410, %v7383, %v7385
        %v7413 = vsel %vm7410, %v7385, %v7387
        %v7414 = vsel %vm7410, %v7387, %v7389
        %v7415 = vsel %vm7410, %v7389, %v7391
        %v7416 = vsel %vm7410, %v7391, %v7393
        %v7417 = vsel %vm7410, %v7393, %v7395
        %v7418 = vsel %vm7410, %v7395, %v7397
        %v7419 = vsel %vm7410, %v7397, %v7399
        %v7420 = vsel %vm7410, %v7399, %v7401
        %v7421 = vsel %vm7410, %v7401, %v7403
        %v7422 = vsel %vm7410, %v7403, %v7405
        %v7423 = vsel %vm7410, %v7405, %v7407
        %v7424 = vsel %vm7410, %v7407, %v7409
        %v7426 = vsel %vm293, %v7379, 0
        %v7429 = vsel %vm297, %v7411, 0
        %v7432 = vsel %vm297, %v7412, 0
        %v7435 = vsel %vm297, %v7413, 0
        %v7438 = vsel %vm297, %v7414, 0
        %v7441 = vsel %vm297, %v7415, 0
        %v7444 = vsel %vm297, %v7416, 0
        %v7447 = vsel %vm297, %v7417, 0
        %v7450 = vsel %vm297, %v7418, 0
        %v7453 = vsel %vm297, %v7419, 0
        %v7456 = vsel %vm297, %v7420, 0
        %v7459 = vsel %vm297, %v7421, 0
        %v7462 = vsel %vm297, %v7422, 0
        %v7465 = vsel %vm297, %v7423, 0
        %v7468 = vsel %vm297, %v7424, 0
        %7470 = vmatpush.bf16.msra.mxu0 0
        %7471 = vmatpush.bf16.msra.mxu0 0
        %7472 = vmatpush.bf16.msra.mxu0 0
        %7473 = vmatpush.bf16.msra.mxu0 0
        %7474 = vmatpush.bf16.msra.mxu0 0
        %7475 = vmatpush.bf16.msra.mxu0 0
        %7476 = vmatpush.bf16.msra.mxu0 0
        %7477 = vmatpush.bf16.msra.mxu0 %v7429
        %7478 = vmatmul.bf16.gmra.mxu0 %v7426
        %v7479 = vpop.f32.mrf.mxu0
        %v7480 = vadd.f32 0.0, %v7479
        %v7481 = vpop.f32.mrf.mxu0
        %7482 = vdwg.mxu0
        %7483 = vmatpush.bf16.msra.mxu0 0
        %7484 = vmatpush.bf16.msra.mxu0 0
        %7485 = vmatpush.bf16.msra.mxu0 0
        %7486 = vmatpush.bf16.msra.mxu0 0
        %7487 = vmatpush.bf16.msra.mxu0 0
        %7488 = vmatpush.bf16.msra.mxu0 0
        %7489 = vmatpush.bf16.msra.mxu0 0
        %7490 = vmatpush.bf16.msra.mxu0 %v7432
        %7491 = vmatmul.bf16.gmra.mxu0 %v7426
        %v7492 = vpop.f32.mrf.mxu0
        %v7493 = vadd.f32 0.0, %v7492
        %v7494 = vpop.f32.mrf.mxu0
        %7495 = vdwg.mxu0
        %7496 = vmatpush.bf16.msra.mxu0 0
        %7497 = vmatpush.bf16.msra.mxu0 0
        %7498 = vmatpush.bf16.msra.mxu0 0
        %7499 = vmatpush.bf16.msra.mxu0 0
        %7500 = vmatpush.bf16.msra.mxu0 0
        %7501 = vmatpush.bf16.msra.mxu0 0
        %7502 = vmatpush.bf16.msra.mxu0 0
        %7503 = vmatpush.bf16.msra.mxu0 %v7435
        %7504 = vmatmul.bf16.gmra.mxu0 %v7426
        %v7505 = vpop.f32.mrf.mxu0
        %v7506 = vadd.f32 0.0, %v7505
        %v7507 = vpop.f32.mrf.mxu0
        %7508 = vdwg.mxu0
        %7509 = vmatpush.bf16.msra.mxu0 0
        %7510 = vmatpush.bf16.msra.mxu0 0
        %7511 = vmatpush.bf16.msra.mxu0 0
        %7512 = vmatpush.bf16.msra.mxu0 0
        %7513 = vmatpush.bf16.msra.mxu0 0
        %7514 = vmatpush.bf16.msra.mxu0 0
        %7515 = vmatpush.bf16.msra.mxu0 0
        %7516 = vmatpush.bf16.msra.mxu0 %v7438
        %7517 = vmatmul.bf16.gmra.mxu0 %v7426
        %v7518 = vpop.f32.mrf.mxu0
        %v7519 = vadd.f32 0.0, %v7518
        %v7520 = vpop.f32.mrf.mxu0
        %7521 = vdwg.mxu0
        %7522 = vmatpush.bf16.msra.mxu0 0
        %7523 = vmatpush.bf16.msra.mxu0 0
        %7524 = vmatpush.bf16.msra.mxu0 0
        %7525 = vmatpush.bf16.msra.mxu0 0
        %7526 = vmatpush.bf16.msra.mxu0 0
        %7527 = vmatpush.bf16.msra.mxu0 0
        %7528 = vmatpush.bf16.msra.mxu0 0
        %7529 = vmatpush.bf16.msra.mxu0 %v7441
        %7530 = vmatmul.bf16.gmra.mxu0 %v7426
        %v7531 = vpop.f32.mrf.mxu0
        %v7532 = vadd.f32 0.0, %v7531
        %v7533 = vpop.f32.mrf.mxu0
        %7534 = vdwg.mxu0
        %7535 = vmatpush.bf16.msra.mxu0 0
        %7536 = vmatpush.bf16.msra.mxu0 0
        %7537 = vmatpush.bf16.msra.mxu0 0
        %7538 = vmatpush.bf16.msra.mxu0 0
        %7539 = vmatpush.bf16.msra.mxu0 0
        %7540 = vmatpush.bf16.msra.mxu0 0
        %7541 = vmatpush.bf16.msra.mxu0 0
        %7542 = vmatpush.bf16.msra.mxu0 %v7444
        %7543 = vmatmul.bf16.gmra.mxu0 %v7426
        %v7544 = vpop.f32.mrf.mxu0
        %v7545 = vadd.f32 0.0, %v7544
        %v7546 = vpop.f32.mrf.mxu0
        %7547 = vdwg.mxu0
        %7548 = vmatpush.bf16.msra.mxu0 0
        %7549 = vmatpush.bf16.msra.mxu0 0
        %7550 = vmatpush.bf16.msra.mxu0 0
        %7551 = vmatpush.bf16.msra.mxu0 0
        %7552 = vmatpush.bf16.msra.mxu0 0
        %7553 = vmatpush.bf16.msra.mxu0 0
        %7554 = vmatpush.bf16.msra.mxu0 0
        %7555 = vmatpush.bf16.msra.mxu0 %v7447
        %7556 = vmatmul.bf16.gmra.mxu0 %v7426
        %v7557 = vpop.f32.mrf.mxu0
        %v7558 = vadd.f32 0.0, %v7557
        %v7559 = vpop.f32.mrf.mxu0
        %7560 = vdwg.mxu0
        %7561 = vmatpush.bf16.msra.mxu0 0
        %7562 = vmatpush.bf16.msra.mxu0 0
        %7563 = vmatpush.bf16.msra.mxu0 0
        %7564 = vmatpush.bf16.msra.mxu0 0
        %7565 = vmatpush.bf16.msra.mxu0 0
        %7566 = vmatpush.bf16.msra.mxu0 0
        %7567 = vmatpush.bf16.msra.mxu0 0
        %7568 = vmatpush.bf16.msra.mxu0 %v7450
        %7569 = vmatmul.bf16.gmra.mxu0 %v7426
        %v7570 = vpop.f32.mrf.mxu0
        %v7571 = vadd.f32 0.0, %v7570
        %v7572 = vpop.f32.mrf.mxu0
        %7573 = vdwg.mxu0
        %7574 = vmatpush.bf16.msra.mxu0 0
        %7575 = vmatpush.bf16.msra.mxu0 0
        %7576 = vmatpush.bf16.msra.mxu0 0
        %7577 = vmatpush.bf16.msra.mxu0 0
        %7578 = vmatpush.bf16.msra.mxu0 0
        %7579 = vmatpush.bf16.msra.mxu0 0
        %7580 = vmatpush.bf16.msra.mxu0 0
        %7581 = vmatpush.bf16.msra.mxu0 %v7453
        %7582 = vmatmul.bf16.gmra.mxu0 %v7426
        %v7583 = vpop.f32.mrf.mxu0
        %v7584 = vadd.f32 0.0, %v7583
        %v7585 = vpop.f32.mrf.mxu0
        %7586 = vdwg.mxu0
        %7587 = vmatpush.bf16.msra.mxu0 0
        %7588 = vmatpush.bf16.msra.mxu0 0
        %7589 = vmatpush.bf16.msra.mxu0 0
        %7590 = vmatpush.bf16.msra.mxu0 0
        %7591 = vmatpush.bf16.msra.mxu0 0
        %7592 = vmatpush.bf16.msra.mxu0 0
        %7593 = vmatpush.bf16.msra.mxu0 0
        %7594 = vmatpush.bf16.msra.mxu0 %v7456
        %7595 = vmatmul.bf16.gmra.mxu0 %v7426
        %v7596 = vpop.f32.mrf.mxu0
        %v7597 = vadd.f32 0.0, %v7596
        %v7598 = vpop.f32.mrf.mxu0
        %7599 = vdwg.mxu0
        %7600 = vmatpush.bf16.msra.mxu0 0
        %7601 = vmatpush.bf16.msra.mxu0 0
        %7602 = vmatpush.bf16.msra.mxu0 0
        %7603 = vmatpush.bf16.msra.mxu0 0
        %7604 = vmatpush.bf16.msra.mxu0 0
        %7605 = vmatpush.bf16.msra.mxu0 0
        %7606 = vmatpush.bf16.msra.mxu0 0
        %7607 = vmatpush.bf16.msra.mxu0 %v7459
        %7608 = vmatmul.bf16.gmra.mxu0 %v7426
        %v7609 = vpop.f32.mrf.mxu0
        %v7610 = vadd.f32 0.0, %v7609
        %v7611 = vpop.f32.mrf.mxu0
        %7612 = vdwg.mxu0
        %7613 = vmatpush.bf16.msra.mxu0 0
        %7614 = vmatpush.bf16.msra.mxu0 0
        %7615 = vmatpush.bf16.msra.mxu0 0
        %7616 = vmatpush.bf16.msra.mxu0 0
        %7617 = vmatpush.bf16.msra.mxu0 0
        %7618 = vmatpush.bf16.msra.mxu0 0
        %7619 = vmatpush.bf16.msra.mxu0 0
        %7620 = vmatpush.bf16.msra.mxu0 %v7462
        %7621 = vmatmul.bf16.gmra.mxu0 %v7426
        %v7622 = vpop.f32.mrf.mxu0
        %v7623 = vadd.f32 0.0, %v7622
        %v7624 = vpop.f32.mrf.mxu0
        %7625 = vdwg.mxu0
        %7626 = vmatpush.bf16.msra.mxu0 0
        %7627 = vmatpush.bf16.msra.mxu0 0
        %7628 = vmatpush.bf16.msra.mxu0 0
        %7629 = vmatpush.bf16.msra.mxu0 0
        %7630 = vmatpush.bf16.msra.mxu0 0
        %7631 = vmatpush.bf16.msra.mxu0 0
        %7632 = vmatpush.bf16.msra.mxu0 0
        %7633 = vmatpush.bf16.msra.mxu0 %v7465
        %7634 = vmatmul.bf16.gmra.mxu0 %v7426
        %v7635 = vpop.f32.mrf.mxu0
        %v7636 = vadd.f32 0.0, %v7635
        %v7637 = vpop.f32.mrf.mxu0
        %7638 = vdwg.mxu0
        %7639 = vmatpush.bf16.msra.mxu0 0
        %7640 = vmatpush.bf16.msra.mxu0 0
        %7641 = vmatpush.bf16.msra.mxu0 0
        %7642 = vmatpush.bf16.msra.mxu0 0
        %7643 = vmatpush.bf16.msra.mxu0 0
        %7644 = vmatpush.bf16.msra.mxu0 0
        %7645 = vmatpush.bf16.msra.mxu0 0
        %7646 = vmatpush.bf16.msra.mxu0 %v7468
        %7647 = vmatmul.bf16.gmra.mxu0 %v7426
        %v7648 = vpop.f32.mrf.mxu0
        %v7649 = vadd.f32 0.0, %v7648
        %v7650 = vpop.f32.mrf.mxu0
        %7651 = vdwg.mxu0
        %v7652 = vadd.f32 %v7364, %v7480
        %v7653 = vadd.f32 %v7365, %v7493
        %v7654 = vadd.f32 %v7366, %v7506
        %v7655 = vadd.f32 %v7367, %v7519
        %v7656 = vadd.f32 %v7368, %v7532
        %v7657 = vadd.f32 %v7369, %v7545
        %v7658 = vadd.f32 %v7370, %v7558
        %v7659 = vadd.f32 %v7371, %v7571
        %v7660 = vadd.f32 %v7372, %v7584
        %v7661 = vadd.f32 %v7373, %v7597
        %v7662 = vadd.f32 %v7374, %v7610
        %v7663 = vadd.f32 %v7375, %v7623
        %v7664 = vadd.f32 %v7376, %v7636
        %v7665 = vadd.f32 %v7377, %v7649
        %v7666 = vld [vmem:[%s1 + $0xd0] sm:$0xff]
        %v7667 = vpack.c.bf16 %v7666, %v7666
        %7668 = vrot.lane.b32.xlu0 %v235, 70
        %v7669 = vpop.permute.xlu0 %7668
        %7670 = vrot.lane.b32.xlu0 %v236, 70
        %v7671 = vpop.permute.xlu0 %7670
        %7672 = vrot.lane.b32.xlu0 %v237, 70
        %v7673 = vpop.permute.xlu0 %7672
        %7674 = vrot.lane.b32.xlu0 %v238, 70
        %v7675 = vpop.permute.xlu0 %7674
        %7676 = vrot.lane.b32.xlu0 %v239, 70
        %v7677 = vpop.permute.xlu0 %7676
        %7678 = vrot.lane.b32.xlu0 %v240, 70
        %v7679 = vpop.permute.xlu0 %7678
        %7680 = vrot.lane.b32.xlu0 %v241, 70
        %v7681 = vpop.permute.xlu0 %7680
        %7682 = vrot.lane.b32.xlu0 %v242, 70
        %v7683 = vpop.permute.xlu0 %7682
        %7684 = vrot.lane.b32.xlu0 %v243, 70
        %v7685 = vpop.permute.xlu0 %7684
        %7686 = vrot.lane.b32.xlu0 %v244, 70
        %v7687 = vpop.permute.xlu0 %7686
        %7688 = vrot.lane.b32.xlu0 %v245, 70
        %v7689 = vpop.permute.xlu0 %7688
        %7690 = vrot.lane.b32.xlu0 %v246, 70
        %v7691 = vpop.permute.xlu0 %7690
        %7692 = vrot.lane.b32.xlu0 %v247, 70
        %v7693 = vpop.permute.xlu0 %7692
        %7694 = vrot.lane.b32.xlu0 %v2769, 70
        %v7695 = vpop.permute.xlu0 %7694
        %7696 = vrot.lane.b32.xlu0 %v5363, 70
        %v7697 = vpop.permute.xlu0 %7696
        %vm7698 = vcmask 572416
        %v7699 = vsel %vm7698, %v7669, %v7671
        %v7700 = vsel %vm7698, %v7671, %v7673
        %v7701 = vsel %vm7698, %v7673, %v7675
        %v7702 = vsel %vm7698, %v7675, %v7677
        %v7703 = vsel %vm7698, %v7677, %v7679
        %v7704 = vsel %vm7698, %v7679, %v7681
        %v7705 = vsel %vm7698, %v7681, %v7683
        %v7706 = vsel %vm7698, %v7683, %v7685
        %v7707 = vsel %vm7698, %v7685, %v7687
        %v7708 = vsel %vm7698, %v7687, %v7689
        %v7709 = vsel %vm7698, %v7689, %v7691
        %v7710 = vsel %vm7698, %v7691, %v7693
        %v7711 = vsel %vm7698, %v7693, %v7695
        %v7712 = vsel %vm7698, %v7695, %v7697
        %v7714 = vsel %vm293, %v7667, 0
        %v7717 = vsel %vm297, %v7699, 0
        %v7720 = vsel %vm297, %v7700, 0
        %v7723 = vsel %vm297, %v7701, 0
        %v7726 = vsel %vm297, %v7702, 0
        %v7729 = vsel %vm297, %v7703, 0
        %v7732 = vsel %vm297, %v7704, 0
        %v7735 = vsel %vm297, %v7705, 0
        %v7738 = vsel %vm297, %v7706, 0
        %v7741 = vsel %vm297, %v7707, 0
        %v7744 = vsel %vm297, %v7708, 0
        %v7747 = vsel %vm297, %v7709, 0
        %v7750 = vsel %vm297, %v7710, 0
        %v7753 = vsel %vm297, %v7711, 0
        %v7756 = vsel %vm297, %v7712, 0
        %7758 = vmatpush.bf16.msra.mxu0 0
        %7759 = vmatpush.bf16.msra.mxu0 0
        %7760 = vmatpush.bf16.msra.mxu0 0
        %7761 = vmatpush.bf16.msra.mxu0 0
        %7762 = vmatpush.bf16.msra.mxu0 0
        %7763 = vmatpush.bf16.msra.mxu0 0
        %7764 = vmatpush.bf16.msra.mxu0 0
        %7765 = vmatpush.bf16.msra.mxu0 %v7717
        %7766 = vmatmul.bf16.gmra.mxu0 %v7714
        %v7767 = vpop.f32.mrf.mxu0
        %v7768 = vadd.f32 0.0, %v7767
        %v7769 = vpop.f32.mrf.mxu0
        %7770 = vdwg.mxu0
        %7771 = vmatpush.bf16.msra.mxu0 0
        %7772 = vmatpush.bf16.msra.mxu0 0
        %7773 = vmatpush.bf16.msra.mxu0 0
        %7774 = vmatpush.bf16.msra.mxu0 0
        %7775 = vmatpush.bf16.msra.mxu0 0
        %7776 = vmatpush.bf16.msra.mxu0 0
        %7777 = vmatpush.bf16.msra.mxu0 0
        %7778 = vmatpush.bf16.msra.mxu0 %v7720
        %7779 = vmatmul.bf16.gmra.mxu0 %v7714
        %v7780 = vpop.f32.mrf.mxu0
        %v7781 = vadd.f32 0.0, %v7780
        %v7782 = vpop.f32.mrf.mxu0
        %7783 = vdwg.mxu0
        %7784 = vmatpush.bf16.msra.mxu0 0
        %7785 = vmatpush.bf16.msra.mxu0 0
        %7786 = vmatpush.bf16.msra.mxu0 0
        %7787 = vmatpush.bf16.msra.mxu0 0
        %7788 = vmatpush.bf16.msra.mxu0 0
        %7789 = vmatpush.bf16.msra.mxu0 0
        %7790 = vmatpush.bf16.msra.mxu0 0
        %7791 = vmatpush.bf16.msra.mxu0 %v7723
        %7792 = vmatmul.bf16.gmra.mxu0 %v7714
        %v7793 = vpop.f32.mrf.mxu0
        %v7794 = vadd.f32 0.0, %v7793
        %v7795 = vpop.f32.mrf.mxu0
        %7796 = vdwg.mxu0
        %7797 = vmatpush.bf16.msra.mxu0 0
        %7798 = vmatpush.bf16.msra.mxu0 0
        %7799 = vmatpush.bf16.msra.mxu0 0
        %7800 = vmatpush.bf16.msra.mxu0 0
        %7801 = vmatpush.bf16.msra.mxu0 0
        %7802 = vmatpush.bf16.msra.mxu0 0
        %7803 = vmatpush.bf16.msra.mxu0 0
        %7804 = vmatpush.bf16.msra.mxu0 %v7726
        %7805 = vmatmul.bf16.gmra.mxu0 %v7714
        %v7806 = vpop.f32.mrf.mxu0
        %v7807 = vadd.f32 0.0, %v7806
        %v7808 = vpop.f32.mrf.mxu0
        %7809 = vdwg.mxu0
        %7810 = vmatpush.bf16.msra.mxu0 0
        %7811 = vmatpush.bf16.msra.mxu0 0
        %7812 = vmatpush.bf16.msra.mxu0 0
        %7813 = vmatpush.bf16.msra.mxu0 0
        %7814 = vmatpush.bf16.msra.mxu0 0
        %7815 = vmatpush.bf16.msra.mxu0 0
        %7816 = vmatpush.bf16.msra.mxu0 0
        %7817 = vmatpush.bf16.msra.mxu0 %v7729
        %7818 = vmatmul.bf16.gmra.mxu0 %v7714
        %v7819 = vpop.f32.mrf.mxu0
        %v7820 = vadd.f32 0.0, %v7819
        %v7821 = vpop.f32.mrf.mxu0
        %7822 = vdwg.mxu0
        %7823 = vmatpush.bf16.msra.mxu0 0
        %7824 = vmatpush.bf16.msra.mxu0 0
        %7825 = vmatpush.bf16.msra.mxu0 0
        %7826 = vmatpush.bf16.msra.mxu0 0
        %7827 = vmatpush.bf16.msra.mxu0 0
        %7828 = vmatpush.bf16.msra.mxu0 0
        %7829 = vmatpush.bf16.msra.mxu0 0
        %7830 = vmatpush.bf16.msra.mxu0 %v7732
        %7831 = vmatmul.bf16.gmra.mxu0 %v7714
        %v7832 = vpop.f32.mrf.mxu0
        %v7833 = vadd.f32 0.0, %v7832
        %v7834 = vpop.f32.mrf.mxu0
        %7835 = vdwg.mxu0
        %7836 = vmatpush.bf16.msra.mxu0 0
        %7837 = vmatpush.bf16.msra.mxu0 0
        %7838 = vmatpush.bf16.msra.mxu0 0
        %7839 = vmatpush.bf16.msra.mxu0 0
        %7840 = vmatpush.bf16.msra.mxu0 0
        %7841 = vmatpush.bf16.msra.mxu0 0
        %7842 = vmatpush.bf16.msra.mxu0 0
        %7843 = vmatpush.bf16.msra.mxu0 %v7735
        %7844 = vmatmul.bf16.gmra.mxu0 %v7714
        %v7845 = vpop.f32.mrf.mxu0
        %v7846 = vadd.f32 0.0, %v7845
        %v7847 = vpop.f32.mrf.mxu0
        %7848 = vdwg.mxu0
        %7849 = vmatpush.bf16.msra.mxu0 0
        %7850 = vmatpush.bf16.msra.mxu0 0
        %7851 = vmatpush.bf16.msra.mxu0 0
        %7852 = vmatpush.bf16.msra.mxu0 0
        %7853 = vmatpush.bf16.msra.mxu0 0
        %7854 = vmatpush.bf16.msra.mxu0 0
        %7855 = vmatpush.bf16.msra.mxu0 0
        %7856 = vmatpush.bf16.msra.mxu0 %v7738
        %7857 = vmatmul.bf16.gmra.mxu0 %v7714
        %v7858 = vpop.f32.mrf.mxu0
        %v7859 = vadd.f32 0.0, %v7858
        %v7860 = vpop.f32.mrf.mxu0
        %7861 = vdwg.mxu0
        %7862 = vmatpush.bf16.msra.mxu0 0
        %7863 = vmatpush.bf16.msra.mxu0 0
        %7864 = vmatpush.bf16.msra.mxu0 0
        %7865 = vmatpush.bf16.msra.mxu0 0
        %7866 = vmatpush.bf16.msra.mxu0 0
        %7867 = vmatpush.bf16.msra.mxu0 0
        %7868 = vmatpush.bf16.msra.mxu0 0
        %7869 = vmatpush.bf16.msra.mxu0 %v7741
        %7870 = vmatmul.bf16.gmra.mxu0 %v7714
        %v7871 = vpop.f32.mrf.mxu0
        %v7872 = vadd.f32 0.0, %v7871
        %v7873 = vpop.f32.mrf.mxu0
        %7874 = vdwg.mxu0
        %7875 = vmatpush.bf16.msra.mxu0 0
        %7876 = vmatpush.bf16.msra.mxu0 0
        %7877 = vmatpush.bf16.msra.mxu0 0
        %7878 = vmatpush.bf16.msra.mxu0 0
        %7879 = vmatpush.bf16.msra.mxu0 0
        %7880 = vmatpush.bf16.msra.mxu0 0
        %7881 = vmatpush.bf16.msra.mxu0 0
        %7882 = vmatpush.bf16.msra.mxu0 %v7744
        %7883 = vmatmul.bf16.gmra.mxu0 %v7714
        %v7884 = vpop.f32.mrf.mxu0
        %v7885 = vadd.f32 0.0, %v7884
        %v7886 = vpop.f32.mrf.mxu0
        %7887 = vdwg.mxu0
        %7888 = vmatpush.bf16.msra.mxu0 0
        %7889 = vmatpush.bf16.msra.mxu0 0
        %7890 = vmatpush.bf16.msra.mxu0 0
        %7891 = vmatpush.bf16.msra.mxu0 0
        %7892 = vmatpush.bf16.msra.mxu0 0
        %7893 = vmatpush.bf16.msra.mxu0 0
        %7894 = vmatpush.bf16.msra.mxu0 0
        %7895 = vmatpush.bf16.msra.mxu0 %v7747
        %7896 = vmatmul.bf16.gmra.mxu0 %v7714
        %v7897 = vpop.f32.mrf.mxu0
        %v7898 = vadd.f32 0.0, %v7897
        %v7899 = vpop.f32.mrf.mxu0
        %7900 = vdwg.mxu0
        %7901 = vmatpush.bf16.msra.mxu0 0
        %7902 = vmatpush.bf16.msra.mxu0 0
        %7903 = vmatpush.bf16.msra.mxu0 0
        %7904 = vmatpush.bf16.msra.mxu0 0
        %7905 = vmatpush.bf16.msra.mxu0 0
        %7906 = vmatpush.bf16.msra.mxu0 0
        %7907 = vmatpush.bf16.msra.mxu0 0
        %7908 = vmatpush.bf16.msra.mxu0 %v7750
        %7909 = vmatmul.bf16.gmra.mxu0 %v7714
        %v7910 = vpop.f32.mrf.mxu0
        %v7911 = vadd.f32 0.0, %v7910
        %v7912 = vpop.f32.mrf.mxu0
        %7913 = vdwg.mxu0
        %7914 = vmatpush.bf16.msra.mxu0 0
        %7915 = vmatpush.bf16.msra.mxu0 0
        %7916 = vmatpush.bf16.msra.mxu0 0
        %7917 = vmatpush.bf16.msra.mxu0 0
        %7918 = vmatpush.bf16.msra.mxu0 0
        %7919 = vmatpush.bf16.msra.mxu0 0
        %7920 = vmatpush.bf16.msra.mxu0 0
        %7921 = vmatpush.bf16.msra.mxu0 %v7753
        %7922 = vmatmul.bf16.gmra.mxu0 %v7714
        %v7923 = vpop.f32.mrf.mxu0
        %v7924 = vadd.f32 0.0, %v7923
        %v7925 = vpop.f32.mrf.mxu0
        %7926 = vdwg.mxu0
        %7927 = vmatpush.bf16.msra.mxu0 0
        %7928 = vmatpush.bf16.msra.mxu0 0
        %7929 = vmatpush.bf16.msra.mxu0 0
        %7930 = vmatpush.bf16.msra.mxu0 0
        %7931 = vmatpush.bf16.msra.mxu0 0
        %7932 = vmatpush.bf16.msra.mxu0 0
        %7933 = vmatpush.bf16.msra.mxu0 0
        %7934 = vmatpush.bf16.msra.mxu0 %v7756
        %7935 = vmatmul.bf16.gmra.mxu0 %v7714
        %v7936 = vpop.f32.mrf.mxu0
        %v7937 = vadd.f32 0.0, %v7936
        %v7938 = vpop.f32.mrf.mxu0
        %7939 = vdwg.mxu0
        %v7940 = vadd.f32 %v7652, %v7768
        %v7941 = vadd.f32 %v7653, %v7781
        %v7942 = vadd.f32 %v7654, %v7794
        %v7943 = vadd.f32 %v7655, %v7807
        %v7944 = vadd.f32 %v7656, %v7820
        %v7945 = vadd.f32 %v7657, %v7833
        %v7946 = vadd.f32 %v7658, %v7846
        %v7947 = vadd.f32 %v7659, %v7859
        %v7948 = vadd.f32 %v7660, %v7872
        %v7949 = vadd.f32 %v7661, %v7885
        %v7950 = vadd.f32 %v7662, %v7898
        %v7951 = vadd.f32 %v7663, %v7911
        %v7952 = vadd.f32 %v7664, %v7924
        %v7953 = vadd.f32 %v7665, %v7937
        %v7954 = vld [vmem:[%s2] sm:$0xff]
        %v7955 = vld [vmem:[%s2 + $0x8] sm:$0x3f]
        %v7958 = vperm.slane %v7954, 0
        %v7959 = vperm.slane %v7954, 1
        %v7960 = vperm.slane %v7954, 2
        %v7961 = vperm.slane %v7954, 3
        %v7962 = vperm.slane %v7954, 4
        %v7963 = vperm.slane %v7954, 5
        %v7964 = vperm.slane %v7954, 6
        %v7965 = vperm.slane %v7954, 7
        %v7966 = vperm.slane %v7955, 0
        %v7967 = vperm.slane %v7955, 1
        %v7968 = vperm.slane %v7955, 2
        %v7969 = vperm.slane %v7955, 3
        %v7970 = vperm.slane %v7955, 4
        %v7971 = vperm.slane %v7955, 5
        %v7986 = vmul.f32 %v7940, %v7958
        %v7987 = vmul.f32 %v7941, %v7959
        %v7988 = vmul.f32 %v7942, %v7960
        %v7989 = vmul.f32 %v7943, %v7961
        %v7990 = vmul.f32 %v7944, %v7962
        %v7991 = vmul.f32 %v7945, %v7963
        %v7992 = vmul.f32 %v7946, %v7964
        %v7993 = vmul.f32 %v7947, %v7965
        %v7994 = vmul.f32 %v7948, %v7966
        %v7995 = vmul.f32 %v7949, %v7967
        %v7996 = vmul.f32 %v7950, %v7968
        %v7997 = vmul.f32 %v7951, %v7969
        %v7998 = vmul.f32 %v7952, %v7970
        %v7999 = vmul.f32 %v7953, %v7971
        %v8000 = vadd.f32 %v7986, %v7987
        %v8001 = vadd.f32 %v8000, %v7988
        %v8002 = vadd.f32 %v8001, %v7989
        %v8003 = vadd.f32 %v8002, %v7990
        %v8004 = vadd.f32 %v8003, %v7991
        %v8005 = vadd.f32 %v8004, %v7992
        %v8006 = vadd.f32 %v8005, %v7993
        %v8007 = vadd.f32 %v8006, %v7994
        %v8008 = vadd.f32 %v8007, %v7995
        %v8009 = vadd.f32 %v8008, %v7996
        %v8010 = vadd.f32 %v8009, %v7997
        %v8011 = vadd.f32 %v8010, %v7998
        %v8012 = vadd.f32 %v8011, %v7999
        %8013 = vadd.xlane.f32.xlu0 %v8012
        %v8014 = vpop.xlane.xlu0 %8013
        %v8015 = vmul.f32 %v8014, 0.001
        %v8016 = vsub.f32 %v7940, %v8015
        %v8017 = vsub.f32 %v7941, %v8015
        %v8018 = vsub.f32 %v7942, %v8015
        %v8019 = vsub.f32 %v7943, %v8015
        %v8020 = vsub.f32 %v7944, %v8015
        %v8021 = vsub.f32 %v7945, %v8015
        %v8022 = vsub.f32 %v7946, %v8015
        %v8023 = vsub.f32 %v7947, %v8015
        %v8024 = vsub.f32 %v7948, %v8015
        %v8025 = vsub.f32 %v7949, %v8015
        %v8026 = vsub.f32 %v7950, %v8015
        %v8027 = vsub.f32 %v7951, %v8015
        %v8028 = vsub.f32 %v7952, %v8015
        %v8029 = vsub.f32 %v7953, %v8015
        %v8030 = vmul.f32 %v8016, %v8016
        %v8031 = vmul.f32 %v8017, %v8017
        %v8032 = vmul.f32 %v8018, %v8018
        %v8033 = vmul.f32 %v8019, %v8019
        %v8034 = vmul.f32 %v8020, %v8020
        %v8035 = vmul.f32 %v8021, %v8021
        %v8036 = vmul.f32 %v8022, %v8022
        %v8037 = vmul.f32 %v8023, %v8023
        %v8038 = vmul.f32 %v8024, %v8024
        %v8039 = vmul.f32 %v8025, %v8025
        %v8040 = vmul.f32 %v8026, %v8026
        %v8041 = vmul.f32 %v8027, %v8027
        %v8042 = vmul.f32 %v8028, %v8028
        %v8043 = vmul.f32 %v8029, %v8029
        %v8044 = vmul.f32 %v8030, %v7958
        %v8045 = vmul.f32 %v8031, %v7959
        %v8046 = vmul.f32 %v8032, %v7960
        %v8047 = vmul.f32 %v8033, %v7961
        %v8048 = vmul.f32 %v8034, %v7962
        %v8049 = vmul.f32 %v8035, %v7963
        %v8050 = vmul.f32 %v8036, %v7964
        %v8051 = vmul.f32 %v8037, %v7965
        %v8052 = vmul.f32 %v8038, %v7966
        %v8053 = vmul.f32 %v8039, %v7967
        %v8054 = vmul.f32 %v8040, %v7968
        %v8055 = vmul.f32 %v8041, %v7969
        %v8056 = vmul.f32 %v8042, %v7970
        %v8057 = vmul.f32 %v8043, %v7971
        %v8058 = vadd.f32 %v8044, %v8045
        %v8059 = vadd.f32 %v8058, %v8046
        %v8060 = vadd.f32 %v8059, %v8047
        %v8061 = vadd.f32 %v8060, %v8048
        %v8062 = vadd.f32 %v8061, %v8049
        %v8063 = vadd.f32 %v8062, %v8050
        %v8064 = vadd.f32 %v8063, %v8051
        %v8065 = vadd.f32 %v8064, %v8052
        %v8066 = vadd.f32 %v8065, %v8053
        %v8067 = vadd.f32 %v8066, %v8054
        %v8068 = vadd.f32 %v8067, %v8055
        %v8069 = vadd.f32 %v8068, %v8056
        %v8070 = vadd.f32 %v8069, %v8057
        %8071 = vadd.xlane.f32.xlu0 %v8070
        %v8072 = vpop.xlane.xlu0 %8071
        %v8073 = vmul.f32 %v8072, 0.001
        %v8074 = vld [vmem:[%s3] sm:$0xff]
        %v8075 = vadd.f32 %v8073, 1e-05
        %v8076 = vrsqrt.pop %v8075
        %v8077 = vmul.f32 %v8076, %v8075
        %v8078 = vmul.f32 %v8077, %v8076
        %v8079 = vmul.f32 0.5, %v8078
        %v8080 = vsub.f32 1.5, %v8079
        %v8081 = vmul.f32 %v8076, %v8080
        %vm8082 = vweird.f32 %v8075
        %vm8083 = vweird.f32 %v8076
        %vm8084 = vmor %vm8082, %vm8083
        %v8085 = vsel %vm8084, %v8076, %v8081
        %v8086 = vmul.f32 %v8016, %v8085
        %v8087 = vmul.f32 %v8017, %v8085
        %v8088 = vmul.f32 %v8018, %v8085
        %v8089 = vmul.f32 %v8019, %v8085
        %v8090 = vmul.f32 %v8020, %v8085
        %v8091 = vmul.f32 %v8021, %v8085
        %v8092 = vmul.f32 %v8022, %v8085
        %v8093 = vmul.f32 %v8023, %v8085
        %v8094 = vmul.f32 %v8024, %v8085
        %v8095 = vmul.f32 %v8025, %v8085
        %v8096 = vmul.f32 %v8026, %v8085
        %v8097 = vmul.f32 %v8027, %v8085
        %v8098 = vmul.f32 %v8028, %v8085
        %v8099 = vmul.f32 %v8029, %v8085
        %8101 = vset.pattern.permute.xlu0 0
        %8102 = vperm.xlu0 %8101, %v8074
        %v8103 = vpop.permute.xlu0 %8102
        %v8105 = vmul.f32 %v8086, %v8103
        %v8106 = vmul.f32 %v8087, %v8103
        %v8107 = vmul.f32 %v8088, %v8103
        %v8108 = vmul.f32 %v8089, %v8103
        %v8109 = vmul.f32 %v8090, %v8103
        %v8110 = vmul.f32 %v8091, %v8103
        %v8111 = vmul.f32 %v8092, %v8103
        %v8112 = vmul.f32 %v8093, %v8103
        %v8113 = vmul.f32 %v8094, %v8103
        %v8114 = vmul.f32 %v8095, %v8103
        %v8115 = vmul.f32 %v8096, %v8103
        %v8116 = vmul.f32 %v8097, %v8103
        %v8117 = vmul.f32 %v8098, %v8103
        %v8118 = vmul.f32 %v8099, %v8103
        %8119 = vset.pattern.permute.xlu0 1
        %8120 = vperm.xlu0 %8119, %v8074
        %v8121 = vpop.permute.xlu0 %8120
        %v8123 = vadd.f32 %v8105, %v8121
        %v8124 = vadd.f32 %v8106, %v8121
        %v8125 = vadd.f32 %v8107, %v8121
        %v8126 = vadd.f32 %v8108, %v8121
        %v8127 = vadd.f32 %v8109, %v8121
        %v8128 = vadd.f32 %v8110, %v8121
        %v8129 = vadd.f32 %v8111, %v8121
        %v8130 = vadd.f32 %v8112, %v8121
        %v8131 = vadd.f32 %v8113, %v8121
        %v8132 = vadd.f32 %v8114, %v8121
        %v8133 = vadd.f32 %v8115, %v8121
        %v8134 = vadd.f32 %v8116, %v8121
        %v8135 = vadd.f32 %v8117, %v8121
        %v8136 = vadd.f32 %v8118, %v8121
        %vm8137 = vcmp.ge.f32.partialorder %v8123, 0.0
        %vm8138 = vcmp.ge.f32.partialorder %v8124, 0.0
        %vm8139 = vcmp.ge.f32.partialorder %v8125, 0.0
        %vm8140 = vcmp.ge.f32.partialorder %v8126, 0.0
        %vm8141 = vcmp.ge.f32.partialorder %v8127, 0.0
        %vm8142 = vcmp.ge.f32.partialorder %v8128, 0.0
        %vm8143 = vcmp.ge.f32.partialorder %v8129, 0.0
        %vm8144 = vcmp.ge.f32.partialorder %v8130, 0.0
        %vm8145 = vcmp.ge.f32.partialorder %v8131, 0.0
        %vm8146 = vcmp.ge.f32.partialorder %v8132, 0.0
        %vm8147 = vcmp.ge.f32.partialorder %v8133, 0.0
        %vm8148 = vcmp.ge.f32.partialorder %v8134, 0.0
        %vm8149 = vcmp.ge.f32.partialorder %v8135, 0.0
        %vm8150 = vcmp.ge.f32.partialorder %v8136, 0.0
        %8151 = vset.pattern.permute.xlu0 2
        %8152 = vperm.xlu0 %8151, %v8074
        %v8153 = vpop.permute.xlu0 %8152
        %v8155 = vmul.f32 %v8153, %v8123
        %v8156 = vmul.f32 %v8153, %v8124
        %v8157 = vmul.f32 %v8153, %v8125
        %v8158 = vmul.f32 %v8153, %v8126
        %v8159 = vmul.f32 %v8153, %v8127
        %v8160 = vmul.f32 %v8153, %v8128
        %v8161 = vmul.f32 %v8153, %v8129
        %v8162 = vmul.f32 %v8153, %v8130
        %v8163 = vmul.f32 %v8153, %v8131
        %v8164 = vmul.f32 %v8153, %v8132
        %v8165 = vmul.f32 %v8153, %v8133
        %v8166 = vmul.f32 %v8153, %v8134
        %v8167 = vmul.f32 %v8153, %v8135
        %v8168 = vmul.f32 %v8153, %v8136
        %v8169 = vsel %vm8137, %v8123, %v8155
        %v8170 = vsel %vm8138, %v8124, %v8156
        %v8171 = vsel %vm8139, %v8125, %v8157
        %v8172 = vsel %vm8140, %v8126, %v8158
        %v8173 = vsel %vm8141, %v8127, %v8159
        %v8174 = vsel %vm8142, %v8128, %v8160
        %v8175 = vsel %vm8143, %v8129, %v8161
        %v8176 = vsel %vm8144, %v8130, %v8162
        %v8177 = vsel %vm8145, %v8131, %v8163
        %v8178 = vsel %vm8146, %v8132, %v8164
        %v8179 = vsel %vm8147, %v8133, %v8165
        %v8180 = vsel %vm8148, %v8134, %v8166
        %v8181 = vsel %vm8149, %v8135, %v8167
        %v8182 = vsel %vm8150, %v8136, %v8168
        %v8183 = vmul.f32 %v8169, %v7958
        %v8184 = vmul.f32 %v8170, %v7959
        %v8185 = vmul.f32 %v8171, %v7960
        %v8186 = vmul.f32 %v8172, %v7961
        %v8187 = vmul.f32 %v8173, %v7962
        %v8188 = vmul.f32 %v8174, %v7963
        %v8189 = vmul.f32 %v8175, %v7964
        %v8190 = vmul.f32 %v8176, %v7965
        %v8191 = vmul.f32 %v8177, %v7966
        %v8192 = vmul.f32 %v8178, %v7967
        %v8193 = vmul.f32 %v8179, %v7968
        %v8194 = vmul.f32 %v8180, %v7969
        %v8195 = vmul.f32 %v8181, %v7970
        %v8196 = vmul.f32 %v8182, %v7971
        %8197 = vst [vmem:[%s190] sm:$0xff] 0
        %8198 = vst [vmem:[%s190 + $0x8] sm:$0xf] 0
        %v8199 = vpack.c.bf16 %v8184, %v8183
        %v8200 = vpack.c.bf16 %v8186, %v8185
        %v8201 = vpack.c.bf16 %v8188, %v8187
        %v8202 = vpack.c.bf16 %v8190, %v8189
        %v8203 = vpack.c.bf16 %v8192, %v8191
        %v8204 = vpack.c.bf16 %v8194, %v8193
        %v8205 = vpack.c.bf16 %v8196, %v8195
        %8206 = vst [vmem:[%s190 + $0xc] sm:$0xff] %v8199
        %8207 = vst [vmem:[%s190 + $0x14] sm:$0xff] %v8200
        %8208 = vst [vmem:[%s190 + $0x1c] sm:$0xff] %v8201
        %8209 = vst [vmem:[%s190 + $0x24] sm:$0xff] %v8202
        %8210 = vst [vmem:[%s190 + $0x2c] sm:$0xff] %v8203
        %8211 = vst [vmem:[%s190 + $0x34] sm:$0xff] %v8204
        %8212 = vst [vmem:[%s190 + $0x3c] sm:$0xff] %v8205
        %8213 = vst [vmem:[%s190 + $0x44] sm:$0xff] 0
        %8214 = vst [vmem:[%s190 + $0x4c] sm:$0xf] 0
        %s8215 = sand.u32 %s115, 1
        %s8216 = scalar_lea.sflag [#allocation3], %s8215
        %s8217 = sand.u32 %s115, 1
        %s8218 = smul.addr %s8217, 80
        %s8219 = scalar_lea.vmem [#allocation2], %s8218
        // Predicated region
        $region37: #{tpu_custom_call.1} parent=35 // pred_check
          %p8220 = pneg %p125
        $region38: #{tpu_custom_call.1} parent=35 // pred_check_branch
          %8222 = sbr.rel (%p8220) target = $region40
        $region39: #{tpu_custom_call.1} parent=35 // pred_region
          %8224 = vsyncadd %s8216, 0
          %s8225 = smul.addr %s18, 20
          %s8226 = smul.addr %s8225, 4
          %s8227 = scalar_lea.hbm %s4, %s8226
          %s8229 = sshll.u32 %s8219, 4
          %s8230 = int_to_ptr.vmem [resolvable:$true] %s8229
          %s8231 = sshll.u32 %s8227, 4
          %s8232 = int_to_ptr.hbm [resolvable:$true] %s8231
          %8234 = dma.vmem_to_hbm [thread:$0]  %s8230, 1280, %s8232, %s8216
        $region40: #{tpu_custom_call.1} parent=35 // pred_fallthru
          _
      $region36: #{tpu_custom_call.1} parent=5 // pred_fallthru
        _
      %p8235 = scmp.le.s32.totalorder 2, %s13
      // Predicated region
      $region41: #{tpu_custom_call.1} parent=5 // pred_check
        %p8236 = pneg %p8235
      $region42: #{tpu_custom_call.1} parent=5 // pred_check_branch
        %8238 = sbr.rel (%p8236) target = $region44
      $region43: #{tpu_custom_call.1} parent=5 // pred_region
        %s8239 = ssub.s32 %s13, 2
        // Predicated region
        $region45: #{tpu_custom_call.1} parent=43 // pred_check
          %p8240 = pneg %p131
        $region46: #{tpu_custom_call.1} parent=43 // pred_check_branch
          %8242 = sbr.rel (%p8240) target = $region48
        $region47: #{tpu_custom_call.1} parent=43 // pred_region
          %s8243 = sand.u32 %s116, 1
          %s8244 = scalar_lea.sflag [#allocation3], %s8243
          %s8245 = sand.u32 %s116, 1
          %s8246 = smul.addr %s8245, 80
          %s8247 = scalar_lea.vmem [#allocation2], %s8246
          %8249 = dma.done %s8244, 1280
        $region48: #{tpu_custom_call.1} parent=43 // pred_fallthru
          _
      $region44: #{tpu_custom_call.1} parent=5 // pred_fallthru
        _
    $region6: #{tpu_custom_call.1} parent=1 // loop_footer
      %s17 = sadd.s32 1, %s13
    $region7: #{tpu_custom_call.1} parent=1 // loop_footer_branch
      %12 = sbr.rel target = $region3
    $region8: #{tpu_custom_call.1} parent=1 // loop_exit
      _
    %8250 = vsyncpa [#allocation3], 1
    %s8251 = scalar_lea.sflag [#allocation3], 1
    %8252 = vsyncpa %s8251, 1

</llo_original>
